<compile_context>
chip_gen: v6e
topology: v6e:2x2x1
jax: 0.10.0
libtpu: 0.0.40
codegen_flags: <defaults>
</compile_context>

<pallas_src>
import numpy as np
import jax
import jax.numpy as jnp
from jax.experimental import pallas as pl
from jax.experimental.pallas import tpu as pltpu

# full-precision f32 matmuls everywhere (reference + wrapper folds + kernel trace default)
jax.config.update("jax_default_matmul_precision", "highest")

# ----------------------------- configuration ---------------------------------
B, S, C_IN, H, W = 2, 6, 16, 16, 16        # batch, seq_len, in_channels, height, width
N_HEAD, D_K, D_MODEL = 4, 4, 32            # attention heads, key dim, d_model
MLP_OUT = 16                               # mlp = [D_MODEL, MLP_OUT]
T_PE = 1000.0                              # positional-encoding period
EPS = 1e-5
TN = 128                                   # pixel tile (lane dim); multiple of 128.
                                           # Raise to 512-1024 at real H*W (v5e/v6e) to
                                           # amortize per-grid-step overhead; keep >=2 steps
                                           # per core for double buffering.

GS1 = C_IN // N_HEAD                       # group size of in_norm GroupNorm
GS2 = MLP_OUT // N_HEAD                    # group size of out_norm GroupNorm
D_PE = D_MODEL // N_HEAD                   # per-head positional-encoding dim
D_HEAD = D_MODEL // N_HEAD                 # per-head value dim
TEMP = float(np.sqrt(D_K))                 # softmax temperature
HI = jax.lax.Precision.HIGHEST


def _group_projector(channels, groups, count):
    """(channels, channels) map: row c sums the channels of group(c), scaled by 1/count."""
    gs = channels // groups
    m = np.zeros((channels, channels), np.float32)
    for g in range(groups):
        m[g * gs:(g + 1) * gs, g * gs:(g + 1) * gs] = 1.0 / float(count)
    return m


# ------------------------------- the kernel ----------------------------------
def ltae_kernel(x_ref, pe_ref, spe_ref, m1_ref, wall_ref, wm_ref, bm_ref,
                m2_ref, g2g_ref, g2b_ref, o_ref, attn_ref):
    f32 = jnp.float32
    x = x_ref[0]                                  # (S, C_IN, TN)  pixel-last, lane-dense
    s, c, tn = x.shape
    pe = pe_ref[0]                                # (S, D_MODEL, 1)  compact PE (+ folded biases)
    spe = spe_ref[0]                              # (S, N_HEAD, 1)   PE term of the scores
    d_model = pe.shape[1]
    n_head = spe.shape[1]
    d_head = d_model // n_head

    # ---- in_norm: GroupNorm(n_head groups) over (seq, group channels) per pixel ----
    # Single folded projector M1 (C_IN x C_IN) replaces the reduce+expand one-hot pair;
    # the 1/(S*group_size) factor is folded into M1.  Centered two-pass variance.
    xs = jnp.sum(x, axis=0)                                                   # (C, TN)
    mean_c = jnp.dot(m1_ref[...], xs, precision=HI, preferred_element_type=f32)
    d = x - mean_c[None]
    var_c = jnp.dot(m1_ref[...], jnp.sum(d * d, axis=0),
                    precision=HI, preferred_element_type=f32)
    xn = d * jax.lax.rsqrt(var_c + EPS)[None]                                 # (S, C, TN)
    # (GroupNorm gamma is folded into wall; GN beta + conv bias are folded into pe / spe.)

    # ---- fused inconv + score projection: one plain 2-D dot per time step ----
    # wall rows [0:d_model] -> conv output, rows [d_model:d_model+n_head] -> attention scores.
    w_all = wall_ref[...]                                                     # (D_MODEL+pad, C)
    h_list, sc_list = [], []
    for t in range(s):
        r = jnp.dot(w_all, xn[t], precision=HI, preferred_element_type=f32)   # (D_MODEL+pad, TN)
        h_list.append(r[:d_model] + pe[t])                                    # (D_MODEL, TN)
        sc_list.append(r[d_model:d_model + n_head] + spe[t])                  # (N_HEAD, TN)

    # ---- softmax over the sequence axis (exact divide; no approx reciprocal) ----
    smax = sc_list[0]
    for t in range(1, s):
        smax = jnp.maximum(smax, sc_list[t])
    e_list = [jnp.exp(sc_list[t] - smax) for t in range(s)]
    denom = e_list[0]
    for t in range(1, s):
        denom = denom + e_list[t]
    inv = 1.0 / denom
    a_list = [e * inv for e in e_list]                                        # S x (N_HEAD, TN)
    attn_ref[0] = jnp.concatenate(a_list, axis=0)                             # (S*N_HEAD, TN)

    # ---- per-head attention-weighted value sum (static 8-aligned head slices) ----
    heads = []
    for hh in range(n_head):
        lo = hh * d_head
        acc = a_list[0][hh:hh + 1] * h_list[0][lo:lo + d_head]
        for t in range(1, s):
            acc = acc + a_list[t][hh:hh + 1] * h_list[t][lo:lo + d_head]
        heads.append(acc)                                                     # (D_HEAD, TN)
    o_cat = jnp.concatenate(heads, axis=0)                                    # (D_MODEL, TN)

    # ---- MLP: Linear fused with eval-mode BatchNorm1d, then ReLU; dropout = identity ----
    m = jnp.dot(wm_ref[...], o_cat, precision=HI, preferred_element_type=f32) + bm_ref[...]
    m = jnp.maximum(m, 0.0)                                                   # (MLP_OUT, TN)

    # ---- out_norm: GroupNorm(n_head groups) over channels per pixel ----
    mc = jnp.dot(m2_ref[...], m, precision=HI, preferred_element_type=f32)
    d2 = m - mc
    vc = jnp.dot(m2_ref[...], d2 * d2, precision=HI, preferred_element_type=f32)
    y = d2 * jax.lax.rsqrt(vc + EPS)
    o_ref[0] = y * g2g_ref[...] + g2b_ref[...]


# ------------------------------- wrapper --------------------------------------
def ltae2d_pallas(x, batch_positions, p):
    b, s, c, h, w = x.shape
    hw = h * w
    assert hw % TN == 0 and TN % 128 == 0

    # --- parameter folding (exact, wrapper-side glue) ---
    wc_eff = p["wc"] * p["gn1_g"][None, :]                        # (D_MODEL, C_IN)
    bc_eff = p["wc"] @ p["gn1_b"] + p["bc"]                       # (D_MODEL,)

    # fused key projection + per-head query (+ 1/temperature); key bias is softmax-invariant
    wk3 = p["wk"].reshape(N_HEAD, D_K, D_MODEL)
    w_score = jnp.einsum('hk,hkd->hd', p["Q"], wk3) / TEMP        # (N_HEAD, D_MODEL)

    # single fused conv + score weight (score rows padded so total rows are a multiple of 8)
    pad = (-(D_MODEL + N_HEAD)) % 8
    w_all = jnp.concatenate(
        [wc_eff, w_score @ wc_eff, jnp.zeros((pad, c), jnp.float32)], axis=0)  # (D_MODEL+NH+pad, C)

    # compact positional encoding per (batch, seq); conv bias + gn1 beta folded in
    denom = (T_PE ** (2 * (np.arange(D_PE) // 2) / D_PE)).astype(np.float32)
    even = (np.arange(D_PE) % 2) == 0
    ang = batch_positions[:, :, None] / denom[None, None, :]      # (B, S, D_PE)
    pe = jnp.where(even[None, None, :], jnp.sin(ang), jnp.cos(ang))
    pe = jnp.tile(pe, (1, 1, N_HEAD)) + bc_eff[None, None, :]     # (B, S, D_MODEL)
    spe = jnp.einsum('hd,bsd->bsh', w_score, pe)                  # (B, S, N_HEAD)
    pe_in = pe[..., None]                                         # (B, S, D_MODEL, 1)
    spe_in = spe[..., None]                                       # (B, S, N_HEAD, 1)

    # MLP linear fused with eval-mode BatchNorm1d
    s_bn = p["bn_g"] / jnp.sqrt(p["bn_rv"] + EPS)
    wm_eff = p["wm"] * s_bn[:, None]                              # (MLP_OUT, D_MODEL)
    bm_eff = ((p["bm"] - p["bn_rm"]) * s_bn + p["bn_b"]).reshape(MLP_OUT, 1)

    # folded GroupNorm projectors (reduce + expand in one matrix, 1/count included)
    m1 = jnp.asarray(_group_projector(c, N_HEAD, s * GS1))        # (C_IN, C_IN)
    m2 = jnp.asarray(_group_projector(MLP_OUT, N_HEAD, GS2))      # (MLP_OUT, MLP_OUT)

    # lane-dense pixel layout with NO HBM transpose: (B, S, C, H*W) is a free reshape
    x_flat = x.reshape(b, s, c, hw)

    args = [x_flat, pe_in, spe_in, m1, w_all, wm_eff, bm_eff, m2,
            p["gn2_g"].reshape(MLP_OUT, 1), p["gn2_b"].reshape(MLP_OUT, 1)]

    def rep_spec(a):
        nd = a.ndim
        return pl.BlockSpec(tuple(a.shape), lambda i, j, _nd=nd: (0,) * _nd)

    in_specs = [
        pl.BlockSpec((1, s, c, TN), lambda i, j: (i, 0, 0, j)),
        pl.BlockSpec((1, s, D_MODEL, 1), lambda i, j: (i, 0, 0, 0)),
        pl.BlockSpec((1, s, N_HEAD, 1), lambda i, j: (i, 0, 0, 0)),
    ] + [rep_spec(a) for a in args[3:]]

    out_specs = [
        pl.BlockSpec((1, MLP_OUT, TN), lambda i, j: (i, 0, j)),
        pl.BlockSpec((1, s * N_HEAD, TN), lambda i, j: (i, 0, j)),
    ]
    out_shape = [
        jax.ShapeDtypeStruct((b, MLP_OUT, hw), jnp.float32),
        jax.ShapeDtypeStruct((b, s * N_HEAD, hw), jnp.float32),
    ]

    o, attn = pl.pallas_call(
        ltae_kernel,
        grid=(b, hw // TN),
        in_specs=in_specs,
        out_specs=out_specs,
        out_shape=out_shape,
        compiler_params=pltpu.CompilerParams(
            dimension_semantics=("parallel", "parallel")),
    )(*args)

    out_map = o.reshape(b, MLP_OUT, h, w)                                   # (B, C_out, H, W) — free
    attn_map = attn.reshape(b, s, N_HEAD, h, w).transpose(2, 0, 1, 3, 4)    # (NH, B, S, H, W) — tiny
    return out_map, attn_map


# ----------------------- pure-JAX reference (for checking) --------------------
def ltae2d_reference(x, batch_positions, p):
    b, s, c, h, w = x.shape
    n = b * h * w
    out = jnp.transpose(x, (0, 3, 4, 1, 2)).reshape(n, s, c)
    # in_norm
    xr = out.reshape(n, s, N_HEAD, GS1)
    mu = xr.mean(axis=(1, 3), keepdims=True)
    var = ((xr - mu) ** 2).mean(axis=(1, 3), keepdims=True)
    xr = (xr - mu) / jnp.sqrt(var + EPS)
    xr = xr * p["gn1_g"].reshape(1, 1, N_HEAD, GS1) + p["gn1_b"].reshape(1, 1, N_HEAD, GS1)
    out = xr.reshape(n, s, c)
    # inconv
    out = out @ p["wc"].T + p["bc"]
    # positional encoding
    denom = (T_PE ** (2 * (np.arange(D_PE) // 2) / D_PE)).astype(np.float32)
    bp = jnp.broadcast_to(batch_positions[:, None, None, :], (b, h, w, s)).reshape(n, s)
    ang = bp[:, :, None] / denom[None, None, :]
    pe = jnp.where((np.arange(D_PE) % 2) == 0, jnp.sin(ang), jnp.cos(ang))
    out = out + jnp.concatenate([pe] * N_HEAD, axis=-1)
    # attention
    k = out @ p["wk"].T + p["bk"]
    heads, attns = [], []
    for hh in range(N_HEAD):
        kh = k[:, :, hh * D_K:(hh + 1) * D_K]
        sc = (kh * p["Q"][hh][None, None, :]).sum(-1) / TEMP
        a = jax.nn.softmax(sc, axis=1)
        vh = out[:, :, hh * D_HEAD:(hh + 1) * D_HEAD]
        heads.append((a[:, :, None] * vh).sum(1))
        attns.append(a)
    o = jnp.concatenate(heads, axis=-1)
    attn = jnp.stack(attns, axis=0)                                   # (NH, N, S)
    # MLP + BN(eval) + ReLU
    m = o @ p["wm"].T + p["bm"]
    m = (m - p["bn_rm"]) / jnp.sqrt(p["bn_rv"] + EPS) * p["bn_g"] + p["bn_b"]
    m = jnp.maximum(m, 0.0)
    # out_norm
    mr = m.reshape(n, N_HEAD, GS2)
    mu2 = mr.mean(axis=2, keepdims=True)
    v2 = ((mr - mu2) ** 2).mean(axis=2, keepdims=True)
    mr = (mr - mu2) / jnp.sqrt(v2 + EPS)
    mr = mr * p["gn2_g"].reshape(1, N_HEAD, GS2) + p["gn2_b"].reshape(1, N_HEAD, GS2)
    m = mr.reshape(n, MLP_OUT)
    out_map = m.reshape(b, h, w, MLP_OUT).transpose(0, 3, 1, 2)
    attn_map = attn.reshape(N_HEAD, b, h, w, s).transpose(0, 1, 4, 2, 3)
    return out_map, attn_map


# ------------------------------------ main ------------------------------------
if __name__ == "__main__":
    key = jax.random.PRNGKey(0)
    keys = jax.random.split(key, 16)

    x = jax.random.normal(keys[0], (B, S, C_IN, H, W), dtype=jnp.float32)
    base = jnp.arange(S, dtype=jnp.float32) * 3.0
    batch_positions = jnp.stack([base, base + 7.0], axis=0)            # (B, S)

    params = {
        "gn1_g": 1.0 + 0.1 * jax.random.normal(keys[8], (C_IN,), dtype=jnp.float32),
        "gn1_b": 0.1 * jax.random.normal(keys[9], (C_IN,), dtype=jnp.float32),
        "wc": 0.2 * jax.random.normal(keys[1], (D_MODEL, C_IN), dtype=jnp.float32),
        "bc": 0.1 * jax.random.normal(keys[2], (D_MODEL,), dtype=jnp.float32),
        "Q": np.sqrt(2.0 / D_K) * jax.random.normal(keys[3], (N_HEAD, D_K), dtype=jnp.float32),
        "wk": np.sqrt(2.0 / D_K) * jax.random.normal(keys[4], (N_HEAD * D_K, D_MODEL), dtype=jnp.float32),
        "bk": 0.1 * jax.random.normal(keys[5], (N_HEAD * D_K,), dtype=jnp.float32),
        "wm": 0.2 * jax.random.normal(keys[6], (MLP_OUT, D_MODEL), dtype=jnp.float32),
        "bm": 0.1 * jax.random.normal(keys[7], (MLP_OUT,), dtype=jnp.float32),
        "bn_g": 1.0 + 0.1 * jax.random.normal(keys[10], (MLP_OUT,), dtype=jnp.float32),
        "bn_b": 0.1 * jax.random.normal(keys[11], (MLP_OUT,), dtype=jnp.float32),
        "bn_rm": 0.1 * jax.random.normal(keys[12], (MLP_OUT,), dtype=jnp.float32),
        "bn_rv": 1.0 + 0.1 * jnp.abs(jax.random.normal(keys[13], (MLP_OUT,), dtype=jnp.float32)),
        "gn2_g": 1.0 + 0.1 * jax.random.normal(keys[14], (MLP_OUT,), dtype=jnp.float32),
        "gn2_b": 0.1 * jax.random.normal(keys[15], (MLP_OUT,), dtype=jnp.float32),
    }

    out_k, attn_k = ltae2d_pallas(x, batch_positions, params)
    jax.block_until_ready((out_k, attn_k))

    out_r, attn_r = ltae2d_reference(x, batch_positions, params)
    np.testing.assert_allclose(np.asarray(out_k), np.asarray(out_r), rtol=2e-2, atol=2e-2)
    np.testing.assert_allclose(np.asarray(attn_k), np.asarray(attn_r), rtol=2e-2, atol=2e-2)

    print("KERNEL_OK")
</pallas_src>

<mosaic_0001>
module attributes {stable_mosaic.version = 11 : i64} {
  func.func @ltae_kernel(%arg0: i32, %arg1: i32, %arg2: memref<1x6x16x128xf32, #tpu.memory_space<vmem>>, %arg3: memref<1x6x32x1xf32, #tpu.memory_space<vmem>>, %arg4: memref<1x6x4x1xf32, #tpu.memory_space<vmem>>, %arg5: memref<16x16xf32, #tpu.memory_space<vmem>>, %arg6: memref<40x16xf32, #tpu.memory_space<vmem>>, %arg7: memref<16x32xf32, #tpu.memory_space<vmem>>, %arg8: memref<16x1xf32, #tpu.memory_space<vmem>>, %arg9: memref<16x16xf32, #tpu.memory_space<vmem>>, %arg10: memref<16x1xf32, #tpu.memory_space<vmem>>, %arg11: memref<16x1xf32, #tpu.memory_space<vmem>>, %arg12: memref<1x16x128xf32, #tpu.memory_space<vmem>>, %arg13: memref<1x24x128xf32, #tpu.memory_space<vmem>>) attributes {dimension_semantics = [#tpu.dimension_semantics<parallel>, #tpu.dimension_semantics<parallel>], iteration_bounds = array<i64: 2, 2>, scalar_prefetch = 0 : i64, scratch_operands = 0 : i64, tpu.core_type = #tpu.core_type<tc>, window_params = [{transform_indices = @transform_0, window_bounds = array<i64: 1, 6, 16, 128>}, {transform_indices = @transform_1, window_bounds = array<i64: 1, 6, 32, 1>}, {transform_indices = @transform_2, window_bounds = array<i64: 1, 6, 4, 1>}, {pipeline_mode = #tpu.pipeline_mode<synchronous>, transform_indices = @transform_3, window_bounds = array<i64: 16, 16>}, {pipeline_mode = #tpu.pipeline_mode<synchronous>, transform_indices = @transform_4, window_bounds = array<i64: 40, 16>}, {pipeline_mode = #tpu.pipeline_mode<synchronous>, transform_indices = @transform_5, window_bounds = array<i64: 16, 32>}, {pipeline_mode = #tpu.pipeline_mode<synchronous>, transform_indices = @transform_6, window_bounds = array<i64: 16, 1>}, {pipeline_mode = #tpu.pipeline_mode<synchronous>, transform_indices = @transform_7, window_bounds = array<i64: 16, 16>}, {pipeline_mode = #tpu.pipeline_mode<synchronous>, transform_indices = @transform_8, window_bounds = array<i64: 16, 1>}, {pipeline_mode = #tpu.pipeline_mode<synchronous>, transform_indices = @transform_9, window_bounds = array<i64: 16, 1>}, {transform_indices = @transform_10, window_bounds = array<i64: 1, 16, 128>}, {transform_indices = @transform_11, window_bounds = array<i64: 1, 24, 128>}]} {
    %c0 = arith.constant 0 : index
    %c0_0 = arith.constant 0 : index
    %c0_1 = arith.constant 0 : index
    %c0_2 = arith.constant 0 : index
    %0 = vector.load %arg2[%c0, %c0_0, %c0_1, %c0_2] : memref<1x6x16x128xf32, #tpu.memory_space<vmem>>, vector<1x6x16x128xf32>
    %1 = vector.shape_cast %0 : vector<1x6x16x128xf32> to vector<6x16x128xf32>
    %c0_3 = arith.constant 0 : index
    %c0_4 = arith.constant 0 : index
    %c0_5 = arith.constant 0 : index
    %c0_6 = arith.constant 0 : index
    %2 = vector.load %arg3[%c0_3, %c0_4, %c0_5, %c0_6] : memref<1x6x32x1xf32, #tpu.memory_space<vmem>>, vector<1x6x32x1xf32>
    %3 = vector.shape_cast %2 : vector<1x6x32x1xf32> to vector<6x32x1xf32>
    %c0_7 = arith.constant 0 : index
    %c0_8 = arith.constant 0 : index
    %c0_9 = arith.constant 0 : index
    %c0_10 = arith.constant 0 : index
    %4 = vector.load %arg4[%c0_7, %c0_8, %c0_9, %c0_10] : memref<1x6x4x1xf32, #tpu.memory_space<vmem>>, vector<1x6x4x1xf32>
    %5 = vector.shape_cast %4 : vector<1x6x4x1xf32> to vector<6x4x1xf32>
    %cst = arith.constant dense<0.000000e+00> : vector<16x128xf32>
    %6 = vector.multi_reduction <add>, %1, %cst [0] : vector<6x16x128xf32> to vector<16x128xf32>
    %c0_11 = arith.constant 0 : index
    %c0_12 = arith.constant 0 : index
    %7 = vector.load %arg5[%c0_11, %c0_12] : memref<16x16xf32, #tpu.memory_space<vmem>>, vector<16x16xf32>
    %cst_13 = arith.constant dense<0.000000e+00> : vector<16x128xf32>
    %8 = tpu.matmul %7, %6, %cst_13 {dimension_numbers = #tpu.dot_dimension_numbers<[1], [0], [0], [1], [0, 0, 1, 1], [], []>, precision = #tpu.contract_precision<fp32>} : vector<16x16xf32>, vector<16x128xf32>, vector<16x128xf32> -> vector<16x128xf32>
    %9 = vector.shape_cast %8 : vector<16x128xf32> to vector<1x16x128xf32>
    %10 = vector.broadcast %9 : vector<1x16x128xf32> to vector<6x16x128xf32>
    %11 = arith.subf %1, %10 : vector<6x16x128xf32>
    %c0_14 = arith.constant 0 : index
    %c0_15 = arith.constant 0 : index
    %12 = vector.load %arg5[%c0_14, %c0_15] : memref<16x16xf32, #tpu.memory_space<vmem>>, vector<16x16xf32>
    %13 = arith.mulf %11, %11 : vector<6x16x128xf32>
    %cst_16 = arith.constant dense<0.000000e+00> : vector<16x128xf32>
    %14 = vector.multi_reduction <add>, %13, %cst_16 [0] : vector<6x16x128xf32> to vector<16x128xf32>
    %cst_17 = arith.constant dense<0.000000e+00> : vector<16x128xf32>
    %15 = tpu.matmul %12, %14, %cst_17 {dimension_numbers = #tpu.dot_dimension_numbers<[1], [0], [0], [1], [0, 0, 1, 1], [], []>, precision = #tpu.contract_precision<fp32>} : vector<16x16xf32>, vector<16x128xf32>, vector<16x128xf32> -> vector<16x128xf32>
    %cst_18 = arith.constant 9.99999974E-6 : f32
    %16 = vector.broadcast %cst_18 : f32 to vector<16x128xf32>
    %17 = arith.addf %15, %16 : vector<16x128xf32>
    %18 = math.rsqrt %17 : vector<16x128xf32>
    %19 = vector.shape_cast %18 : vector<16x128xf32> to vector<1x16x128xf32>
    %20 = vector.broadcast %19 : vector<1x16x128xf32> to vector<6x16x128xf32>
    %21 = arith.mulf %11, %20 : vector<6x16x128xf32>
    %c0_19 = arith.constant 0 : index
    %c0_20 = arith.constant 0 : index
    %22 = vector.load %arg6[%c0_19, %c0_20] : memref<40x16xf32, #tpu.memory_space<vmem>>, vector<40x16xf32>
    %23 = vector.extract_strided_slice %21 {offsets = [0, 0, 0], sizes = [1, 16, 128], strides = [1, 1, 1]} : vector<6x16x128xf32> to vector<1x16x128xf32>
    %24 = vector.shape_cast %23 : vector<1x16x128xf32> to vector<16x128xf32>
    %cst_21 = arith.constant dense<0.000000e+00> : vector<40x128xf32>
    %25 = tpu.matmul %22, %24, %cst_21 {dimension_numbers = #tpu.dot_dimension_numbers<[1], [0], [0], [1], [0, 0, 1, 1], [], []>, precision = #tpu.contract_precision<fp32>} : vector<40x16xf32>, vector<16x128xf32>, vector<40x128xf32> -> vector<40x128xf32>
    %26 = vector.extract_strided_slice %25 {offsets = [0, 0], sizes = [32, 128], strides = [1, 1]} : vector<40x128xf32> to vector<32x128xf32>
    %27 = vector.extract_strided_slice %3 {offsets = [0, 0, 0], sizes = [1, 32, 1], strides = [1, 1, 1]} : vector<6x32x1xf32> to vector<1x32x1xf32>
    %28 = vector.shape_cast %27 : vector<1x32x1xf32> to vector<32x1xf32>
    %29 = vector.broadcast %28 : vector<32x1xf32> to vector<32x128xf32>
    %30 = arith.addf %26, %29 : vector<32x128xf32>
    %31 = vector.extract_strided_slice %25 {offsets = [32, 0], sizes = [4, 128], strides = [1, 1]} : vector<40x128xf32> to vector<4x128xf32>
    %32 = vector.extract_strided_slice %5 {offsets = [0, 0, 0], sizes = [1, 4, 1], strides = [1, 1, 1]} : vector<6x4x1xf32> to vector<1x4x1xf32>
    %33 = vector.shape_cast %32 : vector<1x4x1xf32> to vector<4x1xf32>
    %34 = vector.broadcast %33 : vector<4x1xf32> to vector<4x128xf32>
    %35 = arith.addf %31, %34 : vector<4x128xf32>
    %36 = vector.extract_strided_slice %21 {offsets = [1, 0, 0], sizes = [1, 16, 128], strides = [1, 1, 1]} : vector<6x16x128xf32> to vector<1x16x128xf32>
    %37 = vector.shape_cast %36 : vector<1x16x128xf32> to vector<16x128xf32>
    %cst_22 = arith.constant dense<0.000000e+00> : vector<40x128xf32>
    %38 = tpu.matmul %22, %37, %cst_22 {dimension_numbers = #tpu.dot_dimension_numbers<[1], [0], [0], [1], [0, 0, 1, 1], [], []>, precision = #tpu.contract_precision<fp32>} : vector<40x16xf32>, vector<16x128xf32>, vector<40x128xf32> -> vector<40x128xf32>
    %39 = vector.extract_strided_slice %38 {offsets = [0, 0], sizes = [32, 128], strides = [1, 1]} : vector<40x128xf32> to vector<32x128xf32>
    %40 = vector.extract_strided_slice %3 {offsets = [1, 0, 0], sizes = [1, 32, 1], strides = [1, 1, 1]} : vector<6x32x1xf32> to vector<1x32x1xf32>
    %41 = vector.shape_cast %40 : vector<1x32x1xf32> to vector<32x1xf32>
    %42 = vector.broadcast %41 : vector<32x1xf32> to vector<32x128xf32>
    %43 = arith.addf %39, %42 : vector<32x128xf32>
    %44 = vector.extract_strided_slice %38 {offsets = [32, 0], sizes = [4, 128], strides = [1, 1]} : vector<40x128xf32> to vector<4x128xf32>
    %45 = vector.extract_strided_slice %5 {offsets = [1, 0, 0], sizes = [1, 4, 1], strides = [1, 1, 1]} : vector<6x4x1xf32> to vector<1x4x1xf32>
    %46 = vector.shape_cast %45 : vector<1x4x1xf32> to vector<4x1xf32>
    %47 = vector.broadcast %46 : vector<4x1xf32> to vector<4x128xf32>
    %48 = arith.addf %44, %47 : vector<4x128xf32>
    %49 = vector.extract_strided_slice %21 {offsets = [2, 0, 0], sizes = [1, 16, 128], strides = [1, 1, 1]} : vector<6x16x128xf32> to vector<1x16x128xf32>
    %50 = vector.shape_cast %49 : vector<1x16x128xf32> to vector<16x128xf32>
    %cst_23 = arith.constant dense<0.000000e+00> : vector<40x128xf32>
    %51 = tpu.matmul %22, %50, %cst_23 {dimension_numbers = #tpu.dot_dimension_numbers<[1], [0], [0], [1], [0, 0, 1, 1], [], []>, precision = #tpu.contract_precision<fp32>} : vector<40x16xf32>, vector<16x128xf32>, vector<40x128xf32> -> vector<40x128xf32>
    %52 = vector.extract_strided_slice %51 {offsets = [0, 0], sizes = [32, 128], strides = [1, 1]} : vector<40x128xf32> to vector<32x128xf32>
    %53 = vector.extract_strided_slice %3 {offsets = [2, 0, 0], sizes = [1, 32, 1], strides = [1, 1, 1]} : vector<6x32x1xf32> to vector<1x32x1xf32>
    %54 = vector.shape_cast %53 : vector<1x32x1xf32> to vector<32x1xf32>
    %55 = vector.broadcast %54 : vector<32x1xf32> to vector<32x128xf32>
    %56 = arith.addf %52, %55 : vector<32x128xf32>
    %57 = vector.extract_strided_slice %51 {offsets = [32, 0], sizes = [4, 128], strides = [1, 1]} : vector<40x128xf32> to vector<4x128xf32>
    %58 = vector.extract_strided_slice %5 {offsets = [2, 0, 0], sizes = [1, 4, 1], strides = [1, 1, 1]} : vector<6x4x1xf32> to vector<1x4x1xf32>
    %59 = vector.shape_cast %58 : vector<1x4x1xf32> to vector<4x1xf32>
    %60 = vector.broadcast %59 : vector<4x1xf32> to vector<4x128xf32>
    %61 = arith.addf %57, %60 : vector<4x128xf32>
    %62 = vector.extract_strided_slice %21 {offsets = [3, 0, 0], sizes = [1, 16, 128], strides = [1, 1, 1]} : vector<6x16x128xf32> to vector<1x16x128xf32>
    %63 = vector.shape_cast %62 : vector<1x16x128xf32> to vector<16x128xf32>
    %cst_24 = arith.constant dense<0.000000e+00> : vector<40x128xf32>
    %64 = tpu.matmul %22, %63, %cst_24 {dimension_numbers = #tpu.dot_dimension_numbers<[1], [0], [0], [1], [0, 0, 1, 1], [], []>, precision = #tpu.contract_precision<fp32>} : vector<40x16xf32>, vector<16x128xf32>, vector<40x128xf32> -> vector<40x128xf32>
    %65 = vector.extract_strided_slice %64 {offsets = [0, 0], sizes = [32, 128], strides = [1, 1]} : vector<40x128xf32> to vector<32x128xf32>
    %66 = vector.extract_strided_slice %3 {offsets = [3, 0, 0], sizes = [1, 32, 1], strides = [1, 1, 1]} : vector<6x32x1xf32> to vector<1x32x1xf32>
    %67 = vector.shape_cast %66 : vector<1x32x1xf32> to vector<32x1xf32>
    %68 = vector.broadcast %67 : vector<32x1xf32> to vector<32x128xf32>
    %69 = arith.addf %65, %68 : vector<32x128xf32>
    %70 = vector.extract_strided_slice %64 {offsets = [32, 0], sizes = [4, 128], strides = [1, 1]} : vector<40x128xf32> to vector<4x128xf32>
    %71 = vector.extract_strided_slice %5 {offsets = [3, 0, 0], sizes = [1, 4, 1], strides = [1, 1, 1]} : vector<6x4x1xf32> to vector<1x4x1xf32>
    %72 = vector.shape_cast %71 : vector<1x4x1xf32> to vector<4x1xf32>
    %73 = vector.broadcast %72 : vector<4x1xf32> to vector<4x128xf32>
    %74 = arith.addf %70, %73 : vector<4x128xf32>
    %75 = vector.extract_strided_slice %21 {offsets = [4, 0, 0], sizes = [1, 16, 128], strides = [1, 1, 1]} : vector<6x16x128xf32> to vector<1x16x128xf32>
    %76 = vector.shape_cast %75 : vector<1x16x128xf32> to vector<16x128xf32>
    %cst_25 = arith.constant dense<0.000000e+00> : vector<40x128xf32>
    %77 = tpu.matmul %22, %76, %cst_25 {dimension_numbers = #tpu.dot_dimension_numbers<[1], [0], [0], [1], [0, 0, 1, 1], [], []>, precision = #tpu.contract_precision<fp32>} : vector<40x16xf32>, vector<16x128xf32>, vector<40x128xf32> -> vector<40x128xf32>
    %78 = vector.extract_strided_slice %77 {offsets = [0, 0], sizes = [32, 128], strides = [1, 1]} : vector<40x128xf32> to vector<32x128xf32>
    %79 = vector.extract_strided_slice %3 {offsets = [4, 0, 0], sizes = [1, 32, 1], strides = [1, 1, 1]} : vector<6x32x1xf32> to vector<1x32x1xf32>
    %80 = vector.shape_cast %79 : vector<1x32x1xf32> to vector<32x1xf32>
    %81 = vector.broadcast %80 : vector<32x1xf32> to vector<32x128xf32>
    %82 = arith.addf %78, %81 : vector<32x128xf32>
    %83 = vector.extract_strided_slice %77 {offsets = [32, 0], sizes = [4, 128], strides = [1, 1]} : vector<40x128xf32> to vector<4x128xf32>
    %84 = vector.extract_strided_slice %5 {offsets = [4, 0, 0], sizes = [1, 4, 1], strides = [1, 1, 1]} : vector<6x4x1xf32> to vector<1x4x1xf32>
    %85 = vector.shape_cast %84 : vector<1x4x1xf32> to vector<4x1xf32>
    %86 = vector.broadcast %85 : vector<4x1xf32> to vector<4x128xf32>
    %87 = arith.addf %83, %86 : vector<4x128xf32>
    %88 = vector.extract_strided_slice %21 {offsets = [5, 0, 0], sizes = [1, 16, 128], strides = [1, 1, 1]} : vector<6x16x128xf32> to vector<1x16x128xf32>
    %89 = vector.shape_cast %88 : vector<1x16x128xf32> to vector<16x128xf32>
    %cst_26 = arith.constant dense<0.000000e+00> : vector<40x128xf32>
    %90 = tpu.matmul %22, %89, %cst_26 {dimension_numbers = #tpu.dot_dimension_numbers<[1], [0], [0], [1], [0, 0, 1, 1], [], []>, precision = #tpu.contract_precision<fp32>} : vector<40x16xf32>, vector<16x128xf32>, vector<40x128xf32> -> vector<40x128xf32>
    %91 = vector.extract_strided_slice %90 {offsets = [0, 0], sizes = [32, 128], strides = [1, 1]} : vector<40x128xf32> to vector<32x128xf32>
    %92 = vector.extract_strided_slice %3 {offsets = [5, 0, 0], sizes = [1, 32, 1], strides = [1, 1, 1]} : vector<6x32x1xf32> to vector<1x32x1xf32>
    %93 = vector.shape_cast %92 : vector<1x32x1xf32> to vector<32x1xf32>
    %94 = vector.broadcast %93 : vector<32x1xf32> to vector<32x128xf32>
    %95 = arith.addf %91, %94 : vector<32x128xf32>
    %96 = vector.extract_strided_slice %90 {offsets = [32, 0], sizes = [4, 128], strides = [1, 1]} : vector<40x128xf32> to vector<4x128xf32>
    %97 = vector.extract_strided_slice %5 {offsets = [5, 0, 0], sizes = [1, 4, 1], strides = [1, 1, 1]} : vector<6x4x1xf32> to vector<1x4x1xf32>
    %98 = vector.shape_cast %97 : vector<1x4x1xf32> to vector<4x1xf32>
    %99 = vector.broadcast %98 : vector<4x1xf32> to vector<4x128xf32>
    %100 = arith.addf %96, %99 : vector<4x128xf32>
    %101 = arith.maximumf %35, %48 : vector<4x128xf32>
    %102 = arith.maximumf %101, %61 : vector<4x128xf32>
    %103 = arith.maximumf %102, %74 : vector<4x128xf32>
    %104 = arith.maximumf %103, %87 : vector<4x128xf32>
    %105 = arith.maximumf %104, %100 : vector<4x128xf32>
    %106 = arith.subf %35, %105 : vector<4x128xf32>
    %107 = math.exp %106 : vector<4x128xf32>
    %108 = arith.subf %48, %105 : vector<4x128xf32>
    %109 = math.exp %108 : vector<4x128xf32>
    %110 = arith.subf %61, %105 : vector<4x128xf32>
    %111 = math.exp %110 : vector<4x128xf32>
    %112 = arith.subf %74, %105 : vector<4x128xf32>
    %113 = math.exp %112 : vector<4x128xf32>
    %114 = arith.subf %87, %105 : vector<4x128xf32>
    %115 = math.exp %114 : vector<4x128xf32>
    %116 = arith.subf %100, %105 : vector<4x128xf32>
    %117 = math.exp %116 : vector<4x128xf32>
    %118 = arith.addf %107, %109 : vector<4x128xf32>
    %119 = arith.addf %118, %111 : vector<4x128xf32>
    %120 = arith.addf %119, %113 : vector<4x128xf32>
    %121 = arith.addf %120, %115 : vector<4x128xf32>
    %122 = arith.addf %121, %117 : vector<4x128xf32>
    %cst_27 = arith.constant 1.000000e+00 : f32
    %123 = vector.broadcast %cst_27 : f32 to vector<4x128xf32>
    %124 = arith.divf %123, %122 : vector<4x128xf32>
    %125 = arith.mulf %107, %124 : vector<4x128xf32>
    %126 = arith.mulf %109, %124 : vector<4x128xf32>
    %127 = arith.mulf %111, %124 : vector<4x128xf32>
    %128 = arith.mulf %113, %124 : vector<4x128xf32>
    %129 = arith.mulf %115, %124 : vector<4x128xf32>
    %130 = arith.mulf %117, %124 : vector<4x128xf32>
    %131 = tpu.concatenate %125, %126, %127, %128, %129, %130 in 0 : vector<4x128xf32>, vector<4x128xf32>, vector<4x128xf32>, vector<4x128xf32>, vector<4x128xf32>, vector<4x128xf32> -> vector<24x128xf32>
    %c0_28 = arith.constant 0 : index
    %c0_29 = arith.constant 0 : index
    %c0_30 = arith.constant 0 : index
    %132 = vector.load %arg13[%c0_28, %c0_29, %c0_30] : memref<1x24x128xf32, #tpu.memory_space<vmem>>, vector<1x24x128xf32>
    %133 = vector.shape_cast %132 : vector<1x24x128xf32> to vector<24x128xf32>
    %134 = vector.shape_cast %131 : vector<24x128xf32> to vector<1x24x128xf32>
    tpu.vector_store %arg13[%c0_28, %c0_29, %c0_30], %134 {strides = array<i32>} : memref<1x24x128xf32, #tpu.memory_space<vmem>>, vector<1x24x128xf32>,
    %135 = vector.extract_strided_slice %125 {offsets = [0, 0], sizes = [1, 128], strides = [1, 1]} : vector<4x128xf32> to vector<1x128xf32>
    %136 = vector.extract_strided_slice %30 {offsets = [0, 0], sizes = [8, 128], strides = [1, 1]} : vector<32x128xf32> to vector<8x128xf32>
    %137 = vector.broadcast %135 : vector<1x128xf32> to vector<8x128xf32>
    %138 = arith.mulf %137, %136 : vector<8x128xf32>
    %139 = vector.extract_strided_slice %126 {offsets = [0, 0], sizes = [1, 128], strides = [1, 1]} : vector<4x128xf32> to vector<1x128xf32>
    %140 = vector.extract_strided_slice %43 {offsets = [0, 0], sizes = [8, 128], strides = [1, 1]} : vector<32x128xf32> to vector<8x128xf32>
    %141 = vector.broadcast %139 : vector<1x128xf32> to vector<8x128xf32>
    %142 = arith.mulf %141, %140 : vector<8x128xf32>
    %143 = arith.addf %138, %142 : vector<8x128xf32>
    %144 = vector.extract_strided_slice %127 {offsets = [0, 0], sizes = [1, 128], strides = [1, 1]} : vector<4x128xf32> to vector<1x128xf32>
    %145 = vector.extract_strided_slice %56 {offsets = [0, 0], sizes = [8, 128], strides = [1, 1]} : vector<32x128xf32> to vector<8x128xf32>
    %146 = vector.broadcast %144 : vector<1x128xf32> to vector<8x128xf32>
    %147 = arith.mulf %146, %145 : vector<8x128xf32>
    %148 = arith.addf %143, %147 : vector<8x128xf32>
    %149 = vector.extract_strided_slice %128 {offsets = [0, 0], sizes = [1, 128], strides = [1, 1]} : vector<4x128xf32> to vector<1x128xf32>
    %150 = vector.extract_strided_slice %69 {offsets = [0, 0], sizes = [8, 128], strides = [1, 1]} : vector<32x128xf32> to vector<8x128xf32>
    %151 = vector.broadcast %149 : vector<1x128xf32> to vector<8x128xf32>
    %152 = arith.mulf %151, %150 : vector<8x128xf32>
    %153 = arith.addf %148, %152 : vector<8x128xf32>
    %154 = vector.extract_strided_slice %129 {offsets = [0, 0], sizes = [1, 128], strides = [1, 1]} : vector<4x128xf32> to vector<1x128xf32>
    %155 = vector.extract_strided_slice %82 {offsets = [0, 0], sizes = [8, 128], strides = [1, 1]} : vector<32x128xf32> to vector<8x128xf32>
    %156 = vector.broadcast %154 : vector<1x128xf32> to vector<8x128xf32>
    %157 = arith.mulf %156, %155 : vector<8x128xf32>
    %158 = arith.addf %153, %157 : vector<8x128xf32>
    %159 = vector.extract_strided_slice %130 {offsets = [0, 0], sizes = [1, 128], strides = [1, 1]} : vector<4x128xf32> to vector<1x128xf32>
    %160 = vector.extract_strided_slice %95 {offsets = [0, 0], sizes = [8, 128], strides = [1, 1]} : vector<32x128xf32> to vector<8x128xf32>
    %161 = vector.broadcast %159 : vector<1x128xf32> to vector<8x128xf32>
    %162 = arith.mulf %161, %160 : vector<8x128xf32>
    %163 = arith.addf %158, %162 : vector<8x128xf32>
    %164 = vector.extract_strided_slice %125 {offsets = [1, 0], sizes = [1, 128], strides = [1, 1]} : vector<4x128xf32> to vector<1x128xf32>
    %165 = vector.extract_strided_slice %30 {offsets = [8, 0], sizes = [8, 128], strides = [1, 1]} : vector<32x128xf32> to vector<8x128xf32>
    %166 = vector.broadcast %164 : vector<1x128xf32> to vector<8x128xf32>
    %167 = arith.mulf %166, %165 : vector<8x128xf32>
    %168 = vector.extract_strided_slice %126 {offsets = [1, 0], sizes = [1, 128], strides = [1, 1]} : vector<4x128xf32> to vector<1x128xf32>
    %169 = vector.extract_strided_slice %43 {offsets = [8, 0], sizes = [8, 128], strides = [1, 1]} : vector<32x128xf32> to vector<8x128xf32>
    %170 = vector.broadcast %168 : vector<1x128xf32> to vector<8x128xf32>
    %171 = arith.mulf %170, %169 : vector<8x128xf32>
    %172 = arith.addf %167, %171 : vector<8x128xf32>
    %173 = vector.extract_strided_slice %127 {offsets = [1, 0], sizes = [1, 128], strides = [1, 1]} : vector<4x128xf32> to vector<1x128xf32>
    %174 = vector.extract_strided_slice %56 {offsets = [8, 0], sizes = [8, 128], strides = [1, 1]} : vector<32x128xf32> to vector<8x128xf32>
    %175 = vector.broadcast %173 : vector<1x128xf32> to vector<8x128xf32>
    %176 = arith.mulf %175, %174 : vector<8x128xf32>
    %177 = arith.addf %172, %176 : vector<8x128xf32>
    %178 = vector.extract_strided_slice %128 {offsets = [1, 0], sizes = [1, 128], strides = [1, 1]} : vector<4x128xf32> to vector<1x128xf32>
    %179 = vector.extract_strided_slice %69 {offsets = [8, 0], sizes = [8, 128], strides = [1, 1]} : vector<32x128xf32> to vector<8x128xf32>
    %180 = vector.broadcast %178 : vector<1x128xf32> to vector<8x128xf32>
    %181 = arith.mulf %180, %179 : vector<8x128xf32>
    %182 = arith.addf %177, %181 : vector<8x128xf32>
    %183 = vector.extract_strided_slice %129 {offsets = [1, 0], sizes = [1, 128], strides = [1, 1]} : vector<4x128xf32> to vector<1x128xf32>
    %184 = vector.extract_strided_slice %82 {offsets = [8, 0], sizes = [8, 128], strides = [1, 1]} : vector<32x128xf32> to vector<8x128xf32>
    %185 = vector.broadcast %183 : vector<1x128xf32> to vector<8x128xf32>
    %186 = arith.mulf %185, %184 : vector<8x128xf32>
    %187 = arith.addf %182, %186 : vector<8x128xf32>
    %188 = vector.extract_strided_slice %130 {offsets = [1, 0], sizes = [1, 128], strides = [1, 1]} : vector<4x128xf32> to vector<1x128xf32>
    %189 = vector.extract_strided_slice %95 {offsets = [8, 0], sizes = [8, 128], strides = [1, 1]} : vector<32x128xf32> to vector<8x128xf32>
    %190 = vector.broadcast %188 : vector<1x128xf32> to vector<8x128xf32>
    %191 = arith.mulf %190, %189 : vector<8x128xf32>
    %192 = arith.addf %187, %191 : vector<8x128xf32>
    %193 = vector.extract_strided_slice %125 {offsets = [2, 0], sizes = [1, 128], strides = [1, 1]} : vector<4x128xf32> to vector<1x128xf32>
    %194 = vector.extract_strided_slice %30 {offsets = [16, 0], sizes = [8, 128], strides = [1, 1]} : vector<32x128xf32> to vector<8x128xf32>
    %195 = vector.broadcast %193 : vector<1x128xf32> to vector<8x128xf32>
    %196 = arith.mulf %195, %194 : vector<8x128xf32>
    %197 = vector.extract_strided_slice %126 {offsets = [2, 0], sizes = [1, 128], strides = [1, 1]} : vector<4x128xf32> to vector<1x128xf32>
    %198 = vector.extract_strided_slice %43 {offsets = [16, 0], sizes = [8, 128], strides = [1, 1]} : vector<32x128xf32> to vector<8x128xf32>
    %199 = vector.broadcast %197 : vector<1x128xf32> to vector<8x128xf32>
    %200 = arith.mulf %199, %198 : vector<8x128xf32>
    %201 = arith.addf %196, %200 : vector<8x128xf32>
    %202 = vector.extract_strided_slice %127 {offsets = [2, 0], sizes = [1, 128], strides = [1, 1]} : vector<4x128xf32> to vector<1x128xf32>
    %203 = vector.extract_strided_slice %56 {offsets = [16, 0], sizes = [8, 128], strides = [1, 1]} : vector<32x128xf32> to vector<8x128xf32>
    %204 = vector.broadcast %202 : vector<1x128xf32> to vector<8x128xf32>
    %205 = arith.mulf %204, %203 : vector<8x128xf32>
    %206 = arith.addf %201, %205 : vector<8x128xf32>
    %207 = vector.extract_strided_slice %128 {offsets = [2, 0], sizes = [1, 128], strides = [1, 1]} : vector<4x128xf32> to vector<1x128xf32>
    %208 = vector.extract_strided_slice %69 {offsets = [16, 0], sizes = [8, 128], strides = [1, 1]} : vector<32x128xf32> to vector<8x128xf32>
    %209 = vector.broadcast %207 : vector<1x128xf32> to vector<8x128xf32>
    %210 = arith.mulf %209, %208 : vector<8x128xf32>
    %211 = arith.addf %206, %210 : vector<8x128xf32>
    %212 = vector.extract_strided_slice %129 {offsets = [2, 0], sizes = [1, 128], strides = [1, 1]} : vector<4x128xf32> to vector<1x128xf32>
    %213 = vector.extract_strided_slice %82 {offsets = [16, 0], sizes = [8, 128], strides = [1, 1]} : vector<32x128xf32> to vector<8x128xf32>
    %214 = vector.broadcast %212 : vector<1x128xf32> to vector<8x128xf32>
    %215 = arith.mulf %214, %213 : vector<8x128xf32>
    %216 = arith.addf %211, %215 : vector<8x128xf32>
    %217 = vector.extract_strided_slice %130 {offsets = [2, 0], sizes = [1, 128], strides = [1, 1]} : vector<4x128xf32> to vector<1x128xf32>
    %218 = vector.extract_strided_slice %95 {offsets = [16, 0], sizes = [8, 128], strides = [1, 1]} : vector<32x128xf32> to vector<8x128xf32>
    %219 = vector.broadcast %217 : vector<1x128xf32> to vector<8x128xf32>
    %220 = arith.mulf %219, %218 : vector<8x128xf32>
    %221 = arith.addf %216, %220 : vector<8x128xf32>
    %222 = vector.extract_strided_slice %125 {offsets = [3, 0], sizes = [1, 128], strides = [1, 1]} : vector<4x128xf32> to vector<1x128xf32>
    %223 = vector.extract_strided_slice %30 {offsets = [24, 0], sizes = [8, 128], strides = [1, 1]} : vector<32x128xf32> to vector<8x128xf32>
    %224 = vector.broadcast %222 : vector<1x128xf32> to vector<8x128xf32>
    %225 = arith.mulf %224, %223 : vector<8x128xf32>
    %226 = vector.extract_strided_slice %126 {offsets = [3, 0], sizes = [1, 128], strides = [1, 1]} : vector<4x128xf32> to vector<1x128xf32>
    %227 = vector.extract_strided_slice %43 {offsets = [24, 0], sizes = [8, 128], strides = [1, 1]} : vector<32x128xf32> to vector<8x128xf32>
    %228 = vector.broadcast %226 : vector<1x128xf32> to vector<8x128xf32>
    %229 = arith.mulf %228, %227 : vector<8x128xf32>
    %230 = arith.addf %225, %229 : vector<8x128xf32>
    %231 = vector.extract_strided_slice %127 {offsets = [3, 0], sizes = [1, 128], strides = [1, 1]} : vector<4x128xf32> to vector<1x128xf32>
    %232 = vector.extract_strided_slice %56 {offsets = [24, 0], sizes = [8, 128], strides = [1, 1]} : vector<32x128xf32> to vector<8x128xf32>
    %233 = vector.broadcast %231 : vector<1x128xf32> to vector<8x128xf32>
    %234 = arith.mulf %233, %232 : vector<8x128xf32>
    %235 = arith.addf %230, %234 : vector<8x128xf32>
    %236 = vector.extract_strided_slice %128 {offsets = [3, 0], sizes = [1, 128], strides = [1, 1]} : vector<4x128xf32> to vector<1x128xf32>
    %237 = vector.extract_strided_slice %69 {offsets = [24, 0], sizes = [8, 128], strides = [1, 1]} : vector<32x128xf32> to vector<8x128xf32>
    %238 = vector.broadcast %236 : vector<1x128xf32> to vector<8x128xf32>
    %239 = arith.mulf %238, %237 : vector<8x128xf32>
    %240 = arith.addf %235, %239 : vector<8x128xf32>
    %241 = vector.extract_strided_slice %129 {offsets = [3, 0], sizes = [1, 128], strides = [1, 1]} : vector<4x128xf32> to vector<1x128xf32>
    %242 = vector.extract_strided_slice %82 {offsets = [24, 0], sizes = [8, 128], strides = [1, 1]} : vector<32x128xf32> to vector<8x128xf32>
    %243 = vector.broadcast %241 : vector<1x128xf32> to vector<8x128xf32>
    %244 = arith.mulf %243, %242 : vector<8x128xf32>
    %245 = arith.addf %240, %244 : vector<8x128xf32>
    %246 = vector.extract_strided_slice %130 {offsets = [3, 0], sizes = [1, 128], strides = [1, 1]} : vector<4x128xf32> to vector<1x128xf32>
    %247 = vector.extract_strided_slice %95 {offsets = [24, 0], sizes = [8, 128], strides = [1, 1]} : vector<32x128xf32> to vector<8x128xf32>
    %248 = vector.broadcast %246 : vector<1x128xf32> to vector<8x128xf32>
    %249 = arith.mulf %248, %247 : vector<8x128xf32>
    %250 = arith.addf %245, %249 : vector<8x128xf32>
    %251 = tpu.concatenate %163, %192, %221, %250 in 0 : vector<8x128xf32>, vector<8x128xf32>, vector<8x128xf32>, vector<8x128xf32> -> vector<32x128xf32>
    %c0_31 = arith.constant 0 : index
    %c0_32 = arith.constant 0 : index
    %252 = vector.load %arg7[%c0_31, %c0_32] : memref<16x32xf32, #tpu.memory_space<vmem>>, vector<16x32xf32>
    %cst_33 = arith.constant dense<0.000000e+00> : vector<16x128xf32>
    %253 = tpu.matmul %252, %251, %cst_33 {dimension_numbers = #tpu.dot_dimension_numbers<[1], [0], [0], [1], [0, 0, 1, 1], [], []>, precision = #tpu.contract_precision<fp32>} : vector<16x32xf32>, vector<32x128xf32>, vector<16x128xf32> -> vector<16x128xf32>
    %c0_34 = arith.constant 0 : index
    %c0_35 = arith.constant 0 : index
    %254 = vector.load %arg8[%c0_34, %c0_35] : memref<16x1xf32, #tpu.memory_space<vmem>>, vector<16x1xf32>
    %255 = vector.broadcast %254 : vector<16x1xf32> to vector<16x128xf32>
    %256 = arith.addf %253, %255 : vector<16x128xf32>
    %cst_36 = arith.constant 0.000000e+00 : f32
    %257 = vector.broadcast %cst_36 : f32 to vector<16x128xf32>
    %258 = arith.maximumf %256, %257 : vector<16x128xf32>
    %c0_37 = arith.constant 0 : index
    %c0_38 = arith.constant 0 : index
    %259 = vector.load %arg9[%c0_37, %c0_38] : memref<16x16xf32, #tpu.memory_space<vmem>>, vector<16x16xf32>
    %cst_39 = arith.constant dense<0.000000e+00> : vector<16x128xf32>
    %260 = tpu.matmul %259, %258, %cst_39 {dimension_numbers = #tpu.dot_dimension_numbers<[1], [0], [0], [1], [0, 0, 1, 1], [], []>, precision = #tpu.contract_precision<fp32>} : vector<16x16xf32>, vector<16x128xf32>, vector<16x128xf32> -> vector<16x128xf32>
    %261 = arith.subf %258, %260 : vector<16x128xf32>
    %c0_40 = arith.constant 0 : index
    %c0_41 = arith.constant 0 : index
    %262 = vector.load %arg9[%c0_40, %c0_41] : memref<16x16xf32, #tpu.memory_space<vmem>>, vector<16x16xf32>
    %263 = arith.mulf %261, %261 : vector<16x128xf32>
    %cst_42 = arith.constant dense<0.000000e+00> : vector<16x128xf32>
    %264 = tpu.matmul %262, %263, %cst_42 {dimension_numbers = #tpu.dot_dimension_numbers<[1], [0], [0], [1], [0, 0, 1, 1], [], []>, precision = #tpu.contract_precision<fp32>} : vector<16x16xf32>, vector<16x128xf32>, vector<16x128xf32> -> vector<16x128xf32>
    %cst_43 = arith.constant 9.99999974E-6 : f32
    %265 = vector.broadcast %cst_43 : f32 to vector<16x128xf32>
    %266 = arith.addf %264, %265 : vector<16x128xf32>
    %267 = math.rsqrt %266 : vector<16x128xf32>
    %268 = arith.mulf %261, %267 : vector<16x128xf32>
    %c0_44 = arith.constant 0 : index
    %c0_45 = arith.constant 0 : index
    %269 = vector.load %arg10[%c0_44, %c0_45] : memref<16x1xf32, #tpu.memory_space<vmem>>, vector<16x1xf32>
    %270 = vector.broadcast %269 : vector<16x1xf32> to vector<16x128xf32>
    %271 = arith.mulf %268, %270 : vector<16x128xf32>
    %c0_46 = arith.constant 0 : index
    %c0_47 = arith.constant 0 : index
    %272 = vector.load %arg11[%c0_46, %c0_47] : memref<16x1xf32, #tpu.memory_space<vmem>>, vector<16x1xf32>
    %273 = vector.broadcast %272 : vector<16x1xf32> to vector<16x128xf32>
    %274 = arith.addf %271, %273 : vector<16x128xf32>
    %c0_48 = arith.constant 0 : index
    %c0_49 = arith.constant 0 : index
    %c0_50 = arith.constant 0 : index
    %275 = vector.load %arg12[%c0_48, %c0_49, %c0_50] : memref<1x16x128xf32, #tpu.memory_space<vmem>>, vector<1x16x128xf32>
    %276 = vector.shape_cast %275 : vector<1x16x128xf32> to vector<16x128xf32>
    %277 = vector.shape_cast %274 : vector<16x128xf32> to vector<1x16x128xf32>
    tpu.vector_store %arg12[%c0_48, %c0_49, %c0_50], %277 {strides = array<i32>} : memref<1x16x128xf32, #tpu.memory_space<vmem>>, vector<1x16x128xf32>,
    return
  }
  func.func @transform_0(%arg0: i32, %arg1: i32) -> (i32, i32, i32, i32) {
    %c0_i32 = arith.constant 0 : i32
    %c0_i32_0 = arith.constant 0 : i32
    %c0_i32_1 = arith.constant 0 : i32
    return %arg0, %c0_i32, %c0_i32_0, %arg1 : i32, i32, i32, i32
  }
  func.func @transform_1(%arg0: i32, %arg1: i32) -> (i32, i32, i32, i32) {
    %c0_i32 = arith.constant 0 : i32
    %c0_i32_0 = arith.constant 0 : i32
    %c0_i32_1 = arith.constant 0 : i32
    %c0_i32_2 = arith.constant 0 : i32
    return %arg0, %c0_i32, %c0_i32_0, %c0_i32_1 : i32, i32, i32, i32
  }
  func.func @transform_2(%arg0: i32, %arg1: i32) -> (i32, i32, i32, i32) {
    %c0_i32 = arith.constant 0 : i32
    %c0_i32_0 = arith.constant 0 : i32
    %c0_i32_1 = arith.constant 0 : i32
    %c0_i32_2 = arith.constant 0 : i32
    return %arg0, %c0_i32, %c0_i32_0, %c0_i32_1 : i32, i32, i32, i32
  }
  func.func @transform_3(%arg0: i32, %arg1: i32) -> (i32, i32) {
    %c0_i32 = arith.constant 0 : i32
    %c0_i32_0 = arith.constant 0 : i32
    %c0_i32_1 = arith.constant 0 : i32
    return %c0_i32, %c0_i32_0 : i32, i32
  }
  func.func @transform_4(%arg0: i32, %arg1: i32) -> (i32, i32) {
    %c0_i32 = arith.constant 0 : i32
    %c0_i32_0 = arith.constant 0 : i32
    %c0_i32_1 = arith.constant 0 : i32
    return %c0_i32, %c0_i32_0 : i32, i32
  }
  func.func @transform_5(%arg0: i32, %arg1: i32) -> (i32, i32) {
    %c0_i32 = arith.constant 0 : i32
    %c0_i32_0 = arith.constant 0 : i32
    %c0_i32_1 = arith.constant 0 : i32
    return %c0_i32, %c0_i32_0 : i32, i32
  }
  func.func @transform_6(%arg0: i32, %arg1: i32) -> (i32, i32) {
    %c0_i32 = arith.constant 0 : i32
    %c0_i32_0 = arith.constant 0 : i32
    %c0_i32_1 = arith.constant 0 : i32
    return %c0_i32, %c0_i32_0 : i32, i32
  }
  func.func @transform_7(%arg0: i32, %arg1: i32) -> (i32, i32) {
    %c0_i32 = arith.constant 0 : i32
    %c0_i32_0 = arith.constant 0 : i32
    %c0_i32_1 = arith.constant 0 : i32
    return %c0_i32, %c0_i32_0 : i32, i32
  }
  func.func @transform_8(%arg0: i32, %arg1: i32) -> (i32, i32) {
    %c0_i32 = arith.constant 0 : i32
    %c0_i32_0 = arith.constant 0 : i32
    %c0_i32_1 = arith.constant 0 : i32
    return %c0_i32, %c0_i32_0 : i32, i32
  }
  func.func @transform_9(%arg0: i32, %arg1: i32) -> (i32, i32) {
    %c0_i32 = arith.constant 0 : i32
    %c0_i32_0 = arith.constant 0 : i32
    %c0_i32_1 = arith.constant 0 : i32
    return %c0_i32, %c0_i32_0 : i32, i32
  }
  func.func @transform_10(%arg0: i32, %arg1: i32) -> (i32, i32, i32) {
    %c0_i32 = arith.constant 0 : i32
    %c0_i32_0 = arith.constant 0 : i32
    return %arg0, %c0_i32, %arg1 : i32, i32, i32
  }
  func.func @transform_11(%arg0: i32, %arg1: i32) -> (i32, i32, i32) {
    %c0_i32 = arith.constant 0 : i32
    %c0_i32_0 = arith.constant 0 : i32
    return %arg0, %c0_i32, %arg1 : i32, i32, i32
  }
}

</mosaic_0001>

<llo_original>
// kernel: tpu_custom_call.1
$region0: #{tpu_custom_call.1}
  #allocation0 [shape = 'u32[]', space=smem, size = 0x4, offset = 0x4, fixed_abs, tag = 'smem constant byte address 0x4 - core index']
  #allocation1 [shape = 'u32[144,128]{1,0:T(1,128)}', space=vmem, size = 0x12000, scoped, tag = 'internal scratch']
  %s0 = inlined_call_operand.vmem [shape: f32[2,6,16,256], index: 0, kind: input, shape index: {}]
  %s1 = inlined_call_operand.vmem [shape: f32[2,6,32,1], index: 1, kind: input, shape index: {}]
  %s2 = inlined_call_operand.vmem [shape: f32[2,6,4,1], index: 2, kind: input, shape index: {}]
  %s3 = inlined_call_operand.vmem [shape: f32[16,16], index: 3, kind: input, shape index: {}]
  %s4 = inlined_call_operand.vmem [shape: f32[40,16], index: 4, kind: input, shape index: {}]
  %s5 = inlined_call_operand.vmem [shape: f32[16,32], index: 5, kind: input, shape index: {}]
  %s6 = inlined_call_operand.vmem [shape: f32[16,1], index: 6, kind: input, shape index: {}]
  %s7 = inlined_call_operand.vmem [shape: f32[16,16], index: 7, kind: input, shape index: {}]
  %s8 = inlined_call_operand.vmem [shape: f32[16,1], index: 8, kind: input, shape index: {}]
  %s9 = inlined_call_operand.vmem [shape: f32[16,1], index: 9, kind: input, shape index: {}]
  %s10 = inlined_call_operand.hbm [shape: f32[2,16,256], index: 10, kind: output, shape index: {0}]
  %s11 = inlined_call_operand.hbm [shape: f32[2,24,256], index: 11, kind: output, shape index: {1}]
  %12 = xla_tuple %s10, %s11
  %s13 = sld [smem:[#allocation0]]
  $region119: #{tpu_custom_call.1} parent=0
    _
  %s15 = ssub.s32 1, %s13
  %s16 = scalar_select 0, %s15, %s13
  $region1: #{tpu_custom_call.1} parent=0
    #allocation2 [shape = 'u8[98304]{0}', space=vmem, size = 0x18000, scoped, tag = 'input window, operand 0']
    #allocation3 [shape = 'u8[16384]{0}', space=vmem, size = 0x4000, scoped, tag = 'output window, operand 0']
    #allocation4 [shape = 's32[2]{0}', space=sflag, size = 0x8, scoped, tag = 'scoped memory for tpu_custom_call.1']
    #allocation5 [shape = 'u8[24576]{0}', space=vmem, size = 0x6000, scoped, tag = 'output window, operand 1']
    #allocation6 [shape = 's32[2]{0}', space=sflag, size = 0x8, scoped, tag = 'scoped memory for tpu_custom_call.1']
    %17 = vsyncpa [#allocation4], 0
    %s18 = scalar_lea.sflag [#allocation4], 1
    %19 = vsyncpa %s18, 0
    %20 = vsyncpa [#allocation6], 0
    %s21 = scalar_lea.sflag [#allocation6], 1
    %22 = vsyncpa %s21, 0
    loop: start=0, step=1, limit=6
    $region2: #{tpu_custom_call.1} parent=1 // loop_pre_header
      _
    $region3: #{tpu_custom_call.1} parent=1 // loop_header
      %s24 = sphi 0, %s28
      %p25 = scmp.ge.s32.totalorder %s24, 6
      %s31 = sphi 0, %s43
      %s32 = sphi 0, %s39
      %s33 = sphi 0, %s31
      %s34 = sphi 0, %s32
      %s35 = sphi 0, %s33
      %s36 = sphi 0, %s34
      %s48 = sphi 0, %s50
      %s51 = sphi 0, %s48
      %s52 = sphi 0, %s51
      %s68 = sphi 0, %s52
      %s74 = sphi 0, %s76
      %s77 = sphi 0, %s74
      %s78 = sphi 0, %s77
      %s94 = sphi 0, %s78
      %s100 = sphi 0, %s102
      %s103 = sphi 0, %s100
      %s104 = sphi 0, %s103
      %s120 = sphi 0, %s104
      %s124 = sphi 0, %s124
      %s126 = sphi 0, %s124
      %s127 = sphi 0, %s126
      %s141 = sphi 0, %s127
      %s145 = sphi 0, %s145
      %s147 = sphi 0, %s145
      %s148 = sphi 0, %s147
      %s162 = sphi 0, %s148
      %s166 = sphi 0, %s166
      %s168 = sphi 0, %s166
      %s169 = sphi 0, %s168
      %s183 = sphi 0, %s169
      %s187 = sphi 0, %s187
      %s189 = sphi 0, %s187
      %s190 = sphi 0, %s189
      %s204 = sphi 0, %s190
      %s208 = sphi 0, %s208
      %s210 = sphi 0, %s208
      %s211 = sphi 0, %s210
      %s225 = sphi 0, %s211
      %s229 = sphi 0, %s229
      %s231 = sphi 0, %s229
      %s232 = sphi 0, %s231
      %s246 = sphi 0, %s232
      %s250 = sphi 0, %s250
      %s252 = sphi 0, %s250
      %s253 = sphi 0, %s252
      %s267 = sphi 0, %s253
      %s275 = sphi 0, %s277
      %s278 = sphi 0, %s275
      %s279 = sphi 0, %s278
      %s295 = sphi 0, %s279
      %s303 = sphi 0, %s305
      %s306 = sphi 0, %s303
      %s307 = sphi 0, %s306
      %s323 = sphi 0, %s307
    $region4: #{tpu_custom_call.1} parent=1 // loop_header_branch
      %27 = sbr.rel (%p25) target = $region8
    $region5: #{tpu_custom_call.1} parent=1 // loop_body
      %s29 = ssub.s32 %s24, 1
      %s30 = ssub.s32 %s24, 2
      %s37 = sadd.s32 1, %s32
      %p38 = scmp.ge.s32.totalorder %s37, 2
      %s39 = scalar_select %p38, 0, %s37
      %s40 = sadd.s32 1, %s31
      %s41 = scalar_select %p38, %s40, %s31
      %p42 = scmp.ge.s32.totalorder %s41, 2
      %s43 = scalar_select %p42, 0, %s41
      %s44 = ssub.s32 %s31, %s43
      %s45 = ssub.s32 %s32, %s39
      %s46 = sor.u32 %s44, %s45
      %p47 = scmp.eq.s32.totalorder %s46, 0
      %s49 = sadd.s32 %s48, 1
      %s50 = scalar_select %p47, %s48, %s49
      %p53 = pneg %p47
      %p54 = scmp.eq.s32.totalorder %s24, 3
      %p55 = por %p53, %p54
      %p56 = scmp.ne.s32.totalorder %s48, %s51
      %p57 = scmp.eq.s32.totalorder %s24, 0
      %p58 = por %p56, %p57
      %p59 = scmp.ne.s32.totalorder %s48, %s51
      %p60 = scmp.eq.s32.totalorder %s29, 3
      %p61 = por %p59, %p60
      %p62 = scmp.ne.s32.totalorder %s51, %s52
      %p63 = scmp.eq.s32.totalorder %s29, 0
      %p64 = por %p62, %p63
      %p65 = scmp.ne.s32.totalorder %s51, %s52
      %p66 = scmp.eq.s32.totalorder %s30, 3
      %p67 = por %p65, %p66
      %p69 = scmp.ne.s32.totalorder %s52, %s68
      %p70 = scmp.eq.s32.totalorder %s30, 0
      %p71 = por %p69, %p70
      %s72 = ssub.s32 %s31, %s43
      %p73 = scmp.eq.s32.totalorder %s72, 0
      %s75 = sadd.s32 %s74, 1
      %s76 = scalar_select %p73, %s74, %s75
      %p79 = pneg %p73
      %p80 = scmp.eq.s32.totalorder %s24, 3
      %p81 = por %p79, %p80
      %p82 = scmp.ne.s32.totalorder %s74, %s77
      %p83 = scmp.eq.s32.totalorder %s24, 0
      %p84 = por %p82, %p83
      %p85 = scmp.ne.s32.totalorder %s74, %s77
      %p86 = scmp.eq.s32.totalorder %s29, 3
      %p87 = por %p85, %p86
      %p88 = scmp.ne.s32.totalorder %s77, %s78
      %p89 = scmp.eq.s32.totalorder %s29, 0
      %p90 = por %p88, %p89
      %p91 = scmp.ne.s32.totalorder %s77, %s78
      %p92 = scmp.eq.s32.totalorder %s30, 3
      %p93 = por %p91, %p92
      %p95 = scmp.ne.s32.totalorder %s78, %s94
      %p96 = scmp.eq.s32.totalorder %s30, 0
      %p97 = por %p95, %p96
      %s98 = ssub.s32 %s31, %s43
      %p99 = scmp.eq.s32.totalorder %s98, 0
      %s101 = sadd.s32 %s100, 1
      %s102 = scalar_select %p99, %s100, %s101
      %p105 = pneg %p99
      %p106 = scmp.eq.s32.totalorder %s24, 3
      %p107 = por %p105, %p106
      %p108 = scmp.ne.s32.totalorder %s100, %s103
      %p109 = scmp.eq.s32.totalorder %s24, 0
      %p110 = por %p108, %p109
      %p111 = scmp.ne.s32.totalorder %s100, %s103
      %p112 = scmp.eq.s32.totalorder %s29, 3
      %p113 = por %p111, %p112
      %p114 = scmp.ne.s32.totalorder %s103, %s104
      %p115 = scmp.eq.s32.totalorder %s29, 0
      %p116 = por %p114, %p115
      %p117 = scmp.ne.s32.totalorder %s103, %s104
      %p118 = scmp.eq.s32.totalorder %s30, 3
      %p119 = por %p117, %p118
      %p121 = scmp.ne.s32.totalorder %s104, %s120
      %p122 = scmp.eq.s32.totalorder %s30, 0
      %p123 = por %p121, %p122
      %s125 = sadd.s32 %s124, 1
      %p128 = scmp.eq.s32.totalorder %s24, 3
      %p129 = scmp.ne.s32.totalorder %s124, %s126
      %p130 = scmp.eq.s32.totalorder %s24, 0
      %p131 = por %p129, %p130
      %p132 = scmp.ne.s32.totalorder %s124, %s126
      %p133 = scmp.eq.s32.totalorder %s29, 3
      %p134 = por %p132, %p133
      %p135 = scmp.ne.s32.totalorder %s126, %s127
      %p136 = scmp.eq.s32.totalorder %s29, 0
      %p137 = por %p135, %p136
      %p138 = scmp.ne.s32.totalorder %s126, %s127
      %p139 = scmp.eq.s32.totalorder %s30, 3
      %p140 = por %p138, %p139
      %p142 = scmp.ne.s32.totalorder %s127, %s141
      %p143 = scmp.eq.s32.totalorder %s30, 0
      %p144 = por %p142, %p143
      %s146 = sadd.s32 %s145, 1
      %p149 = scmp.eq.s32.totalorder %s24, 3
      %p150 = scmp.ne.s32.totalorder %s145, %s147
      %p151 = scmp.eq.s32.totalorder %s24, 0
      %p152 = por %p150, %p151
      %p153 = scmp.ne.s32.totalorder %s145, %s147
      %p154 = scmp.eq.s32.totalorder %s29, 3
      %p155 = por %p153, %p154
      %p156 = scmp.ne.s32.totalorder %s147, %s148
      %p157 = scmp.eq.s32.totalorder %s29, 0
      %p158 = por %p156, %p157
      %p159 = scmp.ne.s32.totalorder %s147, %s148
      %p160 = scmp.eq.s32.totalorder %s30, 3
      %p161 = por %p159, %p160
      %p163 = scmp.ne.s32.totalorder %s148, %s162
      %p164 = scmp.eq.s32.totalorder %s30, 0
      %p165 = por %p163, %p164
      %s167 = sadd.s32 %s166, 1
      %p170 = scmp.eq.s32.totalorder %s24, 3
      %p171 = scmp.ne.s32.totalorder %s166, %s168
      %p172 = scmp.eq.s32.totalorder %s24, 0
      %p173 = por %p171, %p172
      %p174 = scmp.ne.s32.totalorder %s166, %s168
      %p175 = scmp.eq.s32.totalorder %s29, 3
      %p176 = por %p174, %p175
      %p177 = scmp.ne.s32.totalorder %s168, %s169
      %p178 = scmp.eq.s32.totalorder %s29, 0
      %p179 = por %p177, %p178
      %p180 = scmp.ne.s32.totalorder %s168, %s169
      %p181 = scmp.eq.s32.totalorder %s30, 3
      %p182 = por %p180, %p181
      %p184 = scmp.ne.s32.totalorder %s169, %s183
      %p185 = scmp.eq.s32.totalorder %s30, 0
      %p186 = por %p184, %p185
      %s188 = sadd.s32 %s187, 1
      %p191 = scmp.eq.s32.totalorder %s24, 3
      %p192 = scmp.ne.s32.totalorder %s187, %s189
      %p193 = scmp.eq.s32.totalorder %s24, 0
      %p194 = por %p192, %p193
      %p195 = scmp.ne.s32.totalorder %s187, %s189
      %p196 = scmp.eq.s32.totalorder %s29, 3
      %p197 = por %p195, %p196
      %p198 = scmp.ne.s32.totalorder %s189, %s190
      %p199 = scmp.eq.s32.totalorder %s29, 0
      %p200 = por %p198, %p199
      %p201 = scmp.ne.s32.totalorder %s189, %s190
      %p202 = scmp.eq.s32.totalorder %s30, 3
      %p203 = por %p201, %p202
      %p205 = scmp.ne.s32.totalorder %s190, %s204
      %p206 = scmp.eq.s32.totalorder %s30, 0
      %p207 = por %p205, %p206
      %s209 = sadd.s32 %s208, 1
      %p212 = scmp.eq.s32.totalorder %s24, 3
      %p213 = scmp.ne.s32.totalorder %s208, %s210
      %p214 = scmp.eq.s32.totalorder %s24, 0
      %p215 = por %p213, %p214
      %p216 = scmp.ne.s32.totalorder %s208, %s210
      %p217 = scmp.eq.s32.totalorder %s29, 3
      %p218 = por %p216, %p217
      %p219 = scmp.ne.s32.totalorder %s210, %s211
      %p220 = scmp.eq.s32.totalorder %s29, 0
      %p221 = por %p219, %p220
      %p222 = scmp.ne.s32.totalorder %s210, %s211
      %p223 = scmp.eq.s32.totalorder %s30, 3
      %p224 = por %p222, %p223
      %p226 = scmp.ne.s32.totalorder %s211, %s225
      %p227 = scmp.eq.s32.totalorder %s30, 0
      %p228 = por %p226, %p227
      %s230 = sadd.s32 %s229, 1
      %p233 = scmp.eq.s32.totalorder %s24, 3
      %p234 = scmp.ne.s32.totalorder %s229, %s231
      %p235 = scmp.eq.s32.totalorder %s24, 0
      %p236 = por %p234, %p235
      %p237 = scmp.ne.s32.totalorder %s229, %s231
      %p238 = scmp.eq.s32.totalorder %s29, 3
      %p239 = por %p237, %p238
      %p240 = scmp.ne.s32.totalorder %s231, %s232
      %p241 = scmp.eq.s32.totalorder %s29, 0
      %p242 = por %p240, %p241
      %p243 = scmp.ne.s32.totalorder %s231, %s232
      %p244 = scmp.eq.s32.totalorder %s30, 3
      %p245 = por %p243, %p244
      %p247 = scmp.ne.s32.totalorder %s232, %s246
      %p248 = scmp.eq.s32.totalorder %s30, 0
      %p249 = por %p247, %p248
      %s251 = sadd.s32 %s250, 1
      %p254 = scmp.eq.s32.totalorder %s24, 3
      %p255 = scmp.ne.s32.totalorder %s250, %s252
      %p256 = scmp.eq.s32.totalorder %s24, 0
      %p257 = por %p255, %p256
      %p258 = scmp.ne.s32.totalorder %s250, %s252
      %p259 = scmp.eq.s32.totalorder %s29, 3
      %p260 = por %p258, %p259
      %p261 = scmp.ne.s32.totalorder %s252, %s253
      %p262 = scmp.eq.s32.totalorder %s29, 0
      %p263 = por %p261, %p262
      %p264 = scmp.ne.s32.totalorder %s252, %s253
      %p265 = scmp.eq.s32.totalorder %s30, 3
      %p266 = por %p264, %p265
      %p268 = scmp.ne.s32.totalorder %s253, %s267
      %p269 = scmp.eq.s32.totalorder %s30, 0
      %p270 = por %p268, %p269
      %s271 = ssub.s32 %s31, %s43
      %s272 = ssub.s32 %s32, %s39
      %s273 = sor.u32 %s271, %s272
      %p274 = scmp.eq.s32.totalorder %s273, 0
      %s276 = sadd.s32 %s275, 1
      %s277 = scalar_select %p274, %s275, %s276
      %p280 = pneg %p274
      %p281 = scmp.eq.s32.totalorder %s24, 3
      %p282 = por %p280, %p281
      %p283 = scmp.ne.s32.totalorder %s275, %s278
      %p284 = scmp.eq.s32.totalorder %s24, 0
      %p285 = por %p283, %p284
      %p286 = scmp.ne.s32.totalorder %s275, %s278
      %p287 = scmp.eq.s32.totalorder %s29, 3
      %p288 = por %p286, %p287
      %p289 = scmp.ne.s32.totalorder %s278, %s279
      %p290 = scmp.eq.s32.totalorder %s29, 0
      %p291 = por %p289, %p290
      %p292 = scmp.ne.s32.totalorder %s278, %s279
      %p293 = scmp.eq.s32.totalorder %s30, 3
      %p294 = por %p292, %p293
      %p296 = scmp.ne.s32.totalorder %s279, %s295
      %p297 = scmp.eq.s32.totalorder %s30, 0
      %p298 = por %p296, %p297
      %s299 = ssub.s32 %s31, %s43
      %s300 = ssub.s32 %s32, %s39
      %s301 = sor.u32 %s299, %s300
      %p302 = scmp.eq.s32.totalorder %s301, 0
      %s304 = sadd.s32 %s303, 1
      %s305 = scalar_select %p302, %s303, %s304
      %p308 = pneg %p302
      %p309 = scmp.eq.s32.totalorder %s24, 3
      %p310 = por %p308, %p309
      %p311 = scmp.ne.s32.totalorder %s303, %s306
      %p312 = scmp.eq.s32.totalorder %s24, 0
      %p313 = por %p311, %p312
      %p314 = scmp.ne.s32.totalorder %s303, %s306
      %p315 = scmp.eq.s32.totalorder %s29, 3
      %p316 = por %p314, %p315
      %p317 = scmp.ne.s32.totalorder %s306, %s307
      %p318 = scmp.eq.s32.totalorder %s29, 0
      %p319 = por %p317, %p318
      %p320 = scmp.ne.s32.totalorder %s306, %s307
      %p321 = scmp.eq.s32.totalorder %s30, 3
      %p322 = por %p320, %p321
      %p324 = scmp.ne.s32.totalorder %s307, %s323
      %p325 = scmp.eq.s32.totalorder %s30, 0
      %p326 = por %p324, %p325
      %p327 = scmp.le.s32.totalorder 1, %s24
      %p328 = scmp.lt.s32.totalorder %s24, 5
      %p329 = pnand %p327, %p328
      %p330 = pneg %p329
      // Predicated region
      $region9: #{tpu_custom_call.1} parent=5 // pred_check
        _
      $region10: #{tpu_custom_call.1} parent=5 // pred_check_branch
        %332 = sbr.rel (%p329) target = $region12
      $region11: #{tpu_custom_call.1} parent=5 // pred_region
        %s333 = ssub.s32 %s24, 1
        // Predicated region
        $region13: #{tpu_custom_call.1} parent=11 // pred_check
          %p334 = pneg %p137
        $region14: #{tpu_custom_call.1} parent=11 // pred_check_branch
          %336 = sbr.rel (%p334) target = $region16
        $region15: #{tpu_custom_call.1} parent=11 // pred_region
          _
        $region16: #{tpu_custom_call.1} parent=11 // pred_fallthru
          _
        // Predicated region
        $region17: #{tpu_custom_call.1} parent=11 // pred_check
          %p337 = pneg %p158
        $region18: #{tpu_custom_call.1} parent=11 // pred_check_branch
          %339 = sbr.rel (%p337) target = $region20
        $region19: #{tpu_custom_call.1} parent=11 // pred_region
          _
        $region20: #{tpu_custom_call.1} parent=11 // pred_fallthru
          _
        // Predicated region
        $region21: #{tpu_custom_call.1} parent=11 // pred_check
          %p340 = pneg %p179
        $region22: #{tpu_custom_call.1} parent=11 // pred_check_branch
          %342 = sbr.rel (%p340) target = $region24
        $region23: #{tpu_custom_call.1} parent=11 // pred_region
          _
        $region24: #{tpu_custom_call.1} parent=11 // pred_fallthru
          _
        // Predicated region
        $region25: #{tpu_custom_call.1} parent=11 // pred_check
          %p343 = pneg %p200
        $region26: #{tpu_custom_call.1} parent=11 // pred_check_branch
          %345 = sbr.rel (%p343) target = $region28
        $region27: #{tpu_custom_call.1} parent=11 // pred_region
          _
        $region28: #{tpu_custom_call.1} parent=11 // pred_fallthru
          _
        // Predicated region
        $region29: #{tpu_custom_call.1} parent=11 // pred_check
          %p346 = pneg %p221
        $region30: #{tpu_custom_call.1} parent=11 // pred_check_branch
          %348 = sbr.rel (%p346) target = $region32
        $region31: #{tpu_custom_call.1} parent=11 // pred_region
          _
        $region32: #{tpu_custom_call.1} parent=11 // pred_fallthru
          _
        // Predicated region
        $region33: #{tpu_custom_call.1} parent=11 // pred_check
          %p349 = pneg %p242
        $region34: #{tpu_custom_call.1} parent=11 // pred_check_branch
          %351 = sbr.rel (%p349) target = $region36
        $region35: #{tpu_custom_call.1} parent=11 // pred_region
          _
        $region36: #{tpu_custom_call.1} parent=11 // pred_fallthru
          _
        // Predicated region
        $region37: #{tpu_custom_call.1} parent=11 // pred_check
          %p352 = pneg %p263
        $region38: #{tpu_custom_call.1} parent=11 // pred_check_branch
          %354 = sbr.rel (%p352) target = $region40
        $region39: #{tpu_custom_call.1} parent=11 // pred_region
          _
        $region40: #{tpu_custom_call.1} parent=11 // pred_fallthru
          _
      $region12: #{tpu_custom_call.1} parent=5 // pred_fallthru
        _
      %p355 = scmp.lt.s32.totalorder %s24, 4
      // Predicated region
      $region41: #{tpu_custom_call.1} parent=5 // pred_check
        %p356 = pneg %p355
      $region42: #{tpu_custom_call.1} parent=5 // pred_check_branch
        %358 = sbr.rel (%p356) target = $region44
      $region43: #{tpu_custom_call.1} parent=5 // pred_region
        // Predicated region
        $region45: #{tpu_custom_call.1} parent=43 // pred_check
          %p359 = pneg %p58
        $region46: #{tpu_custom_call.1} parent=43 // pred_check_branch
          %361 = sbr.rel (%p359) target = $region48
        $region47: #{tpu_custom_call.1} parent=43 // pred_region
          %s362 = sand.u32 %s48, 1
          %s363 = sand.u32 %s48, 1
          %s364 = smul.addr %s363, 96
          %s365 = scalar_lea.vmem [#allocation2], %s364
          %s366 = smul.addr %s31, 24
          %s367 = sadd.s32 %s32, %s366
          %s368 = smul.addr %s367, 8
          %s369 = scalar_lea.vmem %s0, %s368
          // Predicated region
          $region49: #{tpu_custom_call.1} parent=47 // pred_check
            _
          $region50: #{tpu_custom_call.1} parent=47 // pred_check_branch
            %371 = sbr.rel (0) target = $region52
          $region51: #{tpu_custom_call.1} parent=47 // pred_region
            // Predicated region
            $region53: #{tpu_custom_call.1} parent=51 // pred_check
              _
            $region54: #{tpu_custom_call.1} parent=51 // pred_check_branch
              %373 = sbr.rel (0) target = $region56
            $region55: #{tpu_custom_call.1} parent=51 // pred_region
              // Predicated region
              $region68: #{tpu_custom_call.1} parent=55 // pred_check
                _
              $region69: #{tpu_custom_call.1} parent=55 // pred_check_branch
                %411 = sbr.rel (0) target = $region71
              $region70: #{tpu_custom_call.1} parent=55 // pred_region
                loop: start=0, step=1, limit=1
                $region72: #{tpu_custom_call.1} parent=70 // loop_pre_header
                  _
                $region73: #{tpu_custom_call.1} parent=70 // loop_header
                  %s413 = sphi 0, %s417
                  %p414 = scmp.ge.s32.totalorder %s413, 1
                  %s418 = sphi %s369, %s369
                  %s419 = sphi %s365, %s365
                $region74: #{tpu_custom_call.1} parent=70 // loop_header_branch
                  %416 = sbr.rel (%p414) target = $region78
                $region75: #{tpu_custom_call.1} parent=70 // loop_body
                  %v420 = vld [vmem:[%s418] sm:$0xff]
                  %421 = vst [vmem:[%s419] sm:$0xff] %v420
                  %v422 = vld [vmem:[%s418 + $0x10] sm:$0xff]
                  %423 = vst [vmem:[%s419 + $0x8] sm:$0xff] %v422
                  %v424 = vld [vmem:[%s418 + $0x20] sm:$0xff]
                  %425 = vst [vmem:[%s419 + $0x10] sm:$0xff] %v424
                  %v426 = vld [vmem:[%s418 + $0x30] sm:$0xff]
                  %427 = vst [vmem:[%s419 + $0x18] sm:$0xff] %v426
                  %v428 = vld [vmem:[%s418 + $0x40] sm:$0xff]
                  %429 = vst [vmem:[%s419 + $0x20] sm:$0xff] %v428
                  %v430 = vld [vmem:[%s418 + $0x50] sm:$0xff]
                  %431 = vst [vmem:[%s419 + $0x28] sm:$0xff] %v430
                  %v432 = vld [vmem:[%s418 + $0x60] sm:$0xff]
                  %433 = vst [vmem:[%s419 + $0x30] sm:$0xff] %v432
                  %v434 = vld [vmem:[%s418 + $0x70] sm:$0xff]
                  %435 = vst [vmem:[%s419 + $0x38] sm:$0xff] %v434
                  %v436 = vld [vmem:[%s418 + $0x80] sm:$0xff]
                  %437 = vst [vmem:[%s419 + $0x40] sm:$0xff] %v436
                  %v438 = vld [vmem:[%s418 + $0x90] sm:$0xff]
                  %439 = vst [vmem:[%s419 + $0x48] sm:$0xff] %v438
                  %v440 = vld [vmem:[%s418 + $0xa0] sm:$0xff]
                  %441 = vst [vmem:[%s419 + $0x50] sm:$0xff] %v440
                  %v442 = vld [vmem:[%s418 + $0xb0] sm:$0xff]
                  %443 = vst [vmem:[%s419 + $0x58] sm:$0xff] %v442
                $region76: #{tpu_custom_call.1} parent=70 // loop_footer
                  %s417 = sadd.s32 1, %s413
                $region77: #{tpu_custom_call.1} parent=70 // loop_footer_branch
                  %412 = sbr.rel target = $region73
                $region78: #{tpu_custom_call.1} parent=70 // loop_exit
                  _
              $region71: #{tpu_custom_call.1} parent=55 // pred_fallthru
                _
              // Predicated region
              $region79: #{tpu_custom_call.1} parent=55 // pred_check
                _
              $region80: #{tpu_custom_call.1} parent=55 // pred_check_branch
                %445 = sbr.rel target = $region82
              $region81: #{tpu_custom_call.1} parent=55 // pred_region
                _
              $region82: #{tpu_custom_call.1} parent=55 // pred_fallthru
                _
            $region56: #{tpu_custom_call.1} parent=51 // pred_fallthru
              _
            // Predicated region
            $region57: #{tpu_custom_call.1} parent=51 // pred_check
              _
            $region58: #{tpu_custom_call.1} parent=51 // pred_check_branch
              %375 = sbr.rel target = $region60
            $region59: #{tpu_custom_call.1} parent=51 // pred_region
              %s377 = ssub.s32 256, 1
              loop: start=0, step=1, limit=1
              $region61: #{tpu_custom_call.1} parent=59 // loop_pre_header
                _
              $region62: #{tpu_custom_call.1} parent=59 // loop_header
                %s379 = sphi 0, %s383
                %p380 = scmp.ge.s32.totalorder %s379, 1
                %s384 = sphi %s369, %s369
                %s385 = sphi %s365, %s365
              $region63: #{tpu_custom_call.1} parent=59 // loop_header_branch
                %382 = sbr.rel (%p380) target = $region67
              $region64: #{tpu_custom_call.1} parent=59 // loop_body
                %v386 = vld [vmem:[%s384] sm:%s377]
                %387 = vst [vmem:[%s385] sm:%s377] %v386
                %v388 = vld [vmem:[%s384 + $0x10] sm:%s377]
                %389 = vst [vmem:[%s385 + $0x8] sm:%s377] %v388
                %v390 = vld [vmem:[%s384 + $0x20] sm:%s377]
                %391 = vst [vmem:[%s385 + $0x10] sm:%s377] %v390
                %v392 = vld [vmem:[%s384 + $0x30] sm:%s377]
                %393 = vst [vmem:[%s385 + $0x18] sm:%s377] %v392
                %v394 = vld [vmem:[%s384 + $0x40] sm:%s377]
                %395 = vst [vmem:[%s385 + $0x20] sm:%s377] %v394
                %v396 = vld [vmem:[%s384 + $0x50] sm:%s377]
                %397 = vst [vmem:[%s385 + $0x28] sm:%s377] %v396
                %v398 = vld [vmem:[%s384 + $0x60] sm:%s377]
                %399 = vst [vmem:[%s385 + $0x30] sm:%s377] %v398
                %v400 = vld [vmem:[%s384 + $0x70] sm:%s377]
                %401 = vst [vmem:[%s385 + $0x38] sm:%s377] %v400
                %v402 = vld [vmem:[%s384 + $0x80] sm:%s377]
                %403 = vst [vmem:[%s385 + $0x40] sm:%s377] %v402
                %v404 = vld [vmem:[%s384 + $0x90] sm:%s377]
                %405 = vst [vmem:[%s385 + $0x48] sm:%s377] %v404
                %v406 = vld [vmem:[%s384 + $0xa0] sm:%s377]
                %407 = vst [vmem:[%s385 + $0x50] sm:%s377] %v406
                %v408 = vld [vmem:[%s384 + $0xb0] sm:%s377]
                %409 = vst [vmem:[%s385 + $0x58] sm:%s377] %v408
              $region65: #{tpu_custom_call.1} parent=59 // loop_footer
                %s383 = sadd.s32 1, %s379
              $region66: #{tpu_custom_call.1} parent=59 // loop_footer_branch
                %378 = sbr.rel target = $region62
              $region67: #{tpu_custom_call.1} parent=59 // loop_exit
                _
            $region60: #{tpu_custom_call.1} parent=51 // pred_fallthru
              _
          $region52: #{tpu_custom_call.1} parent=47 // pred_fallthru
            _
          %446 = vnop
        $region48: #{tpu_custom_call.1} parent=43 // pred_fallthru
          _
        // Predicated region
        $region83: #{tpu_custom_call.1} parent=43 // pred_check
          %p447 = pneg %p84
        $region84: #{tpu_custom_call.1} parent=43 // pred_check_branch
          %449 = sbr.rel (%p447) target = $region86
        $region85: #{tpu_custom_call.1} parent=43 // pred_region
          %p450 = scmp.lt.s32.totalorder %s31, 1
          %s451 = scalar_select %p450, %s31, 1
          %s452 = smul.addr %s451, 24
          %s453 = smul.addr %s452, 8
          %s454 = scalar_lea.vmem %s1, %s453
        $region86: #{tpu_custom_call.1} parent=43 // pred_fallthru
          _
        // Predicated region
        $region87: #{tpu_custom_call.1} parent=43 // pred_check
          %p455 = pneg %p110
        $region88: #{tpu_custom_call.1} parent=43 // pred_check_branch
          %457 = sbr.rel (%p455) target = $region90
        $region89: #{tpu_custom_call.1} parent=43 // pred_region
          %p458 = scmp.lt.s32.totalorder %s31, 1
          %s459 = scalar_select %p458, %s31, 1
          %s460 = smul.addr %s459, 6
          %s461 = smul.addr %s460, 4
          %s462 = scalar_lea.vmem %s2, %s461
        $region90: #{tpu_custom_call.1} parent=43 // pred_fallthru
          _
      $region44: #{tpu_custom_call.1} parent=5 // pred_fallthru
        _
      %p463 = scmp.le.s32.totalorder 1, %s24
      %p464 = scmp.lt.s32.totalorder %s24, 5
      %p465 = pnand %p463, %p464
      %p466 = pneg %p465
      // Predicated region
      $region91: #{tpu_custom_call.1} parent=5 // pred_check
        _
      $region92: #{tpu_custom_call.1} parent=5 // pred_check_branch
        %468 = sbr.rel (%p465) target = $region94
      $region93: #{tpu_custom_call.1} parent=5 // pred_region
        %s469 = ssub.s32 %s24, 1
        %s470 = sand.u32 %s51, 1
        %s471 = sand.u32 %s51, 1
        %s472 = smul.addr %s471, 96
        %s473 = scalar_lea.vmem [#allocation2], %s472
        // Predicated region
        $region95: #{tpu_custom_call.1} parent=93 // pred_check
          %p474 = pneg %p64
        $region96: #{tpu_custom_call.1} parent=93 // pred_check_branch
          %476 = sbr.rel (%p474) target = $region98
        $region97: #{tpu_custom_call.1} parent=93 // pred_region
          _
        $region98: #{tpu_custom_call.1} parent=93 // pred_fallthru
          _
        %s477 = sand.u32 %s51, 1
        %s478 = sand.u32 %s51, 1
        %s479 = smul.addr %s478, 96
        %s480 = scalar_lea.vmem [#allocation2], %s479
        %p481 = pneg %p64
        %p482 = pneg %p61
        %p483 = scmp.lt.s32.totalorder %s33, 1
        %s484 = scalar_select %p483, %s33, 1
        %s485 = smul.addr %s484, 24
        %s486 = smul.addr %s485, 8
        %s487 = scalar_lea.vmem %s1, %s486
        %p488 = pneg %p90
        %p489 = pneg %p87
        %p490 = scmp.lt.s32.totalorder %s33, 1
        %s491 = scalar_select %p490, %s33, 1
        %s492 = smul.addr %s491, 6
        %s493 = smul.addr %s492, 4
        %s494 = scalar_lea.vmem %s2, %s493
        %p495 = pneg %p116
        %p496 = pneg %p113
        %p497 = pneg %p137
        %p498 = pneg %p134
        %p499 = pneg %p158
        %p500 = pneg %p155
        %p501 = pneg %p179
        %p502 = pneg %p176
        %p503 = pneg %p200
        %p504 = pneg %p197
        %p505 = pneg %p221
        %p506 = pneg %p218
        %p507 = pneg %p242
        %p508 = pneg %p239
        %p509 = pneg %p263
        %p510 = pneg %p260
        %p511 = pneg %p291
        %p512 = pneg %p288
        %s513 = sand.u32 %s278, 1
        %s514 = scalar_lea.sflag [#allocation4], %s513
        %s515 = sand.u32 %s278, 1
        %s516 = smul.addr %s515, 16
        %s517 = scalar_lea.vmem [#allocation3], %s516
        %p518 = pneg %p319
        %p519 = pneg %p316
        %s520 = sand.u32 %s306, 1
        %s521 = scalar_lea.sflag [#allocation6], %s520
        %s522 = sand.u32 %s306, 1
        %s523 = smul.addr %s522, 24
        %s524 = scalar_lea.vmem [#allocation5], %s523
        %p525 = scmp.lt.s32.totalorder %s33, 1
        %s526 = scalar_select %p525, %s33, 1
        %s527 = smul.addr %s526, 24
        %s528 = smul.addr %s527, 8
        %s529 = scalar_lea.vmem %s1, %s528
        %p530 = scmp.lt.s32.totalorder %s33, 1
        %s531 = scalar_select %p530, %s33, 1
        %s532 = smul.addr %s531, 6
        %s533 = smul.addr %s532, 4
        %s534 = scalar_lea.vmem %s2, %s533
        %v535 = vld [vmem:[%s473] sm:$0xff]
        %v536 = vld [vmem:[%s473 + $0x8] sm:$0xff]
        %v537 = vld [vmem:[%s473 + $0x10] sm:$0xff]
        %v538 = vld [vmem:[%s473 + $0x18] sm:$0xff]
        %v539 = vld [vmem:[%s473 + $0x20] sm:$0xff]
        %v540 = vld [vmem:[%s473 + $0x28] sm:$0xff]
        %v541 = vld [vmem:[%s473 + $0x30] sm:$0xff]
        %v542 = vld [vmem:[%s473 + $0x38] sm:$0xff]
        %v543 = vld [vmem:[%s473 + $0x40] sm:$0xff]
        %v544 = vld [vmem:[%s473 + $0x48] sm:$0xff]
        %v545 = vld [vmem:[%s473 + $0x50] sm:$0xff]
        %v546 = vld [vmem:[%s473 + $0x58] sm:$0xff]
        %v547 = vld [vmem:[%s529] sm:$0xff]
        %v548 = vld [vmem:[%s529 + $0x8] sm:$0xff]
        %v549 = vld [vmem:[%s529 + $0x10] sm:$0xff]
        %v550 = vld [vmem:[%s529 + $0x18] sm:$0xff]
        %v551 = vld [vmem:[%s529 + $0x20] sm:$0xff]
        %v552 = vld [vmem:[%s529 + $0x28] sm:$0xff]
        %v553 = vld [vmem:[%s529 + $0x30] sm:$0xff]
        %v554 = vld [vmem:[%s529 + $0x38] sm:$0xff]
        %v555 = vld [vmem:[%s529 + $0x40] sm:$0xff]
        %v556 = vld [vmem:[%s529 + $0x48] sm:$0xff]
        %v557 = vld [vmem:[%s529 + $0x50] sm:$0xff]
        %v558 = vld [vmem:[%s529 + $0x58] sm:$0xff]
        %v559 = vld [vmem:[%s529 + $0x60] sm:$0xff]
        %v560 = vld [vmem:[%s529 + $0x68] sm:$0xff]
        %v561 = vld [vmem:[%s529 + $0x70] sm:$0xff]
        %v562 = vld [vmem:[%s529 + $0x78] sm:$0xff]
        %v563 = vld [vmem:[%s529 + $0x80] sm:$0xff]
        %v564 = vld [vmem:[%s529 + $0x88] sm:$0xff]
        %v565 = vld [vmem:[%s529 + $0x90] sm:$0xff]
        %v566 = vld [vmem:[%s529 + $0x98] sm:$0xff]
        %v567 = vld [vmem:[%s529 + $0xa0] sm:$0xff]
        %v568 = vld [vmem:[%s529 + $0xa8] sm:$0xff]
        %v569 = vld [vmem:[%s529 + $0xb0] sm:$0xff]
        %v570 = vld [vmem:[%s529 + $0xb8] sm:$0xff]
        %v571 = vld [vmem:[%s534] sm:$0xf]
        %v572 = vld [vmem:[%s534 + $0x4] sm:$0xf]
        %v573 = vld [vmem:[%s534 + $0x8] sm:$0xf]
        %v574 = vld [vmem:[%s534 + $0xc] sm:$0xf]
        %v575 = vld [vmem:[%s534 + $0x10] sm:$0xf]
        %v576 = vld [vmem:[%s534 + $0x14] sm:$0xf]
        %v577 = vadd.f32 %v535, %v537
        %v578 = vadd.f32 %v577, %v539
        %v579 = vadd.f32 %v578, %v541
        %v580 = vadd.f32 %v579, %v543
        %v581 = vadd.f32 %v580, %v545
        %v582 = vadd.f32 %v536, %v538
        %v583 = vadd.f32 %v582, %v540
        %v584 = vadd.f32 %v583, %v542
        %v585 = vadd.f32 %v584, %v544
        %v586 = vadd.f32 %v585, %v546
        %v587 = vld [vmem:[%s3] sm:$0xff]
        %v588 = vld [vmem:[%s3 + $0x8] sm:$0xff]
        %vm589 = vcmask 130048
        %v591 = vsel %vm589, %v587, 0
        %v594 = vsel %vm589, %v588, 0
        %596 = vmatprep.subr.mxu0 0.0
        %597 = vmatpush1.msra.mxu0 0.0
        %598 = vmatprep.subr.mxu0 0.0
        %599 = vmatpush1.msra.mxu0 0.0
        %600 = vmatprep.subr.mxu0 0.0
        %601 = vmatpush1.msra.mxu0 0.0
        %602 = vmatprep.subr.mxu0 0.0
        %603 = vmatpush1.msra.mxu0 0.0
        %604 = vmatprep.subr.mxu0 0.0
        %605 = vmatpush1.msra.mxu0 0.0
        %606 = vmatprep.subr.mxu0 0.0
        %607 = vmatpush1.msra.mxu0 0.0
        %608 = vmatprep.subr.mxu0 0.0
        %609 = vmatpush1.msra.mxu0 0.0
        %610 = vmatprep.subr.mxu0 0.0
        %611 = vmatpush1.msra.mxu0 0.0
        %612 = vmatprep.subr.mxu0 0.0
        %613 = vmatpush1.msra.mxu0 0.0
        %614 = vmatprep.subr.mxu0 0.0
        %615 = vmatpush1.msra.mxu0 0.0
        %616 = vmatprep.subr.mxu0 0.0
        %617 = vmatpush1.msra.mxu0 0.0
        %618 = vmatprep.subr.mxu0 0.0
        %619 = vmatpush1.msra.mxu0 0.0
        %620 = vmatprep.subr.mxu0 0.0
        %621 = vmatpush1.msra.mxu0 0.0
        %622 = vmatprep.subr.mxu0 0.0
        %623 = vmatpush1.msra.mxu0 0.0
        %624 = vmatprep.subr.mxu0 0.0
        %v625 = vand.u32 %v586, 4294901760
        %626 = vmatpush1.msra.mxu0 %v625
        %627 = vmatprep.subr.mxu0 0.0
        %v628 = vand.u32 %v581, 4294901760
        %629 = vmatpush1.msra.mxu0 %v628
        %630 = vmatprep.subr.mxu0 0.0
        %631 = vmatpush2.msra.mxu0 0.0
        %632 = vmatprep.subr.mxu0 0.0
        %633 = vmatpush2.msra.mxu0 0.0
        %634 = vmatprep.subr.mxu0 0.0
        %635 = vmatpush2.msra.mxu0 0.0
        %636 = vmatprep.subr.mxu0 0.0
        %637 = vmatpush2.msra.mxu0 0.0
        %638 = vmatprep.subr.mxu0 0.0
        %639 = vmatpush2.msra.mxu0 0.0
        %640 = vmatprep.subr.mxu0 0.0
        %641 = vmatpush2.msra.mxu0 0.0
        %642 = vmatprep.subr.mxu0 0.0
        %643 = vmatpush2.msra.mxu0 0.0
        %644 = vmatprep.subr.mxu0 0.0
        %645 = vmatpush2.msra.mxu0 0.0
        %646 = vmatprep.subr.mxu0 0.0
        %647 = vmatpush2.msra.mxu0 0.0
        %648 = vmatprep.subr.mxu0 0.0
        %649 = vmatpush2.msra.mxu0 0.0
        %650 = vmatprep.subr.mxu0 0.0
        %651 = vmatpush2.msra.mxu0 0.0
        %652 = vmatprep.subr.mxu0 0.0
        %653 = vmatpush2.msra.mxu0 0.0
        %654 = vmatprep.subr.mxu0 0.0
        %655 = vmatpush2.msra.mxu0 0.0
        %656 = vmatprep.subr.mxu0 0.0
        %657 = vmatpush2.msra.mxu0 0.0
        %658 = vmatprep.subr.mxu0 0.0
        %659 = vmatpush2.msra.mxu0 0.0
        %660 = vmatprep.subr.mxu0 0.0
        %661 = vmatpush2.msra.mxu0 0.0
        %662 = vmatprep.mubr.f32.mxu0 0.0
        %v663 = vand.u32 %v591, 4294901760
        %v664 = vsub.f32 %v591, %v663
        %v665 = vand.u32 %v664, 4294901760
        %v666 = vsub.f32 %v664, %v665
        %v667 = vand.u32 %v666, 4294901760
        %668 = vmatmul.mubr.f32.gmra.mxu0 %v667
        %v669 = vpop.f32.mrf.mxu0
        %v670 = vadd.f32 0.0, %v669
        %v671 = vpop.f32.mrf.mxu0
        %672 = vmatprep.mubr.f32.mxu0 0.0
        %v673 = vand.u32 %v594, 4294901760
        %v674 = vsub.f32 %v594, %v673
        %v675 = vand.u32 %v674, 4294901760
        %v676 = vsub.f32 %v674, %v675
        %v677 = vand.u32 %v676, 4294901760
        %678 = vmatmul.mubr.f32.gmra.mxu0 %v677
        %v679 = vpop.f32.mrf.mxu0
        %v680 = vadd.f32 0.0, %v679
        %v681 = vpop.f32.mrf.mxu0
        %682 = vdwg.mxu0
        %683 = vmatprep.subr.mxu0 0.0
        %684 = vmatpush1.msra.mxu0 0.0
        %685 = vmatprep.subr.mxu0 0.0
        %686 = vmatpush1.msra.mxu0 0.0
        %687 = vmatprep.subr.mxu0 0.0
        %688 = vmatpush1.msra.mxu0 0.0
        %689 = vmatprep.subr.mxu0 0.0
        %690 = vmatpush1.msra.mxu0 0.0
        %691 = vmatprep.subr.mxu0 0.0
        %692 = vmatpush1.msra.mxu0 0.0
        %693 = vmatprep.subr.mxu0 0.0
        %694 = vmatpush1.msra.mxu0 0.0
        %695 = vmatprep.subr.mxu0 0.0
        %696 = vmatpush1.msra.mxu0 0.0
        %697 = vmatprep.subr.mxu0 0.0
        %698 = vmatpush1.msra.mxu0 0.0
        %699 = vmatprep.subr.mxu0 0.0
        %700 = vmatpush1.msra.mxu0 0.0
        %701 = vmatprep.subr.mxu0 0.0
        %702 = vmatpush1.msra.mxu0 0.0
        %703 = vmatprep.subr.mxu0 0.0
        %704 = vmatpush1.msra.mxu0 0.0
        %705 = vmatprep.subr.mxu0 0.0
        %706 = vmatpush1.msra.mxu0 0.0
        %707 = vmatprep.subr.mxu0 0.0
        %708 = vmatpush1.msra.mxu0 0.0
        %709 = vmatprep.subr.mxu0 0.0
        %710 = vmatpush1.msra.mxu0 0.0
        %711 = vmatprep.subr.mxu0 0.0
        %v712 = vand.u32 %v586, 4294901760
        %v713 = vsub.f32 %v586, %v712
        %v714 = vand.u32 %v713, 4294901760
        %v715 = vsub.f32 %v713, %v714
        %v716 = vand.u32 %v715, 4294901760
        %717 = vmatpush1.msra.mxu0 %v716
        %718 = vmatprep.subr.mxu0 0.0
        %v719 = vand.u32 %v581, 4294901760
        %v720 = vsub.f32 %v581, %v719
        %v721 = vand.u32 %v720, 4294901760
        %v722 = vsub.f32 %v720, %v721
        %v723 = vand.u32 %v722, 4294901760
        %724 = vmatpush1.msra.mxu0 %v723
        %725 = vmatprep.subr.mxu0 0.0
        %726 = vmatpush2.msra.mxu0 0.0
        %727 = vmatprep.subr.mxu0 0.0
        %728 = vmatpush2.msra.mxu0 0.0
        %729 = vmatprep.subr.mxu0 0.0
        %730 = vmatpush2.msra.mxu0 0.0
        %731 = vmatprep.subr.mxu0 0.0
        %732 = vmatpush2.msra.mxu0 0.0
        %733 = vmatprep.subr.mxu0 0.0
        %734 = vmatpush2.msra.mxu0 0.0
        %735 = vmatprep.subr.mxu0 0.0
        %736 = vmatpush2.msra.mxu0 0.0
        %737 = vmatprep.subr.mxu0 0.0
        %738 = vmatpush2.msra.mxu0 0.0
        %739 = vmatprep.subr.mxu0 0.0
        %740 = vmatpush2.msra.mxu0 0.0
        %741 = vmatprep.subr.mxu0 0.0
        %742 = vmatpush2.msra.mxu0 0.0
        %743 = vmatprep.subr.mxu0 0.0
        %744 = vmatpush2.msra.mxu0 0.0
        %745 = vmatprep.subr.mxu0 0.0
        %746 = vmatpush2.msra.mxu0 0.0
        %747 = vmatprep.subr.mxu0 0.0
        %748 = vmatpush2.msra.mxu0 0.0
        %749 = vmatprep.subr.mxu0 0.0
        %750 = vmatpush2.msra.mxu0 0.0
        %751 = vmatprep.subr.mxu0 0.0
        %752 = vmatpush2.msra.mxu0 0.0
        %753 = vmatprep.subr.mxu0 0.0
        %754 = vmatpush2.msra.mxu0 0.0
        %755 = vmatprep.subr.mxu0 0.0
        %756 = vmatpush2.msra.mxu0 0.0
        %757 = vmatprep.mubr.f32.mxu0 0.0
        %v758 = vand.u32 %v591, 4294901760
        %759 = vmatmul.mubr.f32.gmra.mxu0 %v758
        %v760 = vpop.f32.mrf.mxu0
        %v761 = vadd.f32 %v670, %v760
        %v762 = vpop.f32.mrf.mxu0
        %763 = vmatprep.mubr.f32.mxu0 0.0
        %v764 = vand.u32 %v594, 4294901760
        %765 = vmatmul.mubr.f32.gmra.mxu0 %v764
        %v766 = vpop.f32.mrf.mxu0
        %v767 = vadd.f32 %v680, %v766
        %v768 = vpop.f32.mrf.mxu0
        %769 = vdwg.mxu0
        %770 = vmatprep.subr.mxu0 0.0
        %771 = vmatpush1.msra.mxu0 0.0
        %772 = vmatprep.subr.mxu0 0.0
        %773 = vmatpush1.msra.mxu0 0.0
        %774 = vmatprep.subr.mxu0 0.0
        %775 = vmatpush1.msra.mxu0 0.0
        %776 = vmatprep.subr.mxu0 0.0
        %777 = vmatpush1.msra.mxu0 0.0
        %778 = vmatprep.subr.mxu0 0.0
        %779 = vmatpush1.msra.mxu0 0.0
        %780 = vmatprep.subr.mxu0 0.0
        %781 = vmatpush1.msra.mxu0 0.0
        %782 = vmatprep.subr.mxu0 0.0
        %783 = vmatpush1.msra.mxu0 0.0
        %784 = vmatprep.subr.mxu0 0.0
        %785 = vmatpush1.msra.mxu0 0.0
        %786 = vmatprep.subr.mxu0 0.0
        %787 = vmatpush1.msra.mxu0 0.0
        %788 = vmatprep.subr.mxu0 0.0
        %789 = vmatpush1.msra.mxu0 0.0
        %790 = vmatprep.subr.mxu0 0.0
        %791 = vmatpush1.msra.mxu0 0.0
        %792 = vmatprep.subr.mxu0 0.0
        %793 = vmatpush1.msra.mxu0 0.0
        %794 = vmatprep.subr.mxu0 0.0
        %795 = vmatpush1.msra.mxu0 0.0
        %796 = vmatprep.subr.mxu0 0.0
        %797 = vmatpush1.msra.mxu0 0.0
        %798 = vmatprep.subr.mxu0 0.0
        %v799 = vand.u32 %v586, 4294901760
        %v800 = vsub.f32 %v586, %v799
        %801 = vmatpush1.msra.mxu0 %v800
        %802 = vmatprep.subr.mxu0 0.0
        %v803 = vand.u32 %v581, 4294901760
        %v804 = vsub.f32 %v581, %v803
        %805 = vmatpush1.msra.mxu0 %v804
        %806 = vmatprep.subr.mxu0 0.0
        %807 = vmatpush2.msra.mxu0 0.0
        %808 = vmatprep.subr.mxu0 0.0
        %809 = vmatpush2.msra.mxu0 0.0
        %810 = vmatprep.subr.mxu0 0.0
        %811 = vmatpush2.msra.mxu0 0.0
        %812 = vmatprep.subr.mxu0 0.0
        %813 = vmatpush2.msra.mxu0 0.0
        %814 = vmatprep.subr.mxu0 0.0
        %815 = vmatpush2.msra.mxu0 0.0
        %816 = vmatprep.subr.mxu0 0.0
        %817 = vmatpush2.msra.mxu0 0.0
        %818 = vmatprep.subr.mxu0 0.0
        %819 = vmatpush2.msra.mxu0 0.0
        %820 = vmatprep.subr.mxu0 0.0
        %821 = vmatpush2.msra.mxu0 0.0
        %822 = vmatprep.subr.mxu0 0.0
        %823 = vmatpush2.msra.mxu0 0.0
        %824 = vmatprep.subr.mxu0 0.0
        %825 = vmatpush2.msra.mxu0 0.0
        %826 = vmatprep.subr.mxu0 0.0
        %827 = vmatpush2.msra.mxu0 0.0
        %828 = vmatprep.subr.mxu0 0.0
        %829 = vmatpush2.msra.mxu0 0.0
        %830 = vmatprep.subr.mxu0 0.0
        %831 = vmatpush2.msra.mxu0 0.0
        %832 = vmatprep.subr.mxu0 0.0
        %833 = vmatpush2.msra.mxu0 0.0
        %834 = vmatprep.subr.mxu0 0.0
        %835 = vmatpush2.msra.mxu0 0.0
        %836 = vmatprep.subr.mxu0 0.0
        %837 = vmatpush2.msra.mxu0 0.0
        %838 = vmatprep.mubr.f32.mxu0 0.0
        %v839 = vand.u32 %v591, 4294901760
        %v840 = vsub.f32 %v591, %v839
        %841 = vmatmul.mubr.f32.gmra.mxu0 %v840
        %v842 = vpop.f32.mrf.mxu0
        %v843 = vadd.f32 %v761, %v842
        %v844 = vpop.f32.mrf.mxu0
        %845 = vmatprep.mubr.f32.mxu0 0.0
        %v846 = vand.u32 %v594, 4294901760
        %v847 = vsub.f32 %v594, %v846
        %848 = vmatmul.mubr.f32.gmra.mxu0 %v847
        %v849 = vpop.f32.mrf.mxu0
        %v850 = vadd.f32 %v767, %v849
        %v851 = vpop.f32.mrf.mxu0
        %852 = vdwg.mxu0
        %853 = vmatprep.subr.mxu0 0.0
        %854 = vmatpush1.msra.mxu0 0.0
        %855 = vmatprep.subr.mxu0 0.0
        %856 = vmatpush1.msra.mxu0 0.0
        %857 = vmatprep.subr.mxu0 0.0
        %858 = vmatpush1.msra.mxu0 0.0
        %859 = vmatprep.subr.mxu0 0.0
        %860 = vmatpush1.msra.mxu0 0.0
        %861 = vmatprep.subr.mxu0 0.0
        %862 = vmatpush1.msra.mxu0 0.0
        %863 = vmatprep.subr.mxu0 0.0
        %864 = vmatpush1.msra.mxu0 0.0
        %865 = vmatprep.subr.mxu0 0.0
        %866 = vmatpush1.msra.mxu0 0.0
        %867 = vmatprep.subr.mxu0 0.0
        %868 = vmatpush1.msra.mxu0 0.0
        %869 = vmatprep.subr.mxu0 0.0
        %870 = vmatpush1.msra.mxu0 0.0
        %871 = vmatprep.subr.mxu0 0.0
        %872 = vmatpush1.msra.mxu0 0.0
        %873 = vmatprep.subr.mxu0 0.0
        %874 = vmatpush1.msra.mxu0 0.0
        %875 = vmatprep.subr.mxu0 0.0
        %876 = vmatpush1.msra.mxu0 0.0
        %877 = vmatprep.subr.mxu0 0.0
        %878 = vmatpush1.msra.mxu0 0.0
        %879 = vmatprep.subr.mxu0 0.0
        %880 = vmatpush1.msra.mxu0 0.0
        %881 = vmatprep.subr.mxu0 0.0
        %v882 = vand.u32 %v586, 4294901760
        %883 = vmatpush1.msra.mxu0 %v882
        %884 = vmatprep.subr.mxu0 0.0
        %v885 = vand.u32 %v581, 4294901760
        %886 = vmatpush1.msra.mxu0 %v885
        %887 = vmatprep.subr.mxu0 0.0
        %888 = vmatpush2.msra.mxu0 0.0
        %889 = vmatprep.subr.mxu0 0.0
        %890 = vmatpush2.msra.mxu0 0.0
        %891 = vmatprep.subr.mxu0 0.0
        %892 = vmatpush2.msra.mxu0 0.0
        %893 = vmatprep.subr.mxu0 0.0
        %894 = vmatpush2.msra.mxu0 0.0
        %895 = vmatprep.subr.mxu0 0.0
        %896 = vmatpush2.msra.mxu0 0.0
        %897 = vmatprep.subr.mxu0 0.0
        %898 = vmatpush2.msra.mxu0 0.0
        %899 = vmatprep.subr.mxu0 0.0
        %900 = vmatpush2.msra.mxu0 0.0
        %901 = vmatprep.subr.mxu0 0.0
        %902 = vmatpush2.msra.mxu0 0.0
        %903 = vmatprep.subr.mxu0 0.0
        %904 = vmatpush2.msra.mxu0 0.0
        %905 = vmatprep.subr.mxu0 0.0
        %906 = vmatpush2.msra.mxu0 0.0
        %907 = vmatprep.subr.mxu0 0.0
        %908 = vmatpush2.msra.mxu0 0.0
        %909 = vmatprep.subr.mxu0 0.0
        %910 = vmatpush2.msra.mxu0 0.0
        %911 = vmatprep.subr.mxu0 0.0
        %912 = vmatpush2.msra.mxu0 0.0
        %913 = vmatprep.subr.mxu0 0.0
        %914 = vmatpush2.msra.mxu0 0.0
        %915 = vmatprep.subr.mxu0 0.0
        %916 = vmatpush2.msra.mxu0 0.0
        %917 = vmatprep.subr.mxu0 0.0
        %918 = vmatpush2.msra.mxu0 0.0
        %919 = vmatprep.mubr.f32.mxu0 0.0
        %v920 = vand.u32 %v591, 4294901760
        %v921 = vsub.f32 %v591, %v920
        %v922 = vand.u32 %v921, 4294901760
        %923 = vmatmul.mubr.f32.gmra.mxu0 %v922
        %v924 = vpop.f32.mrf.mxu0
        %v925 = vadd.f32 %v843, %v924
        %v926 = vpop.f32.mrf.mxu0
        %927 = vmatprep.mubr.f32.mxu0 0.0
        %v928 = vand.u32 %v594, 4294901760
        %v929 = vsub.f32 %v594, %v928
        %v930 = vand.u32 %v929, 4294901760
        %931 = vmatmul.mubr.f32.gmra.mxu0 %v930
        %v932 = vpop.f32.mrf.mxu0
        %v933 = vadd.f32 %v850, %v932
        %v934 = vpop.f32.mrf.mxu0
        %935 = vdwg.mxu0
        %936 = vmatprep.subr.mxu0 0.0
        %937 = vmatpush1.msra.mxu0 0.0
        %938 = vmatprep.subr.mxu0 0.0
        %939 = vmatpush1.msra.mxu0 0.0
        %940 = vmatprep.subr.mxu0 0.0
        %941 = vmatpush1.msra.mxu0 0.0
        %942 = vmatprep.subr.mxu0 0.0
        %943 = vmatpush1.msra.mxu0 0.0
        %944 = vmatprep.subr.mxu0 0.0
        %945 = vmatpush1.msra.mxu0 0.0
        %946 = vmatprep.subr.mxu0 0.0
        %947 = vmatpush1.msra.mxu0 0.0
        %948 = vmatprep.subr.mxu0 0.0
        %949 = vmatpush1.msra.mxu0 0.0
        %950 = vmatprep.subr.mxu0 0.0
        %951 = vmatpush1.msra.mxu0 0.0
        %952 = vmatprep.subr.mxu0 0.0
        %953 = vmatpush1.msra.mxu0 0.0
        %954 = vmatprep.subr.mxu0 0.0
        %955 = vmatpush1.msra.mxu0 0.0
        %956 = vmatprep.subr.mxu0 0.0
        %957 = vmatpush1.msra.mxu0 0.0
        %958 = vmatprep.subr.mxu0 0.0
        %959 = vmatpush1.msra.mxu0 0.0
        %960 = vmatprep.subr.mxu0 0.0
        %961 = vmatpush1.msra.mxu0 0.0
        %962 = vmatprep.subr.mxu0 0.0
        %963 = vmatpush1.msra.mxu0 0.0
        %964 = vmatprep.subr.mxu0 0.0
        %v965 = vand.u32 %v586, 4294901760
        %v966 = vsub.f32 %v586, %v965
        %v967 = vand.u32 %v966, 4294901760
        %968 = vmatpush1.msra.mxu0 %v967
        %969 = vmatprep.subr.mxu0 0.0
        %v970 = vand.u32 %v581, 4294901760
        %v971 = vsub.f32 %v581, %v970
        %v972 = vand.u32 %v971, 4294901760
        %973 = vmatpush1.msra.mxu0 %v972
        %974 = vmatprep.subr.mxu0 0.0
        %975 = vmatpush2.msra.mxu0 0.0
        %976 = vmatprep.subr.mxu0 0.0
        %977 = vmatpush2.msra.mxu0 0.0
        %978 = vmatprep.subr.mxu0 0.0
        %979 = vmatpush2.msra.mxu0 0.0
        %980 = vmatprep.subr.mxu0 0.0
        %981 = vmatpush2.msra.mxu0 0.0
        %982 = vmatprep.subr.mxu0 0.0
        %983 = vmatpush2.msra.mxu0 0.0
        %984 = vmatprep.subr.mxu0 0.0
        %985 = vmatpush2.msra.mxu0 0.0
        %986 = vmatprep.subr.mxu0 0.0
        %987 = vmatpush2.msra.mxu0 0.0
        %988 = vmatprep.subr.mxu0 0.0
        %989 = vmatpush2.msra.mxu0 0.0
        %990 = vmatprep.subr.mxu0 0.0
        %991 = vmatpush2.msra.mxu0 0.0
        %992 = vmatprep.subr.mxu0 0.0
        %993 = vmatpush2.msra.mxu0 0.0
        %994 = vmatprep.subr.mxu0 0.0
        %995 = vmatpush2.msra.mxu0 0.0
        %996 = vmatprep.subr.mxu0 0.0
        %997 = vmatpush2.msra.mxu0 0.0
        %998 = vmatprep.subr.mxu0 0.0
        %999 = vmatpush2.msra.mxu0 0.0
        %1000 = vmatprep.subr.mxu0 0.0
        %1001 = vmatpush2.msra.mxu0 0.0
        %1002 = vmatprep.subr.mxu0 0.0
        %1003 = vmatpush2.msra.mxu0 0.0
        %1004 = vmatprep.subr.mxu0 0.0
        %1005 = vmatpush2.msra.mxu0 0.0
        %1006 = vmatprep.mubr.f32.mxu0 0.0
        %v1007 = vand.u32 %v591, 4294901760
        %1008 = vmatmul.mubr.f32.gmra.mxu0 %v1007
        %v1009 = vpop.f32.mrf.mxu0
        %v1010 = vadd.f32 %v925, %v1009
        %v1011 = vpop.f32.mrf.mxu0
        %1012 = vmatprep.mubr.f32.mxu0 0.0
        %v1013 = vand.u32 %v594, 4294901760
        %1014 = vmatmul.mubr.f32.gmra.mxu0 %v1013
        %v1015 = vpop.f32.mrf.mxu0
        %v1016 = vadd.f32 %v933, %v1015
        %v1017 = vpop.f32.mrf.mxu0
        %1018 = vdwg.mxu0
        %1019 = vmatprep.subr.mxu0 0.0
        %1020 = vmatpush1.msra.mxu0 0.0
        %1021 = vmatprep.subr.mxu0 0.0
        %1022 = vmatpush1.msra.mxu0 0.0
        %1023 = vmatprep.subr.mxu0 0.0
        %1024 = vmatpush1.msra.mxu0 0.0
        %1025 = vmatprep.subr.mxu0 0.0
        %1026 = vmatpush1.msra.mxu0 0.0
        %1027 = vmatprep.subr.mxu0 0.0
        %1028 = vmatpush1.msra.mxu0 0.0
        %1029 = vmatprep.subr.mxu0 0.0
        %1030 = vmatpush1.msra.mxu0 0.0
        %1031 = vmatprep.subr.mxu0 0.0
        %1032 = vmatpush1.msra.mxu0 0.0
        %1033 = vmatprep.subr.mxu0 0.0
        %1034 = vmatpush1.msra.mxu0 0.0
        %1035 = vmatprep.subr.mxu0 0.0
        %1036 = vmatpush1.msra.mxu0 0.0
        %1037 = vmatprep.subr.mxu0 0.0
        %1038 = vmatpush1.msra.mxu0 0.0
        %1039 = vmatprep.subr.mxu0 0.0
        %1040 = vmatpush1.msra.mxu0 0.0
        %1041 = vmatprep.subr.mxu0 0.0
        %1042 = vmatpush1.msra.mxu0 0.0
        %1043 = vmatprep.subr.mxu0 0.0
        %1044 = vmatpush1.msra.mxu0 0.0
        %1045 = vmatprep.subr.mxu0 0.0
        %1046 = vmatpush1.msra.mxu0 0.0
        %1047 = vmatprep.subr.mxu0 0.0
        %v1048 = vand.u32 %v586, 4294901760
        %1049 = vmatpush1.msra.mxu0 %v1048
        %1050 = vmatprep.subr.mxu0 0.0
        %v1051 = vand.u32 %v581, 4294901760
        %1052 = vmatpush1.msra.mxu0 %v1051
        %1053 = vmatprep.subr.mxu0 0.0
        %1054 = vmatpush2.msra.mxu0 0.0
        %1055 = vmatprep.subr.mxu0 0.0
        %1056 = vmatpush2.msra.mxu0 0.0
        %1057 = vmatprep.subr.mxu0 0.0
        %1058 = vmatpush2.msra.mxu0 0.0
        %1059 = vmatprep.subr.mxu0 0.0
        %1060 = vmatpush2.msra.mxu0 0.0
        %1061 = vmatprep.subr.mxu0 0.0
        %1062 = vmatpush2.msra.mxu0 0.0
        %1063 = vmatprep.subr.mxu0 0.0
        %1064 = vmatpush2.msra.mxu0 0.0
        %1065 = vmatprep.subr.mxu0 0.0
        %1066 = vmatpush2.msra.mxu0 0.0
        %1067 = vmatprep.subr.mxu0 0.0
        %1068 = vmatpush2.msra.mxu0 0.0
        %1069 = vmatprep.subr.mxu0 0.0
        %1070 = vmatpush2.msra.mxu0 0.0
        %1071 = vmatprep.subr.mxu0 0.0
        %1072 = vmatpush2.msra.mxu0 0.0
        %1073 = vmatprep.subr.mxu0 0.0
        %1074 = vmatpush2.msra.mxu0 0.0
        %1075 = vmatprep.subr.mxu0 0.0
        %1076 = vmatpush2.msra.mxu0 0.0
        %1077 = vmatprep.subr.mxu0 0.0
        %1078 = vmatpush2.msra.mxu0 0.0
        %1079 = vmatprep.subr.mxu0 0.0
        %1080 = vmatpush2.msra.mxu0 0.0
        %1081 = vmatprep.subr.mxu0 0.0
        %1082 = vmatpush2.msra.mxu0 0.0
        %1083 = vmatprep.subr.mxu0 0.0
        %1084 = vmatpush2.msra.mxu0 0.0
        %1085 = vmatprep.mubr.f32.mxu0 0.0
        %v1086 = vand.u32 %v591, 4294901760
        %1087 = vmatmul.mubr.f32.gmra.mxu0 %v1086
        %v1088 = vpop.f32.mrf.mxu0
        %v1089 = vadd.f32 %v1010, %v1088
        %v1090 = vpop.f32.mrf.mxu0
        %1091 = vmatprep.mubr.f32.mxu0 0.0
        %v1092 = vand.u32 %v594, 4294901760
        %1093 = vmatmul.mubr.f32.gmra.mxu0 %v1092
        %v1094 = vpop.f32.mrf.mxu0
        %v1095 = vadd.f32 %v1016, %v1094
        %v1096 = vpop.f32.mrf.mxu0
        %1097 = vdwg.mxu0
        %v1098 = vsub.f32 %v535, %v1089
        %v1099 = vsub.f32 %v536, %v1095
        %v1100 = vsub.f32 %v537, %v1089
        %v1101 = vsub.f32 %v538, %v1095
        %v1102 = vsub.f32 %v539, %v1089
        %v1103 = vsub.f32 %v540, %v1095
        %v1104 = vsub.f32 %v541, %v1089
        %v1105 = vsub.f32 %v542, %v1095
        %v1106 = vsub.f32 %v543, %v1089
        %v1107 = vsub.f32 %v544, %v1095
        %v1108 = vsub.f32 %v545, %v1089
        %v1109 = vsub.f32 %v546, %v1095
        %v1110 = vmul.f32 %v1098, %v1098
        %v1111 = vmul.f32 %v1099, %v1099
        %v1112 = vmul.f32 %v1100, %v1100
        %v1113 = vmul.f32 %v1101, %v1101
        %v1114 = vmul.f32 %v1102, %v1102
        %v1115 = vmul.f32 %v1103, %v1103
        %v1116 = vmul.f32 %v1104, %v1104
        %v1117 = vmul.f32 %v1105, %v1105
        %v1118 = vmul.f32 %v1106, %v1106
        %v1119 = vmul.f32 %v1107, %v1107
        %v1120 = vmul.f32 %v1108, %v1108
        %v1121 = vmul.f32 %v1109, %v1109
        %v1122 = vadd.f32 %v1110, %v1112
        %v1123 = vadd.f32 %v1122, %v1114
        %v1124 = vadd.f32 %v1123, %v1116
        %v1125 = vadd.f32 %v1124, %v1118
        %v1126 = vadd.f32 %v1125, %v1120
        %v1127 = vadd.f32 %v1111, %v1113
        %v1128 = vadd.f32 %v1127, %v1115
        %v1129 = vadd.f32 %v1128, %v1117
        %v1130 = vadd.f32 %v1129, %v1119
        %v1131 = vadd.f32 %v1130, %v1121
        %1132 = vmatprep.subr.mxu0 0.0
        %1133 = vmatpush1.msra.mxu0 0.0
        %1134 = vmatprep.subr.mxu0 0.0
        %1135 = vmatpush1.msra.mxu0 0.0
        %1136 = vmatprep.subr.mxu0 0.0
        %1137 = vmatpush1.msra.mxu0 0.0
        %1138 = vmatprep.subr.mxu0 0.0
        %1139 = vmatpush1.msra.mxu0 0.0
        %1140 = vmatprep.subr.mxu0 0.0
        %1141 = vmatpush1.msra.mxu0 0.0
        %1142 = vmatprep.subr.mxu0 0.0
        %1143 = vmatpush1.msra.mxu0 0.0
        %1144 = vmatprep.subr.mxu0 0.0
        %1145 = vmatpush1.msra.mxu0 0.0
        %1146 = vmatprep.subr.mxu0 0.0
        %1147 = vmatpush1.msra.mxu0 0.0
        %1148 = vmatprep.subr.mxu0 0.0
        %1149 = vmatpush1.msra.mxu0 0.0
        %1150 = vmatprep.subr.mxu0 0.0
        %1151 = vmatpush1.msra.mxu0 0.0
        %1152 = vmatprep.subr.mxu0 0.0
        %1153 = vmatpush1.msra.mxu0 0.0
        %1154 = vmatprep.subr.mxu0 0.0
        %1155 = vmatpush1.msra.mxu0 0.0
        %1156 = vmatprep.subr.mxu0 0.0
        %1157 = vmatpush1.msra.mxu0 0.0
        %1158 = vmatprep.subr.mxu0 0.0
        %1159 = vmatpush1.msra.mxu0 0.0
        %1160 = vmatprep.subr.mxu0 0.0
        %v1161 = vand.u32 %v1131, 4294901760
        %1162 = vmatpush1.msra.mxu0 %v1161
        %1163 = vmatprep.subr.mxu0 0.0
        %v1164 = vand.u32 %v1126, 4294901760
        %1165 = vmatpush1.msra.mxu0 %v1164
        %1166 = vmatprep.subr.mxu0 0.0
        %1167 = vmatpush2.msra.mxu0 0.0
        %1168 = vmatprep.subr.mxu0 0.0
        %1169 = vmatpush2.msra.mxu0 0.0
        %1170 = vmatprep.subr.mxu0 0.0
        %1171 = vmatpush2.msra.mxu0 0.0
        %1172 = vmatprep.subr.mxu0 0.0
        %1173 = vmatpush2.msra.mxu0 0.0
        %1174 = vmatprep.subr.mxu0 0.0
        %1175 = vmatpush2.msra.mxu0 0.0
        %1176 = vmatprep.subr.mxu0 0.0
        %1177 = vmatpush2.msra.mxu0 0.0
        %1178 = vmatprep.subr.mxu0 0.0
        %1179 = vmatpush2.msra.mxu0 0.0
        %1180 = vmatprep.subr.mxu0 0.0
        %1181 = vmatpush2.msra.mxu0 0.0
        %1182 = vmatprep.subr.mxu0 0.0
        %1183 = vmatpush2.msra.mxu0 0.0
        %1184 = vmatprep.subr.mxu0 0.0
        %1185 = vmatpush2.msra.mxu0 0.0
        %1186 = vmatprep.subr.mxu0 0.0
        %1187 = vmatpush2.msra.mxu0 0.0
        %1188 = vmatprep.subr.mxu0 0.0
        %1189 = vmatpush2.msra.mxu0 0.0
        %1190 = vmatprep.subr.mxu0 0.0
        %1191 = vmatpush2.msra.mxu0 0.0
        %1192 = vmatprep.subr.mxu0 0.0
        %1193 = vmatpush2.msra.mxu0 0.0
        %1194 = vmatprep.subr.mxu0 0.0
        %1195 = vmatpush2.msra.mxu0 0.0
        %1196 = vmatprep.subr.mxu0 0.0
        %1197 = vmatpush2.msra.mxu0 0.0
        %1198 = vmatprep.mubr.f32.mxu0 0.0
        %v1199 = vand.u32 %v591, 4294901760
        %v1200 = vsub.f32 %v591, %v1199
        %v1201 = vand.u32 %v1200, 4294901760
        %v1202 = vsub.f32 %v1200, %v1201
        %v1203 = vand.u32 %v1202, 4294901760
        %1204 = vmatmul.mubr.f32.gmra.mxu0 %v1203
        %v1205 = vpop.f32.mrf.mxu0
        %v1206 = vadd.f32 1e-05, %v1205
        %v1207 = vpop.f32.mrf.mxu0
        %1208 = vmatprep.mubr.f32.mxu0 0.0
        %v1209 = vand.u32 %v594, 4294901760
        %v1210 = vsub.f32 %v594, %v1209
        %v1211 = vand.u32 %v1210, 4294901760
        %v1212 = vsub.f32 %v1210, %v1211
        %v1213 = vand.u32 %v1212, 4294901760
        %1214 = vmatmul.mubr.f32.gmra.mxu0 %v1213
        %v1215 = vpop.f32.mrf.mxu0
        %v1216 = vadd.f32 1e-05, %v1215
        %v1217 = vpop.f32.mrf.mxu0
        %1218 = vdwg.mxu0
        %1219 = vmatprep.subr.mxu0 0.0
        %1220 = vmatpush1.msra.mxu0 0.0
        %1221 = vmatprep.subr.mxu0 0.0
        %1222 = vmatpush1.msra.mxu0 0.0
        %1223 = vmatprep.subr.mxu0 0.0
        %1224 = vmatpush1.msra.mxu0 0.0
        %1225 = vmatprep.subr.mxu0 0.0
        %1226 = vmatpush1.msra.mxu0 0.0
        %1227 = vmatprep.subr.mxu0 0.0
        %1228 = vmatpush1.msra.mxu0 0.0
        %1229 = vmatprep.subr.mxu0 0.0
        %1230 = vmatpush1.msra.mxu0 0.0
        %1231 = vmatprep.subr.mxu0 0.0
        %1232 = vmatpush1.msra.mxu0 0.0
        %1233 = vmatprep.subr.mxu0 0.0
        %1234 = vmatpush1.msra.mxu0 0.0
        %1235 = vmatprep.subr.mxu0 0.0
        %1236 = vmatpush1.msra.mxu0 0.0
        %1237 = vmatprep.subr.mxu0 0.0
        %1238 = vmatpush1.msra.mxu0 0.0
        %1239 = vmatprep.subr.mxu0 0.0
        %1240 = vmatpush1.msra.mxu0 0.0
        %1241 = vmatprep.subr.mxu0 0.0
        %1242 = vmatpush1.msra.mxu0 0.0
        %1243 = vmatprep.subr.mxu0 0.0
        %1244 = vmatpush1.msra.mxu0 0.0
        %1245 = vmatprep.subr.mxu0 0.0
        %1246 = vmatpush1.msra.mxu0 0.0
        %1247 = vmatprep.subr.mxu0 0.0
        %v1248 = vand.u32 %v1131, 4294901760
        %v1249 = vsub.f32 %v1131, %v1248
        %v1250 = vand.u32 %v1249, 4294901760
        %v1251 = vsub.f32 %v1249, %v1250
        %v1252 = vand.u32 %v1251, 4294901760
        %1253 = vmatpush1.msra.mxu0 %v1252
        %1254 = vmatprep.subr.mxu0 0.0
        %v1255 = vand.u32 %v1126, 4294901760
        %v1256 = vsub.f32 %v1126, %v1255
        %v1257 = vand.u32 %v1256, 4294901760
        %v1258 = vsub.f32 %v1256, %v1257
        %v1259 = vand.u32 %v1258, 4294901760
        %1260 = vmatpush1.msra.mxu0 %v1259
        %1261 = vmatprep.subr.mxu0 0.0
        %1262 = vmatpush2.msra.mxu0 0.0
        %1263 = vmatprep.subr.mxu0 0.0
        %1264 = vmatpush2.msra.mxu0 0.0
        %1265 = vmatprep.subr.mxu0 0.0
        %1266 = vmatpush2.msra.mxu0 0.0
        %1267 = vmatprep.subr.mxu0 0.0
        %1268 = vmatpush2.msra.mxu0 0.0
        %1269 = vmatprep.subr.mxu0 0.0
        %1270 = vmatpush2.msra.mxu0 0.0
        %1271 = vmatprep.subr.mxu0 0.0
        %1272 = vmatpush2.msra.mxu0 0.0
        %1273 = vmatprep.subr.mxu0 0.0
        %1274 = vmatpush2.msra.mxu0 0.0
        %1275 = vmatprep.subr.mxu0 0.0
        %1276 = vmatpush2.msra.mxu0 0.0
        %1277 = vmatprep.subr.mxu0 0.0
        %1278 = vmatpush2.msra.mxu0 0.0
        %1279 = vmatprep.subr.mxu0 0.0
        %1280 = vmatpush2.msra.mxu0 0.0
        %1281 = vmatprep.subr.mxu0 0.0
        %1282 = vmatpush2.msra.mxu0 0.0
        %1283 = vmatprep.subr.mxu0 0.0
        %1284 = vmatpush2.msra.mxu0 0.0
        %1285 = vmatprep.subr.mxu0 0.0
        %1286 = vmatpush2.msra.mxu0 0.0
        %1287 = vmatprep.subr.mxu0 0.0
        %1288 = vmatpush2.msra.mxu0 0.0
        %1289 = vmatprep.subr.mxu0 0.0
        %1290 = vmatpush2.msra.mxu0 0.0
        %1291 = vmatprep.subr.mxu0 0.0
        %1292 = vmatpush2.msra.mxu0 0.0
        %1293 = vmatprep.mubr.f32.mxu0 0.0
        %v1294 = vand.u32 %v591, 4294901760
        %1295 = vmatmul.mubr.f32.gmra.mxu0 %v1294
        %v1296 = vpop.f32.mrf.mxu0
        %v1297 = vadd.f32 %v1206, %v1296
        %v1298 = vpop.f32.mrf.mxu0
        %1299 = vmatprep.mubr.f32.mxu0 0.0
        %v1300 = vand.u32 %v594, 4294901760
        %1301 = vmatmul.mubr.f32.gmra.mxu0 %v1300
        %v1302 = vpop.f32.mrf.mxu0
        %v1303 = vadd.f32 %v1216, %v1302
        %v1304 = vpop.f32.mrf.mxu0
        %1305 = vdwg.mxu0
        %1306 = vmatprep.subr.mxu0 0.0
        %1307 = vmatpush1.msra.mxu0 0.0
        %1308 = vmatprep.subr.mxu0 0.0
        %1309 = vmatpush1.msra.mxu0 0.0
        %1310 = vmatprep.subr.mxu0 0.0
        %1311 = vmatpush1.msra.mxu0 0.0
        %1312 = vmatprep.subr.mxu0 0.0
        %1313 = vmatpush1.msra.mxu0 0.0
        %1314 = vmatprep.subr.mxu0 0.0
        %1315 = vmatpush1.msra.mxu0 0.0
        %1316 = vmatprep.subr.mxu0 0.0
        %1317 = vmatpush1.msra.mxu0 0.0
        %1318 = vmatprep.subr.mxu0 0.0
        %1319 = vmatpush1.msra.mxu0 0.0
        %1320 = vmatprep.subr.mxu0 0.0
        %1321 = vmatpush1.msra.mxu0 0.0
        %1322 = vmatprep.subr.mxu0 0.0
        %1323 = vmatpush1.msra.mxu0 0.0
        %1324 = vmatprep.subr.mxu0 0.0
        %1325 = vmatpush1.msra.mxu0 0.0
        %1326 = vmatprep.subr.mxu0 0.0
        %1327 = vmatpush1.msra.mxu0 0.0
        %1328 = vmatprep.subr.mxu0 0.0
        %1329 = vmatpush1.msra.mxu0 0.0
        %1330 = vmatprep.subr.mxu0 0.0
        %1331 = vmatpush1.msra.mxu0 0.0
        %1332 = vmatprep.subr.mxu0 0.0
        %1333 = vmatpush1.msra.mxu0 0.0
        %1334 = vmatprep.subr.mxu0 0.0
        %v1335 = vand.u32 %v1131, 4294901760
        %v1336 = vsub.f32 %v1131, %v1335
        %1337 = vmatpush1.msra.mxu0 %v1336
        %1338 = vmatprep.subr.mxu0 0.0
        %v1339 = vand.u32 %v1126, 4294901760
        %v1340 = vsub.f32 %v1126, %v1339
        %1341 = vmatpush1.msra.mxu0 %v1340
        %1342 = vmatprep.subr.mxu0 0.0
        %1343 = vmatpush2.msra.mxu0 0.0
        %1344 = vmatprep.subr.mxu0 0.0
        %1345 = vmatpush2.msra.mxu0 0.0
        %1346 = vmatprep.subr.mxu0 0.0
        %1347 = vmatpush2.msra.mxu0 0.0
        %1348 = vmatprep.subr.mxu0 0.0
        %1349 = vmatpush2.msra.mxu0 0.0
        %1350 = vmatprep.subr.mxu0 0.0
        %1351 = vmatpush2.msra.mxu0 0.0
        %1352 = vmatprep.subr.mxu0 0.0
        %1353 = vmatpush2.msra.mxu0 0.0
        %1354 = vmatprep.subr.mxu0 0.0
        %1355 = vmatpush2.msra.mxu0 0.0
        %1356 = vmatprep.subr.mxu0 0.0
        %1357 = vmatpush2.msra.mxu0 0.0
        %1358 = vmatprep.subr.mxu0 0.0
        %1359 = vmatpush2.msra.mxu0 0.0
        %1360 = vmatprep.subr.mxu0 0.0
        %1361 = vmatpush2.msra.mxu0 0.0
        %1362 = vmatprep.subr.mxu0 0.0
        %1363 = vmatpush2.msra.mxu0 0.0
        %1364 = vmatprep.subr.mxu0 0.0
        %1365 = vmatpush2.msra.mxu0 0.0
        %1366 = vmatprep.subr.mxu0 0.0
        %1367 = vmatpush2.msra.mxu0 0.0
        %1368 = vmatprep.subr.mxu0 0.0
        %1369 = vmatpush2.msra.mxu0 0.0
        %1370 = vmatprep.subr.mxu0 0.0
        %1371 = vmatpush2.msra.mxu0 0.0
        %1372 = vmatprep.subr.mxu0 0.0
        %1373 = vmatpush2.msra.mxu0 0.0
        %1374 = vmatprep.mubr.f32.mxu0 0.0
        %v1375 = vand.u32 %v591, 4294901760
        %v1376 = vsub.f32 %v591, %v1375
        %1377 = vmatmul.mubr.f32.gmra.mxu0 %v1376
        %v1378 = vpop.f32.mrf.mxu0
        %v1379 = vadd.f32 %v1297, %v1378
        %v1380 = vpop.f32.mrf.mxu0
        %1381 = vmatprep.mubr.f32.mxu0 0.0
        %v1382 = vand.u32 %v594, 4294901760
        %v1383 = vsub.f32 %v594, %v1382
        %1384 = vmatmul.mubr.f32.gmra.mxu0 %v1383
        %v1385 = vpop.f32.mrf.mxu0
        %v1386 = vadd.f32 %v1303, %v1385
        %v1387 = vpop.f32.mrf.mxu0
        %1388 = vdwg.mxu0
        %1389 = vmatprep.subr.mxu0 0.0
        %1390 = vmatpush1.msra.mxu0 0.0
        %1391 = vmatprep.subr.mxu0 0.0
        %1392 = vmatpush1.msra.mxu0 0.0
        %1393 = vmatprep.subr.mxu0 0.0
        %1394 = vmatpush1.msra.mxu0 0.0
        %1395 = vmatprep.subr.mxu0 0.0
        %1396 = vmatpush1.msra.mxu0 0.0
        %1397 = vmatprep.subr.mxu0 0.0
        %1398 = vmatpush1.msra.mxu0 0.0
        %1399 = vmatprep.subr.mxu0 0.0
        %1400 = vmatpush1.msra.mxu0 0.0
        %1401 = vmatprep.subr.mxu0 0.0
        %1402 = vmatpush1.msra.mxu0 0.0
        %1403 = vmatprep.subr.mxu0 0.0
        %1404 = vmatpush1.msra.mxu0 0.0
        %1405 = vmatprep.subr.mxu0 0.0
        %1406 = vmatpush1.msra.mxu0 0.0
        %1407 = vmatprep.subr.mxu0 0.0
        %1408 = vmatpush1.msra.mxu0 0.0
        %1409 = vmatprep.subr.mxu0 0.0
        %1410 = vmatpush1.msra.mxu0 0.0
        %1411 = vmatprep.subr.mxu0 0.0
        %1412 = vmatpush1.msra.mxu0 0.0
        %1413 = vmatprep.subr.mxu0 0.0
        %1414 = vmatpush1.msra.mxu0 0.0
        %1415 = vmatprep.subr.mxu0 0.0
        %1416 = vmatpush1.msra.mxu0 0.0
        %1417 = vmatprep.subr.mxu0 0.0
        %v1418 = vand.u32 %v1131, 4294901760
        %1419 = vmatpush1.msra.mxu0 %v1418
        %1420 = vmatprep.subr.mxu0 0.0
        %v1421 = vand.u32 %v1126, 4294901760
        %1422 = vmatpush1.msra.mxu0 %v1421
        %1423 = vmatprep.subr.mxu0 0.0
        %1424 = vmatpush2.msra.mxu0 0.0
        %1425 = vmatprep.subr.mxu0 0.0
        %1426 = vmatpush2.msra.mxu0 0.0
        %1427 = vmatprep.subr.mxu0 0.0
        %1428 = vmatpush2.msra.mxu0 0.0
        %1429 = vmatprep.subr.mxu0 0.0
        %1430 = vmatpush2.msra.mxu0 0.0
        %1431 = vmatprep.subr.mxu0 0.0
        %1432 = vmatpush2.msra.mxu0 0.0
        %1433 = vmatprep.subr.mxu0 0.0
        %1434 = vmatpush2.msra.mxu0 0.0
        %1435 = vmatprep.subr.mxu0 0.0
        %1436 = vmatpush2.msra.mxu0 0.0
        %1437 = vmatprep.subr.mxu0 0.0
        %1438 = vmatpush2.msra.mxu0 0.0
        %1439 = vmatprep.subr.mxu0 0.0
        %1440 = vmatpush2.msra.mxu0 0.0
        %1441 = vmatprep.subr.mxu0 0.0
        %1442 = vmatpush2.msra.mxu0 0.0
        %1443 = vmatprep.subr.mxu0 0.0
        %1444 = vmatpush2.msra.mxu0 0.0
        %1445 = vmatprep.subr.mxu0 0.0
        %1446 = vmatpush2.msra.mxu0 0.0
        %1447 = vmatprep.subr.mxu0 0.0
        %1448 = vmatpush2.msra.mxu0 0.0
        %1449 = vmatprep.subr.mxu0 0.0
        %1450 = vmatpush2.msra.mxu0 0.0
        %1451 = vmatprep.subr.mxu0 0.0
        %1452 = vmatpush2.msra.mxu0 0.0
        %1453 = vmatprep.subr.mxu0 0.0
        %1454 = vmatpush2.msra.mxu0 0.0
        %1455 = vmatprep.mubr.f32.mxu0 0.0
        %v1456 = vand.u32 %v591, 4294901760
        %v1457 = vsub.f32 %v591, %v1456
        %v1458 = vand.u32 %v1457, 4294901760
        %1459 = vmatmul.mubr.f32.gmra.mxu0 %v1458
        %v1460 = vpop.f32.mrf.mxu0
        %v1461 = vadd.f32 %v1379, %v1460
        %v1462 = vpop.f32.mrf.mxu0
        %1463 = vmatprep.mubr.f32.mxu0 0.0
        %v1464 = vand.u32 %v594, 4294901760
        %v1465 = vsub.f32 %v594, %v1464
        %v1466 = vand.u32 %v1465, 4294901760
        %1467 = vmatmul.mubr.f32.gmra.mxu0 %v1466
        %v1468 = vpop.f32.mrf.mxu0
        %v1469 = vadd.f32 %v1386, %v1468
        %v1470 = vpop.f32.mrf.mxu0
        %1471 = vdwg.mxu0
        %1472 = vmatprep.subr.mxu0 0.0
        %1473 = vmatpush1.msra.mxu0 0.0
        %1474 = vmatprep.subr.mxu0 0.0
        %1475 = vmatpush1.msra.mxu0 0.0
        %1476 = vmatprep.subr.mxu0 0.0
        %1477 = vmatpush1.msra.mxu0 0.0
        %1478 = vmatprep.subr.mxu0 0.0
        %1479 = vmatpush1.msra.mxu0 0.0
        %1480 = vmatprep.subr.mxu0 0.0
        %1481 = vmatpush1.msra.mxu0 0.0
        %1482 = vmatprep.subr.mxu0 0.0
        %1483 = vmatpush1.msra.mxu0 0.0
        %1484 = vmatprep.subr.mxu0 0.0
        %1485 = vmatpush1.msra.mxu0 0.0
        %1486 = vmatprep.subr.mxu0 0.0
        %1487 = vmatpush1.msra.mxu0 0.0
        %1488 = vmatprep.subr.mxu0 0.0
        %1489 = vmatpush1.msra.mxu0 0.0
        %1490 = vmatprep.subr.mxu0 0.0
        %1491 = vmatpush1.msra.mxu0 0.0
        %1492 = vmatprep.subr.mxu0 0.0
        %1493 = vmatpush1.msra.mxu0 0.0
        %1494 = vmatprep.subr.mxu0 0.0
        %1495 = vmatpush1.msra.mxu0 0.0
        %1496 = vmatprep.subr.mxu0 0.0
        %1497 = vmatpush1.msra.mxu0 0.0
        %1498 = vmatprep.subr.mxu0 0.0
        %1499 = vmatpush1.msra.mxu0 0.0
        %1500 = vmatprep.subr.mxu0 0.0
        %v1501 = vand.u32 %v1131, 4294901760
        %v1502 = vsub.f32 %v1131, %v1501
        %v1503 = vand.u32 %v1502, 4294901760
        %1504 = vmatpush1.msra.mxu0 %v1503
        %1505 = vmatprep.subr.mxu0 0.0
        %v1506 = vand.u32 %v1126, 4294901760
        %v1507 = vsub.f32 %v1126, %v1506
        %v1508 = vand.u32 %v1507, 4294901760
        %1509 = vmatpush1.msra.mxu0 %v1508
        %1510 = vmatprep.subr.mxu0 0.0
        %1511 = vmatpush2.msra.mxu0 0.0
        %1512 = vmatprep.subr.mxu0 0.0
        %1513 = vmatpush2.msra.mxu0 0.0
        %1514 = vmatprep.subr.mxu0 0.0
        %1515 = vmatpush2.msra.mxu0 0.0
        %1516 = vmatprep.subr.mxu0 0.0
        %1517 = vmatpush2.msra.mxu0 0.0
        %1518 = vmatprep.subr.mxu0 0.0
        %1519 = vmatpush2.msra.mxu0 0.0
        %1520 = vmatprep.subr.mxu0 0.0
        %1521 = vmatpush2.msra.mxu0 0.0
        %1522 = vmatprep.subr.mxu0 0.0
        %1523 = vmatpush2.msra.mxu0 0.0
        %1524 = vmatprep.subr.mxu0 0.0
        %1525 = vmatpush2.msra.mxu0 0.0
        %1526 = vmatprep.subr.mxu0 0.0
        %1527 = vmatpush2.msra.mxu0 0.0
        %1528 = vmatprep.subr.mxu0 0.0
        %1529 = vmatpush2.msra.mxu0 0.0
        %1530 = vmatprep.subr.mxu0 0.0
        %1531 = vmatpush2.msra.mxu0 0.0
        %1532 = vmatprep.subr.mxu0 0.0
        %1533 = vmatpush2.msra.mxu0 0.0
        %1534 = vmatprep.subr.mxu0 0.0
        %1535 = vmatpush2.msra.mxu0 0.0
        %1536 = vmatprep.subr.mxu0 0.0
        %1537 = vmatpush2.msra.mxu0 0.0
        %1538 = vmatprep.subr.mxu0 0.0
        %1539 = vmatpush2.msra.mxu0 0.0
        %1540 = vmatprep.subr.mxu0 0.0
        %1541 = vmatpush2.msra.mxu0 0.0
        %1542 = vmatprep.mubr.f32.mxu0 0.0
        %v1543 = vand.u32 %v591, 4294901760
        %1544 = vmatmul.mubr.f32.gmra.mxu0 %v1543
        %v1545 = vpop.f32.mrf.mxu0
        %v1546 = vadd.f32 %v1461, %v1545
        %v1547 = vpop.f32.mrf.mxu0
        %1548 = vmatprep.mubr.f32.mxu0 0.0
        %v1549 = vand.u32 %v594, 4294901760
        %1550 = vmatmul.mubr.f32.gmra.mxu0 %v1549
        %v1551 = vpop.f32.mrf.mxu0
        %v1552 = vadd.f32 %v1469, %v1551
        %v1553 = vpop.f32.mrf.mxu0
        %1554 = vdwg.mxu0
        %1555 = vmatprep.subr.mxu0 0.0
        %1556 = vmatpush1.msra.mxu0 0.0
        %1557 = vmatprep.subr.mxu0 0.0
        %1558 = vmatpush1.msra.mxu0 0.0
        %1559 = vmatprep.subr.mxu0 0.0
        %1560 = vmatpush1.msra.mxu0 0.0
        %1561 = vmatprep.subr.mxu0 0.0
        %1562 = vmatpush1.msra.mxu0 0.0
        %1563 = vmatprep.subr.mxu0 0.0
        %1564 = vmatpush1.msra.mxu0 0.0
        %1565 = vmatprep.subr.mxu0 0.0
        %1566 = vmatpush1.msra.mxu0 0.0
        %1567 = vmatprep.subr.mxu0 0.0
        %1568 = vmatpush1.msra.mxu0 0.0
        %1569 = vmatprep.subr.mxu0 0.0
        %1570 = vmatpush1.msra.mxu0 0.0
        %1571 = vmatprep.subr.mxu0 0.0
        %1572 = vmatpush1.msra.mxu0 0.0
        %1573 = vmatprep.subr.mxu0 0.0
        %1574 = vmatpush1.msra.mxu0 0.0
        %1575 = vmatprep.subr.mxu0 0.0
        %1576 = vmatpush1.msra.mxu0 0.0
        %1577 = vmatprep.subr.mxu0 0.0
        %1578 = vmatpush1.msra.mxu0 0.0
        %1579 = vmatprep.subr.mxu0 0.0
        %1580 = vmatpush1.msra.mxu0 0.0
        %1581 = vmatprep.subr.mxu0 0.0
        %1582 = vmatpush1.msra.mxu0 0.0
        %1583 = vmatprep.subr.mxu0 0.0
        %v1584 = vand.u32 %v1131, 4294901760
        %1585 = vmatpush1.msra.mxu0 %v1584
        %1586 = vmatprep.subr.mxu0 0.0
        %v1587 = vand.u32 %v1126, 4294901760
        %1588 = vmatpush1.msra.mxu0 %v1587
        %1589 = vmatprep.subr.mxu0 0.0
        %1590 = vmatpush2.msra.mxu0 0.0
        %1591 = vmatprep.subr.mxu0 0.0
        %1592 = vmatpush2.msra.mxu0 0.0
        %1593 = vmatprep.subr.mxu0 0.0
        %1594 = vmatpush2.msra.mxu0 0.0
        %1595 = vmatprep.subr.mxu0 0.0
        %1596 = vmatpush2.msra.mxu0 0.0
        %1597 = vmatprep.subr.mxu0 0.0
        %1598 = vmatpush2.msra.mxu0 0.0
        %1599 = vmatprep.subr.mxu0 0.0
        %1600 = vmatpush2.msra.mxu0 0.0
        %1601 = vmatprep.subr.mxu0 0.0
        %1602 = vmatpush2.msra.mxu0 0.0
        %1603 = vmatprep.subr.mxu0 0.0
        %1604 = vmatpush2.msra.mxu0 0.0
        %1605 = vmatprep.subr.mxu0 0.0
        %1606 = vmatpush2.msra.mxu0 0.0
        %1607 = vmatprep.subr.mxu0 0.0
        %1608 = vmatpush2.msra.mxu0 0.0
        %1609 = vmatprep.subr.mxu0 0.0
        %1610 = vmatpush2.msra.mxu0 0.0
        %1611 = vmatprep.subr.mxu0 0.0
        %1612 = vmatpush2.msra.mxu0 0.0
        %1613 = vmatprep.subr.mxu0 0.0
        %1614 = vmatpush2.msra.mxu0 0.0
        %1615 = vmatprep.subr.mxu0 0.0
        %1616 = vmatpush2.msra.mxu0 0.0
        %1617 = vmatprep.subr.mxu0 0.0
        %1618 = vmatpush2.msra.mxu0 0.0
        %1619 = vmatprep.subr.mxu0 0.0
        %1620 = vmatpush2.msra.mxu0 0.0
        %1621 = vmatprep.mubr.f32.mxu0 0.0
        %v1622 = vand.u32 %v591, 4294901760
        %1623 = vmatmul.mubr.f32.gmra.mxu0 %v1622
        %v1624 = vpop.f32.mrf.mxu0
        %v1625 = vadd.f32 %v1546, %v1624
        %v1626 = vpop.f32.mrf.mxu0
        %1627 = vmatprep.mubr.f32.mxu0 0.0
        %v1628 = vand.u32 %v594, 4294901760
        %1629 = vmatmul.mubr.f32.gmra.mxu0 %v1628
        %v1630 = vpop.f32.mrf.mxu0
        %v1631 = vadd.f32 %v1552, %v1630
        %v1632 = vpop.f32.mrf.mxu0
        %1633 = vdwg.mxu0
        %v1634 = vrsqrt.pop %v1625
        %v1635 = vrsqrt.pop %v1631
        %v1636 = vmul.f32 %v1098, %v1634
        %v1637 = vmul.f32 %v1099, %v1635
        %v1638 = vmul.f32 %v1100, %v1634
        %v1639 = vmul.f32 %v1101, %v1635
        %v1640 = vmul.f32 %v1102, %v1634
        %v1641 = vmul.f32 %v1103, %v1635
        %v1642 = vmul.f32 %v1104, %v1634
        %v1643 = vmul.f32 %v1105, %v1635
        %v1644 = vmul.f32 %v1106, %v1634
        %v1645 = vmul.f32 %v1107, %v1635
        %v1646 = vmul.f32 %v1108, %v1634
        %v1647 = vmul.f32 %v1109, %v1635
        %v1648 = vld [vmem:[%s4] sm:$0xff]
        %v1649 = vld [vmem:[%s4 + $0x8] sm:$0xff]
        %v1650 = vld [vmem:[%s4 + $0x10] sm:$0xff]
        %v1651 = vld [vmem:[%s4 + $0x18] sm:$0xff]
        %v1652 = vld [vmem:[%s4 + $0x20] sm:$0xff]
        %v1654 = vsel %vm589, %v1648, 0
        %v1657 = vsel %vm589, %v1649, 0
        %v1660 = vsel %vm589, %v1650, 0
        %v1663 = vsel %vm589, %v1651, 0
        %v1666 = vsel %vm589, %v1652, 0
        %1668 = vmatprep.subr.mxu0 0.0
        %1669 = vmatpush1.msra.mxu0 0.0
        %1670 = vmatprep.subr.mxu0 0.0
        %1671 = vmatpush1.msra.mxu0 0.0
        %1672 = vmatprep.subr.mxu0 0.0
        %1673 = vmatpush1.msra.mxu0 0.0
        %1674 = vmatprep.subr.mxu0 0.0
        %1675 = vmatpush1.msra.mxu0 0.0
        %1676 = vmatprep.subr.mxu0 0.0
        %1677 = vmatpush1.msra.mxu0 0.0
        %1678 = vmatprep.subr.mxu0 0.0
        %1679 = vmatpush1.msra.mxu0 0.0
        %1680 = vmatprep.subr.mxu0 0.0
        %1681 = vmatpush1.msra.mxu0 0.0
        %1682 = vmatprep.subr.mxu0 0.0
        %1683 = vmatpush1.msra.mxu0 0.0
        %1684 = vmatprep.subr.mxu0 0.0
        %1685 = vmatpush1.msra.mxu0 0.0
        %1686 = vmatprep.subr.mxu0 0.0
        %1687 = vmatpush1.msra.mxu0 0.0
        %1688 = vmatprep.subr.mxu0 0.0
        %1689 = vmatpush1.msra.mxu0 0.0
        %1690 = vmatprep.subr.mxu0 0.0
        %1691 = vmatpush1.msra.mxu0 0.0
        %1692 = vmatprep.subr.mxu0 0.0
        %1693 = vmatpush1.msra.mxu0 0.0
        %1694 = vmatprep.subr.mxu0 0.0
        %1695 = vmatpush1.msra.mxu0 0.0
        %1696 = vmatprep.subr.mxu0 0.0
        %v1697 = vand.u32 %v1637, 4294901760
        %1698 = vmatpush1.msra.mxu0 %v1697
        %1699 = vmatprep.subr.mxu0 0.0
        %v1700 = vand.u32 %v1636, 4294901760
        %1701 = vmatpush1.msra.mxu0 %v1700
        %1702 = vmatprep.subr.mxu0 0.0
        %1703 = vmatpush2.msra.mxu0 0.0
        %1704 = vmatprep.subr.mxu0 0.0
        %1705 = vmatpush2.msra.mxu0 0.0
        %1706 = vmatprep.subr.mxu0 0.0
        %1707 = vmatpush2.msra.mxu0 0.0
        %1708 = vmatprep.subr.mxu0 0.0
        %1709 = vmatpush2.msra.mxu0 0.0
        %1710 = vmatprep.subr.mxu0 0.0
        %1711 = vmatpush2.msra.mxu0 0.0
        %1712 = vmatprep.subr.mxu0 0.0
        %1713 = vmatpush2.msra.mxu0 0.0
        %1714 = vmatprep.subr.mxu0 0.0
        %1715 = vmatpush2.msra.mxu0 0.0
        %1716 = vmatprep.subr.mxu0 0.0
        %1717 = vmatpush2.msra.mxu0 0.0
        %1718 = vmatprep.subr.mxu0 0.0
        %1719 = vmatpush2.msra.mxu0 0.0
        %1720 = vmatprep.subr.mxu0 0.0
        %1721 = vmatpush2.msra.mxu0 0.0
        %1722 = vmatprep.subr.mxu0 0.0
        %1723 = vmatpush2.msra.mxu0 0.0
        %1724 = vmatprep.subr.mxu0 0.0
        %1725 = vmatpush2.msra.mxu0 0.0
        %1726 = vmatprep.subr.mxu0 0.0
        %1727 = vmatpush2.msra.mxu0 0.0
        %1728 = vmatprep.subr.mxu0 0.0
        %1729 = vmatpush2.msra.mxu0 0.0
        %1730 = vmatprep.subr.mxu0 0.0
        %1731 = vmatpush2.msra.mxu0 0.0
        %1732 = vmatprep.subr.mxu0 0.0
        %1733 = vmatpush2.msra.mxu0 0.0
        %1734 = vmatprep.mubr.f32.mxu0 0.0
        %v1735 = vand.u32 %v1654, 4294901760
        %v1736 = vsub.f32 %v1654, %v1735
        %v1737 = vand.u32 %v1736, 4294901760
        %v1738 = vsub.f32 %v1736, %v1737
        %v1739 = vand.u32 %v1738, 4294901760
        %1740 = vmatmul.mubr.f32.gmra.mxu0 %v1739
        %v1741 = vpop.f32.mrf.mxu0
        %v1742 = vadd.f32 0.0, %v1741
        %v1743 = vpop.f32.mrf.mxu0
        %1744 = vmatprep.mubr.f32.mxu0 0.0
        %v1745 = vand.u32 %v1657, 4294901760
        %v1746 = vsub.f32 %v1657, %v1745
        %v1747 = vand.u32 %v1746, 4294901760
        %v1748 = vsub.f32 %v1746, %v1747
        %v1749 = vand.u32 %v1748, 4294901760
        %1750 = vmatmul.mubr.f32.gmra.mxu0 %v1749
        %v1751 = vpop.f32.mrf.mxu0
        %v1752 = vadd.f32 0.0, %v1751
        %v1753 = vpop.f32.mrf.mxu0
        %1754 = vmatprep.mubr.f32.mxu0 0.0
        %v1755 = vand.u32 %v1660, 4294901760
        %v1756 = vsub.f32 %v1660, %v1755
        %v1757 = vand.u32 %v1756, 4294901760
        %v1758 = vsub.f32 %v1756, %v1757
        %v1759 = vand.u32 %v1758, 4294901760
        %1760 = vmatmul.mubr.f32.gmra.mxu0 %v1759
        %v1761 = vpop.f32.mrf.mxu0
        %v1762 = vadd.f32 0.0, %v1761
        %v1763 = vpop.f32.mrf.mxu0
        %1764 = vmatprep.mubr.f32.mxu0 0.0
        %v1765 = vand.u32 %v1663, 4294901760
        %v1766 = vsub.f32 %v1663, %v1765
        %v1767 = vand.u32 %v1766, 4294901760
        %v1768 = vsub.f32 %v1766, %v1767
        %v1769 = vand.u32 %v1768, 4294901760
        %1770 = vmatmul.mubr.f32.gmra.mxu0 %v1769
        %v1771 = vpop.f32.mrf.mxu0
        %v1772 = vadd.f32 0.0, %v1771
        %v1773 = vpop.f32.mrf.mxu0
        %1774 = vmatprep.mubr.f32.mxu0 0.0
        %v1775 = vand.u32 %v1666, 4294901760
        %v1776 = vsub.f32 %v1666, %v1775
        %v1777 = vand.u32 %v1776, 4294901760
        %v1778 = vsub.f32 %v1776, %v1777
        %v1779 = vand.u32 %v1778, 4294901760
        %1780 = vmatmul.mubr.f32.gmra.mxu0 %v1779
        %v1781 = vpop.f32.mrf.mxu0
        %v1782 = vadd.f32 0.0, %v1781
        %v1783 = vpop.f32.mrf.mxu0
        %1784 = vdwg.mxu0
        %1785 = vmatprep.subr.mxu0 0.0
        %1786 = vmatpush1.msra.mxu0 0.0
        %1787 = vmatprep.subr.mxu0 0.0
        %1788 = vmatpush1.msra.mxu0 0.0
        %1789 = vmatprep.subr.mxu0 0.0
        %1790 = vmatpush1.msra.mxu0 0.0
        %1791 = vmatprep.subr.mxu0 0.0
        %1792 = vmatpush1.msra.mxu0 0.0
        %1793 = vmatprep.subr.mxu0 0.0
        %1794 = vmatpush1.msra.mxu0 0.0
        %1795 = vmatprep.subr.mxu0 0.0
        %1796 = vmatpush1.msra.mxu0 0.0
        %1797 = vmatprep.subr.mxu0 0.0
        %1798 = vmatpush1.msra.mxu0 0.0
        %1799 = vmatprep.subr.mxu0 0.0
        %1800 = vmatpush1.msra.mxu0 0.0
        %1801 = vmatprep.subr.mxu0 0.0
        %1802 = vmatpush1.msra.mxu0 0.0
        %1803 = vmatprep.subr.mxu0 0.0
        %1804 = vmatpush1.msra.mxu0 0.0
        %1805 = vmatprep.subr.mxu0 0.0
        %1806 = vmatpush1.msra.mxu0 0.0
        %1807 = vmatprep.subr.mxu0 0.0
        %1808 = vmatpush1.msra.mxu0 0.0
        %1809 = vmatprep.subr.mxu0 0.0
        %1810 = vmatpush1.msra.mxu0 0.0
        %1811 = vmatprep.subr.mxu0 0.0
        %1812 = vmatpush1.msra.mxu0 0.0
        %1813 = vmatprep.subr.mxu0 0.0
        %v1814 = vand.u32 %v1637, 4294901760
        %v1815 = vsub.f32 %v1637, %v1814
        %v1816 = vand.u32 %v1815, 4294901760
        %v1817 = vsub.f32 %v1815, %v1816
        %v1818 = vand.u32 %v1817, 4294901760
        %1819 = vmatpush1.msra.mxu0 %v1818
        %1820 = vmatprep.subr.mxu0 0.0
        %v1821 = vand.u32 %v1636, 4294901760
        %v1822 = vsub.f32 %v1636, %v1821
        %v1823 = vand.u32 %v1822, 4294901760
        %v1824 = vsub.f32 %v1822, %v1823
        %v1825 = vand.u32 %v1824, 4294901760
        %1826 = vmatpush1.msra.mxu0 %v1825
        %1827 = vmatprep.subr.mxu0 0.0
        %1828 = vmatpush2.msra.mxu0 0.0
        %1829 = vmatprep.subr.mxu0 0.0
        %1830 = vmatpush2.msra.mxu0 0.0
        %1831 = vmatprep.subr.mxu0 0.0
        %1832 = vmatpush2.msra.mxu0 0.0
        %1833 = vmatprep.subr.mxu0 0.0
        %1834 = vmatpush2.msra.mxu0 0.0
        %1835 = vmatprep.subr.mxu0 0.0
        %1836 = vmatpush2.msra.mxu0 0.0
        %1837 = vmatprep.subr.mxu0 0.0
        %1838 = vmatpush2.msra.mxu0 0.0
        %1839 = vmatprep.subr.mxu0 0.0
        %1840 = vmatpush2.msra.mxu0 0.0
        %1841 = vmatprep.subr.mxu0 0.0
        %1842 = vmatpush2.msra.mxu0 0.0
        %1843 = vmatprep.subr.mxu0 0.0
        %1844 = vmatpush2.msra.mxu0 0.0
        %1845 = vmatprep.subr.mxu0 0.0
        %1846 = vmatpush2.msra.mxu0 0.0
        %1847 = vmatprep.subr.mxu0 0.0
        %1848 = vmatpush2.msra.mxu0 0.0
        %1849 = vmatprep.subr.mxu0 0.0
        %1850 = vmatpush2.msra.mxu0 0.0
        %1851 = vmatprep.subr.mxu0 0.0
        %1852 = vmatpush2.msra.mxu0 0.0
        %1853 = vmatprep.subr.mxu0 0.0
        %1854 = vmatpush2.msra.mxu0 0.0
        %1855 = vmatprep.subr.mxu0 0.0
        %1856 = vmatpush2.msra.mxu0 0.0
        %1857 = vmatprep.subr.mxu0 0.0
        %1858 = vmatpush2.msra.mxu0 0.0
        %1859 = vmatprep.mubr.f32.mxu0 0.0
        %v1860 = vand.u32 %v1654, 4294901760
        %1861 = vmatmul.mubr.f32.gmra.mxu0 %v1860
        %v1862 = vpop.f32.mrf.mxu0
        %v1863 = vadd.f32 %v1742, %v1862
        %v1864 = vpop.f32.mrf.mxu0
        %1865 = vmatprep.mubr.f32.mxu0 0.0
        %v1866 = vand.u32 %v1657, 4294901760
        %1867 = vmatmul.mubr.f32.gmra.mxu0 %v1866
        %v1868 = vpop.f32.mrf.mxu0
        %v1869 = vadd.f32 %v1752, %v1868
        %v1870 = vpop.f32.mrf.mxu0
        %1871 = vmatprep.mubr.f32.mxu0 0.0
        %v1872 = vand.u32 %v1660, 4294901760
        %1873 = vmatmul.mubr.f32.gmra.mxu0 %v1872
        %v1874 = vpop.f32.mrf.mxu0
        %v1875 = vadd.f32 %v1762, %v1874
        %v1876 = vpop.f32.mrf.mxu0
        %1877 = vmatprep.mubr.f32.mxu0 0.0
        %v1878 = vand.u32 %v1663, 4294901760
        %1879 = vmatmul.mubr.f32.gmra.mxu0 %v1878
        %v1880 = vpop.f32.mrf.mxu0
        %v1881 = vadd.f32 %v1772, %v1880
        %v1882 = vpop.f32.mrf.mxu0
        %1883 = vmatprep.mubr.f32.mxu0 0.0
        %v1884 = vand.u32 %v1666, 4294901760
        %1885 = vmatmul.mubr.f32.gmra.mxu0 %v1884
        %v1886 = vpop.f32.mrf.mxu0
        %v1887 = vadd.f32 %v1782, %v1886
        %v1888 = vpop.f32.mrf.mxu0
        %1889 = vdwg.mxu0
        %1890 = vmatprep.subr.mxu0 0.0
        %1891 = vmatpush1.msra.mxu0 0.0
        %1892 = vmatprep.subr.mxu0 0.0
        %1893 = vmatpush1.msra.mxu0 0.0
        %1894 = vmatprep.subr.mxu0 0.0
        %1895 = vmatpush1.msra.mxu0 0.0
        %1896 = vmatprep.subr.mxu0 0.0
        %1897 = vmatpush1.msra.mxu0 0.0
        %1898 = vmatprep.subr.mxu0 0.0
        %1899 = vmatpush1.msra.mxu0 0.0
        %1900 = vmatprep.subr.mxu0 0.0
        %1901 = vmatpush1.msra.mxu0 0.0
        %1902 = vmatprep.subr.mxu0 0.0
        %1903 = vmatpush1.msra.mxu0 0.0
        %1904 = vmatprep.subr.mxu0 0.0
        %1905 = vmatpush1.msra.mxu0 0.0
        %1906 = vmatprep.subr.mxu0 0.0
        %1907 = vmatpush1.msra.mxu0 0.0
        %1908 = vmatprep.subr.mxu0 0.0
        %1909 = vmatpush1.msra.mxu0 0.0
        %1910 = vmatprep.subr.mxu0 0.0
        %1911 = vmatpush1.msra.mxu0 0.0
        %1912 = vmatprep.subr.mxu0 0.0
        %1913 = vmatpush1.msra.mxu0 0.0
        %1914 = vmatprep.subr.mxu0 0.0
        %1915 = vmatpush1.msra.mxu0 0.0
        %1916 = vmatprep.subr.mxu0 0.0
        %1917 = vmatpush1.msra.mxu0 0.0
        %1918 = vmatprep.subr.mxu0 0.0
        %v1919 = vand.u32 %v1637, 4294901760
        %v1920 = vsub.f32 %v1637, %v1919
        %1921 = vmatpush1.msra.mxu0 %v1920
        %1922 = vmatprep.subr.mxu0 0.0
        %v1923 = vand.u32 %v1636, 4294901760
        %v1924 = vsub.f32 %v1636, %v1923
        %1925 = vmatpush1.msra.mxu0 %v1924
        %1926 = vmatprep.subr.mxu0 0.0
        %1927 = vmatpush2.msra.mxu0 0.0
        %1928 = vmatprep.subr.mxu0 0.0
        %1929 = vmatpush2.msra.mxu0 0.0
        %1930 = vmatprep.subr.mxu0 0.0
        %1931 = vmatpush2.msra.mxu0 0.0
        %1932 = vmatprep.subr.mxu0 0.0
        %1933 = vmatpush2.msra.mxu0 0.0
        %1934 = vmatprep.subr.mxu0 0.0
        %1935 = vmatpush2.msra.mxu0 0.0
        %1936 = vmatprep.subr.mxu0 0.0
        %1937 = vmatpush2.msra.mxu0 0.0
        %1938 = vmatprep.subr.mxu0 0.0
        %1939 = vmatpush2.msra.mxu0 0.0
        %1940 = vmatprep.subr.mxu0 0.0
        %1941 = vmatpush2.msra.mxu0 0.0
        %1942 = vmatprep.subr.mxu0 0.0
        %1943 = vmatpush2.msra.mxu0 0.0
        %1944 = vmatprep.subr.mxu0 0.0
        %1945 = vmatpush2.msra.mxu0 0.0
        %1946 = vmatprep.subr.mxu0 0.0
        %1947 = vmatpush2.msra.mxu0 0.0
        %1948 = vmatprep.subr.mxu0 0.0
        %1949 = vmatpush2.msra.mxu0 0.0
        %1950 = vmatprep.subr.mxu0 0.0
        %1951 = vmatpush2.msra.mxu0 0.0
        %1952 = vmatprep.subr.mxu0 0.0
        %1953 = vmatpush2.msra.mxu0 0.0
        %1954 = vmatprep.subr.mxu0 0.0
        %1955 = vmatpush2.msra.mxu0 0.0
        %1956 = vmatprep.subr.mxu0 0.0
        %1957 = vmatpush2.msra.mxu0 0.0
        %1958 = vmatprep.mubr.f32.mxu0 0.0
        %v1959 = vand.u32 %v1654, 4294901760
        %v1960 = vsub.f32 %v1654, %v1959
        %1961 = vmatmul.mubr.f32.gmra.mxu0 %v1960
        %v1962 = vpop.f32.mrf.mxu0
        %v1963 = vadd.f32 %v1863, %v1962
        %v1964 = vpop.f32.mrf.mxu0
        %1965 = vmatprep.mubr.f32.mxu0 0.0
        %v1966 = vand.u32 %v1657, 4294901760
        %v1967 = vsub.f32 %v1657, %v1966
        %1968 = vmatmul.mubr.f32.gmra.mxu0 %v1967
        %v1969 = vpop.f32.mrf.mxu0
        %v1970 = vadd.f32 %v1869, %v1969
        %v1971 = vpop.f32.mrf.mxu0
        %1972 = vmatprep.mubr.f32.mxu0 0.0
        %v1973 = vand.u32 %v1660, 4294901760
        %v1974 = vsub.f32 %v1660, %v1973
        %1975 = vmatmul.mubr.f32.gmra.mxu0 %v1974
        %v1976 = vpop.f32.mrf.mxu0
        %v1977 = vadd.f32 %v1875, %v1976
        %v1978 = vpop.f32.mrf.mxu0
        %1979 = vmatprep.mubr.f32.mxu0 0.0
        %v1980 = vand.u32 %v1663, 4294901760
        %v1981 = vsub.f32 %v1663, %v1980
        %1982 = vmatmul.mubr.f32.gmra.mxu0 %v1981
        %v1983 = vpop.f32.mrf.mxu0
        %v1984 = vadd.f32 %v1881, %v1983
        %v1985 = vpop.f32.mrf.mxu0
        %1986 = vmatprep.mubr.f32.mxu0 0.0
        %v1987 = vand.u32 %v1666, 4294901760
        %v1988 = vsub.f32 %v1666, %v1987
        %1989 = vmatmul.mubr.f32.gmra.mxu0 %v1988
        %v1990 = vpop.f32.mrf.mxu0
        %v1991 = vadd.f32 %v1887, %v1990
        %v1992 = vpop.f32.mrf.mxu0
        %1993 = vdwg.mxu0
        %1994 = vmatprep.subr.mxu0 0.0
        %1995 = vmatpush1.msra.mxu0 0.0
        %1996 = vmatprep.subr.mxu0 0.0
        %1997 = vmatpush1.msra.mxu0 0.0
        %1998 = vmatprep.subr.mxu0 0.0
        %1999 = vmatpush1.msra.mxu0 0.0
        %2000 = vmatprep.subr.mxu0 0.0
        %2001 = vmatpush1.msra.mxu0 0.0
        %2002 = vmatprep.subr.mxu0 0.0
        %2003 = vmatpush1.msra.mxu0 0.0
        %2004 = vmatprep.subr.mxu0 0.0
        %2005 = vmatpush1.msra.mxu0 0.0
        %2006 = vmatprep.subr.mxu0 0.0
        %2007 = vmatpush1.msra.mxu0 0.0
        %2008 = vmatprep.subr.mxu0 0.0
        %2009 = vmatpush1.msra.mxu0 0.0
        %2010 = vmatprep.subr.mxu0 0.0
        %2011 = vmatpush1.msra.mxu0 0.0
        %2012 = vmatprep.subr.mxu0 0.0
        %2013 = vmatpush1.msra.mxu0 0.0
        %2014 = vmatprep.subr.mxu0 0.0
        %2015 = vmatpush1.msra.mxu0 0.0
        %2016 = vmatprep.subr.mxu0 0.0
        %2017 = vmatpush1.msra.mxu0 0.0
        %2018 = vmatprep.subr.mxu0 0.0
        %2019 = vmatpush1.msra.mxu0 0.0
        %2020 = vmatprep.subr.mxu0 0.0
        %2021 = vmatpush1.msra.mxu0 0.0
        %2022 = vmatprep.subr.mxu0 0.0
        %v2023 = vand.u32 %v1637, 4294901760
        %2024 = vmatpush1.msra.mxu0 %v2023
        %2025 = vmatprep.subr.mxu0 0.0
        %v2026 = vand.u32 %v1636, 4294901760
        %2027 = vmatpush1.msra.mxu0 %v2026
        %2028 = vmatprep.subr.mxu0 0.0
        %2029 = vmatpush2.msra.mxu0 0.0
        %2030 = vmatprep.subr.mxu0 0.0
        %2031 = vmatpush2.msra.mxu0 0.0
        %2032 = vmatprep.subr.mxu0 0.0
        %2033 = vmatpush2.msra.mxu0 0.0
        %2034 = vmatprep.subr.mxu0 0.0
        %2035 = vmatpush2.msra.mxu0 0.0
        %2036 = vmatprep.subr.mxu0 0.0
        %2037 = vmatpush2.msra.mxu0 0.0
        %2038 = vmatprep.subr.mxu0 0.0
        %2039 = vmatpush2.msra.mxu0 0.0
        %2040 = vmatprep.subr.mxu0 0.0
        %2041 = vmatpush2.msra.mxu0 0.0
        %2042 = vmatprep.subr.mxu0 0.0
        %2043 = vmatpush2.msra.mxu0 0.0
        %2044 = vmatprep.subr.mxu0 0.0
        %2045 = vmatpush2.msra.mxu0 0.0
        %2046 = vmatprep.subr.mxu0 0.0
        %2047 = vmatpush2.msra.mxu0 0.0
        %2048 = vmatprep.subr.mxu0 0.0
        %2049 = vmatpush2.msra.mxu0 0.0
        %2050 = vmatprep.subr.mxu0 0.0
        %2051 = vmatpush2.msra.mxu0 0.0
        %2052 = vmatprep.subr.mxu0 0.0
        %2053 = vmatpush2.msra.mxu0 0.0
        %2054 = vmatprep.subr.mxu0 0.0
        %2055 = vmatpush2.msra.mxu0 0.0
        %2056 = vmatprep.subr.mxu0 0.0
        %2057 = vmatpush2.msra.mxu0 0.0
        %2058 = vmatprep.subr.mxu0 0.0
        %2059 = vmatpush2.msra.mxu0 0.0
        %2060 = vmatprep.mubr.f32.mxu0 0.0
        %v2061 = vand.u32 %v1654, 4294901760
        %v2062 = vsub.f32 %v1654, %v2061
        %v2063 = vand.u32 %v2062, 4294901760
        %2064 = vmatmul.mubr.f32.gmra.mxu0 %v2063
        %v2065 = vpop.f32.mrf.mxu0
        %v2066 = vadd.f32 %v1963, %v2065
        %v2067 = vpop.f32.mrf.mxu0
        %2068 = vmatprep.mubr.f32.mxu0 0.0
        %v2069 = vand.u32 %v1657, 4294901760
        %v2070 = vsub.f32 %v1657, %v2069
        %v2071 = vand.u32 %v2070, 4294901760
        %2072 = vmatmul.mubr.f32.gmra.mxu0 %v2071
        %v2073 = vpop.f32.mrf.mxu0
        %v2074 = vadd.f32 %v1970, %v2073
        %v2075 = vpop.f32.mrf.mxu0
        %2076 = vmatprep.mubr.f32.mxu0 0.0
        %v2077 = vand.u32 %v1660, 4294901760
        %v2078 = vsub.f32 %v1660, %v2077
        %v2079 = vand.u32 %v2078, 4294901760
        %2080 = vmatmul.mubr.f32.gmra.mxu0 %v2079
        %v2081 = vpop.f32.mrf.mxu0
        %v2082 = vadd.f32 %v1977, %v2081
        %v2083 = vpop.f32.mrf.mxu0
        %2084 = vmatprep.mubr.f32.mxu0 0.0
        %v2085 = vand.u32 %v1663, 4294901760
        %v2086 = vsub.f32 %v1663, %v2085
        %v2087 = vand.u32 %v2086, 4294901760
        %2088 = vmatmul.mubr.f32.gmra.mxu0 %v2087
        %v2089 = vpop.f32.mrf.mxu0
        %v2090 = vadd.f32 %v1984, %v2089
        %v2091 = vpop.f32.mrf.mxu0
        %2092 = vmatprep.mubr.f32.mxu0 0.0
        %v2093 = vand.u32 %v1666, 4294901760
        %v2094 = vsub.f32 %v1666, %v2093
        %v2095 = vand.u32 %v2094, 4294901760
        %2096 = vmatmul.mubr.f32.gmra.mxu0 %v2095
        %v2097 = vpop.f32.mrf.mxu0
        %v2098 = vadd.f32 %v1991, %v2097
        %v2099 = vpop.f32.mrf.mxu0
        %2100 = vdwg.mxu0
        %2101 = vmatprep.subr.mxu0 0.0
        %2102 = vmatpush1.msra.mxu0 0.0
        %2103 = vmatprep.subr.mxu0 0.0
        %2104 = vmatpush1.msra.mxu0 0.0
        %2105 = vmatprep.subr.mxu0 0.0
        %2106 = vmatpush1.msra.mxu0 0.0
        %2107 = vmatprep.subr.mxu0 0.0
        %2108 = vmatpush1.msra.mxu0 0.0
        %2109 = vmatprep.subr.mxu0 0.0
        %2110 = vmatpush1.msra.mxu0 0.0
        %2111 = vmatprep.subr.mxu0 0.0
        %2112 = vmatpush1.msra.mxu0 0.0
        %2113 = vmatprep.subr.mxu0 0.0
        %2114 = vmatpush1.msra.mxu0 0.0
        %2115 = vmatprep.subr.mxu0 0.0
        %2116 = vmatpush1.msra.mxu0 0.0
        %2117 = vmatprep.subr.mxu0 0.0
        %2118 = vmatpush1.msra.mxu0 0.0
        %2119 = vmatprep.subr.mxu0 0.0
        %2120 = vmatpush1.msra.mxu0 0.0
        %2121 = vmatprep.subr.mxu0 0.0
        %2122 = vmatpush1.msra.mxu0 0.0
        %2123 = vmatprep.subr.mxu0 0.0
        %2124 = vmatpush1.msra.mxu0 0.0
        %2125 = vmatprep.subr.mxu0 0.0
        %2126 = vmatpush1.msra.mxu0 0.0
        %2127 = vmatprep.subr.mxu0 0.0
        %2128 = vmatpush1.msra.mxu0 0.0
        %2129 = vmatprep.subr.mxu0 0.0
        %v2130 = vand.u32 %v1637, 4294901760
        %v2131 = vsub.f32 %v1637, %v2130
        %v2132 = vand.u32 %v2131, 4294901760
        %2133 = vmatpush1.msra.mxu0 %v2132
        %2134 = vmatprep.subr.mxu0 0.0
        %v2135 = vand.u32 %v1636, 4294901760
        %v2136 = vsub.f32 %v1636, %v2135
        %v2137 = vand.u32 %v2136, 4294901760
        %2138 = vmatpush1.msra.mxu0 %v2137
        %2139 = vmatprep.subr.mxu0 0.0
        %2140 = vmatpush2.msra.mxu0 0.0
        %2141 = vmatprep.subr.mxu0 0.0
        %2142 = vmatpush2.msra.mxu0 0.0
        %2143 = vmatprep.subr.mxu0 0.0
        %2144 = vmatpush2.msra.mxu0 0.0
        %2145 = vmatprep.subr.mxu0 0.0
        %2146 = vmatpush2.msra.mxu0 0.0
        %2147 = vmatprep.subr.mxu0 0.0
        %2148 = vmatpush2.msra.mxu0 0.0
        %2149 = vmatprep.subr.mxu0 0.0
        %2150 = vmatpush2.msra.mxu0 0.0
        %2151 = vmatprep.subr.mxu0 0.0
        %2152 = vmatpush2.msra.mxu0 0.0
        %2153 = vmatprep.subr.mxu0 0.0
        %2154 = vmatpush2.msra.mxu0 0.0
        %2155 = vmatprep.subr.mxu0 0.0
        %2156 = vmatpush2.msra.mxu0 0.0
        %2157 = vmatprep.subr.mxu0 0.0
        %2158 = vmatpush2.msra.mxu0 0.0
        %2159 = vmatprep.subr.mxu0 0.0
        %2160 = vmatpush2.msra.mxu0 0.0
        %2161 = vmatprep.subr.mxu0 0.0
        %2162 = vmatpush2.msra.mxu0 0.0
        %2163 = vmatprep.subr.mxu0 0.0
        %2164 = vmatpush2.msra.mxu0 0.0
        %2165 = vmatprep.subr.mxu0 0.0
        %2166 = vmatpush2.msra.mxu0 0.0
        %2167 = vmatprep.subr.mxu0 0.0
        %2168 = vmatpush2.msra.mxu0 0.0
        %2169 = vmatprep.subr.mxu0 0.0
        %2170 = vmatpush2.msra.mxu0 0.0
        %2171 = vmatprep.mubr.f32.mxu0 0.0
        %v2172 = vand.u32 %v1654, 4294901760
        %2173 = vmatmul.mubr.f32.gmra.mxu0 %v2172
        %v2174 = vpop.f32.mrf.mxu0
        %v2175 = vadd.f32 %v2066, %v2174
        %v2176 = vpop.f32.mrf.mxu0
        %2177 = vmatprep.mubr.f32.mxu0 0.0
        %v2178 = vand.u32 %v1657, 4294901760
        %2179 = vmatmul.mubr.f32.gmra.mxu0 %v2178
        %v2180 = vpop.f32.mrf.mxu0
        %v2181 = vadd.f32 %v2074, %v2180
        %v2182 = vpop.f32.mrf.mxu0
        %2183 = vmatprep.mubr.f32.mxu0 0.0
        %v2184 = vand.u32 %v1660, 4294901760
        %2185 = vmatmul.mubr.f32.gmra.mxu0 %v2184
        %v2186 = vpop.f32.mrf.mxu0
        %v2187 = vadd.f32 %v2082, %v2186
        %v2188 = vpop.f32.mrf.mxu0
        %2189 = vmatprep.mubr.f32.mxu0 0.0
        %v2190 = vand.u32 %v1663, 4294901760
        %2191 = vmatmul.mubr.f32.gmra.mxu0 %v2190
        %v2192 = vpop.f32.mrf.mxu0
        %v2193 = vadd.f32 %v2090, %v2192
        %v2194 = vpop.f32.mrf.mxu0
        %2195 = vmatprep.mubr.f32.mxu0 0.0
        %v2196 = vand.u32 %v1666, 4294901760
        %2197 = vmatmul.mubr.f32.gmra.mxu0 %v2196
        %v2198 = vpop.f32.mrf.mxu0
        %v2199 = vadd.f32 %v2098, %v2198
        %v2200 = vpop.f32.mrf.mxu0
        %2201 = vdwg.mxu0
        %2202 = vmatprep.subr.mxu0 0.0
        %2203 = vmatpush1.msra.mxu0 0.0
        %2204 = vmatprep.subr.mxu0 0.0
        %2205 = vmatpush1.msra.mxu0 0.0
        %2206 = vmatprep.subr.mxu0 0.0
        %2207 = vmatpush1.msra.mxu0 0.0
        %2208 = vmatprep.subr.mxu0 0.0
        %2209 = vmatpush1.msra.mxu0 0.0
        %2210 = vmatprep.subr.mxu0 0.0
        %2211 = vmatpush1.msra.mxu0 0.0
        %2212 = vmatprep.subr.mxu0 0.0
        %2213 = vmatpush1.msra.mxu0 0.0
        %2214 = vmatprep.subr.mxu0 0.0
        %2215 = vmatpush1.msra.mxu0 0.0
        %2216 = vmatprep.subr.mxu0 0.0
        %2217 = vmatpush1.msra.mxu0 0.0
        %2218 = vmatprep.subr.mxu0 0.0
        %2219 = vmatpush1.msra.mxu0 0.0
        %2220 = vmatprep.subr.mxu0 0.0
        %2221 = vmatpush1.msra.mxu0 0.0
        %2222 = vmatprep.subr.mxu0 0.0
        %2223 = vmatpush1.msra.mxu0 0.0
        %2224 = vmatprep.subr.mxu0 0.0
        %2225 = vmatpush1.msra.mxu0 0.0
        %2226 = vmatprep.subr.mxu0 0.0
        %2227 = vmatpush1.msra.mxu0 0.0
        %2228 = vmatprep.subr.mxu0 0.0
        %2229 = vmatpush1.msra.mxu0 0.0
        %2230 = vmatprep.subr.mxu0 0.0
        %v2231 = vand.u32 %v1637, 4294901760
        %2232 = vmatpush1.msra.mxu0 %v2231
        %2233 = vmatprep.subr.mxu0 0.0
        %v2234 = vand.u32 %v1636, 4294901760
        %2235 = vmatpush1.msra.mxu0 %v2234
        %2236 = vmatprep.subr.mxu0 0.0
        %2237 = vmatpush2.msra.mxu0 0.0
        %2238 = vmatprep.subr.mxu0 0.0
        %2239 = vmatpush2.msra.mxu0 0.0
        %2240 = vmatprep.subr.mxu0 0.0
        %2241 = vmatpush2.msra.mxu0 0.0
        %2242 = vmatprep.subr.mxu0 0.0
        %2243 = vmatpush2.msra.mxu0 0.0
        %2244 = vmatprep.subr.mxu0 0.0
        %2245 = vmatpush2.msra.mxu0 0.0
        %2246 = vmatprep.subr.mxu0 0.0
        %2247 = vmatpush2.msra.mxu0 0.0
        %2248 = vmatprep.subr.mxu0 0.0
        %2249 = vmatpush2.msra.mxu0 0.0
        %2250 = vmatprep.subr.mxu0 0.0
        %2251 = vmatpush2.msra.mxu0 0.0
        %2252 = vmatprep.subr.mxu0 0.0
        %2253 = vmatpush2.msra.mxu0 0.0
        %2254 = vmatprep.subr.mxu0 0.0
        %2255 = vmatpush2.msra.mxu0 0.0
        %2256 = vmatprep.subr.mxu0 0.0
        %2257 = vmatpush2.msra.mxu0 0.0
        %2258 = vmatprep.subr.mxu0 0.0
        %2259 = vmatpush2.msra.mxu0 0.0
        %2260 = vmatprep.subr.mxu0 0.0
        %2261 = vmatpush2.msra.mxu0 0.0
        %2262 = vmatprep.subr.mxu0 0.0
        %2263 = vmatpush2.msra.mxu0 0.0
        %2264 = vmatprep.subr.mxu0 0.0
        %2265 = vmatpush2.msra.mxu0 0.0
        %2266 = vmatprep.subr.mxu0 0.0
        %2267 = vmatpush2.msra.mxu0 0.0
        %2268 = vmatprep.mubr.f32.mxu0 0.0
        %v2269 = vand.u32 %v1654, 4294901760
        %2270 = vmatmul.mubr.f32.gmra.mxu0 %v2269
        %v2271 = vpop.f32.mrf.mxu0
        %v2272 = vadd.f32 %v2175, %v2271
        %v2273 = vpop.f32.mrf.mxu0
        %2274 = vmatprep.mubr.f32.mxu0 0.0
        %v2275 = vand.u32 %v1657, 4294901760
        %2276 = vmatmul.mubr.f32.gmra.mxu0 %v2275
        %v2277 = vpop.f32.mrf.mxu0
        %v2278 = vadd.f32 %v2181, %v2277
        %v2279 = vpop.f32.mrf.mxu0
        %2280 = vmatprep.mubr.f32.mxu0 0.0
        %v2281 = vand.u32 %v1660, 4294901760
        %2282 = vmatmul.mubr.f32.gmra.mxu0 %v2281
        %v2283 = vpop.f32.mrf.mxu0
        %v2284 = vadd.f32 %v2187, %v2283
        %v2285 = vpop.f32.mrf.mxu0
        %2286 = vmatprep.mubr.f32.mxu0 0.0
        %v2287 = vand.u32 %v1663, 4294901760
        %2288 = vmatmul.mubr.f32.gmra.mxu0 %v2287
        %v2289 = vpop.f32.mrf.mxu0
        %v2290 = vadd.f32 %v2193, %v2289
        %v2291 = vpop.f32.mrf.mxu0
        %2292 = vmatprep.mubr.f32.mxu0 0.0
        %v2293 = vand.u32 %v1666, 4294901760
        %2294 = vmatmul.mubr.f32.gmra.mxu0 %v2293
        %v2295 = vpop.f32.mrf.mxu0
        %v2296 = vadd.f32 %v2199, %v2295
        %v2297 = vpop.f32.mrf.mxu0
        %2298 = vdwg.mxu0
        %2300 = vset.pattern.permute.xlu0 0
        %2301 = vperm.xlu0 %2300, %v547
        %v2302 = vpop.permute.xlu0 %2301
        %2305 = vset.pattern.permute.xlu0 0
        %2306 = vperm.xlu0 %2305, %v548
        %v2307 = vpop.permute.xlu0 %2306
        %2310 = vset.pattern.permute.xlu0 0
        %2311 = vperm.xlu0 %2310, %v549
        %v2312 = vpop.permute.xlu0 %2311
        %2315 = vset.pattern.permute.xlu0 0
        %2316 = vperm.xlu0 %2315, %v550
        %v2317 = vpop.permute.xlu0 %2316
        %v2319 = vadd.f32 %v2272, %v2302
        %v2320 = vadd.f32 %v2278, %v2307
        %v2321 = vadd.f32 %v2284, %v2312
        %v2322 = vadd.f32 %v2290, %v2317
        %2324 = vset.pattern.permute.xlu0 0
        %2325 = vperm.xlu0 %2324, %v571
        %v2326 = vpop.permute.xlu0 %2325
        %v2328 = vadd.f32 %v2296, %v2326
        %2329 = vmatprep.subr.mxu0 0.0
        %2330 = vmatpush1.msra.mxu0 0.0
        %2331 = vmatprep.subr.mxu0 0.0
        %2332 = vmatpush1.msra.mxu0 0.0
        %2333 = vmatprep.subr.mxu0 0.0
        %2334 = vmatpush1.msra.mxu0 0.0
        %2335 = vmatprep.subr.mxu0 0.0
        %2336 = vmatpush1.msra.mxu0 0.0
        %2337 = vmatprep.subr.mxu0 0.0
        %2338 = vmatpush1.msra.mxu0 0.0
        %2339 = vmatprep.subr.mxu0 0.0
        %2340 = vmatpush1.msra.mxu0 0.0
        %2341 = vmatprep.subr.mxu0 0.0
        %2342 = vmatpush1.msra.mxu0 0.0
        %2343 = vmatprep.subr.mxu0 0.0
        %2344 = vmatpush1.msra.mxu0 0.0
        %2345 = vmatprep.subr.mxu0 0.0
        %2346 = vmatpush1.msra.mxu0 0.0
        %2347 = vmatprep.subr.mxu0 0.0
        %2348 = vmatpush1.msra.mxu0 0.0
        %2349 = vmatprep.subr.mxu0 0.0
        %2350 = vmatpush1.msra.mxu0 0.0
        %2351 = vmatprep.subr.mxu0 0.0
        %2352 = vmatpush1.msra.mxu0 0.0
        %2353 = vmatprep.subr.mxu0 0.0
        %2354 = vmatpush1.msra.mxu0 0.0
        %2355 = vmatprep.subr.mxu0 0.0
        %2356 = vmatpush1.msra.mxu0 0.0
        %2357 = vmatprep.subr.mxu0 0.0
        %v2358 = vand.u32 %v1639, 4294901760
        %2359 = vmatpush1.msra.mxu0 %v2358
        %2360 = vmatprep.subr.mxu0 0.0
        %v2361 = vand.u32 %v1638, 4294901760
        %2362 = vmatpush1.msra.mxu0 %v2361
        %2363 = vmatprep.subr.mxu0 0.0
        %2364 = vmatpush2.msra.mxu0 0.0
        %2365 = vmatprep.subr.mxu0 0.0
        %2366 = vmatpush2.msra.mxu0 0.0
        %2367 = vmatprep.subr.mxu0 0.0
        %2368 = vmatpush2.msra.mxu0 0.0
        %2369 = vmatprep.subr.mxu0 0.0
        %2370 = vmatpush2.msra.mxu0 0.0
        %2371 = vmatprep.subr.mxu0 0.0
        %2372 = vmatpush2.msra.mxu0 0.0
        %2373 = vmatprep.subr.mxu0 0.0
        %2374 = vmatpush2.msra.mxu0 0.0
        %2375 = vmatprep.subr.mxu0 0.0
        %2376 = vmatpush2.msra.mxu0 0.0
        %2377 = vmatprep.subr.mxu0 0.0
        %2378 = vmatpush2.msra.mxu0 0.0
        %2379 = vmatprep.subr.mxu0 0.0
        %2380 = vmatpush2.msra.mxu0 0.0
        %2381 = vmatprep.subr.mxu0 0.0
        %2382 = vmatpush2.msra.mxu0 0.0
        %2383 = vmatprep.subr.mxu0 0.0
        %2384 = vmatpush2.msra.mxu0 0.0
        %2385 = vmatprep.subr.mxu0 0.0
        %2386 = vmatpush2.msra.mxu0 0.0
        %2387 = vmatprep.subr.mxu0 0.0
        %2388 = vmatpush2.msra.mxu0 0.0
        %2389 = vmatprep.subr.mxu0 0.0
        %2390 = vmatpush2.msra.mxu0 0.0
        %2391 = vmatprep.subr.mxu0 0.0
        %2392 = vmatpush2.msra.mxu0 0.0
        %2393 = vmatprep.subr.mxu0 0.0
        %2394 = vmatpush2.msra.mxu0 0.0
        %2395 = vmatprep.mubr.f32.mxu0 0.0
        %v2396 = vand.u32 %v1654, 4294901760
        %v2397 = vsub.f32 %v1654, %v2396
        %v2398 = vand.u32 %v2397, 4294901760
        %v2399 = vsub.f32 %v2397, %v2398
        %v2400 = vand.u32 %v2399, 4294901760
        %2401 = vmatmul.mubr.f32.gmra.mxu0 %v2400
        %v2402 = vpop.f32.mrf.mxu0
        %v2403 = vadd.f32 0.0, %v2402
        %v2404 = vpop.f32.mrf.mxu0
        %2405 = vmatprep.mubr.f32.mxu0 0.0
        %v2406 = vand.u32 %v1657, 4294901760
        %v2407 = vsub.f32 %v1657, %v2406
        %v2408 = vand.u32 %v2407, 4294901760
        %v2409 = vsub.f32 %v2407, %v2408
        %v2410 = vand.u32 %v2409, 4294901760
        %2411 = vmatmul.mubr.f32.gmra.mxu0 %v2410
        %v2412 = vpop.f32.mrf.mxu0
        %v2413 = vadd.f32 0.0, %v2412
        %v2414 = vpop.f32.mrf.mxu0
        %2415 = vmatprep.mubr.f32.mxu0 0.0
        %v2416 = vand.u32 %v1660, 4294901760
        %v2417 = vsub.f32 %v1660, %v2416
        %v2418 = vand.u32 %v2417, 4294901760
        %v2419 = vsub.f32 %v2417, %v2418
        %v2420 = vand.u32 %v2419, 4294901760
        %2421 = vmatmul.mubr.f32.gmra.mxu0 %v2420
        %v2422 = vpop.f32.mrf.mxu0
        %v2423 = vadd.f32 0.0, %v2422
        %v2424 = vpop.f32.mrf.mxu0
        %2425 = vmatprep.mubr.f32.mxu0 0.0
        %v2426 = vand.u32 %v1663, 4294901760
        %v2427 = vsub.f32 %v1663, %v2426
        %v2428 = vand.u32 %v2427, 4294901760
        %v2429 = vsub.f32 %v2427, %v2428
        %v2430 = vand.u32 %v2429, 4294901760
        %2431 = vmatmul.mubr.f32.gmra.mxu0 %v2430
        %v2432 = vpop.f32.mrf.mxu0
        %v2433 = vadd.f32 0.0, %v2432
        %v2434 = vpop.f32.mrf.mxu0
        %2435 = vmatprep.mubr.f32.mxu0 0.0
        %v2436 = vand.u32 %v1666, 4294901760
        %v2437 = vsub.f32 %v1666, %v2436
        %v2438 = vand.u32 %v2437, 4294901760
        %v2439 = vsub.f32 %v2437, %v2438
        %v2440 = vand.u32 %v2439, 4294901760
        %2441 = vmatmul.mubr.f32.gmra.mxu0 %v2440
        %v2442 = vpop.f32.mrf.mxu0
        %v2443 = vadd.f32 0.0, %v2442
        %v2444 = vpop.f32.mrf.mxu0
        %2445 = vdwg.mxu0
        %2446 = vmatprep.subr.mxu0 0.0
        %2447 = vmatpush1.msra.mxu0 0.0
        %2448 = vmatprep.subr.mxu0 0.0
        %2449 = vmatpush1.msra.mxu0 0.0
        %2450 = vmatprep.subr.mxu0 0.0
        %2451 = vmatpush1.msra.mxu0 0.0
        %2452 = vmatprep.subr.mxu0 0.0
        %2453 = vmatpush1.msra.mxu0 0.0
        %2454 = vmatprep.subr.mxu0 0.0
        %2455 = vmatpush1.msra.mxu0 0.0
        %2456 = vmatprep.subr.mxu0 0.0
        %2457 = vmatpush1.msra.mxu0 0.0
        %2458 = vmatprep.subr.mxu0 0.0
        %2459 = vmatpush1.msra.mxu0 0.0
        %2460 = vmatprep.subr.mxu0 0.0
        %2461 = vmatpush1.msra.mxu0 0.0
        %2462 = vmatprep.subr.mxu0 0.0
        %2463 = vmatpush1.msra.mxu0 0.0
        %2464 = vmatprep.subr.mxu0 0.0
        %2465 = vmatpush1.msra.mxu0 0.0
        %2466 = vmatprep.subr.mxu0 0.0
        %2467 = vmatpush1.msra.mxu0 0.0
        %2468 = vmatprep.subr.mxu0 0.0
        %2469 = vmatpush1.msra.mxu0 0.0
        %2470 = vmatprep.subr.mxu0 0.0
        %2471 = vmatpush1.msra.mxu0 0.0
        %2472 = vmatprep.subr.mxu0 0.0
        %2473 = vmatpush1.msra.mxu0 0.0
        %2474 = vmatprep.subr.mxu0 0.0
        %v2475 = vand.u32 %v1639, 4294901760
        %v2476 = vsub.f32 %v1639, %v2475
        %v2477 = vand.u32 %v2476, 4294901760
        %v2478 = vsub.f32 %v2476, %v2477
        %v2479 = vand.u32 %v2478, 4294901760
        %2480 = vmatpush1.msra.mxu0 %v2479
        %2481 = vmatprep.subr.mxu0 0.0
        %v2482 = vand.u32 %v1638, 4294901760
        %v2483 = vsub.f32 %v1638, %v2482
        %v2484 = vand.u32 %v2483, 4294901760
        %v2485 = vsub.f32 %v2483, %v2484
        %v2486 = vand.u32 %v2485, 4294901760
        %2487 = vmatpush1.msra.mxu0 %v2486
        %2488 = vmatprep.subr.mxu0 0.0
        %2489 = vmatpush2.msra.mxu0 0.0
        %2490 = vmatprep.subr.mxu0 0.0
        %2491 = vmatpush2.msra.mxu0 0.0
        %2492 = vmatprep.subr.mxu0 0.0
        %2493 = vmatpush2.msra.mxu0 0.0
        %2494 = vmatprep.subr.mxu0 0.0
        %2495 = vmatpush2.msra.mxu0 0.0
        %2496 = vmatprep.subr.mxu0 0.0
        %2497 = vmatpush2.msra.mxu0 0.0
        %2498 = vmatprep.subr.mxu0 0.0
        %2499 = vmatpush2.msra.mxu0 0.0
        %2500 = vmatprep.subr.mxu0 0.0
        %2501 = vmatpush2.msra.mxu0 0.0
        %2502 = vmatprep.subr.mxu0 0.0
        %2503 = vmatpush2.msra.mxu0 0.0
        %2504 = vmatprep.subr.mxu0 0.0
        %2505 = vmatpush2.msra.mxu0 0.0
        %2506 = vmatprep.subr.mxu0 0.0
        %2507 = vmatpush2.msra.mxu0 0.0
        %2508 = vmatprep.subr.mxu0 0.0
        %2509 = vmatpush2.msra.mxu0 0.0
        %2510 = vmatprep.subr.mxu0 0.0
        %2511 = vmatpush2.msra.mxu0 0.0
        %2512 = vmatprep.subr.mxu0 0.0
        %2513 = vmatpush2.msra.mxu0 0.0
        %2514 = vmatprep.subr.mxu0 0.0
        %2515 = vmatpush2.msra.mxu0 0.0
        %2516 = vmatprep.subr.mxu0 0.0
        %2517 = vmatpush2.msra.mxu0 0.0
        %2518 = vmatprep.subr.mxu0 0.0
        %2519 = vmatpush2.msra.mxu0 0.0
        %2520 = vmatprep.mubr.f32.mxu0 0.0
        %v2521 = vand.u32 %v1654, 4294901760
        %2522 = vmatmul.mubr.f32.gmra.mxu0 %v2521
        %v2523 = vpop.f32.mrf.mxu0
        %v2524 = vadd.f32 %v2403, %v2523
        %v2525 = vpop.f32.mrf.mxu0
        %2526 = vmatprep.mubr.f32.mxu0 0.0
        %v2527 = vand.u32 %v1657, 4294901760
        %2528 = vmatmul.mubr.f32.gmra.mxu0 %v2527
        %v2529 = vpop.f32.mrf.mxu0
        %v2530 = vadd.f32 %v2413, %v2529
        %v2531 = vpop.f32.mrf.mxu0
        %2532 = vmatprep.mubr.f32.mxu0 0.0
        %v2533 = vand.u32 %v1660, 4294901760
        %2534 = vmatmul.mubr.f32.gmra.mxu0 %v2533
        %v2535 = vpop.f32.mrf.mxu0
        %v2536 = vadd.f32 %v2423, %v2535
        %v2537 = vpop.f32.mrf.mxu0
        %2538 = vmatprep.mubr.f32.mxu0 0.0
        %v2539 = vand.u32 %v1663, 4294901760
        %2540 = vmatmul.mubr.f32.gmra.mxu0 %v2539
        %v2541 = vpop.f32.mrf.mxu0
        %v2542 = vadd.f32 %v2433, %v2541
        %v2543 = vpop.f32.mrf.mxu0
        %2544 = vmatprep.mubr.f32.mxu0 0.0
        %v2545 = vand.u32 %v1666, 4294901760
        %2546 = vmatmul.mubr.f32.gmra.mxu0 %v2545
        %v2547 = vpop.f32.mrf.mxu0
        %v2548 = vadd.f32 %v2443, %v2547
        %v2549 = vpop.f32.mrf.mxu0
        %2550 = vdwg.mxu0
        %2551 = vmatprep.subr.mxu0 0.0
        %2552 = vmatpush1.msra.mxu0 0.0
        %2553 = vmatprep.subr.mxu0 0.0
        %2554 = vmatpush1.msra.mxu0 0.0
        %2555 = vmatprep.subr.mxu0 0.0
        %2556 = vmatpush1.msra.mxu0 0.0
        %2557 = vmatprep.subr.mxu0 0.0
        %2558 = vmatpush1.msra.mxu0 0.0
        %2559 = vmatprep.subr.mxu0 0.0
        %2560 = vmatpush1.msra.mxu0 0.0
        %2561 = vmatprep.subr.mxu0 0.0
        %2562 = vmatpush1.msra.mxu0 0.0
        %2563 = vmatprep.subr.mxu0 0.0
        %2564 = vmatpush1.msra.mxu0 0.0
        %2565 = vmatprep.subr.mxu0 0.0
        %2566 = vmatpush1.msra.mxu0 0.0
        %2567 = vmatprep.subr.mxu0 0.0
        %2568 = vmatpush1.msra.mxu0 0.0
        %2569 = vmatprep.subr.mxu0 0.0
        %2570 = vmatpush1.msra.mxu0 0.0
        %2571 = vmatprep.subr.mxu0 0.0
        %2572 = vmatpush1.msra.mxu0 0.0
        %2573 = vmatprep.subr.mxu0 0.0
        %2574 = vmatpush1.msra.mxu0 0.0
        %2575 = vmatprep.subr.mxu0 0.0
        %2576 = vmatpush1.msra.mxu0 0.0
        %2577 = vmatprep.subr.mxu0 0.0
        %2578 = vmatpush1.msra.mxu0 0.0
        %2579 = vmatprep.subr.mxu0 0.0
        %v2580 = vand.u32 %v1639, 4294901760
        %v2581 = vsub.f32 %v1639, %v2580
        %2582 = vmatpush1.msra.mxu0 %v2581
        %2583 = vmatprep.subr.mxu0 0.0
        %v2584 = vand.u32 %v1638, 4294901760
        %v2585 = vsub.f32 %v1638, %v2584
        %2586 = vmatpush1.msra.mxu0 %v2585
        %2587 = vmatprep.subr.mxu0 0.0
        %2588 = vmatpush2.msra.mxu0 0.0
        %2589 = vmatprep.subr.mxu0 0.0
        %2590 = vmatpush2.msra.mxu0 0.0
        %2591 = vmatprep.subr.mxu0 0.0
        %2592 = vmatpush2.msra.mxu0 0.0
        %2593 = vmatprep.subr.mxu0 0.0
        %2594 = vmatpush2.msra.mxu0 0.0
        %2595 = vmatprep.subr.mxu0 0.0
        %2596 = vmatpush2.msra.mxu0 0.0
        %2597 = vmatprep.subr.mxu0 0.0
        %2598 = vmatpush2.msra.mxu0 0.0
        %2599 = vmatprep.subr.mxu0 0.0
        %2600 = vmatpush2.msra.mxu0 0.0
        %2601 = vmatprep.subr.mxu0 0.0
        %2602 = vmatpush2.msra.mxu0 0.0
        %2603 = vmatprep.subr.mxu0 0.0
        %2604 = vmatpush2.msra.mxu0 0.0
        %2605 = vmatprep.subr.mxu0 0.0
        %2606 = vmatpush2.msra.mxu0 0.0
        %2607 = vmatprep.subr.mxu0 0.0
        %2608 = vmatpush2.msra.mxu0 0.0
        %2609 = vmatprep.subr.mxu0 0.0
        %2610 = vmatpush2.msra.mxu0 0.0
        %2611 = vmatprep.subr.mxu0 0.0
        %2612 = vmatpush2.msra.mxu0 0.0
        %2613 = vmatprep.subr.mxu0 0.0
        %2614 = vmatpush2.msra.mxu0 0.0
        %2615 = vmatprep.subr.mxu0 0.0
        %2616 = vmatpush2.msra.mxu0 0.0
        %2617 = vmatprep.subr.mxu0 0.0
        %2618 = vmatpush2.msra.mxu0 0.0
        %2619 = vmatprep.mubr.f32.mxu0 0.0
        %v2620 = vand.u32 %v1654, 4294901760
        %v2621 = vsub.f32 %v1654, %v2620
        %2622 = vmatmul.mubr.f32.gmra.mxu0 %v2621
        %v2623 = vpop.f32.mrf.mxu0
        %v2624 = vadd.f32 %v2524, %v2623
        %v2625 = vpop.f32.mrf.mxu0
        %2626 = vmatprep.mubr.f32.mxu0 0.0
        %v2627 = vand.u32 %v1657, 4294901760
        %v2628 = vsub.f32 %v1657, %v2627
        %2629 = vmatmul.mubr.f32.gmra.mxu0 %v2628
        %v2630 = vpop.f32.mrf.mxu0
        %v2631 = vadd.f32 %v2530, %v2630
        %v2632 = vpop.f32.mrf.mxu0
        %2633 = vmatprep.mubr.f32.mxu0 0.0
        %v2634 = vand.u32 %v1660, 4294901760
        %v2635 = vsub.f32 %v1660, %v2634
        %2636 = vmatmul.mubr.f32.gmra.mxu0 %v2635
        %v2637 = vpop.f32.mrf.mxu0
        %v2638 = vadd.f32 %v2536, %v2637
        %v2639 = vpop.f32.mrf.mxu0
        %2640 = vmatprep.mubr.f32.mxu0 0.0
        %v2641 = vand.u32 %v1663, 4294901760
        %v2642 = vsub.f32 %v1663, %v2641
        %2643 = vmatmul.mubr.f32.gmra.mxu0 %v2642
        %v2644 = vpop.f32.mrf.mxu0
        %v2645 = vadd.f32 %v2542, %v2644
        %v2646 = vpop.f32.mrf.mxu0
        %2647 = vmatprep.mubr.f32.mxu0 0.0
        %v2648 = vand.u32 %v1666, 4294901760
        %v2649 = vsub.f32 %v1666, %v2648
        %2650 = vmatmul.mubr.f32.gmra.mxu0 %v2649
        %v2651 = vpop.f32.mrf.mxu0
        %v2652 = vadd.f32 %v2548, %v2651
        %v2653 = vpop.f32.mrf.mxu0
        %2654 = vdwg.mxu0
        %2655 = vmatprep.subr.mxu0 0.0
        %2656 = vmatpush1.msra.mxu0 0.0
        %2657 = vmatprep.subr.mxu0 0.0
        %2658 = vmatpush1.msra.mxu0 0.0
        %2659 = vmatprep.subr.mxu0 0.0
        %2660 = vmatpush1.msra.mxu0 0.0
        %2661 = vmatprep.subr.mxu0 0.0
        %2662 = vmatpush1.msra.mxu0 0.0
        %2663 = vmatprep.subr.mxu0 0.0
        %2664 = vmatpush1.msra.mxu0 0.0
        %2665 = vmatprep.subr.mxu0 0.0
        %2666 = vmatpush1.msra.mxu0 0.0
        %2667 = vmatprep.subr.mxu0 0.0
        %2668 = vmatpush1.msra.mxu0 0.0
        %2669 = vmatprep.subr.mxu0 0.0
        %2670 = vmatpush1.msra.mxu0 0.0
        %2671 = vmatprep.subr.mxu0 0.0
        %2672 = vmatpush1.msra.mxu0 0.0
        %2673 = vmatprep.subr.mxu0 0.0
        %2674 = vmatpush1.msra.mxu0 0.0
        %2675 = vmatprep.subr.mxu0 0.0
        %2676 = vmatpush1.msra.mxu0 0.0
        %2677 = vmatprep.subr.mxu0 0.0
        %2678 = vmatpush1.msra.mxu0 0.0
        %2679 = vmatprep.subr.mxu0 0.0
        %2680 = vmatpush1.msra.mxu0 0.0
        %2681 = vmatprep.subr.mxu0 0.0
        %2682 = vmatpush1.msra.mxu0 0.0
        %2683 = vmatprep.subr.mxu0 0.0
        %v2684 = vand.u32 %v1639, 4294901760
        %2685 = vmatpush1.msra.mxu0 %v2684
        %2686 = vmatprep.subr.mxu0 0.0
        %v2687 = vand.u32 %v1638, 4294901760
        %2688 = vmatpush1.msra.mxu0 %v2687
        %2689 = vmatprep.subr.mxu0 0.0
        %2690 = vmatpush2.msra.mxu0 0.0
        %2691 = vmatprep.subr.mxu0 0.0
        %2692 = vmatpush2.msra.mxu0 0.0
        %2693 = vmatprep.subr.mxu0 0.0
        %2694 = vmatpush2.msra.mxu0 0.0
        %2695 = vmatprep.subr.mxu0 0.0
        %2696 = vmatpush2.msra.mxu0 0.0
        %2697 = vmatprep.subr.mxu0 0.0
        %2698 = vmatpush2.msra.mxu0 0.0
        %2699 = vmatprep.subr.mxu0 0.0
        %2700 = vmatpush2.msra.mxu0 0.0
        %2701 = vmatprep.subr.mxu0 0.0
        %2702 = vmatpush2.msra.mxu0 0.0
        %2703 = vmatprep.subr.mxu0 0.0
        %2704 = vmatpush2.msra.mxu0 0.0
        %2705 = vmatprep.subr.mxu0 0.0
        %2706 = vmatpush2.msra.mxu0 0.0
        %2707 = vmatprep.subr.mxu0 0.0
        %2708 = vmatpush2.msra.mxu0 0.0
        %2709 = vmatprep.subr.mxu0 0.0
        %2710 = vmatpush2.msra.mxu0 0.0
        %2711 = vmatprep.subr.mxu0 0.0
        %2712 = vmatpush2.msra.mxu0 0.0
        %2713 = vmatprep.subr.mxu0 0.0
        %2714 = vmatpush2.msra.mxu0 0.0
        %2715 = vmatprep.subr.mxu0 0.0
        %2716 = vmatpush2.msra.mxu0 0.0
        %2717 = vmatprep.subr.mxu0 0.0
        %2718 = vmatpush2.msra.mxu0 0.0
        %2719 = vmatprep.subr.mxu0 0.0
        %2720 = vmatpush2.msra.mxu0 0.0
        %2721 = vmatprep.mubr.f32.mxu0 0.0
        %v2722 = vand.u32 %v1654, 4294901760
        %v2723 = vsub.f32 %v1654, %v2722
        %v2724 = vand.u32 %v2723, 4294901760
        %2725 = vmatmul.mubr.f32.gmra.mxu0 %v2724
        %v2726 = vpop.f32.mrf.mxu0
        %v2727 = vadd.f32 %v2624, %v2726
        %v2728 = vpop.f32.mrf.mxu0
        %2729 = vmatprep.mubr.f32.mxu0 0.0
        %v2730 = vand.u32 %v1657, 4294901760
        %v2731 = vsub.f32 %v1657, %v2730
        %v2732 = vand.u32 %v2731, 4294901760
        %2733 = vmatmul.mubr.f32.gmra.mxu0 %v2732
        %v2734 = vpop.f32.mrf.mxu0
        %v2735 = vadd.f32 %v2631, %v2734
        %v2736 = vpop.f32.mrf.mxu0
        %2737 = vmatprep.mubr.f32.mxu0 0.0
        %v2738 = vand.u32 %v1660, 4294901760
        %v2739 = vsub.f32 %v1660, %v2738
        %v2740 = vand.u32 %v2739, 4294901760
        %2741 = vmatmul.mubr.f32.gmra.mxu0 %v2740
        %v2742 = vpop.f32.mrf.mxu0
        %v2743 = vadd.f32 %v2638, %v2742
        %v2744 = vpop.f32.mrf.mxu0
        %2745 = vmatprep.mubr.f32.mxu0 0.0
        %v2746 = vand.u32 %v1663, 4294901760
        %v2747 = vsub.f32 %v1663, %v2746
        %v2748 = vand.u32 %v2747, 4294901760
        %2749 = vmatmul.mubr.f32.gmra.mxu0 %v2748
        %v2750 = vpop.f32.mrf.mxu0
        %v2751 = vadd.f32 %v2645, %v2750
        %v2752 = vpop.f32.mrf.mxu0
        %2753 = vmatprep.mubr.f32.mxu0 0.0
        %v2754 = vand.u32 %v1666, 4294901760
        %v2755 = vsub.f32 %v1666, %v2754
        %v2756 = vand.u32 %v2755, 4294901760
        %2757 = vmatmul.mubr.f32.gmra.mxu0 %v2756
        %v2758 = vpop.f32.mrf.mxu0
        %v2759 = vadd.f32 %v2652, %v2758
        %v2760 = vpop.f32.mrf.mxu0
        %2761 = vdwg.mxu0
        %2762 = vmatprep.subr.mxu0 0.0
        %2763 = vmatpush1.msra.mxu0 0.0
        %2764 = vmatprep.subr.mxu0 0.0
        %2765 = vmatpush1.msra.mxu0 0.0
        %2766 = vmatprep.subr.mxu0 0.0
        %2767 = vmatpush1.msra.mxu0 0.0
        %2768 = vmatprep.subr.mxu0 0.0
        %2769 = vmatpush1.msra.mxu0 0.0
        %2770 = vmatprep.subr.mxu0 0.0
        %2771 = vmatpush1.msra.mxu0 0.0
        %2772 = vmatprep.subr.mxu0 0.0
        %2773 = vmatpush1.msra.mxu0 0.0
        %2774 = vmatprep.subr.mxu0 0.0
        %2775 = vmatpush1.msra.mxu0 0.0
        %2776 = vmatprep.subr.mxu0 0.0
        %2777 = vmatpush1.msra.mxu0 0.0
        %2778 = vmatprep.subr.mxu0 0.0
        %2779 = vmatpush1.msra.mxu0 0.0
        %2780 = vmatprep.subr.mxu0 0.0
        %2781 = vmatpush1.msra.mxu0 0.0
        %2782 = vmatprep.subr.mxu0 0.0
        %2783 = vmatpush1.msra.mxu0 0.0
        %2784 = vmatprep.subr.mxu0 0.0
        %2785 = vmatpush1.msra.mxu0 0.0
        %2786 = vmatprep.subr.mxu0 0.0
        %2787 = vmatpush1.msra.mxu0 0.0
        %2788 = vmatprep.subr.mxu0 0.0
        %2789 = vmatpush1.msra.mxu0 0.0
        %2790 = vmatprep.subr.mxu0 0.0
        %v2791 = vand.u32 %v1639, 4294901760
        %v2792 = vsub.f32 %v1639, %v2791
        %v2793 = vand.u32 %v2792, 4294901760
        %2794 = vmatpush1.msra.mxu0 %v2793
        %2795 = vmatprep.subr.mxu0 0.0
        %v2796 = vand.u32 %v1638, 4294901760
        %v2797 = vsub.f32 %v1638, %v2796
        %v2798 = vand.u32 %v2797, 4294901760
        %2799 = vmatpush1.msra.mxu0 %v2798
        %2800 = vmatprep.subr.mxu0 0.0
        %2801 = vmatpush2.msra.mxu0 0.0
        %2802 = vmatprep.subr.mxu0 0.0
        %2803 = vmatpush2.msra.mxu0 0.0
        %2804 = vmatprep.subr.mxu0 0.0
        %2805 = vmatpush2.msra.mxu0 0.0
        %2806 = vmatprep.subr.mxu0 0.0
        %2807 = vmatpush2.msra.mxu0 0.0
        %2808 = vmatprep.subr.mxu0 0.0
        %2809 = vmatpush2.msra.mxu0 0.0
        %2810 = vmatprep.subr.mxu0 0.0
        %2811 = vmatpush2.msra.mxu0 0.0
        %2812 = vmatprep.subr.mxu0 0.0
        %2813 = vmatpush2.msra.mxu0 0.0
        %2814 = vmatprep.subr.mxu0 0.0
        %2815 = vmatpush2.msra.mxu0 0.0
        %2816 = vmatprep.subr.mxu0 0.0
        %2817 = vmatpush2.msra.mxu0 0.0
        %2818 = vmatprep.subr.mxu0 0.0
        %2819 = vmatpush2.msra.mxu0 0.0
        %2820 = vmatprep.subr.mxu0 0.0
        %2821 = vmatpush2.msra.mxu0 0.0
        %2822 = vmatprep.subr.mxu0 0.0
        %2823 = vmatpush2.msra.mxu0 0.0
        %2824 = vmatprep.subr.mxu0 0.0
        %2825 = vmatpush2.msra.mxu0 0.0
        %2826 = vmatprep.subr.mxu0 0.0
        %2827 = vmatpush2.msra.mxu0 0.0
        %2828 = vmatprep.subr.mxu0 0.0
        %2829 = vmatpush2.msra.mxu0 0.0
        %2830 = vmatprep.subr.mxu0 0.0
        %2831 = vmatpush2.msra.mxu0 0.0
        %2832 = vmatprep.mubr.f32.mxu0 0.0
        %v2833 = vand.u32 %v1654, 4294901760
        %2834 = vmatmul.mubr.f32.gmra.mxu0 %v2833
        %v2835 = vpop.f32.mrf.mxu0
        %v2836 = vadd.f32 %v2727, %v2835
        %v2837 = vpop.f32.mrf.mxu0
        %2838 = vmatprep.mubr.f32.mxu0 0.0
        %v2839 = vand.u32 %v1657, 4294901760
        %2840 = vmatmul.mubr.f32.gmra.mxu0 %v2839
        %v2841 = vpop.f32.mrf.mxu0
        %v2842 = vadd.f32 %v2735, %v2841
        %v2843 = vpop.f32.mrf.mxu0
        %2844 = vmatprep.mubr.f32.mxu0 0.0
        %v2845 = vand.u32 %v1660, 4294901760
        %2846 = vmatmul.mubr.f32.gmra.mxu0 %v2845
        %v2847 = vpop.f32.mrf.mxu0
        %v2848 = vadd.f32 %v2743, %v2847
        %v2849 = vpop.f32.mrf.mxu0
        %2850 = vmatprep.mubr.f32.mxu0 0.0
        %v2851 = vand.u32 %v1663, 4294901760
        %2852 = vmatmul.mubr.f32.gmra.mxu0 %v2851
        %v2853 = vpop.f32.mrf.mxu0
        %v2854 = vadd.f32 %v2751, %v2853
        %v2855 = vpop.f32.mrf.mxu0
        %2856 = vmatprep.mubr.f32.mxu0 0.0
        %v2857 = vand.u32 %v1666, 4294901760
        %2858 = vmatmul.mubr.f32.gmra.mxu0 %v2857
        %v2859 = vpop.f32.mrf.mxu0
        %v2860 = vadd.f32 %v2759, %v2859
        %v2861 = vpop.f32.mrf.mxu0
        %2862 = vdwg.mxu0
        %2863 = vmatprep.subr.mxu0 0.0
        %2864 = vmatpush1.msra.mxu0 0.0
        %2865 = vmatprep.subr.mxu0 0.0
        %2866 = vmatpush1.msra.mxu0 0.0
        %2867 = vmatprep.subr.mxu0 0.0
        %2868 = vmatpush1.msra.mxu0 0.0
        %2869 = vmatprep.subr.mxu0 0.0
        %2870 = vmatpush1.msra.mxu0 0.0
        %2871 = vmatprep.subr.mxu0 0.0
        %2872 = vmatpush1.msra.mxu0 0.0
        %2873 = vmatprep.subr.mxu0 0.0
        %2874 = vmatpush1.msra.mxu0 0.0
        %2875 = vmatprep.subr.mxu0 0.0
        %2876 = vmatpush1.msra.mxu0 0.0
        %2877 = vmatprep.subr.mxu0 0.0
        %2878 = vmatpush1.msra.mxu0 0.0
        %2879 = vmatprep.subr.mxu0 0.0
        %2880 = vmatpush1.msra.mxu0 0.0
        %2881 = vmatprep.subr.mxu0 0.0
        %2882 = vmatpush1.msra.mxu0 0.0
        %2883 = vmatprep.subr.mxu0 0.0
        %2884 = vmatpush1.msra.mxu0 0.0
        %2885 = vmatprep.subr.mxu0 0.0
        %2886 = vmatpush1.msra.mxu0 0.0
        %2887 = vmatprep.subr.mxu0 0.0
        %2888 = vmatpush1.msra.mxu0 0.0
        %2889 = vmatprep.subr.mxu0 0.0
        %2890 = vmatpush1.msra.mxu0 0.0
        %2891 = vmatprep.subr.mxu0 0.0
        %v2892 = vand.u32 %v1639, 4294901760
        %2893 = vmatpush1.msra.mxu0 %v2892
        %2894 = vmatprep.subr.mxu0 0.0
        %v2895 = vand.u32 %v1638, 4294901760
        %2896 = vmatpush1.msra.mxu0 %v2895
        %2897 = vmatprep.subr.mxu0 0.0
        %2898 = vmatpush2.msra.mxu0 0.0
        %2899 = vmatprep.subr.mxu0 0.0
        %2900 = vmatpush2.msra.mxu0 0.0
        %2901 = vmatprep.subr.mxu0 0.0
        %2902 = vmatpush2.msra.mxu0 0.0
        %2903 = vmatprep.subr.mxu0 0.0
        %2904 = vmatpush2.msra.mxu0 0.0
        %2905 = vmatprep.subr.mxu0 0.0
        %2906 = vmatpush2.msra.mxu0 0.0
        %2907 = vmatprep.subr.mxu0 0.0
        %2908 = vmatpush2.msra.mxu0 0.0
        %2909 = vmatprep.subr.mxu0 0.0
        %2910 = vmatpush2.msra.mxu0 0.0
        %2911 = vmatprep.subr.mxu0 0.0
        %2912 = vmatpush2.msra.mxu0 0.0
        %2913 = vmatprep.subr.mxu0 0.0
        %2914 = vmatpush2.msra.mxu0 0.0
        %2915 = vmatprep.subr.mxu0 0.0
        %2916 = vmatpush2.msra.mxu0 0.0
        %2917 = vmatprep.subr.mxu0 0.0
        %2918 = vmatpush2.msra.mxu0 0.0
        %2919 = vmatprep.subr.mxu0 0.0
        %2920 = vmatpush2.msra.mxu0 0.0
        %2921 = vmatprep.subr.mxu0 0.0
        %2922 = vmatpush2.msra.mxu0 0.0
        %2923 = vmatprep.subr.mxu0 0.0
        %2924 = vmatpush2.msra.mxu0 0.0
        %2925 = vmatprep.subr.mxu0 0.0
        %2926 = vmatpush2.msra.mxu0 0.0
        %2927 = vmatprep.subr.mxu0 0.0
        %2928 = vmatpush2.msra.mxu0 0.0
        %2929 = vmatprep.mubr.f32.mxu0 0.0
        %v2930 = vand.u32 %v1654, 4294901760
        %2931 = vmatmul.mubr.f32.gmra.mxu0 %v2930
        %v2932 = vpop.f32.mrf.mxu0
        %v2933 = vadd.f32 %v2836, %v2932
        %v2934 = vpop.f32.mrf.mxu0
        %2935 = vmatprep.mubr.f32.mxu0 0.0
        %v2936 = vand.u32 %v1657, 4294901760
        %2937 = vmatmul.mubr.f32.gmra.mxu0 %v2936
        %v2938 = vpop.f32.mrf.mxu0
        %v2939 = vadd.f32 %v2842, %v2938
        %v2940 = vpop.f32.mrf.mxu0
        %2941 = vmatprep.mubr.f32.mxu0 0.0
        %v2942 = vand.u32 %v1660, 4294901760
        %2943 = vmatmul.mubr.f32.gmra.mxu0 %v2942
        %v2944 = vpop.f32.mrf.mxu0
        %v2945 = vadd.f32 %v2848, %v2944
        %v2946 = vpop.f32.mrf.mxu0
        %2947 = vmatprep.mubr.f32.mxu0 0.0
        %v2948 = vand.u32 %v1663, 4294901760
        %2949 = vmatmul.mubr.f32.gmra.mxu0 %v2948
        %v2950 = vpop.f32.mrf.mxu0
        %v2951 = vadd.f32 %v2854, %v2950
        %v2952 = vpop.f32.mrf.mxu0
        %2953 = vmatprep.mubr.f32.mxu0 0.0
        %v2954 = vand.u32 %v1666, 4294901760
        %2955 = vmatmul.mubr.f32.gmra.mxu0 %v2954
        %v2956 = vpop.f32.mrf.mxu0
        %v2957 = vadd.f32 %v2860, %v2956
        %v2958 = vpop.f32.mrf.mxu0
        %2959 = vdwg.mxu0
        %2961 = vset.pattern.permute.xlu0 0
        %2962 = vperm.xlu0 %2961, %v551
        %v2963 = vpop.permute.xlu0 %2962
        %2966 = vset.pattern.permute.xlu0 0
        %2967 = vperm.xlu0 %2966, %v552
        %v2968 = vpop.permute.xlu0 %2967
        %2971 = vset.pattern.permute.xlu0 0
        %2972 = vperm.xlu0 %2971, %v553
        %v2973 = vpop.permute.xlu0 %2972
        %2976 = vset.pattern.permute.xlu0 0
        %2977 = vperm.xlu0 %2976, %v554
        %v2978 = vpop.permute.xlu0 %2977
        %v2980 = vadd.f32 %v2933, %v2963
        %v2981 = vadd.f32 %v2939, %v2968
        %v2982 = vadd.f32 %v2945, %v2973
        %v2983 = vadd.f32 %v2951, %v2978
        %2985 = vset.pattern.permute.xlu0 0
        %2986 = vperm.xlu0 %2985, %v572
        %v2987 = vpop.permute.xlu0 %2986
        %v2989 = vadd.f32 %v2957, %v2987
        %2990 = vmatprep.subr.mxu0 0.0
        %2991 = vmatpush1.msra.mxu0 0.0
        %2992 = vmatprep.subr.mxu0 0.0
        %2993 = vmatpush1.msra.mxu0 0.0
        %2994 = vmatprep.subr.mxu0 0.0
        %2995 = vmatpush1.msra.mxu0 0.0
        %2996 = vmatprep.subr.mxu0 0.0
        %2997 = vmatpush1.msra.mxu0 0.0
        %2998 = vmatprep.subr.mxu0 0.0
        %2999 = vmatpush1.msra.mxu0 0.0
        %3000 = vmatprep.subr.mxu0 0.0
        %3001 = vmatpush1.msra.mxu0 0.0
        %3002 = vmatprep.subr.mxu0 0.0
        %3003 = vmatpush1.msra.mxu0 0.0
        %3004 = vmatprep.subr.mxu0 0.0
        %3005 = vmatpush1.msra.mxu0 0.0
        %3006 = vmatprep.subr.mxu0 0.0
        %3007 = vmatpush1.msra.mxu0 0.0
        %3008 = vmatprep.subr.mxu0 0.0
        %3009 = vmatpush1.msra.mxu0 0.0
        %3010 = vmatprep.subr.mxu0 0.0
        %3011 = vmatpush1.msra.mxu0 0.0
        %3012 = vmatprep.subr.mxu0 0.0
        %3013 = vmatpush1.msra.mxu0 0.0
        %3014 = vmatprep.subr.mxu0 0.0
        %3015 = vmatpush1.msra.mxu0 0.0
        %3016 = vmatprep.subr.mxu0 0.0
        %3017 = vmatpush1.msra.mxu0 0.0
        %3018 = vmatprep.subr.mxu0 0.0
        %v3019 = vand.u32 %v1641, 4294901760
        %3020 = vmatpush1.msra.mxu0 %v3019
        %3021 = vmatprep.subr.mxu0 0.0
        %v3022 = vand.u32 %v1640, 4294901760
        %3023 = vmatpush1.msra.mxu0 %v3022
        %3024 = vmatprep.subr.mxu0 0.0
        %3025 = vmatpush2.msra.mxu0 0.0
        %3026 = vmatprep.subr.mxu0 0.0
        %3027 = vmatpush2.msra.mxu0 0.0
        %3028 = vmatprep.subr.mxu0 0.0
        %3029 = vmatpush2.msra.mxu0 0.0
        %3030 = vmatprep.subr.mxu0 0.0
        %3031 = vmatpush2.msra.mxu0 0.0
        %3032 = vmatprep.subr.mxu0 0.0
        %3033 = vmatpush2.msra.mxu0 0.0
        %3034 = vmatprep.subr.mxu0 0.0
        %3035 = vmatpush2.msra.mxu0 0.0
        %3036 = vmatprep.subr.mxu0 0.0
        %3037 = vmatpush2.msra.mxu0 0.0
        %3038 = vmatprep.subr.mxu0 0.0
        %3039 = vmatpush2.msra.mxu0 0.0
        %3040 = vmatprep.subr.mxu0 0.0
        %3041 = vmatpush2.msra.mxu0 0.0
        %3042 = vmatprep.subr.mxu0 0.0
        %3043 = vmatpush2.msra.mxu0 0.0
        %3044 = vmatprep.subr.mxu0 0.0
        %3045 = vmatpush2.msra.mxu0 0.0
        %3046 = vmatprep.subr.mxu0 0.0
        %3047 = vmatpush2.msra.mxu0 0.0
        %3048 = vmatprep.subr.mxu0 0.0
        %3049 = vmatpush2.msra.mxu0 0.0
        %3050 = vmatprep.subr.mxu0 0.0
        %3051 = vmatpush2.msra.mxu0 0.0
        %3052 = vmatprep.subr.mxu0 0.0
        %3053 = vmatpush2.msra.mxu0 0.0
        %3054 = vmatprep.subr.mxu0 0.0
        %3055 = vmatpush2.msra.mxu0 0.0
        %3056 = vmatprep.mubr.f32.mxu0 0.0
        %v3057 = vand.u32 %v1654, 4294901760
        %v3058 = vsub.f32 %v1654, %v3057
        %v3059 = vand.u32 %v3058, 4294901760
        %v3060 = vsub.f32 %v3058, %v3059
        %v3061 = vand.u32 %v3060, 4294901760
        %3062 = vmatmul.mubr.f32.gmra.mxu0 %v3061
        %v3063 = vpop.f32.mrf.mxu0
        %v3064 = vadd.f32 0.0, %v3063
        %v3065 = vpop.f32.mrf.mxu0
        %3066 = vmatprep.mubr.f32.mxu0 0.0
        %v3067 = vand.u32 %v1657, 4294901760
        %v3068 = vsub.f32 %v1657, %v3067
        %v3069 = vand.u32 %v3068, 4294901760
        %v3070 = vsub.f32 %v3068, %v3069
        %v3071 = vand.u32 %v3070, 4294901760
        %3072 = vmatmul.mubr.f32.gmra.mxu0 %v3071
        %v3073 = vpop.f32.mrf.mxu0
        %v3074 = vadd.f32 0.0, %v3073
        %v3075 = vpop.f32.mrf.mxu0
        %3076 = vmatprep.mubr.f32.mxu0 0.0
        %v3077 = vand.u32 %v1660, 4294901760
        %v3078 = vsub.f32 %v1660, %v3077
        %v3079 = vand.u32 %v3078, 4294901760
        %v3080 = vsub.f32 %v3078, %v3079
        %v3081 = vand.u32 %v3080, 4294901760
        %3082 = vmatmul.mubr.f32.gmra.mxu0 %v3081
        %v3083 = vpop.f32.mrf.mxu0
        %v3084 = vadd.f32 0.0, %v3083
        %v3085 = vpop.f32.mrf.mxu0
        %3086 = vmatprep.mubr.f32.mxu0 0.0
        %v3087 = vand.u32 %v1663, 4294901760
        %v3088 = vsub.f32 %v1663, %v3087
        %v3089 = vand.u32 %v3088, 4294901760
        %v3090 = vsub.f32 %v3088, %v3089
        %v3091 = vand.u32 %v3090, 4294901760
        %3092 = vmatmul.mubr.f32.gmra.mxu0 %v3091
        %v3093 = vpop.f32.mrf.mxu0
        %v3094 = vadd.f32 0.0, %v3093
        %v3095 = vpop.f32.mrf.mxu0
        %3096 = vmatprep.mubr.f32.mxu0 0.0
        %v3097 = vand.u32 %v1666, 4294901760
        %v3098 = vsub.f32 %v1666, %v3097
        %v3099 = vand.u32 %v3098, 4294901760
        %v3100 = vsub.f32 %v3098, %v3099
        %v3101 = vand.u32 %v3100, 4294901760
        %3102 = vmatmul.mubr.f32.gmra.mxu0 %v3101
        %v3103 = vpop.f32.mrf.mxu0
        %v3104 = vadd.f32 0.0, %v3103
        %v3105 = vpop.f32.mrf.mxu0
        %3106 = vdwg.mxu0
        %3107 = vmatprep.subr.mxu0 0.0
        %3108 = vmatpush1.msra.mxu0 0.0
        %3109 = vmatprep.subr.mxu0 0.0
        %3110 = vmatpush1.msra.mxu0 0.0
        %3111 = vmatprep.subr.mxu0 0.0
        %3112 = vmatpush1.msra.mxu0 0.0
        %3113 = vmatprep.subr.mxu0 0.0
        %3114 = vmatpush1.msra.mxu0 0.0
        %3115 = vmatprep.subr.mxu0 0.0
        %3116 = vmatpush1.msra.mxu0 0.0
        %3117 = vmatprep.subr.mxu0 0.0
        %3118 = vmatpush1.msra.mxu0 0.0
        %3119 = vmatprep.subr.mxu0 0.0
        %3120 = vmatpush1.msra.mxu0 0.0
        %3121 = vmatprep.subr.mxu0 0.0
        %3122 = vmatpush1.msra.mxu0 0.0
        %3123 = vmatprep.subr.mxu0 0.0
        %3124 = vmatpush1.msra.mxu0 0.0
        %3125 = vmatprep.subr.mxu0 0.0
        %3126 = vmatpush1.msra.mxu0 0.0
        %3127 = vmatprep.subr.mxu0 0.0
        %3128 = vmatpush1.msra.mxu0 0.0
        %3129 = vmatprep.subr.mxu0 0.0
        %3130 = vmatpush1.msra.mxu0 0.0
        %3131 = vmatprep.subr.mxu0 0.0
        %3132 = vmatpush1.msra.mxu0 0.0
        %3133 = vmatprep.subr.mxu0 0.0
        %3134 = vmatpush1.msra.mxu0 0.0
        %3135 = vmatprep.subr.mxu0 0.0
        %v3136 = vand.u32 %v1641, 4294901760
        %v3137 = vsub.f32 %v1641, %v3136
        %v3138 = vand.u32 %v3137, 4294901760
        %v3139 = vsub.f32 %v3137, %v3138
        %v3140 = vand.u32 %v3139, 4294901760
        %3141 = vmatpush1.msra.mxu0 %v3140
        %3142 = vmatprep.subr.mxu0 0.0
        %v3143 = vand.u32 %v1640, 4294901760
        %v3144 = vsub.f32 %v1640, %v3143
        %v3145 = vand.u32 %v3144, 4294901760
        %v3146 = vsub.f32 %v3144, %v3145
        %v3147 = vand.u32 %v3146, 4294901760
        %3148 = vmatpush1.msra.mxu0 %v3147
        %3149 = vmatprep.subr.mxu0 0.0
        %3150 = vmatpush2.msra.mxu0 0.0
        %3151 = vmatprep.subr.mxu0 0.0
        %3152 = vmatpush2.msra.mxu0 0.0
        %3153 = vmatprep.subr.mxu0 0.0
        %3154 = vmatpush2.msra.mxu0 0.0
        %3155 = vmatprep.subr.mxu0 0.0
        %3156 = vmatpush2.msra.mxu0 0.0
        %3157 = vmatprep.subr.mxu0 0.0
        %3158 = vmatpush2.msra.mxu0 0.0
        %3159 = vmatprep.subr.mxu0 0.0
        %3160 = vmatpush2.msra.mxu0 0.0
        %3161 = vmatprep.subr.mxu0 0.0
        %3162 = vmatpush2.msra.mxu0 0.0
        %3163 = vmatprep.subr.mxu0 0.0
        %3164 = vmatpush2.msra.mxu0 0.0
        %3165 = vmatprep.subr.mxu0 0.0
        %3166 = vmatpush2.msra.mxu0 0.0
        %3167 = vmatprep.subr.mxu0 0.0
        %3168 = vmatpush2.msra.mxu0 0.0
        %3169 = vmatprep.subr.mxu0 0.0
        %3170 = vmatpush2.msra.mxu0 0.0
        %3171 = vmatprep.subr.mxu0 0.0
        %3172 = vmatpush2.msra.mxu0 0.0
        %3173 = vmatprep.subr.mxu0 0.0
        %3174 = vmatpush2.msra.mxu0 0.0
        %3175 = vmatprep.subr.mxu0 0.0
        %3176 = vmatpush2.msra.mxu0 0.0
        %3177 = vmatprep.subr.mxu0 0.0
        %3178 = vmatpush2.msra.mxu0 0.0
        %3179 = vmatprep.subr.mxu0 0.0
        %3180 = vmatpush2.msra.mxu0 0.0
        %3181 = vmatprep.mubr.f32.mxu0 0.0
        %v3182 = vand.u32 %v1654, 4294901760
        %3183 = vmatmul.mubr.f32.gmra.mxu0 %v3182
        %v3184 = vpop.f32.mrf.mxu0
        %v3185 = vadd.f32 %v3064, %v3184
        %v3186 = vpop.f32.mrf.mxu0
        %3187 = vmatprep.mubr.f32.mxu0 0.0
        %v3188 = vand.u32 %v1657, 4294901760
        %3189 = vmatmul.mubr.f32.gmra.mxu0 %v3188
        %v3190 = vpop.f32.mrf.mxu0
        %v3191 = vadd.f32 %v3074, %v3190
        %v3192 = vpop.f32.mrf.mxu0
        %3193 = vmatprep.mubr.f32.mxu0 0.0
        %v3194 = vand.u32 %v1660, 4294901760
        %3195 = vmatmul.mubr.f32.gmra.mxu0 %v3194
        %v3196 = vpop.f32.mrf.mxu0
        %v3197 = vadd.f32 %v3084, %v3196
        %v3198 = vpop.f32.mrf.mxu0
        %3199 = vmatprep.mubr.f32.mxu0 0.0
        %v3200 = vand.u32 %v1663, 4294901760
        %3201 = vmatmul.mubr.f32.gmra.mxu0 %v3200
        %v3202 = vpop.f32.mrf.mxu0
        %v3203 = vadd.f32 %v3094, %v3202
        %v3204 = vpop.f32.mrf.mxu0
        %3205 = vmatprep.mubr.f32.mxu0 0.0
        %v3206 = vand.u32 %v1666, 4294901760
        %3207 = vmatmul.mubr.f32.gmra.mxu0 %v3206
        %v3208 = vpop.f32.mrf.mxu0
        %v3209 = vadd.f32 %v3104, %v3208
        %v3210 = vpop.f32.mrf.mxu0
        %3211 = vdwg.mxu0
        %3212 = vmatprep.subr.mxu0 0.0
        %3213 = vmatpush1.msra.mxu0 0.0
        %3214 = vmatprep.subr.mxu0 0.0
        %3215 = vmatpush1.msra.mxu0 0.0
        %3216 = vmatprep.subr.mxu0 0.0
        %3217 = vmatpush1.msra.mxu0 0.0
        %3218 = vmatprep.subr.mxu0 0.0
        %3219 = vmatpush1.msra.mxu0 0.0
        %3220 = vmatprep.subr.mxu0 0.0
        %3221 = vmatpush1.msra.mxu0 0.0
        %3222 = vmatprep.subr.mxu0 0.0
        %3223 = vmatpush1.msra.mxu0 0.0
        %3224 = vmatprep.subr.mxu0 0.0
        %3225 = vmatpush1.msra.mxu0 0.0
        %3226 = vmatprep.subr.mxu0 0.0
        %3227 = vmatpush1.msra.mxu0 0.0
        %3228 = vmatprep.subr.mxu0 0.0
        %3229 = vmatpush1.msra.mxu0 0.0
        %3230 = vmatprep.subr.mxu0 0.0
        %3231 = vmatpush1.msra.mxu0 0.0
        %3232 = vmatprep.subr.mxu0 0.0
        %3233 = vmatpush1.msra.mxu0 0.0
        %3234 = vmatprep.subr.mxu0 0.0
        %3235 = vmatpush1.msra.mxu0 0.0
        %3236 = vmatprep.subr.mxu0 0.0
        %3237 = vmatpush1.msra.mxu0 0.0
        %3238 = vmatprep.subr.mxu0 0.0
        %3239 = vmatpush1.msra.mxu0 0.0
        %3240 = vmatprep.subr.mxu0 0.0
        %v3241 = vand.u32 %v1641, 4294901760
        %v3242 = vsub.f32 %v1641, %v3241
        %3243 = vmatpush1.msra.mxu0 %v3242
        %3244 = vmatprep.subr.mxu0 0.0
        %v3245 = vand.u32 %v1640, 4294901760
        %v3246 = vsub.f32 %v1640, %v3245
        %3247 = vmatpush1.msra.mxu0 %v3246
        %3248 = vmatprep.subr.mxu0 0.0
        %3249 = vmatpush2.msra.mxu0 0.0
        %3250 = vmatprep.subr.mxu0 0.0
        %3251 = vmatpush2.msra.mxu0 0.0
        %3252 = vmatprep.subr.mxu0 0.0
        %3253 = vmatpush2.msra.mxu0 0.0
        %3254 = vmatprep.subr.mxu0 0.0
        %3255 = vmatpush2.msra.mxu0 0.0
        %3256 = vmatprep.subr.mxu0 0.0
        %3257 = vmatpush2.msra.mxu0 0.0
        %3258 = vmatprep.subr.mxu0 0.0
        %3259 = vmatpush2.msra.mxu0 0.0
        %3260 = vmatprep.subr.mxu0 0.0
        %3261 = vmatpush2.msra.mxu0 0.0
        %3262 = vmatprep.subr.mxu0 0.0
        %3263 = vmatpush2.msra.mxu0 0.0
        %3264 = vmatprep.subr.mxu0 0.0
        %3265 = vmatpush2.msra.mxu0 0.0
        %3266 = vmatprep.subr.mxu0 0.0
        %3267 = vmatpush2.msra.mxu0 0.0
        %3268 = vmatprep.subr.mxu0 0.0
        %3269 = vmatpush2.msra.mxu0 0.0
        %3270 = vmatprep.subr.mxu0 0.0
        %3271 = vmatpush2.msra.mxu0 0.0
        %3272 = vmatprep.subr.mxu0 0.0
        %3273 = vmatpush2.msra.mxu0 0.0
        %3274 = vmatprep.subr.mxu0 0.0
        %3275 = vmatpush2.msra.mxu0 0.0
        %3276 = vmatprep.subr.mxu0 0.0
        %3277 = vmatpush2.msra.mxu0 0.0
        %3278 = vmatprep.subr.mxu0 0.0
        %3279 = vmatpush2.msra.mxu0 0.0
        %3280 = vmatprep.mubr.f32.mxu0 0.0
        %v3281 = vand.u32 %v1654, 4294901760
        %v3282 = vsub.f32 %v1654, %v3281
        %3283 = vmatmul.mubr.f32.gmra.mxu0 %v3282
        %v3284 = vpop.f32.mrf.mxu0
        %v3285 = vadd.f32 %v3185, %v3284
        %v3286 = vpop.f32.mrf.mxu0
        %3287 = vmatprep.mubr.f32.mxu0 0.0
        %v3288 = vand.u32 %v1657, 4294901760
        %v3289 = vsub.f32 %v1657, %v3288
        %3290 = vmatmul.mubr.f32.gmra.mxu0 %v3289
        %v3291 = vpop.f32.mrf.mxu0
        %v3292 = vadd.f32 %v3191, %v3291
        %v3293 = vpop.f32.mrf.mxu0
        %3294 = vmatprep.mubr.f32.mxu0 0.0
        %v3295 = vand.u32 %v1660, 4294901760
        %v3296 = vsub.f32 %v1660, %v3295
        %3297 = vmatmul.mubr.f32.gmra.mxu0 %v3296
        %v3298 = vpop.f32.mrf.mxu0
        %v3299 = vadd.f32 %v3197, %v3298
        %v3300 = vpop.f32.mrf.mxu0
        %3301 = vmatprep.mubr.f32.mxu0 0.0
        %v3302 = vand.u32 %v1663, 4294901760
        %v3303 = vsub.f32 %v1663, %v3302
        %3304 = vmatmul.mubr.f32.gmra.mxu0 %v3303
        %v3305 = vpop.f32.mrf.mxu0
        %v3306 = vadd.f32 %v3203, %v3305
        %v3307 = vpop.f32.mrf.mxu0
        %3308 = vmatprep.mubr.f32.mxu0 0.0
        %v3309 = vand.u32 %v1666, 4294901760
        %v3310 = vsub.f32 %v1666, %v3309
        %3311 = vmatmul.mubr.f32.gmra.mxu0 %v3310
        %v3312 = vpop.f32.mrf.mxu0
        %v3313 = vadd.f32 %v3209, %v3312
        %v3314 = vpop.f32.mrf.mxu0
        %3315 = vdwg.mxu0
        %3316 = vmatprep.subr.mxu0 0.0
        %3317 = vmatpush1.msra.mxu0 0.0
        %3318 = vmatprep.subr.mxu0 0.0
        %3319 = vmatpush1.msra.mxu0 0.0
        %3320 = vmatprep.subr.mxu0 0.0
        %3321 = vmatpush1.msra.mxu0 0.0
        %3322 = vmatprep.subr.mxu0 0.0
        %3323 = vmatpush1.msra.mxu0 0.0
        %3324 = vmatprep.subr.mxu0 0.0
        %3325 = vmatpush1.msra.mxu0 0.0
        %3326 = vmatprep.subr.mxu0 0.0
        %3327 = vmatpush1.msra.mxu0 0.0
        %3328 = vmatprep.subr.mxu0 0.0
        %3329 = vmatpush1.msra.mxu0 0.0
        %3330 = vmatprep.subr.mxu0 0.0
        %3331 = vmatpush1.msra.mxu0 0.0
        %3332 = vmatprep.subr.mxu0 0.0
        %3333 = vmatpush1.msra.mxu0 0.0
        %3334 = vmatprep.subr.mxu0 0.0
        %3335 = vmatpush1.msra.mxu0 0.0
        %3336 = vmatprep.subr.mxu0 0.0
        %3337 = vmatpush1.msra.mxu0 0.0
        %3338 = vmatprep.subr.mxu0 0.0
        %3339 = vmatpush1.msra.mxu0 0.0
        %3340 = vmatprep.subr.mxu0 0.0
        %3341 = vmatpush1.msra.mxu0 0.0
        %3342 = vmatprep.subr.mxu0 0.0
        %3343 = vmatpush1.msra.mxu0 0.0
        %3344 = vmatprep.subr.mxu0 0.0
        %v3345 = vand.u32 %v1641, 4294901760
        %3346 = vmatpush1.msra.mxu0 %v3345
        %3347 = vmatprep.subr.mxu0 0.0
        %v3348 = vand.u32 %v1640, 4294901760
        %3349 = vmatpush1.msra.mxu0 %v3348
        %3350 = vmatprep.subr.mxu0 0.0
        %3351 = vmatpush2.msra.mxu0 0.0
        %3352 = vmatprep.subr.mxu0 0.0
        %3353 = vmatpush2.msra.mxu0 0.0
        %3354 = vmatprep.subr.mxu0 0.0
        %3355 = vmatpush2.msra.mxu0 0.0
        %3356 = vmatprep.subr.mxu0 0.0
        %3357 = vmatpush2.msra.mxu0 0.0
        %3358 = vmatprep.subr.mxu0 0.0
        %3359 = vmatpush2.msra.mxu0 0.0
        %3360 = vmatprep.subr.mxu0 0.0
        %3361 = vmatpush2.msra.mxu0 0.0
        %3362 = vmatprep.subr.mxu0 0.0
        %3363 = vmatpush2.msra.mxu0 0.0
        %3364 = vmatprep.subr.mxu0 0.0
        %3365 = vmatpush2.msra.mxu0 0.0
        %3366 = vmatprep.subr.mxu0 0.0
        %3367 = vmatpush2.msra.mxu0 0.0
        %3368 = vmatprep.subr.mxu0 0.0
        %3369 = vmatpush2.msra.mxu0 0.0
        %3370 = vmatprep.subr.mxu0 0.0
        %3371 = vmatpush2.msra.mxu0 0.0
        %3372 = vmatprep.subr.mxu0 0.0
        %3373 = vmatpush2.msra.mxu0 0.0
        %3374 = vmatprep.subr.mxu0 0.0
        %3375 = vmatpush2.msra.mxu0 0.0
        %3376 = vmatprep.subr.mxu0 0.0
        %3377 = vmatpush2.msra.mxu0 0.0
        %3378 = vmatprep.subr.mxu0 0.0
        %3379 = vmatpush2.msra.mxu0 0.0
        %3380 = vmatprep.subr.mxu0 0.0
        %3381 = vmatpush2.msra.mxu0 0.0
        %3382 = vmatprep.mubr.f32.mxu0 0.0
        %v3383 = vand.u32 %v1654, 4294901760
        %v3384 = vsub.f32 %v1654, %v3383
        %v3385 = vand.u32 %v3384, 4294901760
        %3386 = vmatmul.mubr.f32.gmra.mxu0 %v3385
        %v3387 = vpop.f32.mrf.mxu0
        %v3388 = vadd.f32 %v3285, %v3387
        %v3389 = vpop.f32.mrf.mxu0
        %3390 = vmatprep.mubr.f32.mxu0 0.0
        %v3391 = vand.u32 %v1657, 4294901760
        %v3392 = vsub.f32 %v1657, %v3391
        %v3393 = vand.u32 %v3392, 4294901760
        %3394 = vmatmul.mubr.f32.gmra.mxu0 %v3393
        %v3395 = vpop.f32.mrf.mxu0
        %v3396 = vadd.f32 %v3292, %v3395
        %v3397 = vpop.f32.mrf.mxu0
        %3398 = vmatprep.mubr.f32.mxu0 0.0
        %v3399 = vand.u32 %v1660, 4294901760
        %v3400 = vsub.f32 %v1660, %v3399
        %v3401 = vand.u32 %v3400, 4294901760
        %3402 = vmatmul.mubr.f32.gmra.mxu0 %v3401
        %v3403 = vpop.f32.mrf.mxu0
        %v3404 = vadd.f32 %v3299, %v3403
        %v3405 = vpop.f32.mrf.mxu0
        %3406 = vmatprep.mubr.f32.mxu0 0.0
        %v3407 = vand.u32 %v1663, 4294901760
        %v3408 = vsub.f32 %v1663, %v3407
        %v3409 = vand.u32 %v3408, 4294901760
        %3410 = vmatmul.mubr.f32.gmra.mxu0 %v3409
        %v3411 = vpop.f32.mrf.mxu0
        %v3412 = vadd.f32 %v3306, %v3411
        %v3413 = vpop.f32.mrf.mxu0
        %3414 = vmatprep.mubr.f32.mxu0 0.0
        %v3415 = vand.u32 %v1666, 4294901760
        %v3416 = vsub.f32 %v1666, %v3415
        %v3417 = vand.u32 %v3416, 4294901760
        %3418 = vmatmul.mubr.f32.gmra.mxu0 %v3417
        %v3419 = vpop.f32.mrf.mxu0
        %v3420 = vadd.f32 %v3313, %v3419
        %v3421 = vpop.f32.mrf.mxu0
        %3422 = vdwg.mxu0
        %3423 = vmatprep.subr.mxu0 0.0
        %3424 = vmatpush1.msra.mxu0 0.0
        %3425 = vmatprep.subr.mxu0 0.0
        %3426 = vmatpush1.msra.mxu0 0.0
        %3427 = vmatprep.subr.mxu0 0.0
        %3428 = vmatpush1.msra.mxu0 0.0
        %3429 = vmatprep.subr.mxu0 0.0
        %3430 = vmatpush1.msra.mxu0 0.0
        %3431 = vmatprep.subr.mxu0 0.0
        %3432 = vmatpush1.msra.mxu0 0.0
        %3433 = vmatprep.subr.mxu0 0.0
        %3434 = vmatpush1.msra.mxu0 0.0
        %3435 = vmatprep.subr.mxu0 0.0
        %3436 = vmatpush1.msra.mxu0 0.0
        %3437 = vmatprep.subr.mxu0 0.0
        %3438 = vmatpush1.msra.mxu0 0.0
        %3439 = vmatprep.subr.mxu0 0.0
        %3440 = vmatpush1.msra.mxu0 0.0
        %3441 = vmatprep.subr.mxu0 0.0
        %3442 = vmatpush1.msra.mxu0 0.0
        %3443 = vmatprep.subr.mxu0 0.0
        %3444 = vmatpush1.msra.mxu0 0.0
        %3445 = vmatprep.subr.mxu0 0.0
        %3446 = vmatpush1.msra.mxu0 0.0
        %3447 = vmatprep.subr.mxu0 0.0
        %3448 = vmatpush1.msra.mxu0 0.0
        %3449 = vmatprep.subr.mxu0 0.0
        %3450 = vmatpush1.msra.mxu0 0.0
        %3451 = vmatprep.subr.mxu0 0.0
        %v3452 = vand.u32 %v1641, 4294901760
        %v3453 = vsub.f32 %v1641, %v3452
        %v3454 = vand.u32 %v3453, 4294901760
        %3455 = vmatpush1.msra.mxu0 %v3454
        %3456 = vmatprep.subr.mxu0 0.0
        %v3457 = vand.u32 %v1640, 4294901760
        %v3458 = vsub.f32 %v1640, %v3457
        %v3459 = vand.u32 %v3458, 4294901760
        %3460 = vmatpush1.msra.mxu0 %v3459
        %3461 = vmatprep.subr.mxu0 0.0
        %3462 = vmatpush2.msra.mxu0 0.0
        %3463 = vmatprep.subr.mxu0 0.0
        %3464 = vmatpush2.msra.mxu0 0.0
        %3465 = vmatprep.subr.mxu0 0.0
        %3466 = vmatpush2.msra.mxu0 0.0
        %3467 = vmatprep.subr.mxu0 0.0
        %3468 = vmatpush2.msra.mxu0 0.0
        %3469 = vmatprep.subr.mxu0 0.0
        %3470 = vmatpush2.msra.mxu0 0.0
        %3471 = vmatprep.subr.mxu0 0.0
        %3472 = vmatpush2.msra.mxu0 0.0
        %3473 = vmatprep.subr.mxu0 0.0
        %3474 = vmatpush2.msra.mxu0 0.0
        %3475 = vmatprep.subr.mxu0 0.0
        %3476 = vmatpush2.msra.mxu0 0.0
        %3477 = vmatprep.subr.mxu0 0.0
        %3478 = vmatpush2.msra.mxu0 0.0
        %3479 = vmatprep.subr.mxu0 0.0
        %3480 = vmatpush2.msra.mxu0 0.0
        %3481 = vmatprep.subr.mxu0 0.0
        %3482 = vmatpush2.msra.mxu0 0.0
        %3483 = vmatprep.subr.mxu0 0.0
        %3484 = vmatpush2.msra.mxu0 0.0
        %3485 = vmatprep.subr.mxu0 0.0
        %3486 = vmatpush2.msra.mxu0 0.0
        %3487 = vmatprep.subr.mxu0 0.0
        %3488 = vmatpush2.msra.mxu0 0.0
        %3489 = vmatprep.subr.mxu0 0.0
        %3490 = vmatpush2.msra.mxu0 0.0
        %3491 = vmatprep.subr.mxu0 0.0
        %3492 = vmatpush2.msra.mxu0 0.0
        %3493 = vmatprep.mubr.f32.mxu0 0.0
        %v3494 = vand.u32 %v1654, 4294901760
        %3495 = vmatmul.mubr.f32.gmra.mxu0 %v3494
        %v3496 = vpop.f32.mrf.mxu0
        %v3497 = vadd.f32 %v3388, %v3496
        %v3498 = vpop.f32.mrf.mxu0
        %3499 = vmatprep.mubr.f32.mxu0 0.0
        %v3500 = vand.u32 %v1657, 4294901760
        %3501 = vmatmul.mubr.f32.gmra.mxu0 %v3500
        %v3502 = vpop.f32.mrf.mxu0
        %v3503 = vadd.f32 %v3396, %v3502
        %v3504 = vpop.f32.mrf.mxu0
        %3505 = vmatprep.mubr.f32.mxu0 0.0
        %v3506 = vand.u32 %v1660, 4294901760
        %3507 = vmatmul.mubr.f32.gmra.mxu0 %v3506
        %v3508 = vpop.f32.mrf.mxu0
        %v3509 = vadd.f32 %v3404, %v3508
        %v3510 = vpop.f32.mrf.mxu0
        %3511 = vmatprep.mubr.f32.mxu0 0.0
        %v3512 = vand.u32 %v1663, 4294901760
        %3513 = vmatmul.mubr.f32.gmra.mxu0 %v3512
        %v3514 = vpop.f32.mrf.mxu0
        %v3515 = vadd.f32 %v3412, %v3514
        %v3516 = vpop.f32.mrf.mxu0
        %3517 = vmatprep.mubr.f32.mxu0 0.0
        %v3518 = vand.u32 %v1666, 4294901760
        %3519 = vmatmul.mubr.f32.gmra.mxu0 %v3518
        %v3520 = vpop.f32.mrf.mxu0
        %v3521 = vadd.f32 %v3420, %v3520
        %v3522 = vpop.f32.mrf.mxu0
        %3523 = vdwg.mxu0
        %3524 = vmatprep.subr.mxu0 0.0
        %3525 = vmatpush1.msra.mxu0 0.0
        %3526 = vmatprep.subr.mxu0 0.0
        %3527 = vmatpush1.msra.mxu0 0.0
        %3528 = vmatprep.subr.mxu0 0.0
        %3529 = vmatpush1.msra.mxu0 0.0
        %3530 = vmatprep.subr.mxu0 0.0
        %3531 = vmatpush1.msra.mxu0 0.0
        %3532 = vmatprep.subr.mxu0 0.0
        %3533 = vmatpush1.msra.mxu0 0.0
        %3534 = vmatprep.subr.mxu0 0.0
        %3535 = vmatpush1.msra.mxu0 0.0
        %3536 = vmatprep.subr.mxu0 0.0
        %3537 = vmatpush1.msra.mxu0 0.0
        %3538 = vmatprep.subr.mxu0 0.0
        %3539 = vmatpush1.msra.mxu0 0.0
        %3540 = vmatprep.subr.mxu0 0.0
        %3541 = vmatpush1.msra.mxu0 0.0
        %3542 = vmatprep.subr.mxu0 0.0
        %3543 = vmatpush1.msra.mxu0 0.0
        %3544 = vmatprep.subr.mxu0 0.0
        %3545 = vmatpush1.msra.mxu0 0.0
        %3546 = vmatprep.subr.mxu0 0.0
        %3547 = vmatpush1.msra.mxu0 0.0
        %3548 = vmatprep.subr.mxu0 0.0
        %3549 = vmatpush1.msra.mxu0 0.0
        %3550 = vmatprep.subr.mxu0 0.0
        %3551 = vmatpush1.msra.mxu0 0.0
        %3552 = vmatprep.subr.mxu0 0.0
        %v3553 = vand.u32 %v1641, 4294901760
        %3554 = vmatpush1.msra.mxu0 %v3553
        %3555 = vmatprep.subr.mxu0 0.0
        %v3556 = vand.u32 %v1640, 4294901760
        %3557 = vmatpush1.msra.mxu0 %v3556
        %3558 = vmatprep.subr.mxu0 0.0
        %3559 = vmatpush2.msra.mxu0 0.0
        %3560 = vmatprep.subr.mxu0 0.0
        %3561 = vmatpush2.msra.mxu0 0.0
        %3562 = vmatprep.subr.mxu0 0.0
        %3563 = vmatpush2.msra.mxu0 0.0
        %3564 = vmatprep.subr.mxu0 0.0
        %3565 = vmatpush2.msra.mxu0 0.0
        %3566 = vmatprep.subr.mxu0 0.0
        %3567 = vmatpush2.msra.mxu0 0.0
        %3568 = vmatprep.subr.mxu0 0.0
        %3569 = vmatpush2.msra.mxu0 0.0
        %3570 = vmatprep.subr.mxu0 0.0
        %3571 = vmatpush2.msra.mxu0 0.0
        %3572 = vmatprep.subr.mxu0 0.0
        %3573 = vmatpush2.msra.mxu0 0.0
        %3574 = vmatprep.subr.mxu0 0.0
        %3575 = vmatpush2.msra.mxu0 0.0
        %3576 = vmatprep.subr.mxu0 0.0
        %3577 = vmatpush2.msra.mxu0 0.0
        %3578 = vmatprep.subr.mxu0 0.0
        %3579 = vmatpush2.msra.mxu0 0.0
        %3580 = vmatprep.subr.mxu0 0.0
        %3581 = vmatpush2.msra.mxu0 0.0
        %3582 = vmatprep.subr.mxu0 0.0
        %3583 = vmatpush2.msra.mxu0 0.0
        %3584 = vmatprep.subr.mxu0 0.0
        %3585 = vmatpush2.msra.mxu0 0.0
        %3586 = vmatprep.subr.mxu0 0.0
        %3587 = vmatpush2.msra.mxu0 0.0
        %3588 = vmatprep.subr.mxu0 0.0
        %3589 = vmatpush2.msra.mxu0 0.0
        %3590 = vmatprep.mubr.f32.mxu0 0.0
        %v3591 = vand.u32 %v1654, 4294901760
        %3592 = vmatmul.mubr.f32.gmra.mxu0 %v3591
        %v3593 = vpop.f32.mrf.mxu0
        %v3594 = vadd.f32 %v3497, %v3593
        %v3595 = vpop.f32.mrf.mxu0
        %3596 = vmatprep.mubr.f32.mxu0 0.0
        %v3597 = vand.u32 %v1657, 4294901760
        %3598 = vmatmul.mubr.f32.gmra.mxu0 %v3597
        %v3599 = vpop.f32.mrf.mxu0
        %v3600 = vadd.f32 %v3503, %v3599
        %v3601 = vpop.f32.mrf.mxu0
        %3602 = vmatprep.mubr.f32.mxu0 0.0
        %v3603 = vand.u32 %v1660, 4294901760
        %3604 = vmatmul.mubr.f32.gmra.mxu0 %v3603
        %v3605 = vpop.f32.mrf.mxu0
        %v3606 = vadd.f32 %v3509, %v3605
        %v3607 = vpop.f32.mrf.mxu0
        %3608 = vmatprep.mubr.f32.mxu0 0.0
        %v3609 = vand.u32 %v1663, 4294901760
        %3610 = vmatmul.mubr.f32.gmra.mxu0 %v3609
        %v3611 = vpop.f32.mrf.mxu0
        %v3612 = vadd.f32 %v3515, %v3611
        %v3613 = vpop.f32.mrf.mxu0
        %3614 = vmatprep.mubr.f32.mxu0 0.0
        %v3615 = vand.u32 %v1666, 4294901760
        %3616 = vmatmul.mubr.f32.gmra.mxu0 %v3615
        %v3617 = vpop.f32.mrf.mxu0
        %v3618 = vadd.f32 %v3521, %v3617
        %v3619 = vpop.f32.mrf.mxu0
        %3620 = vdwg.mxu0
        %3622 = vset.pattern.permute.xlu0 0
        %3623 = vperm.xlu0 %3622, %v555
        %v3624 = vpop.permute.xlu0 %3623
        %3627 = vset.pattern.permute.xlu0 0
        %3628 = vperm.xlu0 %3627, %v556
        %v3629 = vpop.permute.xlu0 %3628
        %3632 = vset.pattern.permute.xlu0 0
        %3633 = vperm.xlu0 %3632, %v557
        %v3634 = vpop.permute.xlu0 %3633
        %3637 = vset.pattern.permute.xlu0 0
        %3638 = vperm.xlu0 %3637, %v558
        %v3639 = vpop.permute.xlu0 %3638
        %v3641 = vadd.f32 %v3594, %v3624
        %v3642 = vadd.f32 %v3600, %v3629
        %v3643 = vadd.f32 %v3606, %v3634
        %v3644 = vadd.f32 %v3612, %v3639
        %3646 = vset.pattern.permute.xlu0 0
        %3647 = vperm.xlu0 %3646, %v573
        %v3648 = vpop.permute.xlu0 %3647
        %v3650 = vadd.f32 %v3618, %v3648
        %3651 = vmatprep.subr.mxu0 0.0
        %3652 = vmatpush1.msra.mxu0 0.0
        %3653 = vmatprep.subr.mxu0 0.0
        %3654 = vmatpush1.msra.mxu0 0.0
        %3655 = vmatprep.subr.mxu0 0.0
        %3656 = vmatpush1.msra.mxu0 0.0
        %3657 = vmatprep.subr.mxu0 0.0
        %3658 = vmatpush1.msra.mxu0 0.0
        %3659 = vmatprep.subr.mxu0 0.0
        %3660 = vmatpush1.msra.mxu0 0.0
        %3661 = vmatprep.subr.mxu0 0.0
        %3662 = vmatpush1.msra.mxu0 0.0
        %3663 = vmatprep.subr.mxu0 0.0
        %3664 = vmatpush1.msra.mxu0 0.0
        %3665 = vmatprep.subr.mxu0 0.0
        %3666 = vmatpush1.msra.mxu0 0.0
        %3667 = vmatprep.subr.mxu0 0.0
        %3668 = vmatpush1.msra.mxu0 0.0
        %3669 = vmatprep.subr.mxu0 0.0
        %3670 = vmatpush1.msra.mxu0 0.0
        %3671 = vmatprep.subr.mxu0 0.0
        %3672 = vmatpush1.msra.mxu0 0.0
        %3673 = vmatprep.subr.mxu0 0.0
        %3674 = vmatpush1.msra.mxu0 0.0
        %3675 = vmatprep.subr.mxu0 0.0
        %3676 = vmatpush1.msra.mxu0 0.0
        %3677 = vmatprep.subr.mxu0 0.0
        %3678 = vmatpush1.msra.mxu0 0.0
        %3679 = vmatprep.subr.mxu0 0.0
        %v3680 = vand.u32 %v1643, 4294901760
        %3681 = vmatpush1.msra.mxu0 %v3680
        %3682 = vmatprep.subr.mxu0 0.0
        %v3683 = vand.u32 %v1642, 4294901760
        %3684 = vmatpush1.msra.mxu0 %v3683
        %3685 = vmatprep.subr.mxu0 0.0
        %3686 = vmatpush2.msra.mxu0 0.0
        %3687 = vmatprep.subr.mxu0 0.0
        %3688 = vmatpush2.msra.mxu0 0.0
        %3689 = vmatprep.subr.mxu0 0.0
        %3690 = vmatpush2.msra.mxu0 0.0
        %3691 = vmatprep.subr.mxu0 0.0
        %3692 = vmatpush2.msra.mxu0 0.0
        %3693 = vmatprep.subr.mxu0 0.0
        %3694 = vmatpush2.msra.mxu0 0.0
        %3695 = vmatprep.subr.mxu0 0.0
        %3696 = vmatpush2.msra.mxu0 0.0
        %3697 = vmatprep.subr.mxu0 0.0
        %3698 = vmatpush2.msra.mxu0 0.0
        %3699 = vmatprep.subr.mxu0 0.0
        %3700 = vmatpush2.msra.mxu0 0.0
        %3701 = vmatprep.subr.mxu0 0.0
        %3702 = vmatpush2.msra.mxu0 0.0
        %3703 = vmatprep.subr.mxu0 0.0
        %3704 = vmatpush2.msra.mxu0 0.0
        %3705 = vmatprep.subr.mxu0 0.0
        %3706 = vmatpush2.msra.mxu0 0.0
        %3707 = vmatprep.subr.mxu0 0.0
        %3708 = vmatpush2.msra.mxu0 0.0
        %3709 = vmatprep.subr.mxu0 0.0
        %3710 = vmatpush2.msra.mxu0 0.0
        %3711 = vmatprep.subr.mxu0 0.0
        %3712 = vmatpush2.msra.mxu0 0.0
        %3713 = vmatprep.subr.mxu0 0.0
        %3714 = vmatpush2.msra.mxu0 0.0
        %3715 = vmatprep.subr.mxu0 0.0
        %3716 = vmatpush2.msra.mxu0 0.0
        %3717 = vmatprep.mubr.f32.mxu0 0.0
        %v3718 = vand.u32 %v1654, 4294901760
        %v3719 = vsub.f32 %v1654, %v3718
        %v3720 = vand.u32 %v3719, 4294901760
        %v3721 = vsub.f32 %v3719, %v3720
        %v3722 = vand.u32 %v3721, 4294901760
        %3723 = vmatmul.mubr.f32.gmra.mxu0 %v3722
        %v3724 = vpop.f32.mrf.mxu0
        %v3725 = vadd.f32 0.0, %v3724
        %v3726 = vpop.f32.mrf.mxu0
        %3727 = vmatprep.mubr.f32.mxu0 0.0
        %v3728 = vand.u32 %v1657, 4294901760
        %v3729 = vsub.f32 %v1657, %v3728
        %v3730 = vand.u32 %v3729, 4294901760
        %v3731 = vsub.f32 %v3729, %v3730
        %v3732 = vand.u32 %v3731, 4294901760
        %3733 = vmatmul.mubr.f32.gmra.mxu0 %v3732
        %v3734 = vpop.f32.mrf.mxu0
        %v3735 = vadd.f32 0.0, %v3734
        %v3736 = vpop.f32.mrf.mxu0
        %3737 = vmatprep.mubr.f32.mxu0 0.0
        %v3738 = vand.u32 %v1660, 4294901760
        %v3739 = vsub.f32 %v1660, %v3738
        %v3740 = vand.u32 %v3739, 4294901760
        %v3741 = vsub.f32 %v3739, %v3740
        %v3742 = vand.u32 %v3741, 4294901760
        %3743 = vmatmul.mubr.f32.gmra.mxu0 %v3742
        %v3744 = vpop.f32.mrf.mxu0
        %v3745 = vadd.f32 0.0, %v3744
        %v3746 = vpop.f32.mrf.mxu0
        %3747 = vmatprep.mubr.f32.mxu0 0.0
        %v3748 = vand.u32 %v1663, 4294901760
        %v3749 = vsub.f32 %v1663, %v3748
        %v3750 = vand.u32 %v3749, 4294901760
        %v3751 = vsub.f32 %v3749, %v3750
        %v3752 = vand.u32 %v3751, 4294901760
        %3753 = vmatmul.mubr.f32.gmra.mxu0 %v3752
        %v3754 = vpop.f32.mrf.mxu0
        %v3755 = vadd.f32 0.0, %v3754
        %v3756 = vpop.f32.mrf.mxu0
        %3757 = vmatprep.mubr.f32.mxu0 0.0
        %v3758 = vand.u32 %v1666, 4294901760
        %v3759 = vsub.f32 %v1666, %v3758
        %v3760 = vand.u32 %v3759, 4294901760
        %v3761 = vsub.f32 %v3759, %v3760
        %v3762 = vand.u32 %v3761, 4294901760
        %3763 = vmatmul.mubr.f32.gmra.mxu0 %v3762
        %v3764 = vpop.f32.mrf.mxu0
        %v3765 = vadd.f32 0.0, %v3764
        %v3766 = vpop.f32.mrf.mxu0
        %3767 = vdwg.mxu0
        %3768 = vmatprep.subr.mxu0 0.0
        %3769 = vmatpush1.msra.mxu0 0.0
        %3770 = vmatprep.subr.mxu0 0.0
        %3771 = vmatpush1.msra.mxu0 0.0
        %3772 = vmatprep.subr.mxu0 0.0
        %3773 = vmatpush1.msra.mxu0 0.0
        %3774 = vmatprep.subr.mxu0 0.0
        %3775 = vmatpush1.msra.mxu0 0.0
        %3776 = vmatprep.subr.mxu0 0.0
        %3777 = vmatpush1.msra.mxu0 0.0
        %3778 = vmatprep.subr.mxu0 0.0
        %3779 = vmatpush1.msra.mxu0 0.0
        %3780 = vmatprep.subr.mxu0 0.0
        %3781 = vmatpush1.msra.mxu0 0.0
        %3782 = vmatprep.subr.mxu0 0.0
        %3783 = vmatpush1.msra.mxu0 0.0
        %3784 = vmatprep.subr.mxu0 0.0
        %3785 = vmatpush1.msra.mxu0 0.0
        %3786 = vmatprep.subr.mxu0 0.0
        %3787 = vmatpush1.msra.mxu0 0.0
        %3788 = vmatprep.subr.mxu0 0.0
        %3789 = vmatpush1.msra.mxu0 0.0
        %3790 = vmatprep.subr.mxu0 0.0
        %3791 = vmatpush1.msra.mxu0 0.0
        %3792 = vmatprep.subr.mxu0 0.0
        %3793 = vmatpush1.msra.mxu0 0.0
        %3794 = vmatprep.subr.mxu0 0.0
        %3795 = vmatpush1.msra.mxu0 0.0
        %3796 = vmatprep.subr.mxu0 0.0
        %v3797 = vand.u32 %v1643, 4294901760
        %v3798 = vsub.f32 %v1643, %v3797
        %v3799 = vand.u32 %v3798, 4294901760
        %v3800 = vsub.f32 %v3798, %v3799
        %v3801 = vand.u32 %v3800, 4294901760
        %3802 = vmatpush1.msra.mxu0 %v3801
        %3803 = vmatprep.subr.mxu0 0.0
        %v3804 = vand.u32 %v1642, 4294901760
        %v3805 = vsub.f32 %v1642, %v3804
        %v3806 = vand.u32 %v3805, 4294901760
        %v3807 = vsub.f32 %v3805, %v3806
        %v3808 = vand.u32 %v3807, 4294901760
        %3809 = vmatpush1.msra.mxu0 %v3808
        %3810 = vmatprep.subr.mxu0 0.0
        %3811 = vmatpush2.msra.mxu0 0.0
        %3812 = vmatprep.subr.mxu0 0.0
        %3813 = vmatpush2.msra.mxu0 0.0
        %3814 = vmatprep.subr.mxu0 0.0
        %3815 = vmatpush2.msra.mxu0 0.0
        %3816 = vmatprep.subr.mxu0 0.0
        %3817 = vmatpush2.msra.mxu0 0.0
        %3818 = vmatprep.subr.mxu0 0.0
        %3819 = vmatpush2.msra.mxu0 0.0
        %3820 = vmatprep.subr.mxu0 0.0
        %3821 = vmatpush2.msra.mxu0 0.0
        %3822 = vmatprep.subr.mxu0 0.0
        %3823 = vmatpush2.msra.mxu0 0.0
        %3824 = vmatprep.subr.mxu0 0.0
        %3825 = vmatpush2.msra.mxu0 0.0
        %3826 = vmatprep.subr.mxu0 0.0
        %3827 = vmatpush2.msra.mxu0 0.0
        %3828 = vmatprep.subr.mxu0 0.0
        %3829 = vmatpush2.msra.mxu0 0.0
        %3830 = vmatprep.subr.mxu0 0.0
        %3831 = vmatpush2.msra.mxu0 0.0
        %3832 = vmatprep.subr.mxu0 0.0
        %3833 = vmatpush2.msra.mxu0 0.0
        %3834 = vmatprep.subr.mxu0 0.0
        %3835 = vmatpush2.msra.mxu0 0.0
        %3836 = vmatprep.subr.mxu0 0.0
        %3837 = vmatpush2.msra.mxu0 0.0
        %3838 = vmatprep.subr.mxu0 0.0
        %3839 = vmatpush2.msra.mxu0 0.0
        %3840 = vmatprep.subr.mxu0 0.0
        %3841 = vmatpush2.msra.mxu0 0.0
        %3842 = vmatprep.mubr.f32.mxu0 0.0
        %v3843 = vand.u32 %v1654, 4294901760
        %3844 = vmatmul.mubr.f32.gmra.mxu0 %v3843
        %v3845 = vpop.f32.mrf.mxu0
        %v3846 = vadd.f32 %v3725, %v3845
        %v3847 = vpop.f32.mrf.mxu0
        %3848 = vmatprep.mubr.f32.mxu0 0.0
        %v3849 = vand.u32 %v1657, 4294901760
        %3850 = vmatmul.mubr.f32.gmra.mxu0 %v3849
        %v3851 = vpop.f32.mrf.mxu0
        %v3852 = vadd.f32 %v3735, %v3851
        %v3853 = vpop.f32.mrf.mxu0
        %3854 = vmatprep.mubr.f32.mxu0 0.0
        %v3855 = vand.u32 %v1660, 4294901760
        %3856 = vmatmul.mubr.f32.gmra.mxu0 %v3855
        %v3857 = vpop.f32.mrf.mxu0
        %v3858 = vadd.f32 %v3745, %v3857
        %v3859 = vpop.f32.mrf.mxu0
        %3860 = vmatprep.mubr.f32.mxu0 0.0
        %v3861 = vand.u32 %v1663, 4294901760
        %3862 = vmatmul.mubr.f32.gmra.mxu0 %v3861
        %v3863 = vpop.f32.mrf.mxu0
        %v3864 = vadd.f32 %v3755, %v3863
        %v3865 = vpop.f32.mrf.mxu0
        %3866 = vmatprep.mubr.f32.mxu0 0.0
        %v3867 = vand.u32 %v1666, 4294901760
        %3868 = vmatmul.mubr.f32.gmra.mxu0 %v3867
        %v3869 = vpop.f32.mrf.mxu0
        %v3870 = vadd.f32 %v3765, %v3869
        %v3871 = vpop.f32.mrf.mxu0
        %3872 = vdwg.mxu0
        %3873 = vmatprep.subr.mxu0 0.0
        %3874 = vmatpush1.msra.mxu0 0.0
        %3875 = vmatprep.subr.mxu0 0.0
        %3876 = vmatpush1.msra.mxu0 0.0
        %3877 = vmatprep.subr.mxu0 0.0
        %3878 = vmatpush1.msra.mxu0 0.0
        %3879 = vmatprep.subr.mxu0 0.0
        %3880 = vmatpush1.msra.mxu0 0.0
        %3881 = vmatprep.subr.mxu0 0.0
        %3882 = vmatpush1.msra.mxu0 0.0
        %3883 = vmatprep.subr.mxu0 0.0
        %3884 = vmatpush1.msra.mxu0 0.0
        %3885 = vmatprep.subr.mxu0 0.0
        %3886 = vmatpush1.msra.mxu0 0.0
        %3887 = vmatprep.subr.mxu0 0.0
        %3888 = vmatpush1.msra.mxu0 0.0
        %3889 = vmatprep.subr.mxu0 0.0
        %3890 = vmatpush1.msra.mxu0 0.0
        %3891 = vmatprep.subr.mxu0 0.0
        %3892 = vmatpush1.msra.mxu0 0.0
        %3893 = vmatprep.subr.mxu0 0.0
        %3894 = vmatpush1.msra.mxu0 0.0
        %3895 = vmatprep.subr.mxu0 0.0
        %3896 = vmatpush1.msra.mxu0 0.0
        %3897 = vmatprep.subr.mxu0 0.0
        %3898 = vmatpush1.msra.mxu0 0.0
        %3899 = vmatprep.subr.mxu0 0.0
        %3900 = vmatpush1.msra.mxu0 0.0
        %3901 = vmatprep.subr.mxu0 0.0
        %v3902 = vand.u32 %v1643, 4294901760
        %v3903 = vsub.f32 %v1643, %v3902
        %3904 = vmatpush1.msra.mxu0 %v3903
        %3905 = vmatprep.subr.mxu0 0.0
        %v3906 = vand.u32 %v1642, 4294901760
        %v3907 = vsub.f32 %v1642, %v3906
        %3908 = vmatpush1.msra.mxu0 %v3907
        %3909 = vmatprep.subr.mxu0 0.0
        %3910 = vmatpush2.msra.mxu0 0.0
        %3911 = vmatprep.subr.mxu0 0.0
        %3912 = vmatpush2.msra.mxu0 0.0
        %3913 = vmatprep.subr.mxu0 0.0
        %3914 = vmatpush2.msra.mxu0 0.0
        %3915 = vmatprep.subr.mxu0 0.0
        %3916 = vmatpush2.msra.mxu0 0.0
        %3917 = vmatprep.subr.mxu0 0.0
        %3918 = vmatpush2.msra.mxu0 0.0
        %3919 = vmatprep.subr.mxu0 0.0
        %3920 = vmatpush2.msra.mxu0 0.0
        %3921 = vmatprep.subr.mxu0 0.0
        %3922 = vmatpush2.msra.mxu0 0.0
        %3923 = vmatprep.subr.mxu0 0.0
        %3924 = vmatpush2.msra.mxu0 0.0
        %3925 = vmatprep.subr.mxu0 0.0
        %3926 = vmatpush2.msra.mxu0 0.0
        %3927 = vmatprep.subr.mxu0 0.0
        %3928 = vmatpush2.msra.mxu0 0.0
        %3929 = vmatprep.subr.mxu0 0.0
        %3930 = vmatpush2.msra.mxu0 0.0
        %3931 = vmatprep.subr.mxu0 0.0
        %3932 = vmatpush2.msra.mxu0 0.0
        %3933 = vmatprep.subr.mxu0 0.0
        %3934 = vmatpush2.msra.mxu0 0.0
        %3935 = vmatprep.subr.mxu0 0.0
        %3936 = vmatpush2.msra.mxu0 0.0
        %3937 = vmatprep.subr.mxu0 0.0
        %3938 = vmatpush2.msra.mxu0 0.0
        %3939 = vmatprep.subr.mxu0 0.0
        %3940 = vmatpush2.msra.mxu0 0.0
        %3941 = vmatprep.mubr.f32.mxu0 0.0
        %v3942 = vand.u32 %v1654, 4294901760
        %v3943 = vsub.f32 %v1654, %v3942
        %3944 = vmatmul.mubr.f32.gmra.mxu0 %v3943
        %v3945 = vpop.f32.mrf.mxu0
        %v3946 = vadd.f32 %v3846, %v3945
        %v3947 = vpop.f32.mrf.mxu0
        %3948 = vmatprep.mubr.f32.mxu0 0.0
        %v3949 = vand.u32 %v1657, 4294901760
        %v3950 = vsub.f32 %v1657, %v3949
        %3951 = vmatmul.mubr.f32.gmra.mxu0 %v3950
        %v3952 = vpop.f32.mrf.mxu0
        %v3953 = vadd.f32 %v3852, %v3952
        %v3954 = vpop.f32.mrf.mxu0
        %3955 = vmatprep.mubr.f32.mxu0 0.0
        %v3956 = vand.u32 %v1660, 4294901760
        %v3957 = vsub.f32 %v1660, %v3956
        %3958 = vmatmul.mubr.f32.gmra.mxu0 %v3957
        %v3959 = vpop.f32.mrf.mxu0
        %v3960 = vadd.f32 %v3858, %v3959
        %v3961 = vpop.f32.mrf.mxu0
        %3962 = vmatprep.mubr.f32.mxu0 0.0
        %v3963 = vand.u32 %v1663, 4294901760
        %v3964 = vsub.f32 %v1663, %v3963
        %3965 = vmatmul.mubr.f32.gmra.mxu0 %v3964
        %v3966 = vpop.f32.mrf.mxu0
        %v3967 = vadd.f32 %v3864, %v3966
        %v3968 = vpop.f32.mrf.mxu0
        %3969 = vmatprep.mubr.f32.mxu0 0.0
        %v3970 = vand.u32 %v1666, 4294901760
        %v3971 = vsub.f32 %v1666, %v3970
        %3972 = vmatmul.mubr.f32.gmra.mxu0 %v3971
        %v3973 = vpop.f32.mrf.mxu0
        %v3974 = vadd.f32 %v3870, %v3973
        %v3975 = vpop.f32.mrf.mxu0
        %3976 = vdwg.mxu0
        %3977 = vmatprep.subr.mxu0 0.0
        %3978 = vmatpush1.msra.mxu0 0.0
        %3979 = vmatprep.subr.mxu0 0.0
        %3980 = vmatpush1.msra.mxu0 0.0
        %3981 = vmatprep.subr.mxu0 0.0
        %3982 = vmatpush1.msra.mxu0 0.0
        %3983 = vmatprep.subr.mxu0 0.0
        %3984 = vmatpush1.msra.mxu0 0.0
        %3985 = vmatprep.subr.mxu0 0.0
        %3986 = vmatpush1.msra.mxu0 0.0
        %3987 = vmatprep.subr.mxu0 0.0
        %3988 = vmatpush1.msra.mxu0 0.0
        %3989 = vmatprep.subr.mxu0 0.0
        %3990 = vmatpush1.msra.mxu0 0.0
        %3991 = vmatprep.subr.mxu0 0.0
        %3992 = vmatpush1.msra.mxu0 0.0
        %3993 = vmatprep.subr.mxu0 0.0
        %3994 = vmatpush1.msra.mxu0 0.0
        %3995 = vmatprep.subr.mxu0 0.0
        %3996 = vmatpush1.msra.mxu0 0.0
        %3997 = vmatprep.subr.mxu0 0.0
        %3998 = vmatpush1.msra.mxu0 0.0
        %3999 = vmatprep.subr.mxu0 0.0
        %4000 = vmatpush1.msra.mxu0 0.0
        %4001 = vmatprep.subr.mxu0 0.0
        %4002 = vmatpush1.msra.mxu0 0.0
        %4003 = vmatprep.subr.mxu0 0.0
        %4004 = vmatpush1.msra.mxu0 0.0
        %4005 = vmatprep.subr.mxu0 0.0
        %v4006 = vand.u32 %v1643, 4294901760
        %4007 = vmatpush1.msra.mxu0 %v4006
        %4008 = vmatprep.subr.mxu0 0.0
        %v4009 = vand.u32 %v1642, 4294901760
        %4010 = vmatpush1.msra.mxu0 %v4009
        %4011 = vmatprep.subr.mxu0 0.0
        %4012 = vmatpush2.msra.mxu0 0.0
        %4013 = vmatprep.subr.mxu0 0.0
        %4014 = vmatpush2.msra.mxu0 0.0
        %4015 = vmatprep.subr.mxu0 0.0
        %4016 = vmatpush2.msra.mxu0 0.0
        %4017 = vmatprep.subr.mxu0 0.0
        %4018 = vmatpush2.msra.mxu0 0.0
        %4019 = vmatprep.subr.mxu0 0.0
        %4020 = vmatpush2.msra.mxu0 0.0
        %4021 = vmatprep.subr.mxu0 0.0
        %4022 = vmatpush2.msra.mxu0 0.0
        %4023 = vmatprep.subr.mxu0 0.0
        %4024 = vmatpush2.msra.mxu0 0.0
        %4025 = vmatprep.subr.mxu0 0.0
        %4026 = vmatpush2.msra.mxu0 0.0
        %4027 = vmatprep.subr.mxu0 0.0
        %4028 = vmatpush2.msra.mxu0 0.0
        %4029 = vmatprep.subr.mxu0 0.0
        %4030 = vmatpush2.msra.mxu0 0.0
        %4031 = vmatprep.subr.mxu0 0.0
        %4032 = vmatpush2.msra.mxu0 0.0
        %4033 = vmatprep.subr.mxu0 0.0
        %4034 = vmatpush2.msra.mxu0 0.0
        %4035 = vmatprep.subr.mxu0 0.0
        %4036 = vmatpush2.msra.mxu0 0.0
        %4037 = vmatprep.subr.mxu0 0.0
        %4038 = vmatpush2.msra.mxu0 0.0
        %4039 = vmatprep.subr.mxu0 0.0
        %4040 = vmatpush2.msra.mxu0 0.0
        %4041 = vmatprep.subr.mxu0 0.0
        %4042 = vmatpush2.msra.mxu0 0.0
        %4043 = vmatprep.mubr.f32.mxu0 0.0
        %v4044 = vand.u32 %v1654, 4294901760
        %v4045 = vsub.f32 %v1654, %v4044
        %v4046 = vand.u32 %v4045, 4294901760
        %4047 = vmatmul.mubr.f32.gmra.mxu0 %v4046
        %v4048 = vpop.f32.mrf.mxu0
        %v4049 = vadd.f32 %v3946, %v4048
        %v4050 = vpop.f32.mrf.mxu0
        %4051 = vmatprep.mubr.f32.mxu0 0.0
        %v4052 = vand.u32 %v1657, 4294901760
        %v4053 = vsub.f32 %v1657, %v4052
        %v4054 = vand.u32 %v4053, 4294901760
        %4055 = vmatmul.mubr.f32.gmra.mxu0 %v4054
        %v4056 = vpop.f32.mrf.mxu0
        %v4057 = vadd.f32 %v3953, %v4056
        %v4058 = vpop.f32.mrf.mxu0
        %4059 = vmatprep.mubr.f32.mxu0 0.0
        %v4060 = vand.u32 %v1660, 4294901760
        %v4061 = vsub.f32 %v1660, %v4060
        %v4062 = vand.u32 %v4061, 4294901760
        %4063 = vmatmul.mubr.f32.gmra.mxu0 %v4062
        %v4064 = vpop.f32.mrf.mxu0
        %v4065 = vadd.f32 %v3960, %v4064
        %v4066 = vpop.f32.mrf.mxu0
        %4067 = vmatprep.mubr.f32.mxu0 0.0
        %v4068 = vand.u32 %v1663, 4294901760
        %v4069 = vsub.f32 %v1663, %v4068
        %v4070 = vand.u32 %v4069, 4294901760
        %4071 = vmatmul.mubr.f32.gmra.mxu0 %v4070
        %v4072 = vpop.f32.mrf.mxu0
        %v4073 = vadd.f32 %v3967, %v4072
        %v4074 = vpop.f32.mrf.mxu0
        %4075 = vmatprep.mubr.f32.mxu0 0.0
        %v4076 = vand.u32 %v1666, 4294901760
        %v4077 = vsub.f32 %v1666, %v4076
        %v4078 = vand.u32 %v4077, 4294901760
        %4079 = vmatmul.mubr.f32.gmra.mxu0 %v4078
        %v4080 = vpop.f32.mrf.mxu0
        %v4081 = vadd.f32 %v3974, %v4080
        %v4082 = vpop.f32.mrf.mxu0
        %4083 = vdwg.mxu0
        %4084 = vmatprep.subr.mxu0 0.0
        %4085 = vmatpush1.msra.mxu0 0.0
        %4086 = vmatprep.subr.mxu0 0.0
        %4087 = vmatpush1.msra.mxu0 0.0
        %4088 = vmatprep.subr.mxu0 0.0
        %4089 = vmatpush1.msra.mxu0 0.0
        %4090 = vmatprep.subr.mxu0 0.0
        %4091 = vmatpush1.msra.mxu0 0.0
        %4092 = vmatprep.subr.mxu0 0.0
        %4093 = vmatpush1.msra.mxu0 0.0
        %4094 = vmatprep.subr.mxu0 0.0
        %4095 = vmatpush1.msra.mxu0 0.0
        %4096 = vmatprep.subr.mxu0 0.0
        %4097 = vmatpush1.msra.mxu0 0.0
        %4098 = vmatprep.subr.mxu0 0.0
        %4099 = vmatpush1.msra.mxu0 0.0
        %4100 = vmatprep.subr.mxu0 0.0
        %4101 = vmatpush1.msra.mxu0 0.0
        %4102 = vmatprep.subr.mxu0 0.0
        %4103 = vmatpush1.msra.mxu0 0.0
        %4104 = vmatprep.subr.mxu0 0.0
        %4105 = vmatpush1.msra.mxu0 0.0
        %4106 = vmatprep.subr.mxu0 0.0
        %4107 = vmatpush1.msra.mxu0 0.0
        %4108 = vmatprep.subr.mxu0 0.0
        %4109 = vmatpush1.msra.mxu0 0.0
        %4110 = vmatprep.subr.mxu0 0.0
        %4111 = vmatpush1.msra.mxu0 0.0
        %4112 = vmatprep.subr.mxu0 0.0
        %v4113 = vand.u32 %v1643, 4294901760
        %v4114 = vsub.f32 %v1643, %v4113
        %v4115 = vand.u32 %v4114, 4294901760
        %4116 = vmatpush1.msra.mxu0 %v4115
        %4117 = vmatprep.subr.mxu0 0.0
        %v4118 = vand.u32 %v1642, 4294901760
        %v4119 = vsub.f32 %v1642, %v4118
        %v4120 = vand.u32 %v4119, 4294901760
        %4121 = vmatpush1.msra.mxu0 %v4120
        %4122 = vmatprep.subr.mxu0 0.0
        %4123 = vmatpush2.msra.mxu0 0.0
        %4124 = vmatprep.subr.mxu0 0.0
        %4125 = vmatpush2.msra.mxu0 0.0
        %4126 = vmatprep.subr.mxu0 0.0
        %4127 = vmatpush2.msra.mxu0 0.0
        %4128 = vmatprep.subr.mxu0 0.0
        %4129 = vmatpush2.msra.mxu0 0.0
        %4130 = vmatprep.subr.mxu0 0.0
        %4131 = vmatpush2.msra.mxu0 0.0
        %4132 = vmatprep.subr.mxu0 0.0
        %4133 = vmatpush2.msra.mxu0 0.0
        %4134 = vmatprep.subr.mxu0 0.0
        %4135 = vmatpush2.msra.mxu0 0.0
        %4136 = vmatprep.subr.mxu0 0.0
        %4137 = vmatpush2.msra.mxu0 0.0
        %4138 = vmatprep.subr.mxu0 0.0
        %4139 = vmatpush2.msra.mxu0 0.0
        %4140 = vmatprep.subr.mxu0 0.0
        %4141 = vmatpush2.msra.mxu0 0.0
        %4142 = vmatprep.subr.mxu0 0.0
        %4143 = vmatpush2.msra.mxu0 0.0
        %4144 = vmatprep.subr.mxu0 0.0
        %4145 = vmatpush2.msra.mxu0 0.0
        %4146 = vmatprep.subr.mxu0 0.0
        %4147 = vmatpush2.msra.mxu0 0.0
        %4148 = vmatprep.subr.mxu0 0.0
        %4149 = vmatpush2.msra.mxu0 0.0
        %4150 = vmatprep.subr.mxu0 0.0
        %4151 = vmatpush2.msra.mxu0 0.0
        %4152 = vmatprep.subr.mxu0 0.0
        %4153 = vmatpush2.msra.mxu0 0.0
        %4154 = vmatprep.mubr.f32.mxu0 0.0
        %v4155 = vand.u32 %v1654, 4294901760
        %4156 = vmatmul.mubr.f32.gmra.mxu0 %v4155
        %v4157 = vpop.f32.mrf.mxu0
        %v4158 = vadd.f32 %v4049, %v4157
        %v4159 = vpop.f32.mrf.mxu0
        %4160 = vmatprep.mubr.f32.mxu0 0.0
        %v4161 = vand.u32 %v1657, 4294901760
        %4162 = vmatmul.mubr.f32.gmra.mxu0 %v4161
        %v4163 = vpop.f32.mrf.mxu0
        %v4164 = vadd.f32 %v4057, %v4163
        %v4165 = vpop.f32.mrf.mxu0
        %4166 = vmatprep.mubr.f32.mxu0 0.0
        %v4167 = vand.u32 %v1660, 4294901760
        %4168 = vmatmul.mubr.f32.gmra.mxu0 %v4167
        %v4169 = vpop.f32.mrf.mxu0
        %v4170 = vadd.f32 %v4065, %v4169
        %v4171 = vpop.f32.mrf.mxu0
        %4172 = vmatprep.mubr.f32.mxu0 0.0
        %v4173 = vand.u32 %v1663, 4294901760
        %4174 = vmatmul.mubr.f32.gmra.mxu0 %v4173
        %v4175 = vpop.f32.mrf.mxu0
        %v4176 = vadd.f32 %v4073, %v4175
        %v4177 = vpop.f32.mrf.mxu0
        %4178 = vmatprep.mubr.f32.mxu0 0.0
        %v4179 = vand.u32 %v1666, 4294901760
        %4180 = vmatmul.mubr.f32.gmra.mxu0 %v4179
        %v4181 = vpop.f32.mrf.mxu0
        %v4182 = vadd.f32 %v4081, %v4181
        %v4183 = vpop.f32.mrf.mxu0
        %4184 = vdwg.mxu0
        %4185 = vmatprep.subr.mxu0 0.0
        %4186 = vmatpush1.msra.mxu0 0.0
        %4187 = vmatprep.subr.mxu0 0.0
        %4188 = vmatpush1.msra.mxu0 0.0
        %4189 = vmatprep.subr.mxu0 0.0
        %4190 = vmatpush1.msra.mxu0 0.0
        %4191 = vmatprep.subr.mxu0 0.0
        %4192 = vmatpush1.msra.mxu0 0.0
        %4193 = vmatprep.subr.mxu0 0.0
        %4194 = vmatpush1.msra.mxu0 0.0
        %4195 = vmatprep.subr.mxu0 0.0
        %4196 = vmatpush1.msra.mxu0 0.0
        %4197 = vmatprep.subr.mxu0 0.0
        %4198 = vmatpush1.msra.mxu0 0.0
        %4199 = vmatprep.subr.mxu0 0.0
        %4200 = vmatpush1.msra.mxu0 0.0
        %4201 = vmatprep.subr.mxu0 0.0
        %4202 = vmatpush1.msra.mxu0 0.0
        %4203 = vmatprep.subr.mxu0 0.0
        %4204 = vmatpush1.msra.mxu0 0.0
        %4205 = vmatprep.subr.mxu0 0.0
        %4206 = vmatpush1.msra.mxu0 0.0
        %4207 = vmatprep.subr.mxu0 0.0
        %4208 = vmatpush1.msra.mxu0 0.0
        %4209 = vmatprep.subr.mxu0 0.0
        %4210 = vmatpush1.msra.mxu0 0.0
        %4211 = vmatprep.subr.mxu0 0.0
        %4212 = vmatpush1.msra.mxu0 0.0
        %4213 = vmatprep.subr.mxu0 0.0
        %v4214 = vand.u32 %v1643, 4294901760
        %4215 = vmatpush1.msra.mxu0 %v4214
        %4216 = vmatprep.subr.mxu0 0.0
        %v4217 = vand.u32 %v1642, 4294901760
        %4218 = vmatpush1.msra.mxu0 %v4217
        %4219 = vmatprep.subr.mxu0 0.0
        %4220 = vmatpush2.msra.mxu0 0.0
        %4221 = vmatprep.subr.mxu0 0.0
        %4222 = vmatpush2.msra.mxu0 0.0
        %4223 = vmatprep.subr.mxu0 0.0
        %4224 = vmatpush2.msra.mxu0 0.0
        %4225 = vmatprep.subr.mxu0 0.0
        %4226 = vmatpush2.msra.mxu0 0.0
        %4227 = vmatprep.subr.mxu0 0.0
        %4228 = vmatpush2.msra.mxu0 0.0
        %4229 = vmatprep.subr.mxu0 0.0
        %4230 = vmatpush2.msra.mxu0 0.0
        %4231 = vmatprep.subr.mxu0 0.0
        %4232 = vmatpush2.msra.mxu0 0.0
        %4233 = vmatprep.subr.mxu0 0.0
        %4234 = vmatpush2.msra.mxu0 0.0
        %4235 = vmatprep.subr.mxu0 0.0
        %4236 = vmatpush2.msra.mxu0 0.0
        %4237 = vmatprep.subr.mxu0 0.0
        %4238 = vmatpush2.msra.mxu0 0.0
        %4239 = vmatprep.subr.mxu0 0.0
        %4240 = vmatpush2.msra.mxu0 0.0
        %4241 = vmatprep.subr.mxu0 0.0
        %4242 = vmatpush2.msra.mxu0 0.0
        %4243 = vmatprep.subr.mxu0 0.0
        %4244 = vmatpush2.msra.mxu0 0.0
        %4245 = vmatprep.subr.mxu0 0.0
        %4246 = vmatpush2.msra.mxu0 0.0
        %4247 = vmatprep.subr.mxu0 0.0
        %4248 = vmatpush2.msra.mxu0 0.0
        %4249 = vmatprep.subr.mxu0 0.0
        %4250 = vmatpush2.msra.mxu0 0.0
        %4251 = vmatprep.mubr.f32.mxu0 0.0
        %v4252 = vand.u32 %v1654, 4294901760
        %4253 = vmatmul.mubr.f32.gmra.mxu0 %v4252
        %v4254 = vpop.f32.mrf.mxu0
        %v4255 = vadd.f32 %v4158, %v4254
        %v4256 = vpop.f32.mrf.mxu0
        %4257 = vmatprep.mubr.f32.mxu0 0.0
        %v4258 = vand.u32 %v1657, 4294901760
        %4259 = vmatmul.mubr.f32.gmra.mxu0 %v4258
        %v4260 = vpop.f32.mrf.mxu0
        %v4261 = vadd.f32 %v4164, %v4260
        %v4262 = vpop.f32.mrf.mxu0
        %4263 = vmatprep.mubr.f32.mxu0 0.0
        %v4264 = vand.u32 %v1660, 4294901760
        %4265 = vmatmul.mubr.f32.gmra.mxu0 %v4264
        %v4266 = vpop.f32.mrf.mxu0
        %v4267 = vadd.f32 %v4170, %v4266
        %v4268 = vpop.f32.mrf.mxu0
        %4269 = vmatprep.mubr.f32.mxu0 0.0
        %v4270 = vand.u32 %v1663, 4294901760
        %4271 = vmatmul.mubr.f32.gmra.mxu0 %v4270
        %v4272 = vpop.f32.mrf.mxu0
        %v4273 = vadd.f32 %v4176, %v4272
        %v4274 = vpop.f32.mrf.mxu0
        %4275 = vmatprep.mubr.f32.mxu0 0.0
        %v4276 = vand.u32 %v1666, 4294901760
        %4277 = vmatmul.mubr.f32.gmra.mxu0 %v4276
        %v4278 = vpop.f32.mrf.mxu0
        %v4279 = vadd.f32 %v4182, %v4278
        %v4280 = vpop.f32.mrf.mxu0
        %4281 = vdwg.mxu0
        %4283 = vset.pattern.permute.xlu0 0
        %4284 = vperm.xlu0 %4283, %v559
        %v4285 = vpop.permute.xlu0 %4284
        %4288 = vset.pattern.permute.xlu0 0
        %4289 = vperm.xlu0 %4288, %v560
        %v4290 = vpop.permute.xlu0 %4289
        %4293 = vset.pattern.permute.xlu0 0
        %4294 = vperm.xlu0 %4293, %v561
        %v4295 = vpop.permute.xlu0 %4294
        %4298 = vset.pattern.permute.xlu0 0
        %4299 = vperm.xlu0 %4298, %v562
        %v4300 = vpop.permute.xlu0 %4299
        %v4302 = vadd.f32 %v4255, %v4285
        %v4303 = vadd.f32 %v4261, %v4290
        %v4304 = vadd.f32 %v4267, %v4295
        %v4305 = vadd.f32 %v4273, %v4300
        %4307 = vset.pattern.permute.xlu0 0
        %4308 = vperm.xlu0 %4307, %v574
        %v4309 = vpop.permute.xlu0 %4308
        %v4311 = vadd.f32 %v4279, %v4309
        %4312 = vmatprep.subr.mxu0 0.0
        %4313 = vmatpush1.msra.mxu0 0.0
        %4314 = vmatprep.subr.mxu0 0.0
        %4315 = vmatpush1.msra.mxu0 0.0
        %4316 = vmatprep.subr.mxu0 0.0
        %4317 = vmatpush1.msra.mxu0 0.0
        %4318 = vmatprep.subr.mxu0 0.0
        %4319 = vmatpush1.msra.mxu0 0.0
        %4320 = vmatprep.subr.mxu0 0.0
        %4321 = vmatpush1.msra.mxu0 0.0
        %4322 = vmatprep.subr.mxu0 0.0
        %4323 = vmatpush1.msra.mxu0 0.0
        %4324 = vmatprep.subr.mxu0 0.0
        %4325 = vmatpush1.msra.mxu0 0.0
        %4326 = vmatprep.subr.mxu0 0.0
        %4327 = vmatpush1.msra.mxu0 0.0
        %4328 = vmatprep.subr.mxu0 0.0
        %4329 = vmatpush1.msra.mxu0 0.0
        %4330 = vmatprep.subr.mxu0 0.0
        %4331 = vmatpush1.msra.mxu0 0.0
        %4332 = vmatprep.subr.mxu0 0.0
        %4333 = vmatpush1.msra.mxu0 0.0
        %4334 = vmatprep.subr.mxu0 0.0
        %4335 = vmatpush1.msra.mxu0 0.0
        %4336 = vmatprep.subr.mxu0 0.0
        %4337 = vmatpush1.msra.mxu0 0.0
        %4338 = vmatprep.subr.mxu0 0.0
        %4339 = vmatpush1.msra.mxu0 0.0
        %4340 = vmatprep.subr.mxu0 0.0
        %v4341 = vand.u32 %v1645, 4294901760
        %4342 = vmatpush1.msra.mxu0 %v4341
        %4343 = vmatprep.subr.mxu0 0.0
        %v4344 = vand.u32 %v1644, 4294901760
        %4345 = vmatpush1.msra.mxu0 %v4344
        %4346 = vmatprep.subr.mxu0 0.0
        %4347 = vmatpush2.msra.mxu0 0.0
        %4348 = vmatprep.subr.mxu0 0.0
        %4349 = vmatpush2.msra.mxu0 0.0
        %4350 = vmatprep.subr.mxu0 0.0
        %4351 = vmatpush2.msra.mxu0 0.0
        %4352 = vmatprep.subr.mxu0 0.0
        %4353 = vmatpush2.msra.mxu0 0.0
        %4354 = vmatprep.subr.mxu0 0.0
        %4355 = vmatpush2.msra.mxu0 0.0
        %4356 = vmatprep.subr.mxu0 0.0
        %4357 = vmatpush2.msra.mxu0 0.0
        %4358 = vmatprep.subr.mxu0 0.0
        %4359 = vmatpush2.msra.mxu0 0.0
        %4360 = vmatprep.subr.mxu0 0.0
        %4361 = vmatpush2.msra.mxu0 0.0
        %4362 = vmatprep.subr.mxu0 0.0
        %4363 = vmatpush2.msra.mxu0 0.0
        %4364 = vmatprep.subr.mxu0 0.0
        %4365 = vmatpush2.msra.mxu0 0.0
        %4366 = vmatprep.subr.mxu0 0.0
        %4367 = vmatpush2.msra.mxu0 0.0
        %4368 = vmatprep.subr.mxu0 0.0
        %4369 = vmatpush2.msra.mxu0 0.0
        %4370 = vmatprep.subr.mxu0 0.0
        %4371 = vmatpush2.msra.mxu0 0.0
        %4372 = vmatprep.subr.mxu0 0.0
        %4373 = vmatpush2.msra.mxu0 0.0
        %4374 = vmatprep.subr.mxu0 0.0
        %4375 = vmatpush2.msra.mxu0 0.0
        %4376 = vmatprep.subr.mxu0 0.0
        %4377 = vmatpush2.msra.mxu0 0.0
        %4378 = vmatprep.mubr.f32.mxu0 0.0
        %v4379 = vand.u32 %v1654, 4294901760
        %v4380 = vsub.f32 %v1654, %v4379
        %v4381 = vand.u32 %v4380, 4294901760
        %v4382 = vsub.f32 %v4380, %v4381
        %v4383 = vand.u32 %v4382, 4294901760
        %4384 = vmatmul.mubr.f32.gmra.mxu0 %v4383
        %v4385 = vpop.f32.mrf.mxu0
        %v4386 = vadd.f32 0.0, %v4385
        %v4387 = vpop.f32.mrf.mxu0
        %4388 = vmatprep.mubr.f32.mxu0 0.0
        %v4389 = vand.u32 %v1657, 4294901760
        %v4390 = vsub.f32 %v1657, %v4389
        %v4391 = vand.u32 %v4390, 4294901760
        %v4392 = vsub.f32 %v4390, %v4391
        %v4393 = vand.u32 %v4392, 4294901760
        %4394 = vmatmul.mubr.f32.gmra.mxu0 %v4393
        %v4395 = vpop.f32.mrf.mxu0
        %v4396 = vadd.f32 0.0, %v4395
        %v4397 = vpop.f32.mrf.mxu0
        %4398 = vmatprep.mubr.f32.mxu0 0.0
        %v4399 = vand.u32 %v1660, 4294901760
        %v4400 = vsub.f32 %v1660, %v4399
        %v4401 = vand.u32 %v4400, 4294901760
        %v4402 = vsub.f32 %v4400, %v4401
        %v4403 = vand.u32 %v4402, 4294901760
        %4404 = vmatmul.mubr.f32.gmra.mxu0 %v4403
        %v4405 = vpop.f32.mrf.mxu0
        %v4406 = vadd.f32 0.0, %v4405
        %v4407 = vpop.f32.mrf.mxu0
        %4408 = vmatprep.mubr.f32.mxu0 0.0
        %v4409 = vand.u32 %v1663, 4294901760
        %v4410 = vsub.f32 %v1663, %v4409
        %v4411 = vand.u32 %v4410, 4294901760
        %v4412 = vsub.f32 %v4410, %v4411
        %v4413 = vand.u32 %v4412, 4294901760
        %4414 = vmatmul.mubr.f32.gmra.mxu0 %v4413
        %v4415 = vpop.f32.mrf.mxu0
        %v4416 = vadd.f32 0.0, %v4415
        %v4417 = vpop.f32.mrf.mxu0
        %4418 = vmatprep.mubr.f32.mxu0 0.0
        %v4419 = vand.u32 %v1666, 4294901760
        %v4420 = vsub.f32 %v1666, %v4419
        %v4421 = vand.u32 %v4420, 4294901760
        %v4422 = vsub.f32 %v4420, %v4421
        %v4423 = vand.u32 %v4422, 4294901760
        %4424 = vmatmul.mubr.f32.gmra.mxu0 %v4423
        %v4425 = vpop.f32.mrf.mxu0
        %v4426 = vadd.f32 0.0, %v4425
        %v4427 = vpop.f32.mrf.mxu0
        %4428 = vdwg.mxu0
        %4429 = vmatprep.subr.mxu0 0.0
        %4430 = vmatpush1.msra.mxu0 0.0
        %4431 = vmatprep.subr.mxu0 0.0
        %4432 = vmatpush1.msra.mxu0 0.0
        %4433 = vmatprep.subr.mxu0 0.0
        %4434 = vmatpush1.msra.mxu0 0.0
        %4435 = vmatprep.subr.mxu0 0.0
        %4436 = vmatpush1.msra.mxu0 0.0
        %4437 = vmatprep.subr.mxu0 0.0
        %4438 = vmatpush1.msra.mxu0 0.0
        %4439 = vmatprep.subr.mxu0 0.0
        %4440 = vmatpush1.msra.mxu0 0.0
        %4441 = vmatprep.subr.mxu0 0.0
        %4442 = vmatpush1.msra.mxu0 0.0
        %4443 = vmatprep.subr.mxu0 0.0
        %4444 = vmatpush1.msra.mxu0 0.0
        %4445 = vmatprep.subr.mxu0 0.0
        %4446 = vmatpush1.msra.mxu0 0.0
        %4447 = vmatprep.subr.mxu0 0.0
        %4448 = vmatpush1.msra.mxu0 0.0
        %4449 = vmatprep.subr.mxu0 0.0
        %4450 = vmatpush1.msra.mxu0 0.0
        %4451 = vmatprep.subr.mxu0 0.0
        %4452 = vmatpush1.msra.mxu0 0.0
        %4453 = vmatprep.subr.mxu0 0.0
        %4454 = vmatpush1.msra.mxu0 0.0
        %4455 = vmatprep.subr.mxu0 0.0
        %4456 = vmatpush1.msra.mxu0 0.0
        %4457 = vmatprep.subr.mxu0 0.0
        %v4458 = vand.u32 %v1645, 4294901760
        %v4459 = vsub.f32 %v1645, %v4458
        %v4460 = vand.u32 %v4459, 4294901760
        %v4461 = vsub.f32 %v4459, %v4460
        %v4462 = vand.u32 %v4461, 4294901760
        %4463 = vmatpush1.msra.mxu0 %v4462
        %4464 = vmatprep.subr.mxu0 0.0
        %v4465 = vand.u32 %v1644, 4294901760
        %v4466 = vsub.f32 %v1644, %v4465
        %v4467 = vand.u32 %v4466, 4294901760
        %v4468 = vsub.f32 %v4466, %v4467
        %v4469 = vand.u32 %v4468, 4294901760
        %4470 = vmatpush1.msra.mxu0 %v4469
        %4471 = vmatprep.subr.mxu0 0.0
        %4472 = vmatpush2.msra.mxu0 0.0
        %4473 = vmatprep.subr.mxu0 0.0
        %4474 = vmatpush2.msra.mxu0 0.0
        %4475 = vmatprep.subr.mxu0 0.0
        %4476 = vmatpush2.msra.mxu0 0.0
        %4477 = vmatprep.subr.mxu0 0.0
        %4478 = vmatpush2.msra.mxu0 0.0
        %4479 = vmatprep.subr.mxu0 0.0
        %4480 = vmatpush2.msra.mxu0 0.0
        %4481 = vmatprep.subr.mxu0 0.0
        %4482 = vmatpush2.msra.mxu0 0.0
        %4483 = vmatprep.subr.mxu0 0.0
        %4484 = vmatpush2.msra.mxu0 0.0
        %4485 = vmatprep.subr.mxu0 0.0
        %4486 = vmatpush2.msra.mxu0 0.0
        %4487 = vmatprep.subr.mxu0 0.0
        %4488 = vmatpush2.msra.mxu0 0.0
        %4489 = vmatprep.subr.mxu0 0.0
        %4490 = vmatpush2.msra.mxu0 0.0
        %4491 = vmatprep.subr.mxu0 0.0
        %4492 = vmatpush2.msra.mxu0 0.0
        %4493 = vmatprep.subr.mxu0 0.0
        %4494 = vmatpush2.msra.mxu0 0.0
        %4495 = vmatprep.subr.mxu0 0.0
        %4496 = vmatpush2.msra.mxu0 0.0
        %4497 = vmatprep.subr.mxu0 0.0
        %4498 = vmatpush2.msra.mxu0 0.0
        %4499 = vmatprep.subr.mxu0 0.0
        %4500 = vmatpush2.msra.mxu0 0.0
        %4501 = vmatprep.subr.mxu0 0.0
        %4502 = vmatpush2.msra.mxu0 0.0
        %4503 = vmatprep.mubr.f32.mxu0 0.0
        %v4504 = vand.u32 %v1654, 4294901760
        %4505 = vmatmul.mubr.f32.gmra.mxu0 %v4504
        %v4506 = vpop.f32.mrf.mxu0
        %v4507 = vadd.f32 %v4386, %v4506
        %v4508 = vpop.f32.mrf.mxu0
        %4509 = vmatprep.mubr.f32.mxu0 0.0
        %v4510 = vand.u32 %v1657, 4294901760
        %4511 = vmatmul.mubr.f32.gmra.mxu0 %v4510
        %v4512 = vpop.f32.mrf.mxu0
        %v4513 = vadd.f32 %v4396, %v4512
        %v4514 = vpop.f32.mrf.mxu0
        %4515 = vmatprep.mubr.f32.mxu0 0.0
        %v4516 = vand.u32 %v1660, 4294901760
        %4517 = vmatmul.mubr.f32.gmra.mxu0 %v4516
        %v4518 = vpop.f32.mrf.mxu0
        %v4519 = vadd.f32 %v4406, %v4518
        %v4520 = vpop.f32.mrf.mxu0
        %4521 = vmatprep.mubr.f32.mxu0 0.0
        %v4522 = vand.u32 %v1663, 4294901760
        %4523 = vmatmul.mubr.f32.gmra.mxu0 %v4522
        %v4524 = vpop.f32.mrf.mxu0
        %v4525 = vadd.f32 %v4416, %v4524
        %v4526 = vpop.f32.mrf.mxu0
        %4527 = vmatprep.mubr.f32.mxu0 0.0
        %v4528 = vand.u32 %v1666, 4294901760
        %4529 = vmatmul.mubr.f32.gmra.mxu0 %v4528
        %v4530 = vpop.f32.mrf.mxu0
        %v4531 = vadd.f32 %v4426, %v4530
        %v4532 = vpop.f32.mrf.mxu0
        %4533 = vdwg.mxu0
        %4534 = vmatprep.subr.mxu0 0.0
        %4535 = vmatpush1.msra.mxu0 0.0
        %4536 = vmatprep.subr.mxu0 0.0
        %4537 = vmatpush1.msra.mxu0 0.0
        %4538 = vmatprep.subr.mxu0 0.0
        %4539 = vmatpush1.msra.mxu0 0.0
        %4540 = vmatprep.subr.mxu0 0.0
        %4541 = vmatpush1.msra.mxu0 0.0
        %4542 = vmatprep.subr.mxu0 0.0
        %4543 = vmatpush1.msra.mxu0 0.0
        %4544 = vmatprep.subr.mxu0 0.0
        %4545 = vmatpush1.msra.mxu0 0.0
        %4546 = vmatprep.subr.mxu0 0.0
        %4547 = vmatpush1.msra.mxu0 0.0
        %4548 = vmatprep.subr.mxu0 0.0
        %4549 = vmatpush1.msra.mxu0 0.0
        %4550 = vmatprep.subr.mxu0 0.0
        %4551 = vmatpush1.msra.mxu0 0.0
        %4552 = vmatprep.subr.mxu0 0.0
        %4553 = vmatpush1.msra.mxu0 0.0
        %4554 = vmatprep.subr.mxu0 0.0
        %4555 = vmatpush1.msra.mxu0 0.0
        %4556 = vmatprep.subr.mxu0 0.0
        %4557 = vmatpush1.msra.mxu0 0.0
        %4558 = vmatprep.subr.mxu0 0.0
        %4559 = vmatpush1.msra.mxu0 0.0
        %4560 = vmatprep.subr.mxu0 0.0
        %4561 = vmatpush1.msra.mxu0 0.0
        %4562 = vmatprep.subr.mxu0 0.0
        %v4563 = vand.u32 %v1645, 4294901760
        %v4564 = vsub.f32 %v1645, %v4563
        %4565 = vmatpush1.msra.mxu0 %v4564
        %4566 = vmatprep.subr.mxu0 0.0
        %v4567 = vand.u32 %v1644, 4294901760
        %v4568 = vsub.f32 %v1644, %v4567
        %4569 = vmatpush1.msra.mxu0 %v4568
        %4570 = vmatprep.subr.mxu0 0.0
        %4571 = vmatpush2.msra.mxu0 0.0
        %4572 = vmatprep.subr.mxu0 0.0
        %4573 = vmatpush2.msra.mxu0 0.0
        %4574 = vmatprep.subr.mxu0 0.0
        %4575 = vmatpush2.msra.mxu0 0.0
        %4576 = vmatprep.subr.mxu0 0.0
        %4577 = vmatpush2.msra.mxu0 0.0
        %4578 = vmatprep.subr.mxu0 0.0
        %4579 = vmatpush2.msra.mxu0 0.0
        %4580 = vmatprep.subr.mxu0 0.0
        %4581 = vmatpush2.msra.mxu0 0.0
        %4582 = vmatprep.subr.mxu0 0.0
        %4583 = vmatpush2.msra.mxu0 0.0
        %4584 = vmatprep.subr.mxu0 0.0
        %4585 = vmatpush2.msra.mxu0 0.0
        %4586 = vmatprep.subr.mxu0 0.0
        %4587 = vmatpush2.msra.mxu0 0.0
        %4588 = vmatprep.subr.mxu0 0.0
        %4589 = vmatpush2.msra.mxu0 0.0
        %4590 = vmatprep.subr.mxu0 0.0
        %4591 = vmatpush2.msra.mxu0 0.0
        %4592 = vmatprep.subr.mxu0 0.0
        %4593 = vmatpush2.msra.mxu0 0.0
        %4594 = vmatprep.subr.mxu0 0.0
        %4595 = vmatpush2.msra.mxu0 0.0
        %4596 = vmatprep.subr.mxu0 0.0
        %4597 = vmatpush2.msra.mxu0 0.0
        %4598 = vmatprep.subr.mxu0 0.0
        %4599 = vmatpush2.msra.mxu0 0.0
        %4600 = vmatprep.subr.mxu0 0.0
        %4601 = vmatpush2.msra.mxu0 0.0
        %4602 = vmatprep.mubr.f32.mxu0 0.0
        %v4603 = vand.u32 %v1654, 4294901760
        %v4604 = vsub.f32 %v1654, %v4603
        %4605 = vmatmul.mubr.f32.gmra.mxu0 %v4604
        %v4606 = vpop.f32.mrf.mxu0
        %v4607 = vadd.f32 %v4507, %v4606
        %v4608 = vpop.f32.mrf.mxu0
        %4609 = vmatprep.mubr.f32.mxu0 0.0
        %v4610 = vand.u32 %v1657, 4294901760
        %v4611 = vsub.f32 %v1657, %v4610
        %4612 = vmatmul.mubr.f32.gmra.mxu0 %v4611
        %v4613 = vpop.f32.mrf.mxu0
        %v4614 = vadd.f32 %v4513, %v4613
        %v4615 = vpop.f32.mrf.mxu0
        %4616 = vmatprep.mubr.f32.mxu0 0.0
        %v4617 = vand.u32 %v1660, 4294901760
        %v4618 = vsub.f32 %v1660, %v4617
        %4619 = vmatmul.mubr.f32.gmra.mxu0 %v4618
        %v4620 = vpop.f32.mrf.mxu0
        %v4621 = vadd.f32 %v4519, %v4620
        %v4622 = vpop.f32.mrf.mxu0
        %4623 = vmatprep.mubr.f32.mxu0 0.0
        %v4624 = vand.u32 %v1663, 4294901760
        %v4625 = vsub.f32 %v1663, %v4624
        %4626 = vmatmul.mubr.f32.gmra.mxu0 %v4625
        %v4627 = vpop.f32.mrf.mxu0
        %v4628 = vadd.f32 %v4525, %v4627
        %v4629 = vpop.f32.mrf.mxu0
        %4630 = vmatprep.mubr.f32.mxu0 0.0
        %v4631 = vand.u32 %v1666, 4294901760
        %v4632 = vsub.f32 %v1666, %v4631
        %4633 = vmatmul.mubr.f32.gmra.mxu0 %v4632
        %v4634 = vpop.f32.mrf.mxu0
        %v4635 = vadd.f32 %v4531, %v4634
        %v4636 = vpop.f32.mrf.mxu0
        %4637 = vdwg.mxu0
        %4638 = vmatprep.subr.mxu0 0.0
        %4639 = vmatpush1.msra.mxu0 0.0
        %4640 = vmatprep.subr.mxu0 0.0
        %4641 = vmatpush1.msra.mxu0 0.0
        %4642 = vmatprep.subr.mxu0 0.0
        %4643 = vmatpush1.msra.mxu0 0.0
        %4644 = vmatprep.subr.mxu0 0.0
        %4645 = vmatpush1.msra.mxu0 0.0
        %4646 = vmatprep.subr.mxu0 0.0
        %4647 = vmatpush1.msra.mxu0 0.0
        %4648 = vmatprep.subr.mxu0 0.0
        %4649 = vmatpush1.msra.mxu0 0.0
        %4650 = vmatprep.subr.mxu0 0.0
        %4651 = vmatpush1.msra.mxu0 0.0
        %4652 = vmatprep.subr.mxu0 0.0
        %4653 = vmatpush1.msra.mxu0 0.0
        %4654 = vmatprep.subr.mxu0 0.0
        %4655 = vmatpush1.msra.mxu0 0.0
        %4656 = vmatprep.subr.mxu0 0.0
        %4657 = vmatpush1.msra.mxu0 0.0
        %4658 = vmatprep.subr.mxu0 0.0
        %4659 = vmatpush1.msra.mxu0 0.0
        %4660 = vmatprep.subr.mxu0 0.0
        %4661 = vmatpush1.msra.mxu0 0.0
        %4662 = vmatprep.subr.mxu0 0.0
        %4663 = vmatpush1.msra.mxu0 0.0
        %4664 = vmatprep.subr.mxu0 0.0
        %4665 = vmatpush1.msra.mxu0 0.0
        %4666 = vmatprep.subr.mxu0 0.0
        %v4667 = vand.u32 %v1645, 4294901760
        %4668 = vmatpush1.msra.mxu0 %v4667
        %4669 = vmatprep.subr.mxu0 0.0
        %v4670 = vand.u32 %v1644, 4294901760
        %4671 = vmatpush1.msra.mxu0 %v4670
        %4672 = vmatprep.subr.mxu0 0.0
        %4673 = vmatpush2.msra.mxu0 0.0
        %4674 = vmatprep.subr.mxu0 0.0
        %4675 = vmatpush2.msra.mxu0 0.0
        %4676 = vmatprep.subr.mxu0 0.0
        %4677 = vmatpush2.msra.mxu0 0.0
        %4678 = vmatprep.subr.mxu0 0.0
        %4679 = vmatpush2.msra.mxu0 0.0
        %4680 = vmatprep.subr.mxu0 0.0
        %4681 = vmatpush2.msra.mxu0 0.0
        %4682 = vmatprep.subr.mxu0 0.0
        %4683 = vmatpush2.msra.mxu0 0.0
        %4684 = vmatprep.subr.mxu0 0.0
        %4685 = vmatpush2.msra.mxu0 0.0
        %4686 = vmatprep.subr.mxu0 0.0
        %4687 = vmatpush2.msra.mxu0 0.0
        %4688 = vmatprep.subr.mxu0 0.0
        %4689 = vmatpush2.msra.mxu0 0.0
        %4690 = vmatprep.subr.mxu0 0.0
        %4691 = vmatpush2.msra.mxu0 0.0
        %4692 = vmatprep.subr.mxu0 0.0
        %4693 = vmatpush2.msra.mxu0 0.0
        %4694 = vmatprep.subr.mxu0 0.0
        %4695 = vmatpush2.msra.mxu0 0.0
        %4696 = vmatprep.subr.mxu0 0.0
        %4697 = vmatpush2.msra.mxu0 0.0
        %4698 = vmatprep.subr.mxu0 0.0
        %4699 = vmatpush2.msra.mxu0 0.0
        %4700 = vmatprep.subr.mxu0 0.0
        %4701 = vmatpush2.msra.mxu0 0.0
        %4702 = vmatprep.subr.mxu0 0.0
        %4703 = vmatpush2.msra.mxu0 0.0
        %4704 = vmatprep.mubr.f32.mxu0 0.0
        %v4705 = vand.u32 %v1654, 4294901760
        %v4706 = vsub.f32 %v1654, %v4705
        %v4707 = vand.u32 %v4706, 4294901760
        %4708 = vmatmul.mubr.f32.gmra.mxu0 %v4707
        %v4709 = vpop.f32.mrf.mxu0
        %v4710 = vadd.f32 %v4607, %v4709
        %v4711 = vpop.f32.mrf.mxu0
        %4712 = vmatprep.mubr.f32.mxu0 0.0
        %v4713 = vand.u32 %v1657, 4294901760
        %v4714 = vsub.f32 %v1657, %v4713
        %v4715 = vand.u32 %v4714, 4294901760
        %4716 = vmatmul.mubr.f32.gmra.mxu0 %v4715
        %v4717 = vpop.f32.mrf.mxu0
        %v4718 = vadd.f32 %v4614, %v4717
        %v4719 = vpop.f32.mrf.mxu0
        %4720 = vmatprep.mubr.f32.mxu0 0.0
        %v4721 = vand.u32 %v1660, 4294901760
        %v4722 = vsub.f32 %v1660, %v4721
        %v4723 = vand.u32 %v4722, 4294901760
        %4724 = vmatmul.mubr.f32.gmra.mxu0 %v4723
        %v4725 = vpop.f32.mrf.mxu0
        %v4726 = vadd.f32 %v4621, %v4725
        %v4727 = vpop.f32.mrf.mxu0
        %4728 = vmatprep.mubr.f32.mxu0 0.0
        %v4729 = vand.u32 %v1663, 4294901760
        %v4730 = vsub.f32 %v1663, %v4729
        %v4731 = vand.u32 %v4730, 4294901760
        %4732 = vmatmul.mubr.f32.gmra.mxu0 %v4731
        %v4733 = vpop.f32.mrf.mxu0
        %v4734 = vadd.f32 %v4628, %v4733
        %v4735 = vpop.f32.mrf.mxu0
        %4736 = vmatprep.mubr.f32.mxu0 0.0
        %v4737 = vand.u32 %v1666, 4294901760
        %v4738 = vsub.f32 %v1666, %v4737
        %v4739 = vand.u32 %v4738, 4294901760
        %4740 = vmatmul.mubr.f32.gmra.mxu0 %v4739
        %v4741 = vpop.f32.mrf.mxu0
        %v4742 = vadd.f32 %v4635, %v4741
        %v4743 = vpop.f32.mrf.mxu0
        %4744 = vdwg.mxu0
        %4745 = vmatprep.subr.mxu0 0.0
        %4746 = vmatpush1.msra.mxu0 0.0
        %4747 = vmatprep.subr.mxu0 0.0
        %4748 = vmatpush1.msra.mxu0 0.0
        %4749 = vmatprep.subr.mxu0 0.0
        %4750 = vmatpush1.msra.mxu0 0.0
        %4751 = vmatprep.subr.mxu0 0.0
        %4752 = vmatpush1.msra.mxu0 0.0
        %4753 = vmatprep.subr.mxu0 0.0
        %4754 = vmatpush1.msra.mxu0 0.0
        %4755 = vmatprep.subr.mxu0 0.0
        %4756 = vmatpush1.msra.mxu0 0.0
        %4757 = vmatprep.subr.mxu0 0.0
        %4758 = vmatpush1.msra.mxu0 0.0
        %4759 = vmatprep.subr.mxu0 0.0
        %4760 = vmatpush1.msra.mxu0 0.0
        %4761 = vmatprep.subr.mxu0 0.0
        %4762 = vmatpush1.msra.mxu0 0.0
        %4763 = vmatprep.subr.mxu0 0.0
        %4764 = vmatpush1.msra.mxu0 0.0
        %4765 = vmatprep.subr.mxu0 0.0
        %4766 = vmatpush1.msra.mxu0 0.0
        %4767 = vmatprep.subr.mxu0 0.0
        %4768 = vmatpush1.msra.mxu0 0.0
        %4769 = vmatprep.subr.mxu0 0.0
        %4770 = vmatpush1.msra.mxu0 0.0
        %4771 = vmatprep.subr.mxu0 0.0
        %4772 = vmatpush1.msra.mxu0 0.0
        %4773 = vmatprep.subr.mxu0 0.0
        %v4774 = vand.u32 %v1645, 4294901760
        %v4775 = vsub.f32 %v1645, %v4774
        %v4776 = vand.u32 %v4775, 4294901760
        %4777 = vmatpush1.msra.mxu0 %v4776
        %4778 = vmatprep.subr.mxu0 0.0
        %v4779 = vand.u32 %v1644, 4294901760
        %v4780 = vsub.f32 %v1644, %v4779
        %v4781 = vand.u32 %v4780, 4294901760
        %4782 = vmatpush1.msra.mxu0 %v4781
        %4783 = vmatprep.subr.mxu0 0.0
        %4784 = vmatpush2.msra.mxu0 0.0
        %4785 = vmatprep.subr.mxu0 0.0
        %4786 = vmatpush2.msra.mxu0 0.0
        %4787 = vmatprep.subr.mxu0 0.0
        %4788 = vmatpush2.msra.mxu0 0.0
        %4789 = vmatprep.subr.mxu0 0.0
        %4790 = vmatpush2.msra.mxu0 0.0
        %4791 = vmatprep.subr.mxu0 0.0
        %4792 = vmatpush2.msra.mxu0 0.0
        %4793 = vmatprep.subr.mxu0 0.0
        %4794 = vmatpush2.msra.mxu0 0.0
        %4795 = vmatprep.subr.mxu0 0.0
        %4796 = vmatpush2.msra.mxu0 0.0
        %4797 = vmatprep.subr.mxu0 0.0
        %4798 = vmatpush2.msra.mxu0 0.0
        %4799 = vmatprep.subr.mxu0 0.0
        %4800 = vmatpush2.msra.mxu0 0.0
        %4801 = vmatprep.subr.mxu0 0.0
        %4802 = vmatpush2.msra.mxu0 0.0
        %4803 = vmatprep.subr.mxu0 0.0
        %4804 = vmatpush2.msra.mxu0 0.0
        %4805 = vmatprep.subr.mxu0 0.0
        %4806 = vmatpush2.msra.mxu0 0.0
        %4807 = vmatprep.subr.mxu0 0.0
        %4808 = vmatpush2.msra.mxu0 0.0
        %4809 = vmatprep.subr.mxu0 0.0
        %4810 = vmatpush2.msra.mxu0 0.0
        %4811 = vmatprep.subr.mxu0 0.0
        %4812 = vmatpush2.msra.mxu0 0.0
        %4813 = vmatprep.subr.mxu0 0.0
        %4814 = vmatpush2.msra.mxu0 0.0
        %4815 = vmatprep.mubr.f32.mxu0 0.0
        %v4816 = vand.u32 %v1654, 4294901760
        %4817 = vmatmul.mubr.f32.gmra.mxu0 %v4816
        %v4818 = vpop.f32.mrf.mxu0
        %v4819 = vadd.f32 %v4710, %v4818
        %v4820 = vpop.f32.mrf.mxu0
        %4821 = vmatprep.mubr.f32.mxu0 0.0
        %v4822 = vand.u32 %v1657, 4294901760
        %4823 = vmatmul.mubr.f32.gmra.mxu0 %v4822
        %v4824 = vpop.f32.mrf.mxu0
        %v4825 = vadd.f32 %v4718, %v4824
        %v4826 = vpop.f32.mrf.mxu0
        %4827 = vmatprep.mubr.f32.mxu0 0.0
        %v4828 = vand.u32 %v1660, 4294901760
        %4829 = vmatmul.mubr.f32.gmra.mxu0 %v4828
        %v4830 = vpop.f32.mrf.mxu0
        %v4831 = vadd.f32 %v4726, %v4830
        %v4832 = vpop.f32.mrf.mxu0
        %4833 = vmatprep.mubr.f32.mxu0 0.0
        %v4834 = vand.u32 %v1663, 4294901760
        %4835 = vmatmul.mubr.f32.gmra.mxu0 %v4834
        %v4836 = vpop.f32.mrf.mxu0
        %v4837 = vadd.f32 %v4734, %v4836
        %v4838 = vpop.f32.mrf.mxu0
        %4839 = vmatprep.mubr.f32.mxu0 0.0
        %v4840 = vand.u32 %v1666, 4294901760
        %4841 = vmatmul.mubr.f32.gmra.mxu0 %v4840
        %v4842 = vpop.f32.mrf.mxu0
        %v4843 = vadd.f32 %v4742, %v4842
        %v4844 = vpop.f32.mrf.mxu0
        %4845 = vdwg.mxu0
        %4846 = vmatprep.subr.mxu0 0.0
        %4847 = vmatpush1.msra.mxu0 0.0
        %4848 = vmatprep.subr.mxu0 0.0
        %4849 = vmatpush1.msra.mxu0 0.0
        %4850 = vmatprep.subr.mxu0 0.0
        %4851 = vmatpush1.msra.mxu0 0.0
        %4852 = vmatprep.subr.mxu0 0.0
        %4853 = vmatpush1.msra.mxu0 0.0
        %4854 = vmatprep.subr.mxu0 0.0
        %4855 = vmatpush1.msra.mxu0 0.0
        %4856 = vmatprep.subr.mxu0 0.0
        %4857 = vmatpush1.msra.mxu0 0.0
        %4858 = vmatprep.subr.mxu0 0.0
        %4859 = vmatpush1.msra.mxu0 0.0
        %4860 = vmatprep.subr.mxu0 0.0
        %4861 = vmatpush1.msra.mxu0 0.0
        %4862 = vmatprep.subr.mxu0 0.0
        %4863 = vmatpush1.msra.mxu0 0.0
        %4864 = vmatprep.subr.mxu0 0.0
        %4865 = vmatpush1.msra.mxu0 0.0
        %4866 = vmatprep.subr.mxu0 0.0
        %4867 = vmatpush1.msra.mxu0 0.0
        %4868 = vmatprep.subr.mxu0 0.0
        %4869 = vmatpush1.msra.mxu0 0.0
        %4870 = vmatprep.subr.mxu0 0.0
        %4871 = vmatpush1.msra.mxu0 0.0
        %4872 = vmatprep.subr.mxu0 0.0
        %4873 = vmatpush1.msra.mxu0 0.0
        %4874 = vmatprep.subr.mxu0 0.0
        %v4875 = vand.u32 %v1645, 4294901760
        %4876 = vmatpush1.msra.mxu0 %v4875
        %4877 = vmatprep.subr.mxu0 0.0
        %v4878 = vand.u32 %v1644, 4294901760
        %4879 = vmatpush1.msra.mxu0 %v4878
        %4880 = vmatprep.subr.mxu0 0.0
        %4881 = vmatpush2.msra.mxu0 0.0
        %4882 = vmatprep.subr.mxu0 0.0
        %4883 = vmatpush2.msra.mxu0 0.0
        %4884 = vmatprep.subr.mxu0 0.0
        %4885 = vmatpush2.msra.mxu0 0.0
        %4886 = vmatprep.subr.mxu0 0.0
        %4887 = vmatpush2.msra.mxu0 0.0
        %4888 = vmatprep.subr.mxu0 0.0
        %4889 = vmatpush2.msra.mxu0 0.0
        %4890 = vmatprep.subr.mxu0 0.0
        %4891 = vmatpush2.msra.mxu0 0.0
        %4892 = vmatprep.subr.mxu0 0.0
        %4893 = vmatpush2.msra.mxu0 0.0
        %4894 = vmatprep.subr.mxu0 0.0
        %4895 = vmatpush2.msra.mxu0 0.0
        %4896 = vmatprep.subr.mxu0 0.0
        %4897 = vmatpush2.msra.mxu0 0.0
        %4898 = vmatprep.subr.mxu0 0.0
        %4899 = vmatpush2.msra.mxu0 0.0
        %4900 = vmatprep.subr.mxu0 0.0
        %4901 = vmatpush2.msra.mxu0 0.0
        %4902 = vmatprep.subr.mxu0 0.0
        %4903 = vmatpush2.msra.mxu0 0.0
        %4904 = vmatprep.subr.mxu0 0.0
        %4905 = vmatpush2.msra.mxu0 0.0
        %4906 = vmatprep.subr.mxu0 0.0
        %4907 = vmatpush2.msra.mxu0 0.0
        %4908 = vmatprep.subr.mxu0 0.0
        %4909 = vmatpush2.msra.mxu0 0.0
        %4910 = vmatprep.subr.mxu0 0.0
        %4911 = vmatpush2.msra.mxu0 0.0
        %4912 = vmatprep.mubr.f32.mxu0 0.0
        %v4913 = vand.u32 %v1654, 4294901760
        %4914 = vmatmul.mubr.f32.gmra.mxu0 %v4913
        %v4915 = vpop.f32.mrf.mxu0
        %v4916 = vadd.f32 %v4819, %v4915
        %v4917 = vpop.f32.mrf.mxu0
        %4918 = vmatprep.mubr.f32.mxu0 0.0
        %v4919 = vand.u32 %v1657, 4294901760
        %4920 = vmatmul.mubr.f32.gmra.mxu0 %v4919
        %v4921 = vpop.f32.mrf.mxu0
        %v4922 = vadd.f32 %v4825, %v4921
        %v4923 = vpop.f32.mrf.mxu0
        %4924 = vmatprep.mubr.f32.mxu0 0.0
        %v4925 = vand.u32 %v1660, 4294901760
        %4926 = vmatmul.mubr.f32.gmra.mxu0 %v4925
        %v4927 = vpop.f32.mrf.mxu0
        %v4928 = vadd.f32 %v4831, %v4927
        %v4929 = vpop.f32.mrf.mxu0
        %4930 = vmatprep.mubr.f32.mxu0 0.0
        %v4931 = vand.u32 %v1663, 4294901760
        %4932 = vmatmul.mubr.f32.gmra.mxu0 %v4931
        %v4933 = vpop.f32.mrf.mxu0
        %v4934 = vadd.f32 %v4837, %v4933
        %v4935 = vpop.f32.mrf.mxu0
        %4936 = vmatprep.mubr.f32.mxu0 0.0
        %v4937 = vand.u32 %v1666, 4294901760
        %4938 = vmatmul.mubr.f32.gmra.mxu0 %v4937
        %v4939 = vpop.f32.mrf.mxu0
        %v4940 = vadd.f32 %v4843, %v4939
        %v4941 = vpop.f32.mrf.mxu0
        %4942 = vdwg.mxu0
        %4944 = vset.pattern.permute.xlu0 0
        %4945 = vperm.xlu0 %4944, %v563
        %v4946 = vpop.permute.xlu0 %4945
        %4949 = vset.pattern.permute.xlu0 0
        %4950 = vperm.xlu0 %4949, %v564
        %v4951 = vpop.permute.xlu0 %4950
        %4954 = vset.pattern.permute.xlu0 0
        %4955 = vperm.xlu0 %4954, %v565
        %v4956 = vpop.permute.xlu0 %4955
        %4959 = vset.pattern.permute.xlu0 0
        %4960 = vperm.xlu0 %4959, %v566
        %v4961 = vpop.permute.xlu0 %4960
        %v4963 = vadd.f32 %v4916, %v4946
        %v4964 = vadd.f32 %v4922, %v4951
        %v4965 = vadd.f32 %v4928, %v4956
        %v4966 = vadd.f32 %v4934, %v4961
        %4968 = vset.pattern.permute.xlu0 0
        %4969 = vperm.xlu0 %4968, %v575
        %v4970 = vpop.permute.xlu0 %4969
        %v4972 = vadd.f32 %v4940, %v4970
        %4973 = vmatprep.subr.mxu0 0.0
        %4974 = vmatpush1.msra.mxu0 0.0
        %4975 = vmatprep.subr.mxu0 0.0
        %4976 = vmatpush1.msra.mxu0 0.0
        %4977 = vmatprep.subr.mxu0 0.0
        %4978 = vmatpush1.msra.mxu0 0.0
        %4979 = vmatprep.subr.mxu0 0.0
        %4980 = vmatpush1.msra.mxu0 0.0
        %4981 = vmatprep.subr.mxu0 0.0
        %4982 = vmatpush1.msra.mxu0 0.0
        %4983 = vmatprep.subr.mxu0 0.0
        %4984 = vmatpush1.msra.mxu0 0.0
        %4985 = vmatprep.subr.mxu0 0.0
        %4986 = vmatpush1.msra.mxu0 0.0
        %4987 = vmatprep.subr.mxu0 0.0
        %4988 = vmatpush1.msra.mxu0 0.0
        %4989 = vmatprep.subr.mxu0 0.0
        %4990 = vmatpush1.msra.mxu0 0.0
        %4991 = vmatprep.subr.mxu0 0.0
        %4992 = vmatpush1.msra.mxu0 0.0
        %4993 = vmatprep.subr.mxu0 0.0
        %4994 = vmatpush1.msra.mxu0 0.0
        %4995 = vmatprep.subr.mxu0 0.0
        %4996 = vmatpush1.msra.mxu0 0.0
        %4997 = vmatprep.subr.mxu0 0.0
        %4998 = vmatpush1.msra.mxu0 0.0
        %4999 = vmatprep.subr.mxu0 0.0
        %5000 = vmatpush1.msra.mxu0 0.0
        %5001 = vmatprep.subr.mxu0 0.0
        %v5002 = vand.u32 %v1647, 4294901760
        %5003 = vmatpush1.msra.mxu0 %v5002
        %5004 = vmatprep.subr.mxu0 0.0
        %v5005 = vand.u32 %v1646, 4294901760
        %5006 = vmatpush1.msra.mxu0 %v5005
        %5007 = vmatprep.subr.mxu0 0.0
        %5008 = vmatpush2.msra.mxu0 0.0
        %5009 = vmatprep.subr.mxu0 0.0
        %5010 = vmatpush2.msra.mxu0 0.0
        %5011 = vmatprep.subr.mxu0 0.0
        %5012 = vmatpush2.msra.mxu0 0.0
        %5013 = vmatprep.subr.mxu0 0.0
        %5014 = vmatpush2.msra.mxu0 0.0
        %5015 = vmatprep.subr.mxu0 0.0
        %5016 = vmatpush2.msra.mxu0 0.0
        %5017 = vmatprep.subr.mxu0 0.0
        %5018 = vmatpush2.msra.mxu0 0.0
        %5019 = vmatprep.subr.mxu0 0.0
        %5020 = vmatpush2.msra.mxu0 0.0
        %5021 = vmatprep.subr.mxu0 0.0
        %5022 = vmatpush2.msra.mxu0 0.0
        %5023 = vmatprep.subr.mxu0 0.0
        %5024 = vmatpush2.msra.mxu0 0.0
        %5025 = vmatprep.subr.mxu0 0.0
        %5026 = vmatpush2.msra.mxu0 0.0
        %5027 = vmatprep.subr.mxu0 0.0
        %5028 = vmatpush2.msra.mxu0 0.0
        %5029 = vmatprep.subr.mxu0 0.0
        %5030 = vmatpush2.msra.mxu0 0.0
        %5031 = vmatprep.subr.mxu0 0.0
        %5032 = vmatpush2.msra.mxu0 0.0
        %5033 = vmatprep.subr.mxu0 0.0
        %5034 = vmatpush2.msra.mxu0 0.0
        %5035 = vmatprep.subr.mxu0 0.0
        %5036 = vmatpush2.msra.mxu0 0.0
        %5037 = vmatprep.subr.mxu0 0.0
        %5038 = vmatpush2.msra.mxu0 0.0
        %5039 = vmatprep.mubr.f32.mxu0 0.0
        %v5040 = vand.u32 %v1654, 4294901760
        %v5041 = vsub.f32 %v1654, %v5040
        %v5042 = vand.u32 %v5041, 4294901760
        %v5043 = vsub.f32 %v5041, %v5042
        %v5044 = vand.u32 %v5043, 4294901760
        %5045 = vmatmul.mubr.f32.gmra.mxu0 %v5044
        %v5046 = vpop.f32.mrf.mxu0
        %v5047 = vadd.f32 0.0, %v5046
        %v5048 = vpop.f32.mrf.mxu0
        %5049 = vmatprep.mubr.f32.mxu0 0.0
        %v5050 = vand.u32 %v1657, 4294901760
        %v5051 = vsub.f32 %v1657, %v5050
        %v5052 = vand.u32 %v5051, 4294901760
        %v5053 = vsub.f32 %v5051, %v5052
        %v5054 = vand.u32 %v5053, 4294901760
        %5055 = vmatmul.mubr.f32.gmra.mxu0 %v5054
        %v5056 = vpop.f32.mrf.mxu0
        %v5057 = vadd.f32 0.0, %v5056
        %v5058 = vpop.f32.mrf.mxu0
        %5059 = vmatprep.mubr.f32.mxu0 0.0
        %v5060 = vand.u32 %v1660, 4294901760
        %v5061 = vsub.f32 %v1660, %v5060
        %v5062 = vand.u32 %v5061, 4294901760
        %v5063 = vsub.f32 %v5061, %v5062
        %v5064 = vand.u32 %v5063, 4294901760
        %5065 = vmatmul.mubr.f32.gmra.mxu0 %v5064
        %v5066 = vpop.f32.mrf.mxu0
        %v5067 = vadd.f32 0.0, %v5066
        %v5068 = vpop.f32.mrf.mxu0
        %5069 = vmatprep.mubr.f32.mxu0 0.0
        %v5070 = vand.u32 %v1663, 4294901760
        %v5071 = vsub.f32 %v1663, %v5070
        %v5072 = vand.u32 %v5071, 4294901760
        %v5073 = vsub.f32 %v5071, %v5072
        %v5074 = vand.u32 %v5073, 4294901760
        %5075 = vmatmul.mubr.f32.gmra.mxu0 %v5074
        %v5076 = vpop.f32.mrf.mxu0
        %v5077 = vadd.f32 0.0, %v5076
        %v5078 = vpop.f32.mrf.mxu0
        %5079 = vmatprep.mubr.f32.mxu0 0.0
        %v5080 = vand.u32 %v1666, 4294901760
        %v5081 = vsub.f32 %v1666, %v5080
        %v5082 = vand.u32 %v5081, 4294901760
        %v5083 = vsub.f32 %v5081, %v5082
        %v5084 = vand.u32 %v5083, 4294901760
        %5085 = vmatmul.mubr.f32.gmra.mxu0 %v5084
        %v5086 = vpop.f32.mrf.mxu0
        %v5087 = vadd.f32 0.0, %v5086
        %v5088 = vpop.f32.mrf.mxu0
        %5089 = vdwg.mxu0
        %5090 = vmatprep.subr.mxu0 0.0
        %5091 = vmatpush1.msra.mxu0 0.0
        %5092 = vmatprep.subr.mxu0 0.0
        %5093 = vmatpush1.msra.mxu0 0.0
        %5094 = vmatprep.subr.mxu0 0.0
        %5095 = vmatpush1.msra.mxu0 0.0
        %5096 = vmatprep.subr.mxu0 0.0
        %5097 = vmatpush1.msra.mxu0 0.0
        %5098 = vmatprep.subr.mxu0 0.0
        %5099 = vmatpush1.msra.mxu0 0.0
        %5100 = vmatprep.subr.mxu0 0.0
        %5101 = vmatpush1.msra.mxu0 0.0
        %5102 = vmatprep.subr.mxu0 0.0
        %5103 = vmatpush1.msra.mxu0 0.0
        %5104 = vmatprep.subr.mxu0 0.0
        %5105 = vmatpush1.msra.mxu0 0.0
        %5106 = vmatprep.subr.mxu0 0.0
        %5107 = vmatpush1.msra.mxu0 0.0
        %5108 = vmatprep.subr.mxu0 0.0
        %5109 = vmatpush1.msra.mxu0 0.0
        %5110 = vmatprep.subr.mxu0 0.0
        %5111 = vmatpush1.msra.mxu0 0.0
        %5112 = vmatprep.subr.mxu0 0.0
        %5113 = vmatpush1.msra.mxu0 0.0
        %5114 = vmatprep.subr.mxu0 0.0
        %5115 = vmatpush1.msra.mxu0 0.0
        %5116 = vmatprep.subr.mxu0 0.0
        %5117 = vmatpush1.msra.mxu0 0.0
        %5118 = vmatprep.subr.mxu0 0.0
        %v5119 = vand.u32 %v1647, 4294901760
        %v5120 = vsub.f32 %v1647, %v5119
        %v5121 = vand.u32 %v5120, 4294901760
        %v5122 = vsub.f32 %v5120, %v5121
        %v5123 = vand.u32 %v5122, 4294901760
        %5124 = vmatpush1.msra.mxu0 %v5123
        %5125 = vmatprep.subr.mxu0 0.0
        %v5126 = vand.u32 %v1646, 4294901760
        %v5127 = vsub.f32 %v1646, %v5126
        %v5128 = vand.u32 %v5127, 4294901760
        %v5129 = vsub.f32 %v5127, %v5128
        %v5130 = vand.u32 %v5129, 4294901760
        %5131 = vmatpush1.msra.mxu0 %v5130
        %5132 = vmatprep.subr.mxu0 0.0
        %5133 = vmatpush2.msra.mxu0 0.0
        %5134 = vmatprep.subr.mxu0 0.0
        %5135 = vmatpush2.msra.mxu0 0.0
        %5136 = vmatprep.subr.mxu0 0.0
        %5137 = vmatpush2.msra.mxu0 0.0
        %5138 = vmatprep.subr.mxu0 0.0
        %5139 = vmatpush2.msra.mxu0 0.0
        %5140 = vmatprep.subr.mxu0 0.0
        %5141 = vmatpush2.msra.mxu0 0.0
        %5142 = vmatprep.subr.mxu0 0.0
        %5143 = vmatpush2.msra.mxu0 0.0
        %5144 = vmatprep.subr.mxu0 0.0
        %5145 = vmatpush2.msra.mxu0 0.0
        %5146 = vmatprep.subr.mxu0 0.0
        %5147 = vmatpush2.msra.mxu0 0.0
        %5148 = vmatprep.subr.mxu0 0.0
        %5149 = vmatpush2.msra.mxu0 0.0
        %5150 = vmatprep.subr.mxu0 0.0
        %5151 = vmatpush2.msra.mxu0 0.0
        %5152 = vmatprep.subr.mxu0 0.0
        %5153 = vmatpush2.msra.mxu0 0.0
        %5154 = vmatprep.subr.mxu0 0.0
        %5155 = vmatpush2.msra.mxu0 0.0
        %5156 = vmatprep.subr.mxu0 0.0
        %5157 = vmatpush2.msra.mxu0 0.0
        %5158 = vmatprep.subr.mxu0 0.0
        %5159 = vmatpush2.msra.mxu0 0.0
        %5160 = vmatprep.subr.mxu0 0.0
        %5161 = vmatpush2.msra.mxu0 0.0
        %5162 = vmatprep.subr.mxu0 0.0
        %5163 = vmatpush2.msra.mxu0 0.0
        %5164 = vmatprep.mubr.f32.mxu0 0.0
        %v5165 = vand.u32 %v1654, 4294901760
        %5166 = vmatmul.mubr.f32.gmra.mxu0 %v5165
        %v5167 = vpop.f32.mrf.mxu0
        %v5168 = vadd.f32 %v5047, %v5167
        %v5169 = vpop.f32.mrf.mxu0
        %5170 = vmatprep.mubr.f32.mxu0 0.0
        %v5171 = vand.u32 %v1657, 4294901760
        %5172 = vmatmul.mubr.f32.gmra.mxu0 %v5171
        %v5173 = vpop.f32.mrf.mxu0
        %v5174 = vadd.f32 %v5057, %v5173
        %v5175 = vpop.f32.mrf.mxu0
        %5176 = vmatprep.mubr.f32.mxu0 0.0
        %v5177 = vand.u32 %v1660, 4294901760
        %5178 = vmatmul.mubr.f32.gmra.mxu0 %v5177
        %v5179 = vpop.f32.mrf.mxu0
        %v5180 = vadd.f32 %v5067, %v5179
        %v5181 = vpop.f32.mrf.mxu0
        %5182 = vmatprep.mubr.f32.mxu0 0.0
        %v5183 = vand.u32 %v1663, 4294901760
        %5184 = vmatmul.mubr.f32.gmra.mxu0 %v5183
        %v5185 = vpop.f32.mrf.mxu0
        %v5186 = vadd.f32 %v5077, %v5185
        %v5187 = vpop.f32.mrf.mxu0
        %5188 = vmatprep.mubr.f32.mxu0 0.0
        %v5189 = vand.u32 %v1666, 4294901760
        %5190 = vmatmul.mubr.f32.gmra.mxu0 %v5189
        %v5191 = vpop.f32.mrf.mxu0
        %v5192 = vadd.f32 %v5087, %v5191
        %v5193 = vpop.f32.mrf.mxu0
        %5194 = vdwg.mxu0
        %5195 = vmatprep.subr.mxu0 0.0
        %5196 = vmatpush1.msra.mxu0 0.0
        %5197 = vmatprep.subr.mxu0 0.0
        %5198 = vmatpush1.msra.mxu0 0.0
        %5199 = vmatprep.subr.mxu0 0.0
        %5200 = vmatpush1.msra.mxu0 0.0
        %5201 = vmatprep.subr.mxu0 0.0
        %5202 = vmatpush1.msra.mxu0 0.0
        %5203 = vmatprep.subr.mxu0 0.0
        %5204 = vmatpush1.msra.mxu0 0.0
        %5205 = vmatprep.subr.mxu0 0.0
        %5206 = vmatpush1.msra.mxu0 0.0
        %5207 = vmatprep.subr.mxu0 0.0
        %5208 = vmatpush1.msra.mxu0 0.0
        %5209 = vmatprep.subr.mxu0 0.0
        %5210 = vmatpush1.msra.mxu0 0.0
        %5211 = vmatprep.subr.mxu0 0.0
        %5212 = vmatpush1.msra.mxu0 0.0
        %5213 = vmatprep.subr.mxu0 0.0
        %5214 = vmatpush1.msra.mxu0 0.0
        %5215 = vmatprep.subr.mxu0 0.0
        %5216 = vmatpush1.msra.mxu0 0.0
        %5217 = vmatprep.subr.mxu0 0.0
        %5218 = vmatpush1.msra.mxu0 0.0
        %5219 = vmatprep.subr.mxu0 0.0
        %5220 = vmatpush1.msra.mxu0 0.0
        %5221 = vmatprep.subr.mxu0 0.0
        %5222 = vmatpush1.msra.mxu0 0.0
        %5223 = vmatprep.subr.mxu0 0.0
        %v5224 = vand.u32 %v1647, 4294901760
        %v5225 = vsub.f32 %v1647, %v5224
        %5226 = vmatpush1.msra.mxu0 %v5225
        %5227 = vmatprep.subr.mxu0 0.0
        %v5228 = vand.u32 %v1646, 4294901760
        %v5229 = vsub.f32 %v1646, %v5228
        %5230 = vmatpush1.msra.mxu0 %v5229
        %5231 = vmatprep.subr.mxu0 0.0
        %5232 = vmatpush2.msra.mxu0 0.0
        %5233 = vmatprep.subr.mxu0 0.0
        %5234 = vmatpush2.msra.mxu0 0.0
        %5235 = vmatprep.subr.mxu0 0.0
        %5236 = vmatpush2.msra.mxu0 0.0
        %5237 = vmatprep.subr.mxu0 0.0
        %5238 = vmatpush2.msra.mxu0 0.0
        %5239 = vmatprep.subr.mxu0 0.0
        %5240 = vmatpush2.msra.mxu0 0.0
        %5241 = vmatprep.subr.mxu0 0.0
        %5242 = vmatpush2.msra.mxu0 0.0
        %5243 = vmatprep.subr.mxu0 0.0
        %5244 = vmatpush2.msra.mxu0 0.0
        %5245 = vmatprep.subr.mxu0 0.0
        %5246 = vmatpush2.msra.mxu0 0.0
        %5247 = vmatprep.subr.mxu0 0.0
        %5248 = vmatpush2.msra.mxu0 0.0
        %5249 = vmatprep.subr.mxu0 0.0
        %5250 = vmatpush2.msra.mxu0 0.0
        %5251 = vmatprep.subr.mxu0 0.0
        %5252 = vmatpush2.msra.mxu0 0.0
        %5253 = vmatprep.subr.mxu0 0.0
        %5254 = vmatpush2.msra.mxu0 0.0
        %5255 = vmatprep.subr.mxu0 0.0
        %5256 = vmatpush2.msra.mxu0 0.0
        %5257 = vmatprep.subr.mxu0 0.0
        %5258 = vmatpush2.msra.mxu0 0.0
        %5259 = vmatprep.subr.mxu0 0.0
        %5260 = vmatpush2.msra.mxu0 0.0
        %5261 = vmatprep.subr.mxu0 0.0
        %5262 = vmatpush2.msra.mxu0 0.0
        %5263 = vmatprep.mubr.f32.mxu0 0.0
        %v5264 = vand.u32 %v1654, 4294901760
        %v5265 = vsub.f32 %v1654, %v5264
        %5266 = vmatmul.mubr.f32.gmra.mxu0 %v5265
        %v5267 = vpop.f32.mrf.mxu0
        %v5268 = vadd.f32 %v5168, %v5267
        %v5269 = vpop.f32.mrf.mxu0
        %5270 = vmatprep.mubr.f32.mxu0 0.0
        %v5271 = vand.u32 %v1657, 4294901760
        %v5272 = vsub.f32 %v1657, %v5271
        %5273 = vmatmul.mubr.f32.gmra.mxu0 %v5272
        %v5274 = vpop.f32.mrf.mxu0
        %v5275 = vadd.f32 %v5174, %v5274
        %v5276 = vpop.f32.mrf.mxu0
        %5277 = vmatprep.mubr.f32.mxu0 0.0
        %v5278 = vand.u32 %v1660, 4294901760
        %v5279 = vsub.f32 %v1660, %v5278
        %5280 = vmatmul.mubr.f32.gmra.mxu0 %v5279
        %v5281 = vpop.f32.mrf.mxu0
        %v5282 = vadd.f32 %v5180, %v5281
        %v5283 = vpop.f32.mrf.mxu0
        %5284 = vmatprep.mubr.f32.mxu0 0.0
        %v5285 = vand.u32 %v1663, 4294901760
        %v5286 = vsub.f32 %v1663, %v5285
        %5287 = vmatmul.mubr.f32.gmra.mxu0 %v5286
        %v5288 = vpop.f32.mrf.mxu0
        %v5289 = vadd.f32 %v5186, %v5288
        %v5290 = vpop.f32.mrf.mxu0
        %5291 = vmatprep.mubr.f32.mxu0 0.0
        %v5292 = vand.u32 %v1666, 4294901760
        %v5293 = vsub.f32 %v1666, %v5292
        %5294 = vmatmul.mubr.f32.gmra.mxu0 %v5293
        %v5295 = vpop.f32.mrf.mxu0
        %v5296 = vadd.f32 %v5192, %v5295
        %v5297 = vpop.f32.mrf.mxu0
        %5298 = vdwg.mxu0
        %5299 = vmatprep.subr.mxu0 0.0
        %5300 = vmatpush1.msra.mxu0 0.0
        %5301 = vmatprep.subr.mxu0 0.0
        %5302 = vmatpush1.msra.mxu0 0.0
        %5303 = vmatprep.subr.mxu0 0.0
        %5304 = vmatpush1.msra.mxu0 0.0
        %5305 = vmatprep.subr.mxu0 0.0
        %5306 = vmatpush1.msra.mxu0 0.0
        %5307 = vmatprep.subr.mxu0 0.0
        %5308 = vmatpush1.msra.mxu0 0.0
        %5309 = vmatprep.subr.mxu0 0.0
        %5310 = vmatpush1.msra.mxu0 0.0
        %5311 = vmatprep.subr.mxu0 0.0
        %5312 = vmatpush1.msra.mxu0 0.0
        %5313 = vmatprep.subr.mxu0 0.0
        %5314 = vmatpush1.msra.mxu0 0.0
        %5315 = vmatprep.subr.mxu0 0.0
        %5316 = vmatpush1.msra.mxu0 0.0
        %5317 = vmatprep.subr.mxu0 0.0
        %5318 = vmatpush1.msra.mxu0 0.0
        %5319 = vmatprep.subr.mxu0 0.0
        %5320 = vmatpush1.msra.mxu0 0.0
        %5321 = vmatprep.subr.mxu0 0.0
        %5322 = vmatpush1.msra.mxu0 0.0
        %5323 = vmatprep.subr.mxu0 0.0
        %5324 = vmatpush1.msra.mxu0 0.0
        %5325 = vmatprep.subr.mxu0 0.0
        %5326 = vmatpush1.msra.mxu0 0.0
        %5327 = vmatprep.subr.mxu0 0.0
        %v5328 = vand.u32 %v1647, 4294901760
        %5329 = vmatpush1.msra.mxu0 %v5328
        %5330 = vmatprep.subr.mxu0 0.0
        %v5331 = vand.u32 %v1646, 4294901760
        %5332 = vmatpush1.msra.mxu0 %v5331
        %5333 = vmatprep.subr.mxu0 0.0
        %5334 = vmatpush2.msra.mxu0 0.0
        %5335 = vmatprep.subr.mxu0 0.0
        %5336 = vmatpush2.msra.mxu0 0.0
        %5337 = vmatprep.subr.mxu0 0.0
        %5338 = vmatpush2.msra.mxu0 0.0
        %5339 = vmatprep.subr.mxu0 0.0
        %5340 = vmatpush2.msra.mxu0 0.0
        %5341 = vmatprep.subr.mxu0 0.0
        %5342 = vmatpush2.msra.mxu0 0.0
        %5343 = vmatprep.subr.mxu0 0.0
        %5344 = vmatpush2.msra.mxu0 0.0
        %5345 = vmatprep.subr.mxu0 0.0
        %5346 = vmatpush2.msra.mxu0 0.0
        %5347 = vmatprep.subr.mxu0 0.0
        %5348 = vmatpush2.msra.mxu0 0.0
        %5349 = vmatprep.subr.mxu0 0.0
        %5350 = vmatpush2.msra.mxu0 0.0
        %5351 = vmatprep.subr.mxu0 0.0
        %5352 = vmatpush2.msra.mxu0 0.0
        %5353 = vmatprep.subr.mxu0 0.0
        %5354 = vmatpush2.msra.mxu0 0.0
        %5355 = vmatprep.subr.mxu0 0.0
        %5356 = vmatpush2.msra.mxu0 0.0
        %5357 = vmatprep.subr.mxu0 0.0
        %5358 = vmatpush2.msra.mxu0 0.0
        %5359 = vmatprep.subr.mxu0 0.0
        %5360 = vmatpush2.msra.mxu0 0.0
        %5361 = vmatprep.subr.mxu0 0.0
        %5362 = vmatpush2.msra.mxu0 0.0
        %5363 = vmatprep.subr.mxu0 0.0
        %5364 = vmatpush2.msra.mxu0 0.0
        %5365 = vmatprep.mubr.f32.mxu0 0.0
        %v5366 = vand.u32 %v1654, 4294901760
        %v5367 = vsub.f32 %v1654, %v5366
        %v5368 = vand.u32 %v5367, 4294901760
        %5369 = vmatmul.mubr.f32.gmra.mxu0 %v5368
        %v5370 = vpop.f32.mrf.mxu0
        %v5371 = vadd.f32 %v5268, %v5370
        %v5372 = vpop.f32.mrf.mxu0
        %5373 = vmatprep.mubr.f32.mxu0 0.0
        %v5374 = vand.u32 %v1657, 4294901760
        %v5375 = vsub.f32 %v1657, %v5374
        %v5376 = vand.u32 %v5375, 4294901760
        %5377 = vmatmul.mubr.f32.gmra.mxu0 %v5376
        %v5378 = vpop.f32.mrf.mxu0
        %v5379 = vadd.f32 %v5275, %v5378
        %v5380 = vpop.f32.mrf.mxu0
        %5381 = vmatprep.mubr.f32.mxu0 0.0
        %v5382 = vand.u32 %v1660, 4294901760
        %v5383 = vsub.f32 %v1660, %v5382
        %v5384 = vand.u32 %v5383, 4294901760
        %5385 = vmatmul.mubr.f32.gmra.mxu0 %v5384
        %v5386 = vpop.f32.mrf.mxu0
        %v5387 = vadd.f32 %v5282, %v5386
        %v5388 = vpop.f32.mrf.mxu0
        %5389 = vmatprep.mubr.f32.mxu0 0.0
        %v5390 = vand.u32 %v1663, 4294901760
        %v5391 = vsub.f32 %v1663, %v5390
        %v5392 = vand.u32 %v5391, 4294901760
        %5393 = vmatmul.mubr.f32.gmra.mxu0 %v5392
        %v5394 = vpop.f32.mrf.mxu0
        %v5395 = vadd.f32 %v5289, %v5394
        %v5396 = vpop.f32.mrf.mxu0
        %5397 = vmatprep.mubr.f32.mxu0 0.0
        %v5398 = vand.u32 %v1666, 4294901760
        %v5399 = vsub.f32 %v1666, %v5398
        %v5400 = vand.u32 %v5399, 4294901760
        %5401 = vmatmul.mubr.f32.gmra.mxu0 %v5400
        %v5402 = vpop.f32.mrf.mxu0
        %v5403 = vadd.f32 %v5296, %v5402
        %v5404 = vpop.f32.mrf.mxu0
        %5405 = vdwg.mxu0
        %5406 = vmatprep.subr.mxu0 0.0
        %5407 = vmatpush1.msra.mxu0 0.0
        %5408 = vmatprep.subr.mxu0 0.0
        %5409 = vmatpush1.msra.mxu0 0.0
        %5410 = vmatprep.subr.mxu0 0.0
        %5411 = vmatpush1.msra.mxu0 0.0
        %5412 = vmatprep.subr.mxu0 0.0
        %5413 = vmatpush1.msra.mxu0 0.0
        %5414 = vmatprep.subr.mxu0 0.0
        %5415 = vmatpush1.msra.mxu0 0.0
        %5416 = vmatprep.subr.mxu0 0.0
        %5417 = vmatpush1.msra.mxu0 0.0
        %5418 = vmatprep.subr.mxu0 0.0
        %5419 = vmatpush1.msra.mxu0 0.0
        %5420 = vmatprep.subr.mxu0 0.0
        %5421 = vmatpush1.msra.mxu0 0.0
        %5422 = vmatprep.subr.mxu0 0.0
        %5423 = vmatpush1.msra.mxu0 0.0
        %5424 = vmatprep.subr.mxu0 0.0
        %5425 = vmatpush1.msra.mxu0 0.0
        %5426 = vmatprep.subr.mxu0 0.0
        %5427 = vmatpush1.msra.mxu0 0.0
        %5428 = vmatprep.subr.mxu0 0.0
        %5429 = vmatpush1.msra.mxu0 0.0
        %5430 = vmatprep.subr.mxu0 0.0
        %5431 = vmatpush1.msra.mxu0 0.0
        %5432 = vmatprep.subr.mxu0 0.0
        %5433 = vmatpush1.msra.mxu0 0.0
        %5434 = vmatprep.subr.mxu0 0.0
        %v5435 = vand.u32 %v1647, 4294901760
        %v5436 = vsub.f32 %v1647, %v5435
        %v5437 = vand.u32 %v5436, 4294901760
        %5438 = vmatpush1.msra.mxu0 %v5437
        %5439 = vmatprep.subr.mxu0 0.0
        %v5440 = vand.u32 %v1646, 4294901760
        %v5441 = vsub.f32 %v1646, %v5440
        %v5442 = vand.u32 %v5441, 4294901760
        %5443 = vmatpush1.msra.mxu0 %v5442
        %5444 = vmatprep.subr.mxu0 0.0
        %5445 = vmatpush2.msra.mxu0 0.0
        %5446 = vmatprep.subr.mxu0 0.0
        %5447 = vmatpush2.msra.mxu0 0.0
        %5448 = vmatprep.subr.mxu0 0.0
        %5449 = vmatpush2.msra.mxu0 0.0
        %5450 = vmatprep.subr.mxu0 0.0
        %5451 = vmatpush2.msra.mxu0 0.0
        %5452 = vmatprep.subr.mxu0 0.0
        %5453 = vmatpush2.msra.mxu0 0.0
        %5454 = vmatprep.subr.mxu0 0.0
        %5455 = vmatpush2.msra.mxu0 0.0
        %5456 = vmatprep.subr.mxu0 0.0
        %5457 = vmatpush2.msra.mxu0 0.0
        %5458 = vmatprep.subr.mxu0 0.0
        %5459 = vmatpush2.msra.mxu0 0.0
        %5460 = vmatprep.subr.mxu0 0.0
        %5461 = vmatpush2.msra.mxu0 0.0
        %5462 = vmatprep.subr.mxu0 0.0
        %5463 = vmatpush2.msra.mxu0 0.0
        %5464 = vmatprep.subr.mxu0 0.0
        %5465 = vmatpush2.msra.mxu0 0.0
        %5466 = vmatprep.subr.mxu0 0.0
        %5467 = vmatpush2.msra.mxu0 0.0
        %5468 = vmatprep.subr.mxu0 0.0
        %5469 = vmatpush2.msra.mxu0 0.0
        %5470 = vmatprep.subr.mxu0 0.0
        %5471 = vmatpush2.msra.mxu0 0.0
        %5472 = vmatprep.subr.mxu0 0.0
        %5473 = vmatpush2.msra.mxu0 0.0
        %5474 = vmatprep.subr.mxu0 0.0
        %5475 = vmatpush2.msra.mxu0 0.0
        %5476 = vmatprep.mubr.f32.mxu0 0.0
        %v5477 = vand.u32 %v1654, 4294901760
        %5478 = vmatmul.mubr.f32.gmra.mxu0 %v5477
        %v5479 = vpop.f32.mrf.mxu0
        %v5480 = vadd.f32 %v5371, %v5479
        %v5481 = vpop.f32.mrf.mxu0
        %5482 = vmatprep.mubr.f32.mxu0 0.0
        %v5483 = vand.u32 %v1657, 4294901760
        %5484 = vmatmul.mubr.f32.gmra.mxu0 %v5483
        %v5485 = vpop.f32.mrf.mxu0
        %v5486 = vadd.f32 %v5379, %v5485
        %v5487 = vpop.f32.mrf.mxu0
        %5488 = vmatprep.mubr.f32.mxu0 0.0
        %v5489 = vand.u32 %v1660, 4294901760
        %5490 = vmatmul.mubr.f32.gmra.mxu0 %v5489
        %v5491 = vpop.f32.mrf.mxu0
        %v5492 = vadd.f32 %v5387, %v5491
        %v5493 = vpop.f32.mrf.mxu0
        %5494 = vmatprep.mubr.f32.mxu0 0.0
        %v5495 = vand.u32 %v1663, 4294901760
        %5496 = vmatmul.mubr.f32.gmra.mxu0 %v5495
        %v5497 = vpop.f32.mrf.mxu0
        %v5498 = vadd.f32 %v5395, %v5497
        %v5499 = vpop.f32.mrf.mxu0
        %5500 = vmatprep.mubr.f32.mxu0 0.0
        %v5501 = vand.u32 %v1666, 4294901760
        %5502 = vmatmul.mubr.f32.gmra.mxu0 %v5501
        %v5503 = vpop.f32.mrf.mxu0
        %v5504 = vadd.f32 %v5403, %v5503
        %v5505 = vpop.f32.mrf.mxu0
        %5506 = vdwg.mxu0
        %5507 = vmatprep.subr.mxu0 0.0
        %5508 = vmatpush1.msra.mxu0 0.0
        %5509 = vmatprep.subr.mxu0 0.0
        %5510 = vmatpush1.msra.mxu0 0.0
        %5511 = vmatprep.subr.mxu0 0.0
        %5512 = vmatpush1.msra.mxu0 0.0
        %5513 = vmatprep.subr.mxu0 0.0
        %5514 = vmatpush1.msra.mxu0 0.0
        %5515 = vmatprep.subr.mxu0 0.0
        %5516 = vmatpush1.msra.mxu0 0.0
        %5517 = vmatprep.subr.mxu0 0.0
        %5518 = vmatpush1.msra.mxu0 0.0
        %5519 = vmatprep.subr.mxu0 0.0
        %5520 = vmatpush1.msra.mxu0 0.0
        %5521 = vmatprep.subr.mxu0 0.0
        %5522 = vmatpush1.msra.mxu0 0.0
        %5523 = vmatprep.subr.mxu0 0.0
        %5524 = vmatpush1.msra.mxu0 0.0
        %5525 = vmatprep.subr.mxu0 0.0
        %5526 = vmatpush1.msra.mxu0 0.0
        %5527 = vmatprep.subr.mxu0 0.0
        %5528 = vmatpush1.msra.mxu0 0.0
        %5529 = vmatprep.subr.mxu0 0.0
        %5530 = vmatpush1.msra.mxu0 0.0
        %5531 = vmatprep.subr.mxu0 0.0
        %5532 = vmatpush1.msra.mxu0 0.0
        %5533 = vmatprep.subr.mxu0 0.0
        %5534 = vmatpush1.msra.mxu0 0.0
        %5535 = vmatprep.subr.mxu0 0.0
        %v5536 = vand.u32 %v1647, 4294901760
        %5537 = vmatpush1.msra.mxu0 %v5536
        %5538 = vmatprep.subr.mxu0 0.0
        %v5539 = vand.u32 %v1646, 4294901760
        %5540 = vmatpush1.msra.mxu0 %v5539
        %5541 = vmatprep.subr.mxu0 0.0
        %5542 = vmatpush2.msra.mxu0 0.0
        %5543 = vmatprep.subr.mxu0 0.0
        %5544 = vmatpush2.msra.mxu0 0.0
        %5545 = vmatprep.subr.mxu0 0.0
        %5546 = vmatpush2.msra.mxu0 0.0
        %5547 = vmatprep.subr.mxu0 0.0
        %5548 = vmatpush2.msra.mxu0 0.0
        %5549 = vmatprep.subr.mxu0 0.0
        %5550 = vmatpush2.msra.mxu0 0.0
        %5551 = vmatprep.subr.mxu0 0.0
        %5552 = vmatpush2.msra.mxu0 0.0
        %5553 = vmatprep.subr.mxu0 0.0
        %5554 = vmatpush2.msra.mxu0 0.0
        %5555 = vmatprep.subr.mxu0 0.0
        %5556 = vmatpush2.msra.mxu0 0.0
        %5557 = vmatprep.subr.mxu0 0.0
        %5558 = vmatpush2.msra.mxu0 0.0
        %5559 = vmatprep.subr.mxu0 0.0
        %5560 = vmatpush2.msra.mxu0 0.0
        %5561 = vmatprep.subr.mxu0 0.0
        %5562 = vmatpush2.msra.mxu0 0.0
        %5563 = vmatprep.subr.mxu0 0.0
        %5564 = vmatpush2.msra.mxu0 0.0
        %5565 = vmatprep.subr.mxu0 0.0
        %5566 = vmatpush2.msra.mxu0 0.0
        %5567 = vmatprep.subr.mxu0 0.0
        %5568 = vmatpush2.msra.mxu0 0.0
        %5569 = vmatprep.subr.mxu0 0.0
        %5570 = vmatpush2.msra.mxu0 0.0
        %5571 = vmatprep.subr.mxu0 0.0
        %5572 = vmatpush2.msra.mxu0 0.0
        %5573 = vmatprep.mubr.f32.mxu0 0.0
        %v5574 = vand.u32 %v1654, 4294901760
        %5575 = vmatmul.mubr.f32.gmra.mxu0 %v5574
        %v5576 = vpop.f32.mrf.mxu0
        %v5577 = vadd.f32 %v5480, %v5576
        %v5578 = vpop.f32.mrf.mxu0
        %5579 = vmatprep.mubr.f32.mxu0 0.0
        %v5580 = vand.u32 %v1657, 4294901760
        %5581 = vmatmul.mubr.f32.gmra.mxu0 %v5580
        %v5582 = vpop.f32.mrf.mxu0
        %v5583 = vadd.f32 %v5486, %v5582
        %v5584 = vpop.f32.mrf.mxu0
        %5585 = vmatprep.mubr.f32.mxu0 0.0
        %v5586 = vand.u32 %v1660, 4294901760
        %5587 = vmatmul.mubr.f32.gmra.mxu0 %v5586
        %v5588 = vpop.f32.mrf.mxu0
        %v5589 = vadd.f32 %v5492, %v5588
        %v5590 = vpop.f32.mrf.mxu0
        %5591 = vmatprep.mubr.f32.mxu0 0.0
        %v5592 = vand.u32 %v1663, 4294901760
        %5593 = vmatmul.mubr.f32.gmra.mxu0 %v5592
        %v5594 = vpop.f32.mrf.mxu0
        %v5595 = vadd.f32 %v5498, %v5594
        %v5596 = vpop.f32.mrf.mxu0
        %5597 = vmatprep.mubr.f32.mxu0 0.0
        %v5598 = vand.u32 %v1666, 4294901760
        %5599 = vmatmul.mubr.f32.gmra.mxu0 %v5598
        %v5600 = vpop.f32.mrf.mxu0
        %v5601 = vadd.f32 %v5504, %v5600
        %v5602 = vpop.f32.mrf.mxu0
        %5603 = vdwg.mxu0
        %5605 = vset.pattern.permute.xlu0 0
        %5606 = vperm.xlu0 %5605, %v567
        %v5607 = vpop.permute.xlu0 %5606
        %5610 = vset.pattern.permute.xlu0 0
        %5611 = vperm.xlu0 %5610, %v568
        %v5612 = vpop.permute.xlu0 %5611
        %5615 = vset.pattern.permute.xlu0 0
        %5616 = vperm.xlu0 %5615, %v569
        %v5617 = vpop.permute.xlu0 %5616
        %5620 = vset.pattern.permute.xlu0 0
        %5621 = vperm.xlu0 %5620, %v570
        %v5622 = vpop.permute.xlu0 %5621
        %v5624 = vadd.f32 %v5577, %v5607
        %v5625 = vadd.f32 %v5583, %v5612
        %v5626 = vadd.f32 %v5589, %v5617
        %v5627 = vadd.f32 %v5595, %v5622
        %5629 = vset.pattern.permute.xlu0 0
        %5630 = vperm.xlu0 %5629, %v576
        %v5631 = vpop.permute.xlu0 %5630
        %v5633 = vadd.f32 %v5601, %v5631
        %v5634 = vmax.f32 %v2328, %v2989
        %v5635 = vmax.f32 %v5634, %v3650
        %v5636 = vmax.f32 %v5635, %v4311
        %v5637 = vmax.f32 %v5636, %v4972
        %v5638 = vmax.f32 %v5637, %v5633
        %v5639 = vsub.f32 %v2328, %v5638
        %v5640 = vmul.f32 %v5639, 1.442695
        %v5641 = vpow.pop %v5640
        %v5642 = vsub.f32 %v2989, %v5638
        %v5643 = vmul.f32 %v5642, 1.442695
        %v5644 = vpow.pop %v5643
        %v5645 = vsub.f32 %v3650, %v5638
        %v5646 = vmul.f32 %v5645, 1.442695
        %v5647 = vpow.pop %v5646
        %v5648 = vsub.f32 %v4311, %v5638
        %v5649 = vmul.f32 %v5648, 1.442695
        %v5650 = vpow.pop %v5649
        %v5651 = vsub.f32 %v4972, %v5638
        %v5652 = vmul.f32 %v5651, 1.442695
        %v5653 = vpow.pop %v5652
        %v5654 = vsub.f32 %v5633, %v5638
        %v5655 = vmul.f32 %v5654, 1.442695
        %v5656 = vpow.pop %v5655
        %v5657 = vadd.f32 %v5641, %v5644
        %v5658 = vadd.f32 %v5657, %v5647
        %v5659 = vadd.f32 %v5658, %v5650
        %v5660 = vadd.f32 %v5659, %v5653
        %v5661 = vadd.f32 %v5660, %v5656
        %v5662 = vrcp.pop %v5661
        %v5663 = vmul.f32 1.0, %v5662
        %v5664 = vmul.f32 %v5641, %v5663
        %v5665 = vmul.f32 %v5644, %v5663
        %v5666 = vmul.f32 %v5647, %v5663
        %v5667 = vmul.f32 %v5650, %v5663
        %v5668 = vmul.f32 %v5653, %v5663
        %v5669 = vmul.f32 %v5656, %v5663
        %v5671 = vrot.slane %v5665, 4
        %v5674 = vrot.slane %v5667, 4
        %v5677 = vrot.slane %v5669, 4
        %vm5679 = vcmask 1043456
        %v5680 = vsel %vm5679, %v5664, %v5671
        %v5681 = vsel %vm5679, %v5666, %v5674
        %v5682 = vsel %vm5679, %v5668, %v5677
        %5683 = vst [vmem:[%s524] sm:$0xff] %v5680
        %5684 = vst [vmem:[%s524 + $0x8] sm:$0xff] %v5681
        %5685 = vst [vmem:[%s524 + $0x10] sm:$0xff] %v5682
        %v5686 = vlaneseq
        %v5687 = vshrl.u32 %v5686, 7
        %v5688 = vsub.s32 0, %v5687
        %v5689 = vrot.slane %v5664, %v5688
        %v5690 = vmul.f32 %v5689, %v2319
        %v5691 = vlaneseq
        %v5692 = vshrl.u32 %v5691, 7
        %v5693 = vsub.s32 0, %v5692
        %v5694 = vrot.slane %v5665, %v5693
        %v5695 = vmul.f32 %v5694, %v2980
        %v5696 = vadd.f32 %v5690, %v5695
        %v5697 = vlaneseq
        %v5698 = vshrl.u32 %v5697, 7
        %v5699 = vsub.s32 0, %v5698
        %v5700 = vrot.slane %v5666, %v5699
        %v5701 = vmul.f32 %v5700, %v3641
        %v5702 = vadd.f32 %v5696, %v5701
        %v5703 = vlaneseq
        %v5704 = vshrl.u32 %v5703, 7
        %v5705 = vsub.s32 0, %v5704
        %v5706 = vrot.slane %v5667, %v5705
        %v5707 = vmul.f32 %v5706, %v4302
        %v5708 = vadd.f32 %v5702, %v5707
        %v5709 = vlaneseq
        %v5710 = vshrl.u32 %v5709, 7
        %v5711 = vsub.s32 0, %v5710
        %v5712 = vrot.slane %v5668, %v5711
        %v5713 = vmul.f32 %v5712, %v4963
        %v5714 = vadd.f32 %v5708, %v5713
        %v5715 = vlaneseq
        %v5716 = vshrl.u32 %v5715, 7
        %v5717 = vsub.s32 0, %v5716
        %v5718 = vrot.slane %v5669, %v5717
        %v5719 = vmul.f32 %v5718, %v5624
        %v5720 = vadd.f32 %v5714, %v5719
        %v5721 = vlaneseq
        %v5722 = vshrl.u32 %v5721, 7
        %v5723 = vsub.s32 1, %v5722
        %v5724 = vrot.slane %v5664, %v5723
        %v5725 = vmul.f32 %v5724, %v2320
        %v5726 = vlaneseq
        %v5727 = vshrl.u32 %v5726, 7
        %v5728 = vsub.s32 1, %v5727
        %v5729 = vrot.slane %v5665, %v5728
        %v5730 = vmul.f32 %v5729, %v2981
        %v5731 = vadd.f32 %v5725, %v5730
        %v5732 = vlaneseq
        %v5733 = vshrl.u32 %v5732, 7
        %v5734 = vsub.s32 1, %v5733
        %v5735 = vrot.slane %v5666, %v5734
        %v5736 = vmul.f32 %v5735, %v3642
        %v5737 = vadd.f32 %v5731, %v5736
        %v5738 = vlaneseq
        %v5739 = vshrl.u32 %v5738, 7
        %v5740 = vsub.s32 1, %v5739
        %v5741 = vrot.slane %v5667, %v5740
        %v5742 = vmul.f32 %v5741, %v4303
        %v5743 = vadd.f32 %v5737, %v5742
        %v5744 = vlaneseq
        %v5745 = vshrl.u32 %v5744, 7
        %v5746 = vsub.s32 1, %v5745
        %v5747 = vrot.slane %v5668, %v5746
        %v5748 = vmul.f32 %v5747, %v4964
        %v5749 = vadd.f32 %v5743, %v5748
        %v5750 = vlaneseq
        %v5751 = vshrl.u32 %v5750, 7
        %v5752 = vsub.s32 1, %v5751
        %v5753 = vrot.slane %v5669, %v5752
        %v5754 = vmul.f32 %v5753, %v5625
        %v5755 = vadd.f32 %v5749, %v5754
        %v5756 = vlaneseq
        %v5757 = vshrl.u32 %v5756, 7
        %v5758 = vsub.s32 2, %v5757
        %v5759 = vrot.slane %v5664, %v5758
        %v5760 = vmul.f32 %v5759, %v2321
        %v5761 = vlaneseq
        %v5762 = vshrl.u32 %v5761, 7
        %v5763 = vsub.s32 2, %v5762
        %v5764 = vrot.slane %v5665, %v5763
        %v5765 = vmul.f32 %v5764, %v2982
        %v5766 = vadd.f32 %v5760, %v5765
        %v5767 = vlaneseq
        %v5768 = vshrl.u32 %v5767, 7
        %v5769 = vsub.s32 2, %v5768
        %v5770 = vrot.slane %v5666, %v5769
        %v5771 = vmul.f32 %v5770, %v3643
        %v5772 = vadd.f32 %v5766, %v5771
        %v5773 = vlaneseq
        %v5774 = vshrl.u32 %v5773, 7
        %v5775 = vsub.s32 2, %v5774
        %v5776 = vrot.slane %v5667, %v5775
        %v5777 = vmul.f32 %v5776, %v4304
        %v5778 = vadd.f32 %v5772, %v5777
        %v5779 = vlaneseq
        %v5780 = vshrl.u32 %v5779, 7
        %v5781 = vsub.s32 2, %v5780
        %v5782 = vrot.slane %v5668, %v5781
        %v5783 = vmul.f32 %v5782, %v4965
        %v5784 = vadd.f32 %v5778, %v5783
        %v5785 = vlaneseq
        %v5786 = vshrl.u32 %v5785, 7
        %v5787 = vsub.s32 2, %v5786
        %v5788 = vrot.slane %v5669, %v5787
        %v5789 = vmul.f32 %v5788, %v5626
        %v5790 = vadd.f32 %v5784, %v5789
        %v5791 = vlaneseq
        %v5792 = vshrl.u32 %v5791, 7
        %v5793 = vsub.s32 3, %v5792
        %v5794 = vrot.slane %v5664, %v5793
        %v5795 = vmul.f32 %v5794, %v2322
        %v5796 = vlaneseq
        %v5797 = vshrl.u32 %v5796, 7
        %v5798 = vsub.s32 3, %v5797
        %v5799 = vrot.slane %v5665, %v5798
        %v5800 = vmul.f32 %v5799, %v2983
        %v5801 = vadd.f32 %v5795, %v5800
        %v5802 = vlaneseq
        %v5803 = vshrl.u32 %v5802, 7
        %v5804 = vsub.s32 3, %v5803
        %v5805 = vrot.slane %v5666, %v5804
        %v5806 = vmul.f32 %v5805, %v3644
        %v5807 = vadd.f32 %v5801, %v5806
        %v5808 = vlaneseq
        %v5809 = vshrl.u32 %v5808, 7
        %v5810 = vsub.s32 3, %v5809
        %v5811 = vrot.slane %v5667, %v5810
        %v5812 = vmul.f32 %v5811, %v4305
        %v5813 = vadd.f32 %v5807, %v5812
        %v5814 = vlaneseq
        %v5815 = vshrl.u32 %v5814, 7
        %v5816 = vsub.s32 3, %v5815
        %v5817 = vrot.slane %v5668, %v5816
        %v5818 = vmul.f32 %v5817, %v4966
        %v5819 = vadd.f32 %v5813, %v5818
        %v5820 = vlaneseq
        %v5821 = vshrl.u32 %v5820, 7
        %v5822 = vsub.s32 3, %v5821
        %v5823 = vrot.slane %v5669, %v5822
        %v5824 = vmul.f32 %v5823, %v5627
        %v5825 = vadd.f32 %v5819, %v5824
        %v5826 = vld [vmem:[%s5] sm:$0xff]
        %v5827 = vld [vmem:[%s5 + $0x8] sm:$0xff]
        %v5828 = vld [vmem:[%s6] sm:$0xff]
        %v5829 = vld [vmem:[%s6 + $0x8] sm:$0xff]
        %5831 = vset.pattern.permute.xlu0 0
        %5832 = vperm.xlu0 %5831, %v5828
        %v5833 = vpop.permute.xlu0 %5832
        %5836 = vset.pattern.permute.xlu0 0
        %5837 = vperm.xlu0 %5836, %v5829
        %v5838 = vpop.permute.xlu0 %5837
        %vm5840 = vcmask 261120
        %v5842 = vsel %vm5840, %v5826, 0
        %v5845 = vsel %vm5840, %v5827, 0
        %5847 = vmatprep.subr.mxu0 0.0
        %5848 = vmatpush1.msra.mxu0 0.0
        %5849 = vmatprep.subr.mxu0 0.0
        %5850 = vmatpush1.msra.mxu0 0.0
        %5851 = vmatprep.subr.mxu0 0.0
        %5852 = vmatpush1.msra.mxu0 0.0
        %5853 = vmatprep.subr.mxu0 0.0
        %5854 = vmatpush1.msra.mxu0 0.0
        %5855 = vmatprep.subr.mxu0 0.0
        %5856 = vmatpush1.msra.mxu0 0.0
        %5857 = vmatprep.subr.mxu0 0.0
        %5858 = vmatpush1.msra.mxu0 0.0
        %5859 = vmatprep.subr.mxu0 0.0
        %5860 = vmatpush1.msra.mxu0 0.0
        %5861 = vmatprep.subr.mxu0 0.0
        %5862 = vmatpush1.msra.mxu0 0.0
        %5863 = vmatprep.subr.mxu0 0.0
        %5864 = vmatpush1.msra.mxu0 0.0
        %5865 = vmatprep.subr.mxu0 0.0
        %5866 = vmatpush1.msra.mxu0 0.0
        %5867 = vmatprep.subr.mxu0 0.0
        %5868 = vmatpush1.msra.mxu0 0.0
        %5869 = vmatprep.subr.mxu0 0.0
        %5870 = vmatpush1.msra.mxu0 0.0
        %5871 = vmatprep.subr.mxu0 0.0
        %v5872 = vand.u32 %v5825, 4294901760
        %5873 = vmatpush1.msra.mxu0 %v5872
        %5874 = vmatprep.subr.mxu0 0.0
        %v5875 = vand.u32 %v5790, 4294901760
        %5876 = vmatpush1.msra.mxu0 %v5875
        %5877 = vmatprep.subr.mxu0 0.0
        %v5878 = vand.u32 %v5755, 4294901760
        %5879 = vmatpush1.msra.mxu0 %v5878
        %5880 = vmatprep.subr.mxu0 0.0
        %v5881 = vand.u32 %v5720, 4294901760
        %5882 = vmatpush1.msra.mxu0 %v5881
        %5883 = vmatprep.subr.mxu0 0.0
        %5884 = vmatpush2.msra.mxu0 0.0
        %5885 = vmatprep.subr.mxu0 0.0
        %5886 = vmatpush2.msra.mxu0 0.0
        %5887 = vmatprep.subr.mxu0 0.0
        %5888 = vmatpush2.msra.mxu0 0.0
        %5889 = vmatprep.subr.mxu0 0.0
        %5890 = vmatpush2.msra.mxu0 0.0
        %5891 = vmatprep.subr.mxu0 0.0
        %5892 = vmatpush2.msra.mxu0 0.0
        %5893 = vmatprep.subr.mxu0 0.0
        %5894 = vmatpush2.msra.mxu0 0.0
        %5895 = vmatprep.subr.mxu0 0.0
        %5896 = vmatpush2.msra.mxu0 0.0
        %5897 = vmatprep.subr.mxu0 0.0
        %5898 = vmatpush2.msra.mxu0 0.0
        %5899 = vmatprep.subr.mxu0 0.0
        %5900 = vmatpush2.msra.mxu0 0.0
        %5901 = vmatprep.subr.mxu0 0.0
        %5902 = vmatpush2.msra.mxu0 0.0
        %5903 = vmatprep.subr.mxu0 0.0
        %5904 = vmatpush2.msra.mxu0 0.0
        %5905 = vmatprep.subr.mxu0 0.0
        %5906 = vmatpush2.msra.mxu0 0.0
        %5907 = vmatprep.subr.mxu0 0.0
        %5908 = vmatpush2.msra.mxu0 0.0
        %5909 = vmatprep.subr.mxu0 0.0
        %5910 = vmatpush2.msra.mxu0 0.0
        %5911 = vmatprep.subr.mxu0 0.0
        %5912 = vmatpush2.msra.mxu0 0.0
        %5913 = vmatprep.subr.mxu0 0.0
        %5914 = vmatpush2.msra.mxu0 0.0
        %5915 = vmatprep.mubr.f32.mxu0 0.0
        %v5916 = vand.u32 %v5842, 4294901760
        %v5917 = vsub.f32 %v5842, %v5916
        %v5918 = vand.u32 %v5917, 4294901760
        %v5919 = vsub.f32 %v5917, %v5918
        %v5920 = vand.u32 %v5919, 4294901760
        %5921 = vmatmul.mubr.f32.gmra.mxu0 %v5920
        %v5922 = vpop.f32.mrf.mxu0
        %v5923 = vadd.f32 %v5833, %v5922
        %v5924 = vpop.f32.mrf.mxu0
        %5925 = vmatprep.mubr.f32.mxu0 0.0
        %v5926 = vand.u32 %v5845, 4294901760
        %v5927 = vsub.f32 %v5845, %v5926
        %v5928 = vand.u32 %v5927, 4294901760
        %v5929 = vsub.f32 %v5927, %v5928
        %v5930 = vand.u32 %v5929, 4294901760
        %5931 = vmatmul.mubr.f32.gmra.mxu0 %v5930
        %v5932 = vpop.f32.mrf.mxu0
        %v5933 = vadd.f32 %v5838, %v5932
        %v5934 = vpop.f32.mrf.mxu0
        %5935 = vdwg.mxu0
        %5936 = vmatprep.subr.mxu0 0.0
        %5937 = vmatpush1.msra.mxu0 0.0
        %5938 = vmatprep.subr.mxu0 0.0
        %5939 = vmatpush1.msra.mxu0 0.0
        %5940 = vmatprep.subr.mxu0 0.0
        %5941 = vmatpush1.msra.mxu0 0.0
        %5942 = vmatprep.subr.mxu0 0.0
        %5943 = vmatpush1.msra.mxu0 0.0
        %5944 = vmatprep.subr.mxu0 0.0
        %5945 = vmatpush1.msra.mxu0 0.0
        %5946 = vmatprep.subr.mxu0 0.0
        %5947 = vmatpush1.msra.mxu0 0.0
        %5948 = vmatprep.subr.mxu0 0.0
        %5949 = vmatpush1.msra.mxu0 0.0
        %5950 = vmatprep.subr.mxu0 0.0
        %5951 = vmatpush1.msra.mxu0 0.0
        %5952 = vmatprep.subr.mxu0 0.0
        %5953 = vmatpush1.msra.mxu0 0.0
        %5954 = vmatprep.subr.mxu0 0.0
        %5955 = vmatpush1.msra.mxu0 0.0
        %5956 = vmatprep.subr.mxu0 0.0
        %5957 = vmatpush1.msra.mxu0 0.0
        %5958 = vmatprep.subr.mxu0 0.0
        %5959 = vmatpush1.msra.mxu0 0.0
        %5960 = vmatprep.subr.mxu0 0.0
        %v5961 = vand.u32 %v5825, 4294901760
        %v5962 = vsub.f32 %v5825, %v5961
        %v5963 = vand.u32 %v5962, 4294901760
        %v5964 = vsub.f32 %v5962, %v5963
        %v5965 = vand.u32 %v5964, 4294901760
        %5966 = vmatpush1.msra.mxu0 %v5965
        %5967 = vmatprep.subr.mxu0 0.0
        %v5968 = vand.u32 %v5790, 4294901760
        %v5969 = vsub.f32 %v5790, %v5968
        %v5970 = vand.u32 %v5969, 4294901760
        %v5971 = vsub.f32 %v5969, %v5970
        %v5972 = vand.u32 %v5971, 4294901760
        %5973 = vmatpush1.msra.mxu0 %v5972
        %5974 = vmatprep.subr.mxu0 0.0
        %v5975 = vand.u32 %v5755, 4294901760
        %v5976 = vsub.f32 %v5755, %v5975
        %v5977 = vand.u32 %v5976, 4294901760
        %v5978 = vsub.f32 %v5976, %v5977
        %v5979 = vand.u32 %v5978, 4294901760
        %5980 = vmatpush1.msra.mxu0 %v5979
        %5981 = vmatprep.subr.mxu0 0.0
        %v5982 = vand.u32 %v5720, 4294901760
        %v5983 = vsub.f32 %v5720, %v5982
        %v5984 = vand.u32 %v5983, 4294901760
        %v5985 = vsub.f32 %v5983, %v5984
        %v5986 = vand.u32 %v5985, 4294901760
        %5987 = vmatpush1.msra.mxu0 %v5986
        %5988 = vmatprep.subr.mxu0 0.0
        %5989 = vmatpush2.msra.mxu0 0.0
        %5990 = vmatprep.subr.mxu0 0.0
        %5991 = vmatpush2.msra.mxu0 0.0
        %5992 = vmatprep.subr.mxu0 0.0
        %5993 = vmatpush2.msra.mxu0 0.0
        %5994 = vmatprep.subr.mxu0 0.0
        %5995 = vmatpush2.msra.mxu0 0.0
        %5996 = vmatprep.subr.mxu0 0.0
        %5997 = vmatpush2.msra.mxu0 0.0
        %5998 = vmatprep.subr.mxu0 0.0
        %5999 = vmatpush2.msra.mxu0 0.0
        %6000 = vmatprep.subr.mxu0 0.0
        %6001 = vmatpush2.msra.mxu0 0.0
        %6002 = vmatprep.subr.mxu0 0.0
        %6003 = vmatpush2.msra.mxu0 0.0
        %6004 = vmatprep.subr.mxu0 0.0
        %6005 = vmatpush2.msra.mxu0 0.0
        %6006 = vmatprep.subr.mxu0 0.0
        %6007 = vmatpush2.msra.mxu0 0.0
        %6008 = vmatprep.subr.mxu0 0.0
        %6009 = vmatpush2.msra.mxu0 0.0
        %6010 = vmatprep.subr.mxu0 0.0
        %6011 = vmatpush2.msra.mxu0 0.0
        %6012 = vmatprep.subr.mxu0 0.0
        %6013 = vmatpush2.msra.mxu0 0.0
        %6014 = vmatprep.subr.mxu0 0.0
        %6015 = vmatpush2.msra.mxu0 0.0
        %6016 = vmatprep.subr.mxu0 0.0
        %6017 = vmatpush2.msra.mxu0 0.0
        %6018 = vmatprep.subr.mxu0 0.0
        %6019 = vmatpush2.msra.mxu0 0.0
        %6020 = vmatprep.mubr.f32.mxu0 0.0
        %v6021 = vand.u32 %v5842, 4294901760
        %6022 = vmatmul.mubr.f32.gmra.mxu0 %v6021
        %v6023 = vpop.f32.mrf.mxu0
        %v6024 = vadd.f32 %v5923, %v6023
        %v6025 = vpop.f32.mrf.mxu0
        %6026 = vmatprep.mubr.f32.mxu0 0.0
        %v6027 = vand.u32 %v5845, 4294901760
        %6028 = vmatmul.mubr.f32.gmra.mxu0 %v6027
        %v6029 = vpop.f32.mrf.mxu0
        %v6030 = vadd.f32 %v5933, %v6029
        %v6031 = vpop.f32.mrf.mxu0
        %6032 = vdwg.mxu0
        %6033 = vmatprep.subr.mxu0 0.0
        %6034 = vmatpush1.msra.mxu0 0.0
        %6035 = vmatprep.subr.mxu0 0.0
        %6036 = vmatpush1.msra.mxu0 0.0
        %6037 = vmatprep.subr.mxu0 0.0
        %6038 = vmatpush1.msra.mxu0 0.0
        %6039 = vmatprep.subr.mxu0 0.0
        %6040 = vmatpush1.msra.mxu0 0.0
        %6041 = vmatprep.subr.mxu0 0.0
        %6042 = vmatpush1.msra.mxu0 0.0
        %6043 = vmatprep.subr.mxu0 0.0
        %6044 = vmatpush1.msra.mxu0 0.0
        %6045 = vmatprep.subr.mxu0 0.0
        %6046 = vmatpush1.msra.mxu0 0.0
        %6047 = vmatprep.subr.mxu0 0.0
        %6048 = vmatpush1.msra.mxu0 0.0
        %6049 = vmatprep.subr.mxu0 0.0
        %6050 = vmatpush1.msra.mxu0 0.0
        %6051 = vmatprep.subr.mxu0 0.0
        %6052 = vmatpush1.msra.mxu0 0.0
        %6053 = vmatprep.subr.mxu0 0.0
        %6054 = vmatpush1.msra.mxu0 0.0
        %6055 = vmatprep.subr.mxu0 0.0
        %6056 = vmatpush1.msra.mxu0 0.0
        %6057 = vmatprep.subr.mxu0 0.0
        %v6058 = vand.u32 %v5825, 4294901760
        %v6059 = vsub.f32 %v5825, %v6058
        %6060 = vmatpush1.msra.mxu0 %v6059
        %6061 = vmatprep.subr.mxu0 0.0
        %v6062 = vand.u32 %v5790, 4294901760
        %v6063 = vsub.f32 %v5790, %v6062
        %6064 = vmatpush1.msra.mxu0 %v6063
        %6065 = vmatprep.subr.mxu0 0.0
        %v6066 = vand.u32 %v5755, 4294901760
        %v6067 = vsub.f32 %v5755, %v6066
        %6068 = vmatpush1.msra.mxu0 %v6067
        %6069 = vmatprep.subr.mxu0 0.0
        %v6070 = vand.u32 %v5720, 4294901760
        %v6071 = vsub.f32 %v5720, %v6070
        %6072 = vmatpush1.msra.mxu0 %v6071
        %6073 = vmatprep.subr.mxu0 0.0
        %6074 = vmatpush2.msra.mxu0 0.0
        %6075 = vmatprep.subr.mxu0 0.0
        %6076 = vmatpush2.msra.mxu0 0.0
        %6077 = vmatprep.subr.mxu0 0.0
        %6078 = vmatpush2.msra.mxu0 0.0
        %6079 = vmatprep.subr.mxu0 0.0
        %6080 = vmatpush2.msra.mxu0 0.0
        %6081 = vmatprep.subr.mxu0 0.0
        %6082 = vmatpush2.msra.mxu0 0.0
        %6083 = vmatprep.subr.mxu0 0.0
        %6084 = vmatpush2.msra.mxu0 0.0
        %6085 = vmatprep.subr.mxu0 0.0
        %6086 = vmatpush2.msra.mxu0 0.0
        %6087 = vmatprep.subr.mxu0 0.0
        %6088 = vmatpush2.msra.mxu0 0.0
        %6089 = vmatprep.subr.mxu0 0.0
        %6090 = vmatpush2.msra.mxu0 0.0
        %6091 = vmatprep.subr.mxu0 0.0
        %6092 = vmatpush2.msra.mxu0 0.0
        %6093 = vmatprep.subr.mxu0 0.0
        %6094 = vmatpush2.msra.mxu0 0.0
        %6095 = vmatprep.subr.mxu0 0.0
        %6096 = vmatpush2.msra.mxu0 0.0
        %6097 = vmatprep.subr.mxu0 0.0
        %6098 = vmatpush2.msra.mxu0 0.0
        %6099 = vmatprep.subr.mxu0 0.0
        %6100 = vmatpush2.msra.mxu0 0.0
        %6101 = vmatprep.subr.mxu0 0.0
        %6102 = vmatpush2.msra.mxu0 0.0
        %6103 = vmatprep.subr.mxu0 0.0
        %6104 = vmatpush2.msra.mxu0 0.0
        %6105 = vmatprep.mubr.f32.mxu0 0.0
        %v6106 = vand.u32 %v5842, 4294901760
        %v6107 = vsub.f32 %v5842, %v6106
        %6108 = vmatmul.mubr.f32.gmra.mxu0 %v6107
        %v6109 = vpop.f32.mrf.mxu0
        %v6110 = vadd.f32 %v6024, %v6109
        %v6111 = vpop.f32.mrf.mxu0
        %6112 = vmatprep.mubr.f32.mxu0 0.0
        %v6113 = vand.u32 %v5845, 4294901760
        %v6114 = vsub.f32 %v5845, %v6113
        %6115 = vmatmul.mubr.f32.gmra.mxu0 %v6114
        %v6116 = vpop.f32.mrf.mxu0
        %v6117 = vadd.f32 %v6030, %v6116
        %v6118 = vpop.f32.mrf.mxu0
        %6119 = vdwg.mxu0
        %6120 = vmatprep.subr.mxu0 0.0
        %6121 = vmatpush1.msra.mxu0 0.0
        %6122 = vmatprep.subr.mxu0 0.0
        %6123 = vmatpush1.msra.mxu0 0.0
        %6124 = vmatprep.subr.mxu0 0.0
        %6125 = vmatpush1.msra.mxu0 0.0
        %6126 = vmatprep.subr.mxu0 0.0
        %6127 = vmatpush1.msra.mxu0 0.0
        %6128 = vmatprep.subr.mxu0 0.0
        %6129 = vmatpush1.msra.mxu0 0.0
        %6130 = vmatprep.subr.mxu0 0.0
        %6131 = vmatpush1.msra.mxu0 0.0
        %6132 = vmatprep.subr.mxu0 0.0
        %6133 = vmatpush1.msra.mxu0 0.0
        %6134 = vmatprep.subr.mxu0 0.0
        %6135 = vmatpush1.msra.mxu0 0.0
        %6136 = vmatprep.subr.mxu0 0.0
        %6137 = vmatpush1.msra.mxu0 0.0
        %6138 = vmatprep.subr.mxu0 0.0
        %6139 = vmatpush1.msra.mxu0 0.0
        %6140 = vmatprep.subr.mxu0 0.0
        %6141 = vmatpush1.msra.mxu0 0.0
        %6142 = vmatprep.subr.mxu0 0.0
        %6143 = vmatpush1.msra.mxu0 0.0
        %6144 = vmatprep.subr.mxu0 0.0
        %v6145 = vand.u32 %v5825, 4294901760
        %6146 = vmatpush1.msra.mxu0 %v6145
        %6147 = vmatprep.subr.mxu0 0.0
        %v6148 = vand.u32 %v5790, 4294901760
        %6149 = vmatpush1.msra.mxu0 %v6148
        %6150 = vmatprep.subr.mxu0 0.0
        %v6151 = vand.u32 %v5755, 4294901760
        %6152 = vmatpush1.msra.mxu0 %v6151
        %6153 = vmatprep.subr.mxu0 0.0
        %v6154 = vand.u32 %v5720, 4294901760
        %6155 = vmatpush1.msra.mxu0 %v6154
        %6156 = vmatprep.subr.mxu0 0.0
        %6157 = vmatpush2.msra.mxu0 0.0
        %6158 = vmatprep.subr.mxu0 0.0
        %6159 = vmatpush2.msra.mxu0 0.0
        %6160 = vmatprep.subr.mxu0 0.0
        %6161 = vmatpush2.msra.mxu0 0.0
        %6162 = vmatprep.subr.mxu0 0.0
        %6163 = vmatpush2.msra.mxu0 0.0
        %6164 = vmatprep.subr.mxu0 0.0
        %6165 = vmatpush2.msra.mxu0 0.0
        %6166 = vmatprep.subr.mxu0 0.0
        %6167 = vmatpush2.msra.mxu0 0.0
        %6168 = vmatprep.subr.mxu0 0.0
        %6169 = vmatpush2.msra.mxu0 0.0
        %6170 = vmatprep.subr.mxu0 0.0
        %6171 = vmatpush2.msra.mxu0 0.0
        %6172 = vmatprep.subr.mxu0 0.0
        %6173 = vmatpush2.msra.mxu0 0.0
        %6174 = vmatprep.subr.mxu0 0.0
        %6175 = vmatpush2.msra.mxu0 0.0
        %6176 = vmatprep.subr.mxu0 0.0
        %6177 = vmatpush2.msra.mxu0 0.0
        %6178 = vmatprep.subr.mxu0 0.0
        %6179 = vmatpush2.msra.mxu0 0.0
        %6180 = vmatprep.subr.mxu0 0.0
        %6181 = vmatpush2.msra.mxu0 0.0
        %6182 = vmatprep.subr.mxu0 0.0
        %6183 = vmatpush2.msra.mxu0 0.0
        %6184 = vmatprep.subr.mxu0 0.0
        %6185 = vmatpush2.msra.mxu0 0.0
        %6186 = vmatprep.subr.mxu0 0.0
        %6187 = vmatpush2.msra.mxu0 0.0
        %6188 = vmatprep.mubr.f32.mxu0 0.0
        %v6189 = vand.u32 %v5842, 4294901760
        %v6190 = vsub.f32 %v5842, %v6189
        %v6191 = vand.u32 %v6190, 4294901760
        %6192 = vmatmul.mubr.f32.gmra.mxu0 %v6191
        %v6193 = vpop.f32.mrf.mxu0
        %v6194 = vadd.f32 %v6110, %v6193
        %v6195 = vpop.f32.mrf.mxu0
        %6196 = vmatprep.mubr.f32.mxu0 0.0
        %v6197 = vand.u32 %v5845, 4294901760
        %v6198 = vsub.f32 %v5845, %v6197
        %v6199 = vand.u32 %v6198, 4294901760
        %6200 = vmatmul.mubr.f32.gmra.mxu0 %v6199
        %v6201 = vpop.f32.mrf.mxu0
        %v6202 = vadd.f32 %v6117, %v6201
        %v6203 = vpop.f32.mrf.mxu0
        %6204 = vdwg.mxu0
        %6205 = vmatprep.subr.mxu0 0.0
        %6206 = vmatpush1.msra.mxu0 0.0
        %6207 = vmatprep.subr.mxu0 0.0
        %6208 = vmatpush1.msra.mxu0 0.0
        %6209 = vmatprep.subr.mxu0 0.0
        %6210 = vmatpush1.msra.mxu0 0.0
        %6211 = vmatprep.subr.mxu0 0.0
        %6212 = vmatpush1.msra.mxu0 0.0
        %6213 = vmatprep.subr.mxu0 0.0
        %6214 = vmatpush1.msra.mxu0 0.0
        %6215 = vmatprep.subr.mxu0 0.0
        %6216 = vmatpush1.msra.mxu0 0.0
        %6217 = vmatprep.subr.mxu0 0.0
        %6218 = vmatpush1.msra.mxu0 0.0
        %6219 = vmatprep.subr.mxu0 0.0
        %6220 = vmatpush1.msra.mxu0 0.0
        %6221 = vmatprep.subr.mxu0 0.0
        %6222 = vmatpush1.msra.mxu0 0.0
        %6223 = vmatprep.subr.mxu0 0.0
        %6224 = vmatpush1.msra.mxu0 0.0
        %6225 = vmatprep.subr.mxu0 0.0
        %6226 = vmatpush1.msra.mxu0 0.0
        %6227 = vmatprep.subr.mxu0 0.0
        %6228 = vmatpush1.msra.mxu0 0.0
        %6229 = vmatprep.subr.mxu0 0.0
        %v6230 = vand.u32 %v5825, 4294901760
        %v6231 = vsub.f32 %v5825, %v6230
        %v6232 = vand.u32 %v6231, 4294901760
        %6233 = vmatpush1.msra.mxu0 %v6232
        %6234 = vmatprep.subr.mxu0 0.0
        %v6235 = vand.u32 %v5790, 4294901760
        %v6236 = vsub.f32 %v5790, %v6235
        %v6237 = vand.u32 %v6236, 4294901760
        %6238 = vmatpush1.msra.mxu0 %v6237
        %6239 = vmatprep.subr.mxu0 0.0
        %v6240 = vand.u32 %v5755, 4294901760
        %v6241 = vsub.f32 %v5755, %v6240
        %v6242 = vand.u32 %v6241, 4294901760
        %6243 = vmatpush1.msra.mxu0 %v6242
        %6244 = vmatprep.subr.mxu0 0.0
        %v6245 = vand.u32 %v5720, 4294901760
        %v6246 = vsub.f32 %v5720, %v6245
        %v6247 = vand.u32 %v6246, 4294901760
        %6248 = vmatpush1.msra.mxu0 %v6247
        %6249 = vmatprep.subr.mxu0 0.0
        %6250 = vmatpush2.msra.mxu0 0.0
        %6251 = vmatprep.subr.mxu0 0.0
        %6252 = vmatpush2.msra.mxu0 0.0
        %6253 = vmatprep.subr.mxu0 0.0
        %6254 = vmatpush2.msra.mxu0 0.0
        %6255 = vmatprep.subr.mxu0 0.0
        %6256 = vmatpush2.msra.mxu0 0.0
        %6257 = vmatprep.subr.mxu0 0.0
        %6258 = vmatpush2.msra.mxu0 0.0
        %6259 = vmatprep.subr.mxu0 0.0
        %6260 = vmatpush2.msra.mxu0 0.0
        %6261 = vmatprep.subr.mxu0 0.0
        %6262 = vmatpush2.msra.mxu0 0.0
        %6263 = vmatprep.subr.mxu0 0.0
        %6264 = vmatpush2.msra.mxu0 0.0
        %6265 = vmatprep.subr.mxu0 0.0
        %6266 = vmatpush2.msra.mxu0 0.0
        %6267 = vmatprep.subr.mxu0 0.0
        %6268 = vmatpush2.msra.mxu0 0.0
        %6269 = vmatprep.subr.mxu0 0.0
        %6270 = vmatpush2.msra.mxu0 0.0
        %6271 = vmatprep.subr.mxu0 0.0
        %6272 = vmatpush2.msra.mxu0 0.0
        %6273 = vmatprep.subr.mxu0 0.0
        %6274 = vmatpush2.msra.mxu0 0.0
        %6275 = vmatprep.subr.mxu0 0.0
        %6276 = vmatpush2.msra.mxu0 0.0
        %6277 = vmatprep.subr.mxu0 0.0
        %6278 = vmatpush2.msra.mxu0 0.0
        %6279 = vmatprep.subr.mxu0 0.0
        %6280 = vmatpush2.msra.mxu0 0.0
        %6281 = vmatprep.mubr.f32.mxu0 0.0
        %v6282 = vand.u32 %v5842, 4294901760
        %6283 = vmatmul.mubr.f32.gmra.mxu0 %v6282
        %v6284 = vpop.f32.mrf.mxu0
        %v6285 = vadd.f32 %v6194, %v6284
        %v6286 = vpop.f32.mrf.mxu0
        %6287 = vmatprep.mubr.f32.mxu0 0.0
        %v6288 = vand.u32 %v5845, 4294901760
        %6289 = vmatmul.mubr.f32.gmra.mxu0 %v6288
        %v6290 = vpop.f32.mrf.mxu0
        %v6291 = vadd.f32 %v6202, %v6290
        %v6292 = vpop.f32.mrf.mxu0
        %6293 = vdwg.mxu0
        %6294 = vmatprep.subr.mxu0 0.0
        %6295 = vmatpush1.msra.mxu0 0.0
        %6296 = vmatprep.subr.mxu0 0.0
        %6297 = vmatpush1.msra.mxu0 0.0
        %6298 = vmatprep.subr.mxu0 0.0
        %6299 = vmatpush1.msra.mxu0 0.0
        %6300 = vmatprep.subr.mxu0 0.0
        %6301 = vmatpush1.msra.mxu0 0.0
        %6302 = vmatprep.subr.mxu0 0.0
        %6303 = vmatpush1.msra.mxu0 0.0
        %6304 = vmatprep.subr.mxu0 0.0
        %6305 = vmatpush1.msra.mxu0 0.0
        %6306 = vmatprep.subr.mxu0 0.0
        %6307 = vmatpush1.msra.mxu0 0.0
        %6308 = vmatprep.subr.mxu0 0.0
        %6309 = vmatpush1.msra.mxu0 0.0
        %6310 = vmatprep.subr.mxu0 0.0
        %6311 = vmatpush1.msra.mxu0 0.0
        %6312 = vmatprep.subr.mxu0 0.0
        %6313 = vmatpush1.msra.mxu0 0.0
        %6314 = vmatprep.subr.mxu0 0.0
        %6315 = vmatpush1.msra.mxu0 0.0
        %6316 = vmatprep.subr.mxu0 0.0
        %6317 = vmatpush1.msra.mxu0 0.0
        %6318 = vmatprep.subr.mxu0 0.0
        %v6319 = vand.u32 %v5825, 4294901760
        %6320 = vmatpush1.msra.mxu0 %v6319
        %6321 = vmatprep.subr.mxu0 0.0
        %v6322 = vand.u32 %v5790, 4294901760
        %6323 = vmatpush1.msra.mxu0 %v6322
        %6324 = vmatprep.subr.mxu0 0.0
        %v6325 = vand.u32 %v5755, 4294901760
        %6326 = vmatpush1.msra.mxu0 %v6325
        %6327 = vmatprep.subr.mxu0 0.0
        %v6328 = vand.u32 %v5720, 4294901760
        %6329 = vmatpush1.msra.mxu0 %v6328
        %6330 = vmatprep.subr.mxu0 0.0
        %6331 = vmatpush2.msra.mxu0 0.0
        %6332 = vmatprep.subr.mxu0 0.0
        %6333 = vmatpush2.msra.mxu0 0.0
        %6334 = vmatprep.subr.mxu0 0.0
        %6335 = vmatpush2.msra.mxu0 0.0
        %6336 = vmatprep.subr.mxu0 0.0
        %6337 = vmatpush2.msra.mxu0 0.0
        %6338 = vmatprep.subr.mxu0 0.0
        %6339 = vmatpush2.msra.mxu0 0.0
        %6340 = vmatprep.subr.mxu0 0.0
        %6341 = vmatpush2.msra.mxu0 0.0
        %6342 = vmatprep.subr.mxu0 0.0
        %6343 = vmatpush2.msra.mxu0 0.0
        %6344 = vmatprep.subr.mxu0 0.0
        %6345 = vmatpush2.msra.mxu0 0.0
        %6346 = vmatprep.subr.mxu0 0.0
        %6347 = vmatpush2.msra.mxu0 0.0
        %6348 = vmatprep.subr.mxu0 0.0
        %6349 = vmatpush2.msra.mxu0 0.0
        %6350 = vmatprep.subr.mxu0 0.0
        %6351 = vmatpush2.msra.mxu0 0.0
        %6352 = vmatprep.subr.mxu0 0.0
        %6353 = vmatpush2.msra.mxu0 0.0
        %6354 = vmatprep.subr.mxu0 0.0
        %6355 = vmatpush2.msra.mxu0 0.0
        %6356 = vmatprep.subr.mxu0 0.0
        %6357 = vmatpush2.msra.mxu0 0.0
        %6358 = vmatprep.subr.mxu0 0.0
        %6359 = vmatpush2.msra.mxu0 0.0
        %6360 = vmatprep.subr.mxu0 0.0
        %6361 = vmatpush2.msra.mxu0 0.0
        %6362 = vmatprep.mubr.f32.mxu0 0.0
        %v6363 = vand.u32 %v5842, 4294901760
        %6364 = vmatmul.mubr.f32.gmra.mxu0 %v6363
        %v6365 = vpop.f32.mrf.mxu0
        %v6366 = vadd.f32 %v6285, %v6365
        %v6367 = vpop.f32.mrf.mxu0
        %6368 = vmatprep.mubr.f32.mxu0 0.0
        %v6369 = vand.u32 %v5845, 4294901760
        %6370 = vmatmul.mubr.f32.gmra.mxu0 %v6369
        %v6371 = vpop.f32.mrf.mxu0
        %v6372 = vadd.f32 %v6291, %v6371
        %v6373 = vpop.f32.mrf.mxu0
        %6374 = vdwg.mxu0
        %v6375 = vmax.f32 %v6366, 0.0
        %v6376 = vmax.f32 %v6372, 0.0
        %v6377 = vld [vmem:[%s7] sm:$0xff]
        %v6378 = vld [vmem:[%s7 + $0x8] sm:$0xff]
        %v6380 = vsel %vm589, %v6377, 0
        %v6383 = vsel %vm589, %v6378, 0
        %6385 = vmatprep.subr.mxu0 0.0
        %6386 = vmatpush1.msra.mxu0 0.0
        %6387 = vmatprep.subr.mxu0 0.0
        %6388 = vmatpush1.msra.mxu0 0.0
        %6389 = vmatprep.subr.mxu0 0.0
        %6390 = vmatpush1.msra.mxu0 0.0
        %6391 = vmatprep.subr.mxu0 0.0
        %6392 = vmatpush1.msra.mxu0 0.0
        %6393 = vmatprep.subr.mxu0 0.0
        %6394 = vmatpush1.msra.mxu0 0.0
        %6395 = vmatprep.subr.mxu0 0.0
        %6396 = vmatpush1.msra.mxu0 0.0
        %6397 = vmatprep.subr.mxu0 0.0
        %6398 = vmatpush1.msra.mxu0 0.0
        %6399 = vmatprep.subr.mxu0 0.0
        %6400 = vmatpush1.msra.mxu0 0.0
        %6401 = vmatprep.subr.mxu0 0.0
        %6402 = vmatpush1.msra.mxu0 0.0
        %6403 = vmatprep.subr.mxu0 0.0
        %6404 = vmatpush1.msra.mxu0 0.0
        %6405 = vmatprep.subr.mxu0 0.0
        %6406 = vmatpush1.msra.mxu0 0.0
        %6407 = vmatprep.subr.mxu0 0.0
        %6408 = vmatpush1.msra.mxu0 0.0
        %6409 = vmatprep.subr.mxu0 0.0
        %6410 = vmatpush1.msra.mxu0 0.0
        %6411 = vmatprep.subr.mxu0 0.0
        %6412 = vmatpush1.msra.mxu0 0.0
        %6413 = vmatprep.subr.mxu0 0.0
        %v6414 = vand.u32 %v6376, 4294901760
        %6415 = vmatpush1.msra.mxu0 %v6414
        %6416 = vmatprep.subr.mxu0 0.0
        %v6417 = vand.u32 %v6375, 4294901760
        %6418 = vmatpush1.msra.mxu0 %v6417
        %6419 = vmatprep.subr.mxu0 0.0
        %6420 = vmatpush2.msra.mxu0 0.0
        %6421 = vmatprep.subr.mxu0 0.0
        %6422 = vmatpush2.msra.mxu0 0.0
        %6423 = vmatprep.subr.mxu0 0.0
        %6424 = vmatpush2.msra.mxu0 0.0
        %6425 = vmatprep.subr.mxu0 0.0
        %6426 = vmatpush2.msra.mxu0 0.0
        %6427 = vmatprep.subr.mxu0 0.0
        %6428 = vmatpush2.msra.mxu0 0.0
        %6429 = vmatprep.subr.mxu0 0.0
        %6430 = vmatpush2.msra.mxu0 0.0
        %6431 = vmatprep.subr.mxu0 0.0
        %6432 = vmatpush2.msra.mxu0 0.0
        %6433 = vmatprep.subr.mxu0 0.0
        %6434 = vmatpush2.msra.mxu0 0.0
        %6435 = vmatprep.subr.mxu0 0.0
        %6436 = vmatpush2.msra.mxu0 0.0
        %6437 = vmatprep.subr.mxu0 0.0
        %6438 = vmatpush2.msra.mxu0 0.0
        %6439 = vmatprep.subr.mxu0 0.0
        %6440 = vmatpush2.msra.mxu0 0.0
        %6441 = vmatprep.subr.mxu0 0.0
        %6442 = vmatpush2.msra.mxu0 0.0
        %6443 = vmatprep.subr.mxu0 0.0
        %6444 = vmatpush2.msra.mxu0 0.0
        %6445 = vmatprep.subr.mxu0 0.0
        %6446 = vmatpush2.msra.mxu0 0.0
        %6447 = vmatprep.subr.mxu0 0.0
        %6448 = vmatpush2.msra.mxu0 0.0
        %6449 = vmatprep.subr.mxu0 0.0
        %6450 = vmatpush2.msra.mxu0 0.0
        %6451 = vmatprep.mubr.f32.mxu0 0.0
        %v6452 = vand.u32 %v6380, 4294901760
        %v6453 = vsub.f32 %v6380, %v6452
        %v6454 = vand.u32 %v6453, 4294901760
        %v6455 = vsub.f32 %v6453, %v6454
        %v6456 = vand.u32 %v6455, 4294901760
        %6457 = vmatmul.mubr.f32.gmra.mxu0 %v6456
        %v6458 = vpop.f32.mrf.mxu0
        %v6459 = vadd.f32 0.0, %v6458
        %v6460 = vpop.f32.mrf.mxu0
        %6461 = vmatprep.mubr.f32.mxu0 0.0
        %v6462 = vand.u32 %v6383, 4294901760
        %v6463 = vsub.f32 %v6383, %v6462
        %v6464 = vand.u32 %v6463, 4294901760
        %v6465 = vsub.f32 %v6463, %v6464
        %v6466 = vand.u32 %v6465, 4294901760
        %6467 = vmatmul.mubr.f32.gmra.mxu0 %v6466
        %v6468 = vpop.f32.mrf.mxu0
        %v6469 = vadd.f32 0.0, %v6468
        %v6470 = vpop.f32.mrf.mxu0
        %6471 = vdwg.mxu0
        %6472 = vmatprep.subr.mxu0 0.0
        %6473 = vmatpush1.msra.mxu0 0.0
        %6474 = vmatprep.subr.mxu0 0.0
        %6475 = vmatpush1.msra.mxu0 0.0
        %6476 = vmatprep.subr.mxu0 0.0
        %6477 = vmatpush1.msra.mxu0 0.0
        %6478 = vmatprep.subr.mxu0 0.0
        %6479 = vmatpush1.msra.mxu0 0.0
        %6480 = vmatprep.subr.mxu0 0.0
        %6481 = vmatpush1.msra.mxu0 0.0
        %6482 = vmatprep.subr.mxu0 0.0
        %6483 = vmatpush1.msra.mxu0 0.0
        %6484 = vmatprep.subr.mxu0 0.0
        %6485 = vmatpush1.msra.mxu0 0.0
        %6486 = vmatprep.subr.mxu0 0.0
        %6487 = vmatpush1.msra.mxu0 0.0
        %6488 = vmatprep.subr.mxu0 0.0
        %6489 = vmatpush1.msra.mxu0 0.0
        %6490 = vmatprep.subr.mxu0 0.0
        %6491 = vmatpush1.msra.mxu0 0.0
        %6492 = vmatprep.subr.mxu0 0.0
        %6493 = vmatpush1.msra.mxu0 0.0
        %6494 = vmatprep.subr.mxu0 0.0
        %6495 = vmatpush1.msra.mxu0 0.0
        %6496 = vmatprep.subr.mxu0 0.0
        %6497 = vmatpush1.msra.mxu0 0.0
        %6498 = vmatprep.subr.mxu0 0.0
        %6499 = vmatpush1.msra.mxu0 0.0
        %6500 = vmatprep.subr.mxu0 0.0
        %v6501 = vand.u32 %v6376, 4294901760
        %v6502 = vsub.f32 %v6376, %v6501
        %v6503 = vand.u32 %v6502, 4294901760
        %v6504 = vsub.f32 %v6502, %v6503
        %v6505 = vand.u32 %v6504, 4294901760
        %6506 = vmatpush1.msra.mxu0 %v6505
        %6507 = vmatprep.subr.mxu0 0.0
        %v6508 = vand.u32 %v6375, 4294901760
        %v6509 = vsub.f32 %v6375, %v6508
        %v6510 = vand.u32 %v6509, 4294901760
        %v6511 = vsub.f32 %v6509, %v6510
        %v6512 = vand.u32 %v6511, 4294901760
        %6513 = vmatpush1.msra.mxu0 %v6512
        %6514 = vmatprep.subr.mxu0 0.0
        %6515 = vmatpush2.msra.mxu0 0.0
        %6516 = vmatprep.subr.mxu0 0.0
        %6517 = vmatpush2.msra.mxu0 0.0
        %6518 = vmatprep.subr.mxu0 0.0
        %6519 = vmatpush2.msra.mxu0 0.0
        %6520 = vmatprep.subr.mxu0 0.0
        %6521 = vmatpush2.msra.mxu0 0.0
        %6522 = vmatprep.subr.mxu0 0.0
        %6523 = vmatpush2.msra.mxu0 0.0
        %6524 = vmatprep.subr.mxu0 0.0
        %6525 = vmatpush2.msra.mxu0 0.0
        %6526 = vmatprep.subr.mxu0 0.0
        %6527 = vmatpush2.msra.mxu0 0.0
        %6528 = vmatprep.subr.mxu0 0.0
        %6529 = vmatpush2.msra.mxu0 0.0
        %6530 = vmatprep.subr.mxu0 0.0
        %6531 = vmatpush2.msra.mxu0 0.0
        %6532 = vmatprep.subr.mxu0 0.0
        %6533 = vmatpush2.msra.mxu0 0.0
        %6534 = vmatprep.subr.mxu0 0.0
        %6535 = vmatpush2.msra.mxu0 0.0
        %6536 = vmatprep.subr.mxu0 0.0
        %6537 = vmatpush2.msra.mxu0 0.0
        %6538 = vmatprep.subr.mxu0 0.0
        %6539 = vmatpush2.msra.mxu0 0.0
        %6540 = vmatprep.subr.mxu0 0.0
        %6541 = vmatpush2.msra.mxu0 0.0
        %6542 = vmatprep.subr.mxu0 0.0
        %6543 = vmatpush2.msra.mxu0 0.0
        %6544 = vmatprep.subr.mxu0 0.0
        %6545 = vmatpush2.msra.mxu0 0.0
        %6546 = vmatprep.mubr.f32.mxu0 0.0
        %v6547 = vand.u32 %v6380, 4294901760
        %6548 = vmatmul.mubr.f32.gmra.mxu0 %v6547
        %v6549 = vpop.f32.mrf.mxu0
        %v6550 = vadd.f32 %v6459, %v6549
        %v6551 = vpop.f32.mrf.mxu0
        %6552 = vmatprep.mubr.f32.mxu0 0.0
        %v6553 = vand.u32 %v6383, 4294901760
        %6554 = vmatmul.mubr.f32.gmra.mxu0 %v6553
        %v6555 = vpop.f32.mrf.mxu0
        %v6556 = vadd.f32 %v6469, %v6555
        %v6557 = vpop.f32.mrf.mxu0
        %6558 = vdwg.mxu0
        %6559 = vmatprep.subr.mxu0 0.0
        %6560 = vmatpush1.msra.mxu0 0.0
        %6561 = vmatprep.subr.mxu0 0.0
        %6562 = vmatpush1.msra.mxu0 0.0
        %6563 = vmatprep.subr.mxu0 0.0
        %6564 = vmatpush1.msra.mxu0 0.0
        %6565 = vmatprep.subr.mxu0 0.0
        %6566 = vmatpush1.msra.mxu0 0.0
        %6567 = vmatprep.subr.mxu0 0.0
        %6568 = vmatpush1.msra.mxu0 0.0
        %6569 = vmatprep.subr.mxu0 0.0
        %6570 = vmatpush1.msra.mxu0 0.0
        %6571 = vmatprep.subr.mxu0 0.0
        %6572 = vmatpush1.msra.mxu0 0.0
        %6573 = vmatprep.subr.mxu0 0.0
        %6574 = vmatpush1.msra.mxu0 0.0
        %6575 = vmatprep.subr.mxu0 0.0
        %6576 = vmatpush1.msra.mxu0 0.0
        %6577 = vmatprep.subr.mxu0 0.0
        %6578 = vmatpush1.msra.mxu0 0.0
        %6579 = vmatprep.subr.mxu0 0.0
        %6580 = vmatpush1.msra.mxu0 0.0
        %6581 = vmatprep.subr.mxu0 0.0
        %6582 = vmatpush1.msra.mxu0 0.0
        %6583 = vmatprep.subr.mxu0 0.0
        %6584 = vmatpush1.msra.mxu0 0.0
        %6585 = vmatprep.subr.mxu0 0.0
        %6586 = vmatpush1.msra.mxu0 0.0
        %6587 = vmatprep.subr.mxu0 0.0
        %v6588 = vand.u32 %v6376, 4294901760
        %v6589 = vsub.f32 %v6376, %v6588
        %6590 = vmatpush1.msra.mxu0 %v6589
        %6591 = vmatprep.subr.mxu0 0.0
        %v6592 = vand.u32 %v6375, 4294901760
        %v6593 = vsub.f32 %v6375, %v6592
        %6594 = vmatpush1.msra.mxu0 %v6593
        %6595 = vmatprep.subr.mxu0 0.0
        %6596 = vmatpush2.msra.mxu0 0.0
        %6597 = vmatprep.subr.mxu0 0.0
        %6598 = vmatpush2.msra.mxu0 0.0
        %6599 = vmatprep.subr.mxu0 0.0
        %6600 = vmatpush2.msra.mxu0 0.0
        %6601 = vmatprep.subr.mxu0 0.0
        %6602 = vmatpush2.msra.mxu0 0.0
        %6603 = vmatprep.subr.mxu0 0.0
        %6604 = vmatpush2.msra.mxu0 0.0
        %6605 = vmatprep.subr.mxu0 0.0
        %6606 = vmatpush2.msra.mxu0 0.0
        %6607 = vmatprep.subr.mxu0 0.0
        %6608 = vmatpush2.msra.mxu0 0.0
        %6609 = vmatprep.subr.mxu0 0.0
        %6610 = vmatpush2.msra.mxu0 0.0
        %6611 = vmatprep.subr.mxu0 0.0
        %6612 = vmatpush2.msra.mxu0 0.0
        %6613 = vmatprep.subr.mxu0 0.0
        %6614 = vmatpush2.msra.mxu0 0.0
        %6615 = vmatprep.subr.mxu0 0.0
        %6616 = vmatpush2.msra.mxu0 0.0
        %6617 = vmatprep.subr.mxu0 0.0
        %6618 = vmatpush2.msra.mxu0 0.0
        %6619 = vmatprep.subr.mxu0 0.0
        %6620 = vmatpush2.msra.mxu0 0.0
        %6621 = vmatprep.subr.mxu0 0.0
        %6622 = vmatpush2.msra.mxu0 0.0
        %6623 = vmatprep.subr.mxu0 0.0
        %6624 = vmatpush2.msra.mxu0 0.0
        %6625 = vmatprep.subr.mxu0 0.0
        %6626 = vmatpush2.msra.mxu0 0.0
        %6627 = vmatprep.mubr.f32.mxu0 0.0
        %v6628 = vand.u32 %v6380, 4294901760
        %v6629 = vsub.f32 %v6380, %v6628
        %6630 = vmatmul.mubr.f32.gmra.mxu0 %v6629
        %v6631 = vpop.f32.mrf.mxu0
        %v6632 = vadd.f32 %v6550, %v6631
        %v6633 = vpop.f32.mrf.mxu0
        %6634 = vmatprep.mubr.f32.mxu0 0.0
        %v6635 = vand.u32 %v6383, 4294901760
        %v6636 = vsub.f32 %v6383, %v6635
        %6637 = vmatmul.mubr.f32.gmra.mxu0 %v6636
        %v6638 = vpop.f32.mrf.mxu0
        %v6639 = vadd.f32 %v6556, %v6638
        %v6640 = vpop.f32.mrf.mxu0
        %6641 = vdwg.mxu0
        %6642 = vmatprep.subr.mxu0 0.0
        %6643 = vmatpush1.msra.mxu0 0.0
        %6644 = vmatprep.subr.mxu0 0.0
        %6645 = vmatpush1.msra.mxu0 0.0
        %6646 = vmatprep.subr.mxu0 0.0
        %6647 = vmatpush1.msra.mxu0 0.0
        %6648 = vmatprep.subr.mxu0 0.0
        %6649 = vmatpush1.msra.mxu0 0.0
        %6650 = vmatprep.subr.mxu0 0.0
        %6651 = vmatpush1.msra.mxu0 0.0
        %6652 = vmatprep.subr.mxu0 0.0
        %6653 = vmatpush1.msra.mxu0 0.0
        %6654 = vmatprep.subr.mxu0 0.0
        %6655 = vmatpush1.msra.mxu0 0.0
        %6656 = vmatprep.subr.mxu0 0.0
        %6657 = vmatpush1.msra.mxu0 0.0
        %6658 = vmatprep.subr.mxu0 0.0
        %6659 = vmatpush1.msra.mxu0 0.0
        %6660 = vmatprep.subr.mxu0 0.0
        %6661 = vmatpush1.msra.mxu0 0.0
        %6662 = vmatprep.subr.mxu0 0.0
        %6663 = vmatpush1.msra.mxu0 0.0
        %6664 = vmatprep.subr.mxu0 0.0
        %6665 = vmatpush1.msra.mxu0 0.0
        %6666 = vmatprep.subr.mxu0 0.0
        %6667 = vmatpush1.msra.mxu0 0.0
        %6668 = vmatprep.subr.mxu0 0.0
        %6669 = vmatpush1.msra.mxu0 0.0
        %6670 = vmatprep.subr.mxu0 0.0
        %v6671 = vand.u32 %v6376, 4294901760
        %6672 = vmatpush1.msra.mxu0 %v6671
        %6673 = vmatprep.subr.mxu0 0.0
        %v6674 = vand.u32 %v6375, 4294901760
        %6675 = vmatpush1.msra.mxu0 %v6674
        %6676 = vmatprep.subr.mxu0 0.0
        %6677 = vmatpush2.msra.mxu0 0.0
        %6678 = vmatprep.subr.mxu0 0.0
        %6679 = vmatpush2.msra.mxu0 0.0
        %6680 = vmatprep.subr.mxu0 0.0
        %6681 = vmatpush2.msra.mxu0 0.0
        %6682 = vmatprep.subr.mxu0 0.0
        %6683 = vmatpush2.msra.mxu0 0.0
        %6684 = vmatprep.subr.mxu0 0.0
        %6685 = vmatpush2.msra.mxu0 0.0
        %6686 = vmatprep.subr.mxu0 0.0
        %6687 = vmatpush2.msra.mxu0 0.0
        %6688 = vmatprep.subr.mxu0 0.0
        %6689 = vmatpush2.msra.mxu0 0.0
        %6690 = vmatprep.subr.mxu0 0.0
        %6691 = vmatpush2.msra.mxu0 0.0
        %6692 = vmatprep.subr.mxu0 0.0
        %6693 = vmatpush2.msra.mxu0 0.0
        %6694 = vmatprep.subr.mxu0 0.0
        %6695 = vmatpush2.msra.mxu0 0.0
        %6696 = vmatprep.subr.mxu0 0.0
        %6697 = vmatpush2.msra.mxu0 0.0
        %6698 = vmatprep.subr.mxu0 0.0
        %6699 = vmatpush2.msra.mxu0 0.0
        %6700 = vmatprep.subr.mxu0 0.0
        %6701 = vmatpush2.msra.mxu0 0.0
        %6702 = vmatprep.subr.mxu0 0.0
        %6703 = vmatpush2.msra.mxu0 0.0
        %6704 = vmatprep.subr.mxu0 0.0
        %6705 = vmatpush2.msra.mxu0 0.0
        %6706 = vmatprep.subr.mxu0 0.0
        %6707 = vmatpush2.msra.mxu0 0.0
        %6708 = vmatprep.mubr.f32.mxu0 0.0
        %v6709 = vand.u32 %v6380, 4294901760
        %v6710 = vsub.f32 %v6380, %v6709
        %v6711 = vand.u32 %v6710, 4294901760
        %6712 = vmatmul.mubr.f32.gmra.mxu0 %v6711
        %v6713 = vpop.f32.mrf.mxu0
        %v6714 = vadd.f32 %v6632, %v6713
        %v6715 = vpop.f32.mrf.mxu0
        %6716 = vmatprep.mubr.f32.mxu0 0.0
        %v6717 = vand.u32 %v6383, 4294901760
        %v6718 = vsub.f32 %v6383, %v6717
        %v6719 = vand.u32 %v6718, 4294901760
        %6720 = vmatmul.mubr.f32.gmra.mxu0 %v6719
        %v6721 = vpop.f32.mrf.mxu0
        %v6722 = vadd.f32 %v6639, %v6721
        %v6723 = vpop.f32.mrf.mxu0
        %6724 = vdwg.mxu0
        %6725 = vmatprep.subr.mxu0 0.0
        %6726 = vmatpush1.msra.mxu0 0.0
        %6727 = vmatprep.subr.mxu0 0.0
        %6728 = vmatpush1.msra.mxu0 0.0
        %6729 = vmatprep.subr.mxu0 0.0
        %6730 = vmatpush1.msra.mxu0 0.0
        %6731 = vmatprep.subr.mxu0 0.0
        %6732 = vmatpush1.msra.mxu0 0.0
        %6733 = vmatprep.subr.mxu0 0.0
        %6734 = vmatpush1.msra.mxu0 0.0
        %6735 = vmatprep.subr.mxu0 0.0
        %6736 = vmatpush1.msra.mxu0 0.0
        %6737 = vmatprep.subr.mxu0 0.0
        %6738 = vmatpush1.msra.mxu0 0.0
        %6739 = vmatprep.subr.mxu0 0.0
        %6740 = vmatpush1.msra.mxu0 0.0
        %6741 = vmatprep.subr.mxu0 0.0
        %6742 = vmatpush1.msra.mxu0 0.0
        %6743 = vmatprep.subr.mxu0 0.0
        %6744 = vmatpush1.msra.mxu0 0.0
        %6745 = vmatprep.subr.mxu0 0.0
        %6746 = vmatpush1.msra.mxu0 0.0
        %6747 = vmatprep.subr.mxu0 0.0
        %6748 = vmatpush1.msra.mxu0 0.0
        %6749 = vmatprep.subr.mxu0 0.0
        %6750 = vmatpush1.msra.mxu0 0.0
        %6751 = vmatprep.subr.mxu0 0.0
        %6752 = vmatpush1.msra.mxu0 0.0
        %6753 = vmatprep.subr.mxu0 0.0
        %v6754 = vand.u32 %v6376, 4294901760
        %v6755 = vsub.f32 %v6376, %v6754
        %v6756 = vand.u32 %v6755, 4294901760
        %6757 = vmatpush1.msra.mxu0 %v6756
        %6758 = vmatprep.subr.mxu0 0.0
        %v6759 = vand.u32 %v6375, 4294901760
        %v6760 = vsub.f32 %v6375, %v6759
        %v6761 = vand.u32 %v6760, 4294901760
        %6762 = vmatpush1.msra.mxu0 %v6761
        %6763 = vmatprep.subr.mxu0 0.0
        %6764 = vmatpush2.msra.mxu0 0.0
        %6765 = vmatprep.subr.mxu0 0.0
        %6766 = vmatpush2.msra.mxu0 0.0
        %6767 = vmatprep.subr.mxu0 0.0
        %6768 = vmatpush2.msra.mxu0 0.0
        %6769 = vmatprep.subr.mxu0 0.0
        %6770 = vmatpush2.msra.mxu0 0.0
        %6771 = vmatprep.subr.mxu0 0.0
        %6772 = vmatpush2.msra.mxu0 0.0
        %6773 = vmatprep.subr.mxu0 0.0
        %6774 = vmatpush2.msra.mxu0 0.0
        %6775 = vmatprep.subr.mxu0 0.0
        %6776 = vmatpush2.msra.mxu0 0.0
        %6777 = vmatprep.subr.mxu0 0.0
        %6778 = vmatpush2.msra.mxu0 0.0
        %6779 = vmatprep.subr.mxu0 0.0
        %6780 = vmatpush2.msra.mxu0 0.0
        %6781 = vmatprep.subr.mxu0 0.0
        %6782 = vmatpush2.msra.mxu0 0.0
        %6783 = vmatprep.subr.mxu0 0.0
        %6784 = vmatpush2.msra.mxu0 0.0
        %6785 = vmatprep.subr.mxu0 0.0
        %6786 = vmatpush2.msra.mxu0 0.0
        %6787 = vmatprep.subr.mxu0 0.0
        %6788 = vmatpush2.msra.mxu0 0.0
        %6789 = vmatprep.subr.mxu0 0.0
        %6790 = vmatpush2.msra.mxu0 0.0
        %6791 = vmatprep.subr.mxu0 0.0
        %6792 = vmatpush2.msra.mxu0 0.0
        %6793 = vmatprep.subr.mxu0 0.0
        %6794 = vmatpush2.msra.mxu0 0.0
        %6795 = vmatprep.mubr.f32.mxu0 0.0
        %v6796 = vand.u32 %v6380, 4294901760
        %6797 = vmatmul.mubr.f32.gmra.mxu0 %v6796
        %v6798 = vpop.f32.mrf.mxu0
        %v6799 = vadd.f32 %v6714, %v6798
        %v6800 = vpop.f32.mrf.mxu0
        %6801 = vmatprep.mubr.f32.mxu0 0.0
        %v6802 = vand.u32 %v6383, 4294901760
        %6803 = vmatmul.mubr.f32.gmra.mxu0 %v6802
        %v6804 = vpop.f32.mrf.mxu0
        %v6805 = vadd.f32 %v6722, %v6804
        %v6806 = vpop.f32.mrf.mxu0
        %6807 = vdwg.mxu0
        %6808 = vmatprep.subr.mxu0 0.0
        %6809 = vmatpush1.msra.mxu0 0.0
        %6810 = vmatprep.subr.mxu0 0.0
        %6811 = vmatpush1.msra.mxu0 0.0
        %6812 = vmatprep.subr.mxu0 0.0
        %6813 = vmatpush1.msra.mxu0 0.0
        %6814 = vmatprep.subr.mxu0 0.0
        %6815 = vmatpush1.msra.mxu0 0.0
        %6816 = vmatprep.subr.mxu0 0.0
        %6817 = vmatpush1.msra.mxu0 0.0
        %6818 = vmatprep.subr.mxu0 0.0
        %6819 = vmatpush1.msra.mxu0 0.0
        %6820 = vmatprep.subr.mxu0 0.0
        %6821 = vmatpush1.msra.mxu0 0.0
        %6822 = vmatprep.subr.mxu0 0.0
        %6823 = vmatpush1.msra.mxu0 0.0
        %6824 = vmatprep.subr.mxu0 0.0
        %6825 = vmatpush1.msra.mxu0 0.0
        %6826 = vmatprep.subr.mxu0 0.0
        %6827 = vmatpush1.msra.mxu0 0.0
        %6828 = vmatprep.subr.mxu0 0.0
        %6829 = vmatpush1.msra.mxu0 0.0
        %6830 = vmatprep.subr.mxu0 0.0
        %6831 = vmatpush1.msra.mxu0 0.0
        %6832 = vmatprep.subr.mxu0 0.0
        %6833 = vmatpush1.msra.mxu0 0.0
        %6834 = vmatprep.subr.mxu0 0.0
        %6835 = vmatpush1.msra.mxu0 0.0
        %6836 = vmatprep.subr.mxu0 0.0
        %v6837 = vand.u32 %v6376, 4294901760
        %6838 = vmatpush1.msra.mxu0 %v6837
        %6839 = vmatprep.subr.mxu0 0.0
        %v6840 = vand.u32 %v6375, 4294901760
        %6841 = vmatpush1.msra.mxu0 %v6840
        %6842 = vmatprep.subr.mxu0 0.0
        %6843 = vmatpush2.msra.mxu0 0.0
        %6844 = vmatprep.subr.mxu0 0.0
        %6845 = vmatpush2.msra.mxu0 0.0
        %6846 = vmatprep.subr.mxu0 0.0
        %6847 = vmatpush2.msra.mxu0 0.0
        %6848 = vmatprep.subr.mxu0 0.0
        %6849 = vmatpush2.msra.mxu0 0.0
        %6850 = vmatprep.subr.mxu0 0.0
        %6851 = vmatpush2.msra.mxu0 0.0
        %6852 = vmatprep.subr.mxu0 0.0
        %6853 = vmatpush2.msra.mxu0 0.0
        %6854 = vmatprep.subr.mxu0 0.0
        %6855 = vmatpush2.msra.mxu0 0.0
        %6856 = vmatprep.subr.mxu0 0.0
        %6857 = vmatpush2.msra.mxu0 0.0
        %6858 = vmatprep.subr.mxu0 0.0
        %6859 = vmatpush2.msra.mxu0 0.0
        %6860 = vmatprep.subr.mxu0 0.0
        %6861 = vmatpush2.msra.mxu0 0.0
        %6862 = vmatprep.subr.mxu0 0.0
        %6863 = vmatpush2.msra.mxu0 0.0
        %6864 = vmatprep.subr.mxu0 0.0
        %6865 = vmatpush2.msra.mxu0 0.0
        %6866 = vmatprep.subr.mxu0 0.0
        %6867 = vmatpush2.msra.mxu0 0.0
        %6868 = vmatprep.subr.mxu0 0.0
        %6869 = vmatpush2.msra.mxu0 0.0
        %6870 = vmatprep.subr.mxu0 0.0
        %6871 = vmatpush2.msra.mxu0 0.0
        %6872 = vmatprep.subr.mxu0 0.0
        %6873 = vmatpush2.msra.mxu0 0.0
        %6874 = vmatprep.mubr.f32.mxu0 0.0
        %v6875 = vand.u32 %v6380, 4294901760
        %6876 = vmatmul.mubr.f32.gmra.mxu0 %v6875
        %v6877 = vpop.f32.mrf.mxu0
        %v6878 = vadd.f32 %v6799, %v6877
        %v6879 = vpop.f32.mrf.mxu0
        %6880 = vmatprep.mubr.f32.mxu0 0.0
        %v6881 = vand.u32 %v6383, 4294901760
        %6882 = vmatmul.mubr.f32.gmra.mxu0 %v6881
        %v6883 = vpop.f32.mrf.mxu0
        %v6884 = vadd.f32 %v6805, %v6883
        %v6885 = vpop.f32.mrf.mxu0
        %6886 = vdwg.mxu0
        %v6887 = vsub.f32 %v6375, %v6878
        %v6888 = vsub.f32 %v6376, %v6884
        %v6889 = vmul.f32 %v6887, %v6887
        %v6890 = vmul.f32 %v6888, %v6888
        %6891 = vmatprep.subr.mxu0 0.0
        %6892 = vmatpush1.msra.mxu0 0.0
        %6893 = vmatprep.subr.mxu0 0.0
        %6894 = vmatpush1.msra.mxu0 0.0
        %6895 = vmatprep.subr.mxu0 0.0
        %6896 = vmatpush1.msra.mxu0 0.0
        %6897 = vmatprep.subr.mxu0 0.0
        %6898 = vmatpush1.msra.mxu0 0.0
        %6899 = vmatprep.subr.mxu0 0.0
        %6900 = vmatpush1.msra.mxu0 0.0
        %6901 = vmatprep.subr.mxu0 0.0
        %6902 = vmatpush1.msra.mxu0 0.0
        %6903 = vmatprep.subr.mxu0 0.0
        %6904 = vmatpush1.msra.mxu0 0.0
        %6905 = vmatprep.subr.mxu0 0.0
        %6906 = vmatpush1.msra.mxu0 0.0
        %6907 = vmatprep.subr.mxu0 0.0
        %6908 = vmatpush1.msra.mxu0 0.0
        %6909 = vmatprep.subr.mxu0 0.0
        %6910 = vmatpush1.msra.mxu0 0.0
        %6911 = vmatprep.subr.mxu0 0.0
        %6912 = vmatpush1.msra.mxu0 0.0
        %6913 = vmatprep.subr.mxu0 0.0
        %6914 = vmatpush1.msra.mxu0 0.0
        %6915 = vmatprep.subr.mxu0 0.0
        %6916 = vmatpush1.msra.mxu0 0.0
        %6917 = vmatprep.subr.mxu0 0.0
        %6918 = vmatpush1.msra.mxu0 0.0
        %6919 = vmatprep.subr.mxu0 0.0
        %v6920 = vand.u32 %v6890, 4294901760
        %6921 = vmatpush1.msra.mxu0 %v6920
        %6922 = vmatprep.subr.mxu0 0.0
        %v6923 = vand.u32 %v6889, 4294901760
        %6924 = vmatpush1.msra.mxu0 %v6923
        %6925 = vmatprep.subr.mxu0 0.0
        %6926 = vmatpush2.msra.mxu0 0.0
        %6927 = vmatprep.subr.mxu0 0.0
        %6928 = vmatpush2.msra.mxu0 0.0
        %6929 = vmatprep.subr.mxu0 0.0
        %6930 = vmatpush2.msra.mxu0 0.0
        %6931 = vmatprep.subr.mxu0 0.0
        %6932 = vmatpush2.msra.mxu0 0.0
        %6933 = vmatprep.subr.mxu0 0.0
        %6934 = vmatpush2.msra.mxu0 0.0
        %6935 = vmatprep.subr.mxu0 0.0
        %6936 = vmatpush2.msra.mxu0 0.0
        %6937 = vmatprep.subr.mxu0 0.0
        %6938 = vmatpush2.msra.mxu0 0.0
        %6939 = vmatprep.subr.mxu0 0.0
        %6940 = vmatpush2.msra.mxu0 0.0
        %6941 = vmatprep.subr.mxu0 0.0
        %6942 = vmatpush2.msra.mxu0 0.0
        %6943 = vmatprep.subr.mxu0 0.0
        %6944 = vmatpush2.msra.mxu0 0.0
        %6945 = vmatprep.subr.mxu0 0.0
        %6946 = vmatpush2.msra.mxu0 0.0
        %6947 = vmatprep.subr.mxu0 0.0
        %6948 = vmatpush2.msra.mxu0 0.0
        %6949 = vmatprep.subr.mxu0 0.0
        %6950 = vmatpush2.msra.mxu0 0.0
        %6951 = vmatprep.subr.mxu0 0.0
        %6952 = vmatpush2.msra.mxu0 0.0
        %6953 = vmatprep.subr.mxu0 0.0
        %6954 = vmatpush2.msra.mxu0 0.0
        %6955 = vmatprep.subr.mxu0 0.0
        %6956 = vmatpush2.msra.mxu0 0.0
        %6957 = vmatprep.mubr.f32.mxu0 0.0
        %v6958 = vand.u32 %v6380, 4294901760
        %v6959 = vsub.f32 %v6380, %v6958
        %v6960 = vand.u32 %v6959, 4294901760
        %v6961 = vsub.f32 %v6959, %v6960
        %v6962 = vand.u32 %v6961, 4294901760
        %6963 = vmatmul.mubr.f32.gmra.mxu0 %v6962
        %v6964 = vpop.f32.mrf.mxu0
        %v6965 = vadd.f32 1e-05, %v6964
        %v6966 = vpop.f32.mrf.mxu0
        %6967 = vmatprep.mubr.f32.mxu0 0.0
        %v6968 = vand.u32 %v6383, 4294901760
        %v6969 = vsub.f32 %v6383, %v6968
        %v6970 = vand.u32 %v6969, 4294901760
        %v6971 = vsub.f32 %v6969, %v6970
        %v6972 = vand.u32 %v6971, 4294901760
        %6973 = vmatmul.mubr.f32.gmra.mxu0 %v6972
        %v6974 = vpop.f32.mrf.mxu0
        %v6975 = vadd.f32 1e-05, %v6974
        %v6976 = vpop.f32.mrf.mxu0
        %6977 = vdwg.mxu0
        %6978 = vmatprep.subr.mxu0 0.0
        %6979 = vmatpush1.msra.mxu0 0.0
        %6980 = vmatprep.subr.mxu0 0.0
        %6981 = vmatpush1.msra.mxu0 0.0
        %6982 = vmatprep.subr.mxu0 0.0
        %6983 = vmatpush1.msra.mxu0 0.0
        %6984 = vmatprep.subr.mxu0 0.0
        %6985 = vmatpush1.msra.mxu0 0.0
        %6986 = vmatprep.subr.mxu0 0.0
        %6987 = vmatpush1.msra.mxu0 0.0
        %6988 = vmatprep.subr.mxu0 0.0
        %6989 = vmatpush1.msra.mxu0 0.0
        %6990 = vmatprep.subr.mxu0 0.0
        %6991 = vmatpush1.msra.mxu0 0.0
        %6992 = vmatprep.subr.mxu0 0.0
        %6993 = vmatpush1.msra.mxu0 0.0
        %6994 = vmatprep.subr.mxu0 0.0
        %6995 = vmatpush1.msra.mxu0 0.0
        %6996 = vmatprep.subr.mxu0 0.0
        %6997 = vmatpush1.msra.mxu0 0.0
        %6998 = vmatprep.subr.mxu0 0.0
        %6999 = vmatpush1.msra.mxu0 0.0
        %7000 = vmatprep.subr.mxu0 0.0
        %7001 = vmatpush1.msra.mxu0 0.0
        %7002 = vmatprep.subr.mxu0 0.0
        %7003 = vmatpush1.msra.mxu0 0.0
        %7004 = vmatprep.subr.mxu0 0.0
        %7005 = vmatpush1.msra.mxu0 0.0
        %7006 = vmatprep.subr.mxu0 0.0
        %v7007 = vand.u32 %v6890, 4294901760
        %v7008 = vsub.f32 %v6890, %v7007
        %v7009 = vand.u32 %v7008, 4294901760
        %v7010 = vsub.f32 %v7008, %v7009
        %v7011 = vand.u32 %v7010, 4294901760
        %7012 = vmatpush1.msra.mxu0 %v7011
        %7013 = vmatprep.subr.mxu0 0.0
        %v7014 = vand.u32 %v6889, 4294901760
        %v7015 = vsub.f32 %v6889, %v7014
        %v7016 = vand.u32 %v7015, 4294901760
        %v7017 = vsub.f32 %v7015, %v7016
        %v7018 = vand.u32 %v7017, 4294901760
        %7019 = vmatpush1.msra.mxu0 %v7018
        %7020 = vmatprep.subr.mxu0 0.0
        %7021 = vmatpush2.msra.mxu0 0.0
        %7022 = vmatprep.subr.mxu0 0.0
        %7023 = vmatpush2.msra.mxu0 0.0
        %7024 = vmatprep.subr.mxu0 0.0
        %7025 = vmatpush2.msra.mxu0 0.0
        %7026 = vmatprep.subr.mxu0 0.0
        %7027 = vmatpush2.msra.mxu0 0.0
        %7028 = vmatprep.subr.mxu0 0.0
        %7029 = vmatpush2.msra.mxu0 0.0
        %7030 = vmatprep.subr.mxu0 0.0
        %7031 = vmatpush2.msra.mxu0 0.0
        %7032 = vmatprep.subr.mxu0 0.0
        %7033 = vmatpush2.msra.mxu0 0.0
        %7034 = vmatprep.subr.mxu0 0.0
        %7035 = vmatpush2.msra.mxu0 0.0
        %7036 = vmatprep.subr.mxu0 0.0
        %7037 = vmatpush2.msra.mxu0 0.0
        %7038 = vmatprep.subr.mxu0 0.0
        %7039 = vmatpush2.msra.mxu0 0.0
        %7040 = vmatprep.subr.mxu0 0.0
        %7041 = vmatpush2.msra.mxu0 0.0
        %7042 = vmatprep.subr.mxu0 0.0
        %7043 = vmatpush2.msra.mxu0 0.0
        %7044 = vmatprep.subr.mxu0 0.0
        %7045 = vmatpush2.msra.mxu0 0.0
        %7046 = vmatprep.subr.mxu0 0.0
        %7047 = vmatpush2.msra.mxu0 0.0
        %7048 = vmatprep.subr.mxu0 0.0
        %7049 = vmatpush2.msra.mxu0 0.0
        %7050 = vmatprep.subr.mxu0 0.0
        %7051 = vmatpush2.msra.mxu0 0.0
        %7052 = vmatprep.mubr.f32.mxu0 0.0
        %v7053 = vand.u32 %v6380, 4294901760
        %7054 = vmatmul.mubr.f32.gmra.mxu0 %v7053
        %v7055 = vpop.f32.mrf.mxu0
        %v7056 = vadd.f32 %v6965, %v7055
        %v7057 = vpop.f32.mrf.mxu0
        %7058 = vmatprep.mubr.f32.mxu0 0.0
        %v7059 = vand.u32 %v6383, 4294901760
        %7060 = vmatmul.mubr.f32.gmra.mxu0 %v7059
        %v7061 = vpop.f32.mrf.mxu0
        %v7062 = vadd.f32 %v6975, %v7061
        %v7063 = vpop.f32.mrf.mxu0
        %7064 = vdwg.mxu0
        %7065 = vmatprep.subr.mxu0 0.0
        %7066 = vmatpush1.msra.mxu0 0.0
        %7067 = vmatprep.subr.mxu0 0.0
        %7068 = vmatpush1.msra.mxu0 0.0
        %7069 = vmatprep.subr.mxu0 0.0
        %7070 = vmatpush1.msra.mxu0 0.0
        %7071 = vmatprep.subr.mxu0 0.0
        %7072 = vmatpush1.msra.mxu0 0.0
        %7073 = vmatprep.subr.mxu0 0.0
        %7074 = vmatpush1.msra.mxu0 0.0
        %7075 = vmatprep.subr.mxu0 0.0
        %7076 = vmatpush1.msra.mxu0 0.0
        %7077 = vmatprep.subr.mxu0 0.0
        %7078 = vmatpush1.msra.mxu0 0.0
        %7079 = vmatprep.subr.mxu0 0.0
        %7080 = vmatpush1.msra.mxu0 0.0
        %7081 = vmatprep.subr.mxu0 0.0
        %7082 = vmatpush1.msra.mxu0 0.0
        %7083 = vmatprep.subr.mxu0 0.0
        %7084 = vmatpush1.msra.mxu0 0.0
        %7085 = vmatprep.subr.mxu0 0.0
        %7086 = vmatpush1.msra.mxu0 0.0
        %7087 = vmatprep.subr.mxu0 0.0
        %7088 = vmatpush1.msra.mxu0 0.0
        %7089 = vmatprep.subr.mxu0 0.0
        %7090 = vmatpush1.msra.mxu0 0.0
        %7091 = vmatprep.subr.mxu0 0.0
        %7092 = vmatpush1.msra.mxu0 0.0
        %7093 = vmatprep.subr.mxu0 0.0
        %v7094 = vand.u32 %v6890, 4294901760
        %v7095 = vsub.f32 %v6890, %v7094
        %7096 = vmatpush1.msra.mxu0 %v7095
        %7097 = vmatprep.subr.mxu0 0.0
        %v7098 = vand.u32 %v6889, 4294901760
        %v7099 = vsub.f32 %v6889, %v7098
        %7100 = vmatpush1.msra.mxu0 %v7099
        %7101 = vmatprep.subr.mxu0 0.0
        %7102 = vmatpush2.msra.mxu0 0.0
        %7103 = vmatprep.subr.mxu0 0.0
        %7104 = vmatpush2.msra.mxu0 0.0
        %7105 = vmatprep.subr.mxu0 0.0
        %7106 = vmatpush2.msra.mxu0 0.0
        %7107 = vmatprep.subr.mxu0 0.0
        %7108 = vmatpush2.msra.mxu0 0.0
        %7109 = vmatprep.subr.mxu0 0.0
        %7110 = vmatpush2.msra.mxu0 0.0
        %7111 = vmatprep.subr.mxu0 0.0
        %7112 = vmatpush2.msra.mxu0 0.0
        %7113 = vmatprep.subr.mxu0 0.0
        %7114 = vmatpush2.msra.mxu0 0.0
        %7115 = vmatprep.subr.mxu0 0.0
        %7116 = vmatpush2.msra.mxu0 0.0
        %7117 = vmatprep.subr.mxu0 0.0
        %7118 = vmatpush2.msra.mxu0 0.0
        %7119 = vmatprep.subr.mxu0 0.0
        %7120 = vmatpush2.msra.mxu0 0.0
        %7121 = vmatprep.subr.mxu0 0.0
        %7122 = vmatpush2.msra.mxu0 0.0
        %7123 = vmatprep.subr.mxu0 0.0
        %7124 = vmatpush2.msra.mxu0 0.0
        %7125 = vmatprep.subr.mxu0 0.0
        %7126 = vmatpush2.msra.mxu0 0.0
        %7127 = vmatprep.subr.mxu0 0.0
        %7128 = vmatpush2.msra.mxu0 0.0
        %7129 = vmatprep.subr.mxu0 0.0
        %7130 = vmatpush2.msra.mxu0 0.0
        %7131 = vmatprep.subr.mxu0 0.0
        %7132 = vmatpush2.msra.mxu0 0.0
        %7133 = vmatprep.mubr.f32.mxu0 0.0
        %v7134 = vand.u32 %v6380, 4294901760
        %v7135 = vsub.f32 %v6380, %v7134
        %7136 = vmatmul.mubr.f32.gmra.mxu0 %v7135
        %v7137 = vpop.f32.mrf.mxu0
        %v7138 = vadd.f32 %v7056, %v7137
        %v7139 = vpop.f32.mrf.mxu0
        %7140 = vmatprep.mubr.f32.mxu0 0.0
        %v7141 = vand.u32 %v6383, 4294901760
        %v7142 = vsub.f32 %v6383, %v7141
        %7143 = vmatmul.mubr.f32.gmra.mxu0 %v7142
        %v7144 = vpop.f32.mrf.mxu0
        %v7145 = vadd.f32 %v7062, %v7144
        %v7146 = vpop.f32.mrf.mxu0
        %7147 = vdwg.mxu0
        %7148 = vmatprep.subr.mxu0 0.0
        %7149 = vmatpush1.msra.mxu0 0.0
        %7150 = vmatprep.subr.mxu0 0.0
        %7151 = vmatpush1.msra.mxu0 0.0
        %7152 = vmatprep.subr.mxu0 0.0
        %7153 = vmatpush1.msra.mxu0 0.0
        %7154 = vmatprep.subr.mxu0 0.0
        %7155 = vmatpush1.msra.mxu0 0.0
        %7156 = vmatprep.subr.mxu0 0.0
        %7157 = vmatpush1.msra.mxu0 0.0
        %7158 = vmatprep.subr.mxu0 0.0
        %7159 = vmatpush1.msra.mxu0 0.0
        %7160 = vmatprep.subr.mxu0 0.0
        %7161 = vmatpush1.msra.mxu0 0.0
        %7162 = vmatprep.subr.mxu0 0.0
        %7163 = vmatpush1.msra.mxu0 0.0
        %7164 = vmatprep.subr.mxu0 0.0
        %7165 = vmatpush1.msra.mxu0 0.0
        %7166 = vmatprep.subr.mxu0 0.0
        %7167 = vmatpush1.msra.mxu0 0.0
        %7168 = vmatprep.subr.mxu0 0.0
        %7169 = vmatpush1.msra.mxu0 0.0
        %7170 = vmatprep.subr.mxu0 0.0
        %7171 = vmatpush1.msra.mxu0 0.0
        %7172 = vmatprep.subr.mxu0 0.0
        %7173 = vmatpush1.msra.mxu0 0.0
        %7174 = vmatprep.subr.mxu0 0.0
        %7175 = vmatpush1.msra.mxu0 0.0
        %7176 = vmatprep.subr.mxu0 0.0
        %v7177 = vand.u32 %v6890, 4294901760
        %7178 = vmatpush1.msra.mxu0 %v7177
        %7179 = vmatprep.subr.mxu0 0.0
        %v7180 = vand.u32 %v6889, 4294901760
        %7181 = vmatpush1.msra.mxu0 %v7180
        %7182 = vmatprep.subr.mxu0 0.0
        %7183 = vmatpush2.msra.mxu0 0.0
        %7184 = vmatprep.subr.mxu0 0.0
        %7185 = vmatpush2.msra.mxu0 0.0
        %7186 = vmatprep.subr.mxu0 0.0
        %7187 = vmatpush2.msra.mxu0 0.0
        %7188 = vmatprep.subr.mxu0 0.0
        %7189 = vmatpush2.msra.mxu0 0.0
        %7190 = vmatprep.subr.mxu0 0.0
        %7191 = vmatpush2.msra.mxu0 0.0
        %7192 = vmatprep.subr.mxu0 0.0
        %7193 = vmatpush2.msra.mxu0 0.0
        %7194 = vmatprep.subr.mxu0 0.0
        %7195 = vmatpush2.msra.mxu0 0.0
        %7196 = vmatprep.subr.mxu0 0.0
        %7197 = vmatpush2.msra.mxu0 0.0
        %7198 = vmatprep.subr.mxu0 0.0
        %7199 = vmatpush2.msra.mxu0 0.0
        %7200 = vmatprep.subr.mxu0 0.0
        %7201 = vmatpush2.msra.mxu0 0.0
        %7202 = vmatprep.subr.mxu0 0.0
        %7203 = vmatpush2.msra.mxu0 0.0
        %7204 = vmatprep.subr.mxu0 0.0
        %7205 = vmatpush2.msra.mxu0 0.0
        %7206 = vmatprep.subr.mxu0 0.0
        %7207 = vmatpush2.msra.mxu0 0.0
        %7208 = vmatprep.subr.mxu0 0.0
        %7209 = vmatpush2.msra.mxu0 0.0
        %7210 = vmatprep.subr.mxu0 0.0
        %7211 = vmatpush2.msra.mxu0 0.0
        %7212 = vmatprep.subr.mxu0 0.0
        %7213 = vmatpush2.msra.mxu0 0.0
        %7214 = vmatprep.mubr.f32.mxu0 0.0
        %v7215 = vand.u32 %v6380, 4294901760
        %v7216 = vsub.f32 %v6380, %v7215
        %v7217 = vand.u32 %v7216, 4294901760
        %7218 = vmatmul.mubr.f32.gmra.mxu0 %v7217
        %v7219 = vpop.f32.mrf.mxu0
        %v7220 = vadd.f32 %v7138, %v7219
        %v7221 = vpop.f32.mrf.mxu0
        %7222 = vmatprep.mubr.f32.mxu0 0.0
        %v7223 = vand.u32 %v6383, 4294901760
        %v7224 = vsub.f32 %v6383, %v7223
        %v7225 = vand.u32 %v7224, 4294901760
        %7226 = vmatmul.mubr.f32.gmra.mxu0 %v7225
        %v7227 = vpop.f32.mrf.mxu0
        %v7228 = vadd.f32 %v7145, %v7227
        %v7229 = vpop.f32.mrf.mxu0
        %7230 = vdwg.mxu0
        %7231 = vmatprep.subr.mxu0 0.0
        %7232 = vmatpush1.msra.mxu0 0.0
        %7233 = vmatprep.subr.mxu0 0.0
        %7234 = vmatpush1.msra.mxu0 0.0
        %7235 = vmatprep.subr.mxu0 0.0
        %7236 = vmatpush1.msra.mxu0 0.0
        %7237 = vmatprep.subr.mxu0 0.0
        %7238 = vmatpush1.msra.mxu0 0.0
        %7239 = vmatprep.subr.mxu0 0.0
        %7240 = vmatpush1.msra.mxu0 0.0
        %7241 = vmatprep.subr.mxu0 0.0
        %7242 = vmatpush1.msra.mxu0 0.0
        %7243 = vmatprep.subr.mxu0 0.0
        %7244 = vmatpush1.msra.mxu0 0.0
        %7245 = vmatprep.subr.mxu0 0.0
        %7246 = vmatpush1.msra.mxu0 0.0
        %7247 = vmatprep.subr.mxu0 0.0
        %7248 = vmatpush1.msra.mxu0 0.0
        %7249 = vmatprep.subr.mxu0 0.0
        %7250 = vmatpush1.msra.mxu0 0.0
        %7251 = vmatprep.subr.mxu0 0.0
        %7252 = vmatpush1.msra.mxu0 0.0
        %7253 = vmatprep.subr.mxu0 0.0
        %7254 = vmatpush1.msra.mxu0 0.0
        %7255 = vmatprep.subr.mxu0 0.0
        %7256 = vmatpush1.msra.mxu0 0.0
        %7257 = vmatprep.subr.mxu0 0.0
        %7258 = vmatpush1.msra.mxu0 0.0
        %7259 = vmatprep.subr.mxu0 0.0
        %v7260 = vand.u32 %v6890, 4294901760
        %v7261 = vsub.f32 %v6890, %v7260
        %v7262 = vand.u32 %v7261, 4294901760
        %7263 = vmatpush1.msra.mxu0 %v7262
        %7264 = vmatprep.subr.mxu0 0.0
        %v7265 = vand.u32 %v6889, 4294901760
        %v7266 = vsub.f32 %v6889, %v7265
        %v7267 = vand.u32 %v7266, 4294901760
        %7268 = vmatpush1.msra.mxu0 %v7267
        %7269 = vmatprep.subr.mxu0 0.0
        %7270 = vmatpush2.msra.mxu0 0.0
        %7271 = vmatprep.subr.mxu0 0.0
        %7272 = vmatpush2.msra.mxu0 0.0
        %7273 = vmatprep.subr.mxu0 0.0
        %7274 = vmatpush2.msra.mxu0 0.0
        %7275 = vmatprep.subr.mxu0 0.0
        %7276 = vmatpush2.msra.mxu0 0.0
        %7277 = vmatprep.subr.mxu0 0.0
        %7278 = vmatpush2.msra.mxu0 0.0
        %7279 = vmatprep.subr.mxu0 0.0
        %7280 = vmatpush2.msra.mxu0 0.0
        %7281 = vmatprep.subr.mxu0 0.0
        %7282 = vmatpush2.msra.mxu0 0.0
        %7283 = vmatprep.subr.mxu0 0.0
        %7284 = vmatpush2.msra.mxu0 0.0
        %7285 = vmatprep.subr.mxu0 0.0
        %7286 = vmatpush2.msra.mxu0 0.0
        %7287 = vmatprep.subr.mxu0 0.0
        %7288 = vmatpush2.msra.mxu0 0.0
        %7289 = vmatprep.subr.mxu0 0.0
        %7290 = vmatpush2.msra.mxu0 0.0
        %7291 = vmatprep.subr.mxu0 0.0
        %7292 = vmatpush2.msra.mxu0 0.0
        %7293 = vmatprep.subr.mxu0 0.0
        %7294 = vmatpush2.msra.mxu0 0.0
        %7295 = vmatprep.subr.mxu0 0.0
        %7296 = vmatpush2.msra.mxu0 0.0
        %7297 = vmatprep.subr.mxu0 0.0
        %7298 = vmatpush2.msra.mxu0 0.0
        %7299 = vmatprep.subr.mxu0 0.0
        %7300 = vmatpush2.msra.mxu0 0.0
        %7301 = vmatprep.mubr.f32.mxu0 0.0
        %v7302 = vand.u32 %v6380, 4294901760
        %7303 = vmatmul.mubr.f32.gmra.mxu0 %v7302
        %v7304 = vpop.f32.mrf.mxu0
        %v7305 = vadd.f32 %v7220, %v7304
        %v7306 = vpop.f32.mrf.mxu0
        %7307 = vmatprep.mubr.f32.mxu0 0.0
        %v7308 = vand.u32 %v6383, 4294901760
        %7309 = vmatmul.mubr.f32.gmra.mxu0 %v7308
        %v7310 = vpop.f32.mrf.mxu0
        %v7311 = vadd.f32 %v7228, %v7310
        %v7312 = vpop.f32.mrf.mxu0
        %7313 = vdwg.mxu0
        %7314 = vmatprep.subr.mxu0 0.0
        %7315 = vmatpush1.msra.mxu0 0.0
        %7316 = vmatprep.subr.mxu0 0.0
        %7317 = vmatpush1.msra.mxu0 0.0
        %7318 = vmatprep.subr.mxu0 0.0
        %7319 = vmatpush1.msra.mxu0 0.0
        %7320 = vmatprep.subr.mxu0 0.0
        %7321 = vmatpush1.msra.mxu0 0.0
        %7322 = vmatprep.subr.mxu0 0.0
        %7323 = vmatpush1.msra.mxu0 0.0
        %7324 = vmatprep.subr.mxu0 0.0
        %7325 = vmatpush1.msra.mxu0 0.0
        %7326 = vmatprep.subr.mxu0 0.0
        %7327 = vmatpush1.msra.mxu0 0.0
        %7328 = vmatprep.subr.mxu0 0.0
        %7329 = vmatpush1.msra.mxu0 0.0
        %7330 = vmatprep.subr.mxu0 0.0
        %7331 = vmatpush1.msra.mxu0 0.0
        %7332 = vmatprep.subr.mxu0 0.0
        %7333 = vmatpush1.msra.mxu0 0.0
        %7334 = vmatprep.subr.mxu0 0.0
        %7335 = vmatpush1.msra.mxu0 0.0
        %7336 = vmatprep.subr.mxu0 0.0
        %7337 = vmatpush1.msra.mxu0 0.0
        %7338 = vmatprep.subr.mxu0 0.0
        %7339 = vmatpush1.msra.mxu0 0.0
        %7340 = vmatprep.subr.mxu0 0.0
        %7341 = vmatpush1.msra.mxu0 0.0
        %7342 = vmatprep.subr.mxu0 0.0
        %v7343 = vand.u32 %v6890, 4294901760
        %7344 = vmatpush1.msra.mxu0 %v7343
        %7345 = vmatprep.subr.mxu0 0.0
        %v7346 = vand.u32 %v6889, 4294901760
        %7347 = vmatpush1.msra.mxu0 %v7346
        %7348 = vmatprep.subr.mxu0 0.0
        %7349 = vmatpush2.msra.mxu0 0.0
        %7350 = vmatprep.subr.mxu0 0.0
        %7351 = vmatpush2.msra.mxu0 0.0
        %7352 = vmatprep.subr.mxu0 0.0
        %7353 = vmatpush2.msra.mxu0 0.0
        %7354 = vmatprep.subr.mxu0 0.0
        %7355 = vmatpush2.msra.mxu0 0.0
        %7356 = vmatprep.subr.mxu0 0.0
        %7357 = vmatpush2.msra.mxu0 0.0
        %7358 = vmatprep.subr.mxu0 0.0
        %7359 = vmatpush2.msra.mxu0 0.0
        %7360 = vmatprep.subr.mxu0 0.0
        %7361 = vmatpush2.msra.mxu0 0.0
        %7362 = vmatprep.subr.mxu0 0.0
        %7363 = vmatpush2.msra.mxu0 0.0
        %7364 = vmatprep.subr.mxu0 0.0
        %7365 = vmatpush2.msra.mxu0 0.0
        %7366 = vmatprep.subr.mxu0 0.0
        %7367 = vmatpush2.msra.mxu0 0.0
        %7368 = vmatprep.subr.mxu0 0.0
        %7369 = vmatpush2.msra.mxu0 0.0
        %7370 = vmatprep.subr.mxu0 0.0
        %7371 = vmatpush2.msra.mxu0 0.0
        %7372 = vmatprep.subr.mxu0 0.0
        %7373 = vmatpush2.msra.mxu0 0.0
        %7374 = vmatprep.subr.mxu0 0.0
        %7375 = vmatpush2.msra.mxu0 0.0
        %7376 = vmatprep.subr.mxu0 0.0
        %7377 = vmatpush2.msra.mxu0 0.0
        %7378 = vmatprep.subr.mxu0 0.0
        %7379 = vmatpush2.msra.mxu0 0.0
        %7380 = vmatprep.mubr.f32.mxu0 0.0
        %v7381 = vand.u32 %v6380, 4294901760
        %7382 = vmatmul.mubr.f32.gmra.mxu0 %v7381
        %v7383 = vpop.f32.mrf.mxu0
        %v7384 = vadd.f32 %v7305, %v7383
        %v7385 = vpop.f32.mrf.mxu0
        %7386 = vmatprep.mubr.f32.mxu0 0.0
        %v7387 = vand.u32 %v6383, 4294901760
        %7388 = vmatmul.mubr.f32.gmra.mxu0 %v7387
        %v7389 = vpop.f32.mrf.mxu0
        %v7390 = vadd.f32 %v7311, %v7389
        %v7391 = vpop.f32.mrf.mxu0
        %7392 = vdwg.mxu0
        %v7393 = vrsqrt.pop %v7384
        %v7394 = vrsqrt.pop %v7390
        %v7395 = vmul.f32 %v6887, %v7393
        %v7396 = vmul.f32 %v6888, %v7394
        %v7397 = vld [vmem:[%s8] sm:$0xff]
        %v7398 = vld [vmem:[%s8 + $0x8] sm:$0xff]
        %7400 = vset.pattern.permute.xlu0 0
        %7401 = vperm.xlu0 %7400, %v7397
        %v7402 = vpop.permute.xlu0 %7401
        %7405 = vset.pattern.permute.xlu0 0
        %7406 = vperm.xlu0 %7405, %v7398
        %v7407 = vpop.permute.xlu0 %7406
        %v7409 = vmul.f32 %v7395, %v7402
        %v7410 = vmul.f32 %v7396, %v7407
        %v7411 = vld [vmem:[%s9] sm:$0xff]
        %v7412 = vld [vmem:[%s9 + $0x8] sm:$0xff]
        %7414 = vset.pattern.permute.xlu0 0
        %7415 = vperm.xlu0 %7414, %v7411
        %v7416 = vpop.permute.xlu0 %7415
        %7419 = vset.pattern.permute.xlu0 0
        %7420 = vperm.xlu0 %7419, %v7412
        %v7421 = vpop.permute.xlu0 %7420
        %v7423 = vadd.f32 %v7409, %v7416
        %v7424 = vadd.f32 %v7410, %v7421
        %7425 = vst [vmem:[%s517] sm:$0xff] %v7423
        %7426 = vst [vmem:[%s517 + $0x8] sm:$0xff] %v7424
        %s7427 = sand.u32 %s278, 1
        %s7428 = scalar_lea.sflag [#allocation4], %s7427
        %s7429 = sand.u32 %s278, 1
        %s7430 = smul.addr %s7429, 16
        %s7431 = scalar_lea.vmem [#allocation3], %s7430
        %s7432 = sand.u32 %s306, 1
        %s7433 = scalar_lea.sflag [#allocation6], %s7432
        %s7434 = sand.u32 %s306, 1
        %s7435 = smul.addr %s7434, 24
        %s7436 = scalar_lea.vmem [#allocation5], %s7435
        // Predicated region
        $region99: #{tpu_custom_call.1} parent=93 // pred_check
          %p7437 = pneg %p288
        $region100: #{tpu_custom_call.1} parent=93 // pred_check_branch
          %7439 = sbr.rel (%p7437) target = $region102
        $region101: #{tpu_custom_call.1} parent=93 // pred_region
          %s7441 = ssub.s32 256, 256
          %7442 = vsyncadd %s7428, %s7441
          %s7443 = smul.addr %s33, 4
          %s7444 = sadd.s32 %s34, %s7443
          %s7445 = smul.addr %s7444, 128
          %s7446 = scalar_lea.hbm %s10, %s7445
          %s7447 = sshll.u32 %s7431, 4
          %s7448 = int_to_ptr.vmem [resolvable:$true] %s7447
          %7453 = dma.vmem_to_hbm [thread:$0]  %s7448, 256, %s7446, %s7428, 128, 256, 8
        $region102: #{tpu_custom_call.1} parent=93 // pred_fallthru
          _
        // Predicated region
        $region103: #{tpu_custom_call.1} parent=93 // pred_check
          %p7454 = pneg %p316
        $region104: #{tpu_custom_call.1} parent=93 // pred_check_branch
          %7456 = sbr.rel (%p7454) target = $region106
        $region105: #{tpu_custom_call.1} parent=93 // pred_region
          %s7458 = ssub.s32 384, 384
          %7459 = vsyncadd %s7433, %s7458
          %s7460 = smul.addr %s33, 6
          %s7461 = sadd.s32 %s34, %s7460
          %s7462 = smul.addr %s7461, 128
          %s7463 = scalar_lea.hbm %s11, %s7462
          %s7464 = sshll.u32 %s7436, 4
          %s7465 = int_to_ptr.vmem [resolvable:$true] %s7464
          %7470 = dma.vmem_to_hbm [thread:$0]  %s7465, 384, %s7463, %s7433, 128, 256, 8
        $region106: #{tpu_custom_call.1} parent=93 // pred_fallthru
          _
      $region94: #{tpu_custom_call.1} parent=5 // pred_fallthru
        _
      %p7471 = scmp.le.s32.totalorder 2, %s24
      // Predicated region
      $region107: #{tpu_custom_call.1} parent=5 // pred_check
        %p7472 = pneg %p7471
      $region108: #{tpu_custom_call.1} parent=5 // pred_check_branch
        %7474 = sbr.rel (%p7472) target = $region110
      $region109: #{tpu_custom_call.1} parent=5 // pred_region
        %s7475 = ssub.s32 %s24, 2
        // Predicated region
        $region111: #{tpu_custom_call.1} parent=109 // pred_check
          %p7476 = pneg %p294
        $region112: #{tpu_custom_call.1} parent=109 // pred_check_branch
          %7478 = sbr.rel (%p7476) target = $region114
        $region113: #{tpu_custom_call.1} parent=109 // pred_region
          %s7479 = sand.u32 %s279, 1
          %s7480 = scalar_lea.sflag [#allocation4], %s7479
          %s7481 = sand.u32 %s279, 1
          %s7482 = smul.addr %s7481, 16
          %s7483 = scalar_lea.vmem [#allocation3], %s7482
          %7484 = dma.done %s7480, 256
        $region114: #{tpu_custom_call.1} parent=109 // pred_fallthru
          _
        // Predicated region
        $region115: #{tpu_custom_call.1} parent=109 // pred_check
          %p7485 = pneg %p322
        $region116: #{tpu_custom_call.1} parent=109 // pred_check_branch
          %7487 = sbr.rel (%p7485) target = $region118
        $region117: #{tpu_custom_call.1} parent=109 // pred_region
          %s7488 = sand.u32 %s307, 1
          %s7489 = scalar_lea.sflag [#allocation6], %s7488
          %s7490 = sand.u32 %s307, 1
          %s7491 = smul.addr %s7490, 24
          %s7492 = scalar_lea.vmem [#allocation5], %s7491
          %7493 = dma.done %s7489, 384
        $region118: #{tpu_custom_call.1} parent=109 // pred_fallthru
          _
      $region110: #{tpu_custom_call.1} parent=5 // pred_fallthru
        _
    $region6: #{tpu_custom_call.1} parent=1 // loop_footer
      %s28 = sadd.s32 1, %s24
    $region7: #{tpu_custom_call.1} parent=1 // loop_footer_branch
      %23 = sbr.rel target = $region3
    $region8: #{tpu_custom_call.1} parent=1 // loop_exit
      _
    %7494 = vsyncpa [#allocation4], 1
    %s7495 = scalar_lea.sflag [#allocation4], 1
    %7496 = vsyncpa %s7495, 1
    %7497 = vsyncpa [#allocation6], 1
    %s7498 = scalar_lea.sflag [#allocation6], 1
    %7499 = vsyncpa %s7498, 1

</llo_original>
